<compile_context>
chip_gen: v5e
topology: v5e:2x2
jax: 0.10.0
libtpu: 0.0.40
codegen_flags: <defaults>
</compile_context>

<pallas_src>
import functools

import jax
import jax.numpy as jnp
from jax import lax
from jax.experimental import pallas as pl
from jax.experimental.pallas import tpu as pltpu


def _round_up(x, m):
    return -(-x // m) * m


def _vmem_limit_bytes(needed):
    """Explicit scoped-VMEM limit: cover `needed` (>= 32 MiB default) but stay well under the
    physical capacity of the current generation (64 MiB on v7x, 128 MiB on v5e/v6e)."""
    try:
        cap = int(pltpu.get_tpu_info().vmem_capacity_bytes)
    except Exception:  # interpret mode / older jax: conservative fallback
        cap = 64 << 20
    hi = (cap * 3) // 4
    return int(max(1 << 20, min(max(int(needed), 32 << 20), hi)))


# ----------------------------------------------------------------------------- kernels ---


def _conv_stats_kernel(x_ref, w_ref, raw_ref, stats_ref, patch_ref, *, K, Wp, W, Cin):
    """Phase 1: conv of one (image, row-block) tile + per-image BN partial sums.

    x_ref:     (L_in, Cin)        flattened zero-padded NHWC image (resident per image)
    w_ref:     (K*K*Cin, Cout_p)  im2col weight matrix (Cout zero-padded to 128 lanes)
    raw_ref:   (TM, Cout_p)       raw conv tile (compute_dtype)
    stats_ref: (2, Cout_p) f32    row 0 = sum, row 1 = sum of squares; resident across hb
    patch_ref: (TM, K*K*Cin)      VMEM scratch (None when K == 1)
    """
    TM = raw_ref.shape[0]
    hb = pl.program_id(1)
    base = hb * TM                       # flattened (h*Wp + w') start row of this tile
    if TM % 8 == 0:
        base = pl.multiple_of(base, 8)

    if K == 1:
        patch = x_ref[pl.ds(base, TM), :]
    else:
        # Fused im2col: scatter the K*K shifted slices into the patch scratch, then one
        # deep dot (contraction = K*K*Cin) instead of K*K shallow tap-dots.
        for t in range(K * K):
            kh, kw = divmod(t, K)
            patch_ref[:, t * Cin:(t + 1) * Cin] = x_ref[pl.ds(base + kh * Wp + kw, TM), :]
        patch = patch_ref[...]

    acc = jnp.dot(patch, w_ref[...], preferred_element_type=jnp.float32)
    raw_ref[...] = acc.astype(raw_ref.dtype)

    # BN partials from the f32 accumulator (before the cast), excluding the padded-width
    # garbage columns.  Valid because the tile base is always a multiple of Wp (asserted
    # in the wrapper), so the local row index mod Wp is the column coordinate w'.
    if Wp == W:
        masked = acc
    else:
        col = lax.broadcasted_iota(jnp.int32, (TM, 1), 0) % Wp
        masked = jnp.where(col < W, acc, 0.0)
    s = jnp.sum(masked, axis=0, keepdims=True)
    sq = jnp.sum(masked * masked, axis=0, keepdims=True)

    @pl.when(hb == 0)
    def _():
        stats_ref[0:1, :] = s
        stats_ref[1:2, :] = sq

    @pl.when(hb > 0)
    def _():
        stats_ref[0:1, :] = stats_ref[0:1, :] + s
        stats_ref[1:2, :] = stats_ref[1:2, :] + sq


def _bn_relu_kernel(raw_ref, ss_ref, out_ref):
    """Phase 2: y = relu(raw * scale + shift) with per-channel (folded) scale/shift."""
    y = raw_ref[...].astype(jnp.float32) * ss_ref[0:1, :] + ss_ref[1:2, :]
    out_ref[...] = jnp.maximum(y, 0.0).astype(out_ref.dtype)


# ----------------------------------------------------------------------------- wrappers --


def basic_conv2d(x, weight, gamma, beta, *, padding, eps=1e-5,
                 compute_dtype=jnp.bfloat16, acc_bytes=128 * 1024, max_phase2_rows=2048):
    """BasicConv2d forward: Conv2d -> training-mode BatchNorm2d(eps=1e-5) -> ReLU.

    x: (N, H, W, Cin) NHWC.  weight: (Cout, Cin, K, K) OIHW.  Returns (N, H, W, Cout) in
    compute_dtype.  Stride-1 'same' convs only (all Inception2d uses K == 2*padding + 1).
    The nn.Conv2d bias cancels exactly under training-mode batch norm and is omitted.
    """
    N, H, W, Cin = x.shape
    Cout, Cin_w, KH, KW = weight.shape
    assert Cin == Cin_w and KH == KW
    K, P = KH, padding
    assert K == 2 * P + 1, "only stride-1 'same' convs (as used by Inception2d)"

    # ---- padded, width-flattened image layout -------------------------------------------
    # Output pixel base r = h*Wp + w'; tap (kh,kw) reads flattened padded row r + kh*Wp + kw.
    # One extra bottom pad row keeps the reads of the (discarded) w' >= W columns in-bounds.
    Wp0 = W + 2 * P
    Wp8 = _round_up(Wp0, 8)

    def _legal(wp):  # some whole-row block must satisfy the (8,128) tiling constraint
        return any(H % th == 0 and (th * wp) % 8 == 0 for th in range(1, H + 1))

    # Round Wp up to a multiple of 8 (sublane-aligned tile bases / tap offsets) only when
    # the extra garbage columns are a small fraction, or when required for a legal block.
    Wp = Wp8 if (Wp8 == Wp0 or (Wp8 - Wp0) * 8 <= Wp0 or not _legal(Wp0)) else Wp0
    pad_right = Wp - W - P
    pad_bot = P + 1 if K > 1 else 0
    Hp = H + P + pad_bot
    L_in, L_out = Hp * Wp, H * Wp
    x_flat = jnp.pad(x, ((0, 0), (P, pad_bot), (P, pad_right), (0, 0))) \
                .reshape(N, L_in, Cin).astype(compute_dtype)

    # ---- lane-dense, im2col-ordered weights ----------------------------------------------
    Cout_pad = _round_up(Cout, 128)
    w_mat = jnp.transpose(weight, (2, 3, 1, 0)).reshape(K * K * Cin, Cout)  # (kh,kw,ci),co
    w_mat = jnp.pad(w_mat, ((0, 0), (0, Cout_pad - Cout))).astype(compute_dtype)

    # ---- phase-1 row block: keep the f32 matmul result <= acc_bytes (no vreg spill) ------
    max_rows = max(Wp, acc_bytes // (4 * Cout_pad))
    TH = 0
    for th in range(1, H + 1):
        if H % th == 0 and th * Wp <= max_rows and (th * Wp) % 8 == 0:
            TH = th
    if TH == 0:  # no aligned block within budget: smallest aligned block, else whole image
        for th in range(1, H + 1):
            if H % th == 0 and (th * Wp) % 8 == 0:
                TH = th
                break
        TH = TH or H
    TM = TH * Wp
    HB = L_out // TM
    assert TM % Wp == 0, "BN-statistics mask requires Wp-aligned tile bases"

    csize = jnp.dtype(compute_dtype).itemsize
    if K == 1:
        kernel1 = lambda x_r, w_r, raw_r, st_r: _conv_stats_kernel(
            x_r, w_r, raw_r, st_r, None, K=K, Wp=Wp, W=W, Cin=Cin)
        scratch = []
        patch_bytes = 0
    else:
        kernel1 = functools.partial(_conv_stats_kernel, K=K, Wp=Wp, W=W, Cin=Cin)
        scratch = [pltpu.VMEM((TM, K * K * Cin), compute_dtype)]
        patch_bytes = TM * K * K * Cin * csize

    vmem1 = _vmem_limit_bytes(
        2 * L_in * Cin * csize                 # resident image (double-buffered over n)
        + 2 * K * K * Cin * Cout_pad * csize   # weights
        + 2 * TM * Cout_pad * csize            # raw output tiles
        + 2 * 2 * Cout_pad * 4                 # stats
        + patch_bytes                          # im2col scratch
        + 2 * TM * Cout_pad * 4                # f32 matmul result + slack
        + (2 << 20))

    cost1 = pl.CostEstimate(
        flops=2 * N * L_out * (K * K * Cin) * Cout_pad,
        transcendentals=0,
        bytes_accessed=(N * L_in * Cin + K * K * Cin * Cout_pad
                        + N * L_out * Cout_pad) * csize + N * 2 * Cout_pad * 4)

    # ---- phase 1: fused-im2col conv (single deep dot) + per-image BN partial sums --------
    raw, stats = pl.pallas_call(
        kernel1,
        out_shape=(jax.ShapeDtypeStruct((N, L_out, Cout_pad), compute_dtype),
                   jax.ShapeDtypeStruct((N, 2, Cout_pad), jnp.float32)),
        grid=(N, HB),
        in_specs=[
            pl.BlockSpec((None, L_in, Cin), lambda n, hb: (n, 0, 0)),       # resident image
            pl.BlockSpec((K * K * Cin, Cout_pad), lambda n, hb: (0, 0)),    # resident weights
        ],
        out_specs=(
            pl.BlockSpec((None, TM, Cout_pad), lambda n, hb: (n, hb, 0)),
            pl.BlockSpec((None, 2, Cout_pad), lambda n, hb: (n, 0, 0)),     # hb-resident acc
        ),
        scratch_shapes=scratch,
        compiler_params=pltpu.CompilerParams(
            dimension_semantics=("parallel", "arbitrary"),
            vmem_limit_bytes=vmem1),
        cost_estimate=cost1,
    )(x_flat, w_mat)

    # ---- fold batch statistics into per-channel scale/shift (tiny, per-channel only) -----
    cnt = jnp.float32(N * H * W)
    mean = jnp.sum(stats[:, 0, :], axis=0) / cnt
    var = jnp.maximum(jnp.sum(stats[:, 1, :], axis=0) / cnt - mean * mean, 0.0)
    gp = jnp.pad(gamma.astype(jnp.float32), (0, Cout_pad - Cout))
    bp = jnp.pad(beta.astype(jnp.float32), (0, Cout_pad - Cout))
    scale = gp * lax.rsqrt(var + eps)
    shift = bp - mean * scale
    ss = jnp.stack([scale, shift], axis=0)                                  # (2, Cout_pad)

    # ---- phase 2: scale/shift + ReLU; large streaming tiles, raw aliased onto the output -
    m = 1
    for cand in range(1, HB + 1):
        if HB % cand == 0 and cand * TM <= max(max_phase2_rows, TM):
            m = cand
    TM2 = m * TM
    MB2 = L_out // TM2

    vmem2 = _vmem_limit_bytes(4 * TM2 * Cout_pad * csize + 2 * Cout_pad * 4 + (1 << 20))

    out = pl.pallas_call(
        _bn_relu_kernel,
        out_shape=jax.ShapeDtypeStruct((N, L_out, Cout_pad), compute_dtype),
        grid=(N, MB2),
        in_specs=[pl.BlockSpec((None, TM2, Cout_pad), lambda n, mb: (n, mb, 0)),
                  pl.BlockSpec((2, Cout_pad), lambda n, mb: (0, 0))],
        out_specs=pl.BlockSpec((None, TM2, Cout_pad), lambda n, mb: (n, mb, 0)),
        input_output_aliases={0: 0},            # reuse raw's HBM buffer in place
        compiler_params=pltpu.CompilerParams(
            dimension_semantics=("parallel", "parallel"),
            vmem_limit_bytes=vmem2),
    )(raw, ss)

    # drop padded-width columns and padded channels; stay NHWC (lane-dense) for next layer
    return out.reshape(N, H, Wp, Cout_pad)[:, :, :W, :Cout]


def inception2d(x_nchw, params, *, compute_dtype=jnp.bfloat16):
    """Inception2d forward. x_nchw: (N, C, H, W). params[name] = (w, bias, gamma, beta)."""
    x = jnp.transpose(x_nchw, (0, 2, 3, 1))     # NCHW -> NHWC once, at the module boundary

    def conv(w, g, be, inp, padding):
        return basic_conv2d(inp, w, g, be, padding=padding, compute_dtype=compute_dtype)

    # Fuse the three padding-0 1x1 convs that read x into one conv (BN is per-channel,
    # so channel-concatenating weights/gamma/beta is exact): x is read/padded/cast once.
    w1, _, g1, be1 = params["branch1x1"]
    wr3, _, gr3, ber3 = params["branch3x3_reduce"]
    wr4, _, gr4, ber4 = params["branch3x3_reduce_2"]
    out_ch, mid = w1.shape[0], wr3.shape[0]
    fused = conv(jnp.concatenate([w1, wr3, wr4], axis=0),
                 jnp.concatenate([g1, gr3, gr4], axis=0),
                 jnp.concatenate([be1, ber3, ber4], axis=0), x, 0)
    b1 = fused[..., :out_ch]
    r3 = fused[..., out_ch:out_ch + mid]
    r4 = fused[..., out_ch + mid:out_ch + 2 * mid]

    # avg_pool2d(x,3,1,1) (count_include_pad) + 1x1 conv == one 3x3 conv with per-tap w/9:
    # the pooled activation never exists in HBM.
    w2, _, g2, be2 = params["branch1x1_2"]
    b2 = conv(jnp.tile(w2, (1, 1, 3, 3)) / 9.0, g2, be2, x, 1)

    w3, _, g3, be3 = params["branch3x3"]
    b3 = conv(w3, g3, be3, r3, 1)

    w42, _, g42, be42 = params["branch3x3_2"]
    w43, _, g43, be43 = params["branch3x3_3"]
    b4 = conv(w43, g43, be43, conv(w42, g42, be42, r4, 1), 1)

    out = jnp.concatenate([b1, b2, b3, b4], axis=-1).astype(x_nchw.dtype)
    return jnp.transpose(out, (0, 3, 1, 2))      # back to NCHW at the module boundary


# --------------------------------------------------------------------------- reference ---


def _ref_basic(x, w, b, g, be, padding):
    y = lax.conv_general_dilated(
        x, w, (1, 1), ((padding, padding), (padding, padding)),
        dimension_numbers=("NCHW", "OIHW", "NCHW"), precision=lax.Precision.HIGHEST)
    y = y + b.reshape(1, -1, 1, 1)
    m = y.mean(axis=(0, 2, 3), keepdims=True)
    v = ((y - m) ** 2).mean(axis=(0, 2, 3), keepdims=True)
    y = (y - m) / jnp.sqrt(v + 1e-5) * g.reshape(1, -1, 1, 1) + be.reshape(1, -1, 1, 1)
    return jnp.maximum(y, 0.0)


def _ref_inception(x, params):
    def c(name, inp, padding):
        w, b, g, be = params[name]
        return _ref_basic(inp, w, b, g, be, padding)

    b1 = c("branch1x1", x, 0)
    pooled = lax.reduce_window(x, 0.0, lax.add, (1, 1, 3, 3), (1, 1, 1, 1),
                               ((0, 0), (0, 0), (1, 1), (1, 1))) / 9.0
    b2 = c("branch1x1_2", pooled, 0)
    b3 = c("branch3x3", c("branch3x3_reduce", x, 0), 1)
    b4 = c("branch3x3_3", c("branch3x3_2", c("branch3x3_reduce_2", x, 0), 1), 1)
    return jnp.concatenate([b1, b2, b3, b4], axis=1)


# --------------------------------------------------------------------------------- main --


if __name__ == "__main__":
    N, Cin, H, W = 2, 32, 16, 16
    mid, out_ch = Cin // 8, Cin // 4

    layer_defs = {
        "branch1x1":          (Cin, out_ch, 1),
        "branch1x1_2":        (Cin, out_ch, 1),
        "branch3x3_reduce":   (Cin, mid, 1),
        "branch3x3":          (mid, out_ch, 3),
        "branch3x3_reduce_2": (Cin, mid, 1),
        "branch3x3_2":        (mid, out_ch, 3),
        "branch3x3_3":        (out_ch, out_ch, 3),
    }

    def make_params(key, cin, cout, k):
        kw, kb, kg, kbe = jax.random.split(key, 4)
        w = 0.1 * jax.random.normal(kw, (cout, cin, k, k), jnp.float32)
        b = 0.1 * jax.random.normal(kb, (cout,), jnp.float32)
        g = 1.0 + 0.1 * jax.random.normal(kg, (cout,), jnp.float32)
        be = 0.1 * jax.random.normal(kbe, (cout,), jnp.float32)
        return (w, b, g, be)

    key = jax.random.PRNGKey(0)
    keys = jax.random.split(key, len(layer_defs) + 1)
    params = {name: make_params(k, *d)
              for (name, d), k in zip(layer_defs.items(), keys[:-1])}
    x = jax.random.normal(keys[-1], (N, Cin, H, W), jnp.float32)

    ref = _ref_inception(x, params)

    # f32 MXU path: strict check against the PyTorch-style reference.
    out_f32 = jax.block_until_ready(
        jax.jit(functools.partial(inception2d, compute_dtype=jnp.float32))(x, params))
    assert out_f32.shape == (N, Cin, H, W), out_f32.shape
    assert jnp.allclose(out_f32, ref, atol=1e-3, rtol=1e-3), \
        float(jnp.max(jnp.abs(out_f32 - ref)))

    # bf16 fast path (bf16 operands + bf16 raw/inter-layer activations, f32 accumulation):
    # loose smoke check only -- three stacked convs of bf16-quantized intermediates.
    out_bf16 = jax.block_until_ready(
        jax.jit(functools.partial(inception2d, compute_dtype=jnp.bfloat16))(x, params))
    assert out_bf16.shape == (N, Cin, H, W), out_bf16.shape
    assert jnp.allclose(out_bf16, ref, atol=0.5, rtol=0.5), \
        float(jnp.max(jnp.abs(out_bf16 - ref)))

    print("KERNEL_OK")
</pallas_src>

<mosaic_0001>
module attributes {stable_mosaic.version = 11 : i64} {
  func.func @_lambda_(%arg0: i32, %arg1: i32, %arg2: memref<1x256x32xf32, #tpu.memory_space<vmem>>, %arg3: memref<32x128xf32, #tpu.memory_space<vmem>>, %arg4: memref<1x256x128xf32, #tpu.memory_space<vmem>>, %arg5: memref<1x2x128xf32, #tpu.memory_space<vmem>>) attributes {dimension_semantics = [#tpu.dimension_semantics<parallel>, #tpu.dimension_semantics<arbitrary>], iteration_bounds = array<i64: 2, 1>, scalar_prefetch = 0 : i64, scratch_operands = 0 : i64, tpu.core_type = #tpu.core_type<tc>, window_params = [{transform_indices = @transform_0, window_bounds = array<i64: 1, 256, 32>}, {pipeline_mode = #tpu.pipeline_mode<synchronous>, transform_indices = @transform_1, window_bounds = array<i64: 32, 128>}, {transform_indices = @transform_2, window_bounds = array<i64: 1, 256, 128>}, {transform_indices = @transform_3, window_bounds = array<i64: 1, 2, 128>}]} {
    %c256_i32 = arith.constant 256 : i32
    %0 = arith.muli %arg1, %c256_i32 : i32
    %1 = tpu.assume_multiple %0, 8 : i32
    %c0 = arith.constant 0 : index
    %2 = arith.index_cast %1 : i32 to index
    %c0_0 = arith.constant 0 : index
    %3 = vector.load %arg2[%c0, %2, %c0_0] : memref<1x256x32xf32, #tpu.memory_space<vmem>>, vector<1x256x32xf32>
    %4 = vector.shape_cast %3 : vector<1x256x32xf32> to vector<256x32xf32>
    %c0_1 = arith.constant 0 : index
    %c0_2 = arith.constant 0 : index
    %5 = vector.load %arg3[%c0_1, %c0_2] : memref<32x128xf32, #tpu.memory_space<vmem>>, vector<32x128xf32>
    %cst = arith.constant dense<0.000000e+00> : vector<256x128xf32>
    %6 = tpu.matmul %4, %5, %cst {dimension_numbers = #tpu.dot_dimension_numbers<[1], [0], [0], [1], [0, 0, 1, 1], [], []>} : vector<256x32xf32>, vector<32x128xf32>, vector<256x128xf32> -> vector<256x128xf32>
    %c0_3 = arith.constant 0 : index
    %c0_4 = arith.constant 0 : index
    %c0_5 = arith.constant 0 : index
    %7 = vector.load %arg4[%c0_3, %c0_4, %c0_5] : memref<1x256x128xf32, #tpu.memory_space<vmem>>, vector<1x256x128xf32>
    %8 = vector.shape_cast %7 : vector<1x256x128xf32> to vector<256x128xf32>
    %9 = vector.shape_cast %6 : vector<256x128xf32> to vector<1x256x128xf32>
    tpu.vector_store %arg4[%c0_3, %c0_4, %c0_5], %9 {strides = array<i32>} : memref<1x256x128xf32, #tpu.memory_space<vmem>>, vector<1x256x128xf32>,
    %cst_6 = arith.constant dense<0.000000e+00> : vector<128xf32>
    %10 = vector.multi_reduction <add>, %6, %cst_6 [0] : vector<256x128xf32> to vector<128xf32>
    %11 = vector.shape_cast %10 : vector<128xf32> to vector<1x128xf32>
    %12 = arith.mulf %6, %6 : vector<256x128xf32>
    %cst_7 = arith.constant dense<0.000000e+00> : vector<128xf32>
    %13 = vector.multi_reduction <add>, %12, %cst_7 [0] : vector<256x128xf32> to vector<128xf32>
    %14 = vector.shape_cast %13 : vector<128xf32> to vector<1x128xf32>
    %c0_i32 = arith.constant 0 : i32
    %15 = arith.cmpi eq, %arg1, %c0_i32 : i32
    %16 = arith.extui %15 : i1 to i32
    %c0_i32_8 = arith.constant 0 : i32
    %17 = arith.cmpi ne, %16, %c0_i32_8 : i32
    scf.if %17 {
      %c0_11 = arith.constant 0 : index
      %c0_12 = arith.constant 0 : index
      %c0_13 = arith.constant 0 : index
      %21 = vector.load %arg5[%c0_11, %c0_12, %c0_13] : memref<1x2x128xf32, #tpu.memory_space<vmem>>, vector<1x1x128xf32>
      %22 = vector.shape_cast %21 : vector<1x1x128xf32> to vector<1x128xf32>
      %23 = vector.shape_cast %11 : vector<1x128xf32> to vector<1x1x128xf32>
      tpu.vector_store %arg5[%c0_11, %c0_12, %c0_13], %23 {strides = array<i32>} : memref<1x2x128xf32, #tpu.memory_space<vmem>>, vector<1x1x128xf32>,
      %c0_14 = arith.constant 0 : index
      %c1 = arith.constant 1 : index
      %c0_15 = arith.constant 0 : index
      %24 = vector.load %arg5[%c0_14, %c1, %c0_15] : memref<1x2x128xf32, #tpu.memory_space<vmem>>, vector<1x1x128xf32>
      %25 = vector.shape_cast %24 : vector<1x1x128xf32> to vector<1x128xf32>
      %26 = vector.shape_cast %14 : vector<1x128xf32> to vector<1x1x128xf32>
      tpu.vector_store %arg5[%c0_14, %c1, %c0_15], %26 {strides = array<i32>} : memref<1x2x128xf32, #tpu.memory_space<vmem>>, vector<1x1x128xf32>,
    } else {
    }
    %c0_i32_9 = arith.constant 0 : i32
    %18 = arith.cmpi sgt, %arg1, %c0_i32_9 : i32
    %19 = arith.extui %18 : i1 to i32
    %c0_i32_10 = arith.constant 0 : i32
    %20 = arith.cmpi ne, %19, %c0_i32_10 : i32
    scf.if %20 {
      %c0_11 = arith.constant 0 : index
      %c0_12 = arith.constant 0 : index
      %c0_13 = arith.constant 0 : index
      %21 = vector.load %arg5[%c0_11, %c0_12, %c0_13] : memref<1x2x128xf32, #tpu.memory_space<vmem>>, vector<1x1x128xf32>
      %22 = vector.shape_cast %21 : vector<1x1x128xf32> to vector<1x128xf32>
      %23 = arith.addf %22, %11 : vector<1x128xf32>
      %c0_14 = arith.constant 0 : index
      %c0_15 = arith.constant 0 : index
      %c0_16 = arith.constant 0 : index
      %24 = vector.load %arg5[%c0_14, %c0_15, %c0_16] : memref<1x2x128xf32, #tpu.memory_space<vmem>>, vector<1x1x128xf32>
      %25 = vector.shape_cast %24 : vector<1x1x128xf32> to vector<1x128xf32>
      %26 = vector.shape_cast %23 : vector<1x128xf32> to vector<1x1x128xf32>
      tpu.vector_store %arg5[%c0_14, %c0_15, %c0_16], %26 {strides = array<i32>} : memref<1x2x128xf32, #tpu.memory_space<vmem>>, vector<1x1x128xf32>,
      %c0_17 = arith.constant 0 : index
      %c1 = arith.constant 1 : index
      %c0_18 = arith.constant 0 : index
      %27 = vector.load %arg5[%c0_17, %c1, %c0_18] : memref<1x2x128xf32, #tpu.memory_space<vmem>>, vector<1x1x128xf32>
      %28 = vector.shape_cast %27 : vector<1x1x128xf32> to vector<1x128xf32>
      %29 = arith.addf %28, %14 : vector<1x128xf32>
      %c0_19 = arith.constant 0 : index
      %c1_20 = arith.constant 1 : index
      %c0_21 = arith.constant 0 : index
      %30 = vector.load %arg5[%c0_19, %c1_20, %c0_21] : memref<1x2x128xf32, #tpu.memory_space<vmem>>, vector<1x1x128xf32>
      %31 = vector.shape_cast %30 : vector<1x1x128xf32> to vector<1x128xf32>
      %32 = vector.shape_cast %29 : vector<1x128xf32> to vector<1x1x128xf32>
      tpu.vector_store %arg5[%c0_19, %c1_20, %c0_21], %32 {strides = array<i32>} : memref<1x2x128xf32, #tpu.memory_space<vmem>>, vector<1x1x128xf32>,
    } else {
    }
    return
  }
  func.func @transform_0(%arg0: i32, %arg1: i32) -> (i32, i32, i32) {
    %c0_i32 = arith.constant 0 : i32
    %c0_i32_0 = arith.constant 0 : i32
    %c0_i32_1 = arith.constant 0 : i32
    return %arg0, %c0_i32, %c0_i32_0 : i32, i32, i32
  }
  func.func @transform_1(%arg0: i32, %arg1: i32) -> (i32, i32) {
    %c0_i32 = arith.constant 0 : i32
    %c0_i32_0 = arith.constant 0 : i32
    %c0_i32_1 = arith.constant 0 : i32
    return %c0_i32, %c0_i32_0 : i32, i32
  }
  func.func @transform_2(%arg0: i32, %arg1: i32) -> (i32, i32, i32) {
    %c0_i32 = arith.constant 0 : i32
    %c0_i32_0 = arith.constant 0 : i32
    return %arg0, %arg1, %c0_i32 : i32, i32, i32
  }
  func.func @transform_3(%arg0: i32, %arg1: i32) -> (i32, i32, i32) {
    %c0_i32 = arith.constant 0 : i32
    %c0_i32_0 = arith.constant 0 : i32
    %c0_i32_1 = arith.constant 0 : i32
    return %arg0, %c0_i32, %c0_i32_0 : i32, i32, i32
  }
}

module attributes {stable_mosaic.version = 11 : i64} {
  func.func @_bn_relu_kernel(%arg0: i32, %arg1: i32, %arg2: memref<1x256x128xf32, #tpu.memory_space<vmem>>, %arg3: memref<2x128xf32, #tpu.memory_space<vmem>>, %arg4: memref<1x256x128xf32, #tpu.memory_space<vmem>>) attributes {dimension_semantics = [#tpu.dimension_semantics<parallel>, #tpu.dimension_semantics<parallel>], iteration_bounds = array<i64: 2, 1>, scalar_prefetch = 0 : i64, scratch_operands = 0 : i64, tpu.core_type = #tpu.core_type<tc>, window_params = [{transform_indices = @transform_0, window_bounds = array<i64: 1, 256, 128>}, {pipeline_mode = #tpu.pipeline_mode<synchronous>, transform_indices = @transform_1, window_bounds = array<i64: 2, 128>}, {transform_indices = @transform_2, window_bounds = array<i64: 1, 256, 128>}]} {
    %c0 = arith.constant 0 : index
    %c0_0 = arith.constant 0 : index
    %c0_1 = arith.constant 0 : index
    %0 = vector.load %arg2[%c0, %c0_0, %c0_1] : memref<1x256x128xf32, #tpu.memory_space<vmem>>, vector<1x256x128xf32>
    %1 = vector.shape_cast %0 : vector<1x256x128xf32> to vector<256x128xf32>
    %c0_2 = arith.constant 0 : index
    %c0_3 = arith.constant 0 : index
    %2 = vector.load %arg3[%c0_2, %c0_3] : memref<2x128xf32, #tpu.memory_space<vmem>>, vector<1x128xf32>
    %3 = vector.broadcast %2 : vector<1x128xf32> to vector<256x128xf32>
    %4 = arith.mulf %1, %3 : vector<256x128xf32>
    %c1 = arith.constant 1 : index
    %c0_4 = arith.constant 0 : index
    %5 = vector.load %arg3[%c1, %c0_4] : memref<2x128xf32, #tpu.memory_space<vmem>>, vector<1x128xf32>
    %6 = vector.broadcast %5 : vector<1x128xf32> to vector<256x128xf32>
    %7 = arith.addf %4, %6 : vector<256x128xf32>
    %cst = arith.constant 0.000000e+00 : f32
    %8 = vector.broadcast %cst : f32 to vector<256x128xf32>
    %9 = arith.maximumf %7, %8 : vector<256x128xf32>
    %c0_5 = arith.constant 0 : index
    %c0_6 = arith.constant 0 : index
    %c0_7 = arith.constant 0 : index
    %10 = vector.load %arg4[%c0_5, %c0_6, %c0_7] : memref<1x256x128xf32, #tpu.memory_space<vmem>>, vector<1x256x128xf32>
    %11 = vector.shape_cast %10 : vector<1x256x128xf32> to vector<256x128xf32>
    %12 = vector.shape_cast %9 : vector<256x128xf32> to vector<1x256x128xf32>
    tpu.vector_store %arg4[%c0_5, %c0_6, %c0_7], %12 {strides = array<i32>} : memref<1x256x128xf32, #tpu.memory_space<vmem>>, vector<1x256x128xf32>,
    return
  }
  func.func @transform_0(%arg0: i32, %arg1: i32) -> (i32, i32, i32) {
    %c0_i32 = arith.constant 0 : i32
    %c0_i32_0 = arith.constant 0 : i32
    return %arg0, %arg1, %c0_i32 : i32, i32, i32
  }
  func.func @transform_1(%arg0: i32, %arg1: i32) -> (i32, i32) {
    %c0_i32 = arith.constant 0 : i32
    %c0_i32_0 = arith.constant 0 : i32
    %c0_i32_1 = arith.constant 0 : i32
    return %c0_i32, %c0_i32_0 : i32, i32
  }
  func.func @transform_2(%arg0: i32, %arg1: i32) -> (i32, i32, i32) {
    %c0_i32 = arith.constant 0 : i32
    %c0_i32_0 = arith.constant 0 : i32
    return %arg0, %arg1, %c0_i32 : i32, i32, i32
  }
}

module attributes {stable_mosaic.version = 11 : i64} {
  func.func @_bn_relu_kernel(%arg0: i32, %arg1: i32, %arg2: memref<1x288x128xf32, #tpu.memory_space<vmem>>, %arg3: memref<2x128xf32, #tpu.memory_space<vmem>>, %arg4: memref<1x288x128xf32, #tpu.memory_space<vmem>>) attributes {dimension_semantics = [#tpu.dimension_semantics<parallel>, #tpu.dimension_semantics<parallel>], iteration_bounds = array<i64: 2, 1>, scalar_prefetch = 0 : i64, scratch_operands = 0 : i64, tpu.core_type = #tpu.core_type<tc>, window_params = [{transform_indices = @transform_0, window_bounds = array<i64: 1, 288, 128>}, {pipeline_mode = #tpu.pipeline_mode<synchronous>, transform_indices = @transform_1, window_bounds = array<i64: 2, 128>}, {transform_indices = @transform_2, window_bounds = array<i64: 1, 288, 128>}]} {
    %c0 = arith.constant 0 : index
    %c0_0 = arith.constant 0 : index
    %c0_1 = arith.constant 0 : index
    %0 = vector.load %arg2[%c0, %c0_0, %c0_1] : memref<1x288x128xf32, #tpu.memory_space<vmem>>, vector<1x288x128xf32>
    %1 = vector.shape_cast %0 : vector<1x288x128xf32> to vector<288x128xf32>
    %c0_2 = arith.constant 0 : index
    %c0_3 = arith.constant 0 : index
    %2 = vector.load %arg3[%c0_2, %c0_3] : memref<2x128xf32, #tpu.memory_space<vmem>>, vector<1x128xf32>
    %3 = vector.broadcast %2 : vector<1x128xf32> to vector<288x128xf32>
    %4 = arith.mulf %1, %3 : vector<288x128xf32>
    %c1 = arith.constant 1 : index
    %c0_4 = arith.constant 0 : index
    %5 = vector.load %arg3[%c1, %c0_4] : memref<2x128xf32, #tpu.memory_space<vmem>>, vector<1x128xf32>
    %6 = vector.broadcast %5 : vector<1x128xf32> to vector<288x128xf32>
    %7 = arith.addf %4, %6 : vector<288x128xf32>
    %cst = arith.constant 0.000000e+00 : f32
    %8 = vector.broadcast %cst : f32 to vector<288x128xf32>
    %9 = arith.maximumf %7, %8 : vector<288x128xf32>
    %c0_5 = arith.constant 0 : index
    %c0_6 = arith.constant 0 : index
    %c0_7 = arith.constant 0 : index
    %10 = vector.load %arg4[%c0_5, %c0_6, %c0_7] : memref<1x288x128xf32, #tpu.memory_space<vmem>>, vector<1x288x128xf32>
    %11 = vector.shape_cast %10 : vector<1x288x128xf32> to vector<288x128xf32>
    %12 = vector.shape_cast %9 : vector<288x128xf32> to vector<1x288x128xf32>
    tpu.vector_store %arg4[%c0_5, %c0_6, %c0_7], %12 {strides = array<i32>} : memref<1x288x128xf32, #tpu.memory_space<vmem>>, vector<1x288x128xf32>,
    return
  }
  func.func @transform_0(%arg0: i32, %arg1: i32) -> (i32, i32, i32) {
    %c0_i32 = arith.constant 0 : i32
    %c0_i32_0 = arith.constant 0 : i32
    return %arg0, %arg1, %c0_i32 : i32, i32, i32
  }
  func.func @transform_1(%arg0: i32, %arg1: i32) -> (i32, i32) {
    %c0_i32 = arith.constant 0 : i32
    %c0_i32_0 = arith.constant 0 : i32
    %c0_i32_1 = arith.constant 0 : i32
    return %c0_i32, %c0_i32_0 : i32, i32
  }
  func.func @transform_2(%arg0: i32, %arg1: i32) -> (i32, i32, i32) {
    %c0_i32 = arith.constant 0 : i32
    %c0_i32_0 = arith.constant 0 : i32
    return %arg0, %arg1, %c0_i32 : i32, i32, i32
  }
}

module attributes {stable_mosaic.version = 11 : i64} {
  func.func @_conv_stats_kernel(%arg0: i32, %arg1: i32, %arg2: memref<1x342x4xf32, #tpu.memory_space<vmem>>, %arg3: memref<36x128xf32, #tpu.memory_space<vmem>>, %arg4: memref<1x144x128xf32, #tpu.memory_space<vmem>>, %arg5: memref<1x2x128xf32, #tpu.memory_space<vmem>>, %arg6: memref<144x36xf32, #tpu.memory_space<vmem>>) attributes {dimension_semantics = [#tpu.dimension_semantics<parallel>, #tpu.dimension_semantics<arbitrary>], iteration_bounds = array<i64: 2, 2>, scalar_prefetch = 0 : i64, scratch_operands = 1 : i64, tpu.core_type = #tpu.core_type<tc>, window_params = [{transform_indices = @transform_0, window_bounds = array<i64: 1, 342, 4>}, {pipeline_mode = #tpu.pipeline_mode<synchronous>, transform_indices = @transform_1, window_bounds = array<i64: 36, 128>}, {transform_indices = @transform_2, window_bounds = array<i64: 1, 144, 128>}, {transform_indices = @transform_3, window_bounds = array<i64: 1, 2, 128>}]} {
    %c144_i32 = arith.constant 144 : i32
    %0 = arith.muli %arg1, %c144_i32 : i32
    %1 = tpu.assume_multiple %0, 8 : i32
    %c0_i32 = arith.constant 0 : i32
    %2 = arith.addi %1, %c0_i32 : i32
    %c0_i32_0 = arith.constant 0 : i32
    %3 = arith.addi %2, %c0_i32_0 : i32
    %c0 = arith.constant 0 : index
    %4 = arith.index_cast %3 : i32 to index
    %c0_1 = arith.constant 0 : index
    %5 = vector.load %arg2[%c0, %4, %c0_1] : memref<1x342x4xf32, #tpu.memory_space<vmem>>, vector<1x144x4xf32>
    %6 = vector.shape_cast %5 : vector<1x144x4xf32> to vector<144x4xf32>
    %c0_2 = arith.constant 0 : index
    %c0_3 = arith.constant 0 : index
    %7 = vector.load %arg6[%c0_2, %c0_3] : memref<144x36xf32, #tpu.memory_space<vmem>>, vector<144x4xf32>
    tpu.vector_store %arg6[%c0_2, %c0_3], %6 {strides = array<i32>} : memref<144x36xf32, #tpu.memory_space<vmem>>, vector<144x4xf32>,
    %c0_i32_4 = arith.constant 0 : i32
    %8 = arith.addi %1, %c0_i32_4 : i32
    %c1_i32 = arith.constant 1 : i32
    %9 = arith.addi %8, %c1_i32 : i32
    %c0_5 = arith.constant 0 : index
    %10 = arith.index_cast %9 : i32 to index
    %c0_6 = arith.constant 0 : index
    %11 = vector.load %arg2[%c0_5, %10, %c0_6] : memref<1x342x4xf32, #tpu.memory_space<vmem>>, vector<1x144x4xf32>
    %12 = vector.shape_cast %11 : vector<1x144x4xf32> to vector<144x4xf32>
    %c0_7 = arith.constant 0 : index
    %c4 = arith.constant 4 : index
    %13 = vector.load %arg6[%c0_7, %c4] : memref<144x36xf32, #tpu.memory_space<vmem>>, vector<144x4xf32>
    tpu.vector_store %arg6[%c0_7, %c4], %12 {strides = array<i32>} : memref<144x36xf32, #tpu.memory_space<vmem>>, vector<144x4xf32>,
    %c0_i32_8 = arith.constant 0 : i32
    %14 = arith.addi %1, %c0_i32_8 : i32
    %c2_i32 = arith.constant 2 : i32
    %15 = arith.addi %14, %c2_i32 : i32
    %c0_9 = arith.constant 0 : index
    %16 = arith.index_cast %15 : i32 to index
    %c0_10 = arith.constant 0 : index
    %17 = vector.load %arg2[%c0_9, %16, %c0_10] : memref<1x342x4xf32, #tpu.memory_space<vmem>>, vector<1x144x4xf32>
    %18 = vector.shape_cast %17 : vector<1x144x4xf32> to vector<144x4xf32>
    %c0_11 = arith.constant 0 : index
    %c8 = arith.constant 8 : index
    %19 = vector.load %arg6[%c0_11, %c8] : memref<144x36xf32, #tpu.memory_space<vmem>>, vector<144x4xf32>
    tpu.vector_store %arg6[%c0_11, %c8], %18 {strides = array<i32>} : memref<144x36xf32, #tpu.memory_space<vmem>>, vector<144x4xf32>,
    %c18_i32 = arith.constant 18 : i32
    %20 = arith.addi %1, %c18_i32 : i32
    %c0_i32_12 = arith.constant 0 : i32
    %21 = arith.addi %20, %c0_i32_12 : i32
    %c0_13 = arith.constant 0 : index
    %22 = arith.index_cast %21 : i32 to index
    %c0_14 = arith.constant 0 : index
    %23 = vector.load %arg2[%c0_13, %22, %c0_14] : memref<1x342x4xf32, #tpu.memory_space<vmem>>, vector<1x144x4xf32>
    %24 = vector.shape_cast %23 : vector<1x144x4xf32> to vector<144x4xf32>
    %c0_15 = arith.constant 0 : index
    %c12 = arith.constant 12 : index
    %25 = vector.load %arg6[%c0_15, %c12] : memref<144x36xf32, #tpu.memory_space<vmem>>, vector<144x4xf32>
    tpu.vector_store %arg6[%c0_15, %c12], %24 {strides = array<i32>} : memref<144x36xf32, #tpu.memory_space<vmem>>, vector<144x4xf32>,
    %c18_i32_16 = arith.constant 18 : i32
    %26 = arith.addi %1, %c18_i32_16 : i32
    %c1_i32_17 = arith.constant 1 : i32
    %27 = arith.addi %26, %c1_i32_17 : i32
    %c0_18 = arith.constant 0 : index
    %28 = arith.index_cast %27 : i32 to index
    %c0_19 = arith.constant 0 : index
    %29 = vector.load %arg2[%c0_18, %28, %c0_19] : memref<1x342x4xf32, #tpu.memory_space<vmem>>, vector<1x144x4xf32>
    %30 = vector.shape_cast %29 : vector<1x144x4xf32> to vector<144x4xf32>
    %c0_20 = arith.constant 0 : index
    %c16 = arith.constant 16 : index
    %31 = vector.load %arg6[%c0_20, %c16] : memref<144x36xf32, #tpu.memory_space<vmem>>, vector<144x4xf32>
    tpu.vector_store %arg6[%c0_20, %c16], %30 {strides = array<i32>} : memref<144x36xf32, #tpu.memory_space<vmem>>, vector<144x4xf32>,
    %c18_i32_21 = arith.constant 18 : i32
    %32 = arith.addi %1, %c18_i32_21 : i32
    %c2_i32_22 = arith.constant 2 : i32
    %33 = arith.addi %32, %c2_i32_22 : i32
    %c0_23 = arith.constant 0 : index
    %34 = arith.index_cast %33 : i32 to index
    %c0_24 = arith.constant 0 : index
    %35 = vector.load %arg2[%c0_23, %34, %c0_24] : memref<1x342x4xf32, #tpu.memory_space<vmem>>, vector<1x144x4xf32>
    %36 = vector.shape_cast %35 : vector<1x144x4xf32> to vector<144x4xf32>
    %c0_25 = arith.constant 0 : index
    %c20 = arith.constant 20 : index
    %37 = vector.load %arg6[%c0_25, %c20] : memref<144x36xf32, #tpu.memory_space<vmem>>, vector<144x4xf32>
    tpu.vector_store %arg6[%c0_25, %c20], %36 {strides = array<i32>} : memref<144x36xf32, #tpu.memory_space<vmem>>, vector<144x4xf32>,
    %c36_i32 = arith.constant 36 : i32
    %38 = arith.addi %1, %c36_i32 : i32
    %c0_i32_26 = arith.constant 0 : i32
    %39 = arith.addi %38, %c0_i32_26 : i32
    %c0_27 = arith.constant 0 : index
    %40 = arith.index_cast %39 : i32 to index
    %c0_28 = arith.constant 0 : index
    %41 = vector.load %arg2[%c0_27, %40, %c0_28] : memref<1x342x4xf32, #tpu.memory_space<vmem>>, vector<1x144x4xf32>
    %42 = vector.shape_cast %41 : vector<1x144x4xf32> to vector<144x4xf32>
    %c0_29 = arith.constant 0 : index
    %c24 = arith.constant 24 : index
    %43 = vector.load %arg6[%c0_29, %c24] : memref<144x36xf32, #tpu.memory_space<vmem>>, vector<144x4xf32>
    tpu.vector_store %arg6[%c0_29, %c24], %42 {strides = array<i32>} : memref<144x36xf32, #tpu.memory_space<vmem>>, vector<144x4xf32>,
    %c36_i32_30 = arith.constant 36 : i32
    %44 = arith.addi %1, %c36_i32_30 : i32
    %c1_i32_31 = arith.constant 1 : i32
    %45 = arith.addi %44, %c1_i32_31 : i32
    %c0_32 = arith.constant 0 : index
    %46 = arith.index_cast %45 : i32 to index
    %c0_33 = arith.constant 0 : index
    %47 = vector.load %arg2[%c0_32, %46, %c0_33] : memref<1x342x4xf32, #tpu.memory_space<vmem>>, vector<1x144x4xf32>
    %48 = vector.shape_cast %47 : vector<1x144x4xf32> to vector<144x4xf32>
    %c0_34 = arith.constant 0 : index
    %c28 = arith.constant 28 : index
    %49 = vector.load %arg6[%c0_34, %c28] : memref<144x36xf32, #tpu.memory_space<vmem>>, vector<144x4xf32>
    tpu.vector_store %arg6[%c0_34, %c28], %48 {strides = array<i32>} : memref<144x36xf32, #tpu.memory_space<vmem>>, vector<144x4xf32>,
    %c36_i32_35 = arith.constant 36 : i32
    %50 = arith.addi %1, %c36_i32_35 : i32
    %c2_i32_36 = arith.constant 2 : i32
    %51 = arith.addi %50, %c2_i32_36 : i32
    %c0_37 = arith.constant 0 : index
    %52 = arith.index_cast %51 : i32 to index
    %c0_38 = arith.constant 0 : index
    %53 = vector.load %arg2[%c0_37, %52, %c0_38] : memref<1x342x4xf32, #tpu.memory_space<vmem>>, vector<1x144x4xf32>
    %54 = vector.shape_cast %53 : vector<1x144x4xf32> to vector<144x4xf32>
    %c0_39 = arith.constant 0 : index
    %c32 = arith.constant 32 : index
    %55 = vector.load %arg6[%c0_39, %c32] : memref<144x36xf32, #tpu.memory_space<vmem>>, vector<144x4xf32>
    tpu.vector_store %arg6[%c0_39, %c32], %54 {strides = array<i32>} : memref<144x36xf32, #tpu.memory_space<vmem>>, vector<144x4xf32>,
    %c0_40 = arith.constant 0 : index
    %c0_41 = arith.constant 0 : index
    %56 = vector.load %arg6[%c0_40, %c0_41] : memref<144x36xf32, #tpu.memory_space<vmem>>, vector<144x36xf32>
    %c0_42 = arith.constant 0 : index
    %c0_43 = arith.constant 0 : index
    %57 = vector.load %arg3[%c0_42, %c0_43] : memref<36x128xf32, #tpu.memory_space<vmem>>, vector<36x128xf32>
    %cst = arith.constant dense<0.000000e+00> : vector<144x128xf32>
    %58 = tpu.matmul %56, %57, %cst {dimension_numbers = #tpu.dot_dimension_numbers<[1], [0], [0], [1], [0, 0, 1, 1], [], []>} : vector<144x36xf32>, vector<36x128xf32>, vector<144x128xf32> -> vector<144x128xf32>
    %c0_44 = arith.constant 0 : index
    %c0_45 = arith.constant 0 : index
    %c0_46 = arith.constant 0 : index
    %59 = vector.load %arg4[%c0_44, %c0_45, %c0_46] : memref<1x144x128xf32, #tpu.memory_space<vmem>>, vector<1x144x128xf32>
    %60 = vector.shape_cast %59 : vector<1x144x128xf32> to vector<144x128xf32>
    %61 = vector.shape_cast %58 : vector<144x128xf32> to vector<1x144x128xf32>
    tpu.vector_store %arg4[%c0_44, %c0_45, %c0_46], %61 {strides = array<i32>} : memref<1x144x128xf32, #tpu.memory_space<vmem>>, vector<1x144x128xf32>,
    %62 = tpu.iota {dimensions = array<i32: 0>} : vector<144x1xi32>
    %c18_i32_47 = arith.constant 18 : i32
    %c0_i32_48 = arith.constant 0 : i32
    %63 = arith.cmpi eq, %c18_i32_47, %c0_i32_48 : i32
    %c1_i32_49 = arith.constant 1 : i32
    %64 = arith.select %63, %c1_i32_49, %c18_i32_47 : i32
    %65 = vector.broadcast %64 : i32 to vector<144x1xi32>
    %66 = arith.remsi %62, %65 : vector<144x1xi32>
    %c0_i32_50 = arith.constant 0 : i32
    %67 = vector.broadcast %c0_i32_50 : i32 to vector<144x1xi32>
    %68 = arith.cmpi ne, %66, %67 : vector<144x1xi32>
    %c0_i32_51 = arith.constant 0 : i32
    %69 = vector.broadcast %c0_i32_51 : i32 to vector<144x1xi32>
    %70 = arith.cmpi slt, %66, %69 : vector<144x1xi32>
    %c0_i32_52 = arith.constant 0 : i32
    %71 = arith.cmpi slt, %64, %c0_i32_52 : i32
    %72 = vector.broadcast %71 : i1 to vector<144x1xi1>
    %73 = vector.broadcast %72 : vector<144x1xi1> to vector<144x1xi1>
    %74 = arith.xori %70, %73 : vector<144x1xi1>
    %75 = arith.andi %74, %68 : vector<144x1xi1>
    %76 = vector.broadcast %64 : i32 to vector<144x1xi32>
    %77 = arith.addi %66, %76 : vector<144x1xi32>
    %78 = arith.select %75, %77, %66 : vector<144x1xi1>, vector<144x1xi32>
    %c16_i32 = arith.constant 16 : i32
    %79 = vector.broadcast %c16_i32 : i32 to vector<144x1xi32>
    %80 = arith.cmpi slt, %78, %79 : vector<144x1xi32>
    %cst_53 = arith.constant 0.000000e+00 : f32
    %81 = vector.shape_cast %80 : vector<144x1xi1> to vector<144x1xi1>
    %82 = vector.broadcast %81 : vector<144x1xi1> to vector<144x128xi1>
    %83 = vector.broadcast %cst_53 : f32 to vector<144x128xf32>
    %84 = arith.select %82, %58, %83 : vector<144x128xi1>, vector<144x128xf32>
    %cst_54 = arith.constant dense<0.000000e+00> : vector<128xf32>
    %85 = vector.multi_reduction <add>, %84, %cst_54 [0] : vector<144x128xf32> to vector<128xf32>
    %86 = vector.shape_cast %85 : vector<128xf32> to vector<1x128xf32>
    %87 = arith.mulf %84, %84 : vector<144x128xf32>
    %cst_55 = arith.constant dense<0.000000e+00> : vector<128xf32>
    %88 = vector.multi_reduction <add>, %87, %cst_55 [0] : vector<144x128xf32> to vector<128xf32>
    %89 = vector.shape_cast %88 : vector<128xf32> to vector<1x128xf32>
    %c0_i32_56 = arith.constant 0 : i32
    %90 = arith.cmpi eq, %arg1, %c0_i32_56 : i32
    %91 = arith.extui %90 : i1 to i32
    %c0_i32_57 = arith.constant 0 : i32
    %92 = arith.cmpi ne, %91, %c0_i32_57 : i32
    scf.if %92 {
      %c0_60 = arith.constant 0 : index
      %c0_61 = arith.constant 0 : index
      %c0_62 = arith.constant 0 : index
      %96 = vector.load %arg5[%c0_60, %c0_61, %c0_62] : memref<1x2x128xf32, #tpu.memory_space<vmem>>, vector<1x1x128xf32>
      %97 = vector.shape_cast %96 : vector<1x1x128xf32> to vector<1x128xf32>
      %98 = vector.shape_cast %86 : vector<1x128xf32> to vector<1x1x128xf32>
      tpu.vector_store %arg5[%c0_60, %c0_61, %c0_62], %98 {strides = array<i32>} : memref<1x2x128xf32, #tpu.memory_space<vmem>>, vector<1x1x128xf32>,
      %c0_63 = arith.constant 0 : index
      %c1 = arith.constant 1 : index
      %c0_64 = arith.constant 0 : index
      %99 = vector.load %arg5[%c0_63, %c1, %c0_64] : memref<1x2x128xf32, #tpu.memory_space<vmem>>, vector<1x1x128xf32>
      %100 = vector.shape_cast %99 : vector<1x1x128xf32> to vector<1x128xf32>
      %101 = vector.shape_cast %89 : vector<1x128xf32> to vector<1x1x128xf32>
      tpu.vector_store %arg5[%c0_63, %c1, %c0_64], %101 {strides = array<i32>} : memref<1x2x128xf32, #tpu.memory_space<vmem>>, vector<1x1x128xf32>,
    } else {
    }
    %c0_i32_58 = arith.constant 0 : i32
    %93 = arith.cmpi sgt, %arg1, %c0_i32_58 : i32
    %94 = arith.extui %93 : i1 to i32
    %c0_i32_59 = arith.constant 0 : i32
    %95 = arith.cmpi ne, %94, %c0_i32_59 : i32
    scf.if %95 {
      %c0_60 = arith.constant 0 : index
      %c0_61 = arith.constant 0 : index
      %c0_62 = arith.constant 0 : index
      %96 = vector.load %arg5[%c0_60, %c0_61, %c0_62] : memref<1x2x128xf32, #tpu.memory_space<vmem>>, vector<1x1x128xf32>
      %97 = vector.shape_cast %96 : vector<1x1x128xf32> to vector<1x128xf32>
      %98 = arith.addf %97, %86 : vector<1x128xf32>
      %c0_63 = arith.constant 0 : index
      %c0_64 = arith.constant 0 : index
      %c0_65 = arith.constant 0 : index
      %99 = vector.load %arg5[%c0_63, %c0_64, %c0_65] : memref<1x2x128xf32, #tpu.memory_space<vmem>>, vector<1x1x128xf32>
      %100 = vector.shape_cast %99 : vector<1x1x128xf32> to vector<1x128xf32>
      %101 = vector.shape_cast %98 : vector<1x128xf32> to vector<1x1x128xf32>
      tpu.vector_store %arg5[%c0_63, %c0_64, %c0_65], %101 {strides = array<i32>} : memref<1x2x128xf32, #tpu.memory_space<vmem>>, vector<1x1x128xf32>,
      %c0_66 = arith.constant 0 : index
      %c1 = arith.constant 1 : index
      %c0_67 = arith.constant 0 : index
      %102 = vector.load %arg5[%c0_66, %c1, %c0_67] : memref<1x2x128xf32, #tpu.memory_space<vmem>>, vector<1x1x128xf32>
      %103 = vector.shape_cast %102 : vector<1x1x128xf32> to vector<1x128xf32>
      %104 = arith.addf %103, %89 : vector<1x128xf32>
      %c0_68 = arith.constant 0 : index
      %c1_69 = arith.constant 1 : index
      %c0_70 = arith.constant 0 : index
      %105 = vector.load %arg5[%c0_68, %c1_69, %c0_70] : memref<1x2x128xf32, #tpu.memory_space<vmem>>, vector<1x1x128xf32>
      %106 = vector.shape_cast %105 : vector<1x1x128xf32> to vector<1x128xf32>
      %107 = vector.shape_cast %104 : vector<1x128xf32> to vector<1x1x128xf32>
      tpu.vector_store %arg5[%c0_68, %c1_69, %c0_70], %107 {strides = array<i32>} : memref<1x2x128xf32, #tpu.memory_space<vmem>>, vector<1x1x128xf32>,
    } else {
    }
    return
  }
  func.func @transform_0(%arg0: i32, %arg1: i32) -> (i32, i32, i32) {
    %c0_i32 = arith.constant 0 : i32
    %c0_i32_0 = arith.constant 0 : i32
    %c0_i32_1 = arith.constant 0 : i32
    return %arg0, %c0_i32, %c0_i32_0 : i32, i32, i32
  }
  func.func @transform_1(%arg0: i32, %arg1: i32) -> (i32, i32) {
    %c0_i32 = arith.constant 0 : i32
    %c0_i32_0 = arith.constant 0 : i32
    %c0_i32_1 = arith.constant 0 : i32
    return %c0_i32, %c0_i32_0 : i32, i32
  }
  func.func @transform_2(%arg0: i32, %arg1: i32) -> (i32, i32, i32) {
    %c0_i32 = arith.constant 0 : i32
    %c0_i32_0 = arith.constant 0 : i32
    return %arg0, %arg1, %c0_i32 : i32, i32, i32
  }
  func.func @transform_3(%arg0: i32, %arg1: i32) -> (i32, i32, i32) {
    %c0_i32 = arith.constant 0 : i32
    %c0_i32_0 = arith.constant 0 : i32
    %c0_i32_1 = arith.constant 0 : i32
    return %arg0, %c0_i32, %c0_i32_0 : i32, i32, i32
  }
}

module attributes {stable_mosaic.version = 11 : i64} {
  func.func @_conv_stats_kernel(%arg0: i32, %arg1: i32, %arg2: memref<1x342x8xf32, #tpu.memory_space<vmem>>, %arg3: memref<72x128xf32, #tpu.memory_space<vmem>>, %arg4: memref<1x144x128xf32, #tpu.memory_space<vmem>>, %arg5: memref<1x2x128xf32, #tpu.memory_space<vmem>>, %arg6: memref<144x72xf32, #tpu.memory_space<vmem>>) attributes {dimension_semantics = [#tpu.dimension_semantics<parallel>, #tpu.dimension_semantics<arbitrary>], iteration_bounds = array<i64: 2, 2>, scalar_prefetch = 0 : i64, scratch_operands = 1 : i64, tpu.core_type = #tpu.core_type<tc>, window_params = [{transform_indices = @transform_0, window_bounds = array<i64: 1, 342, 8>}, {pipeline_mode = #tpu.pipeline_mode<synchronous>, transform_indices = @transform_1, window_bounds = array<i64: 72, 128>}, {transform_indices = @transform_2, window_bounds = array<i64: 1, 144, 128>}, {transform_indices = @transform_3, window_bounds = array<i64: 1, 2, 128>}]} {
    %c144_i32 = arith.constant 144 : i32
    %0 = arith.muli %arg1, %c144_i32 : i32
    %1 = tpu.assume_multiple %0, 8 : i32
    %c0_i32 = arith.constant 0 : i32
    %2 = arith.addi %1, %c0_i32 : i32
    %c0_i32_0 = arith.constant 0 : i32
    %3 = arith.addi %2, %c0_i32_0 : i32
    %c0 = arith.constant 0 : index
    %4 = arith.index_cast %3 : i32 to index
    %c0_1 = arith.constant 0 : index
    %5 = vector.load %arg2[%c0, %4, %c0_1] : memref<1x342x8xf32, #tpu.memory_space<vmem>>, vector<1x144x8xf32>
    %6 = vector.shape_cast %5 : vector<1x144x8xf32> to vector<144x8xf32>
    %c0_2 = arith.constant 0 : index
    %c0_3 = arith.constant 0 : index
    %7 = vector.load %arg6[%c0_2, %c0_3] : memref<144x72xf32, #tpu.memory_space<vmem>>, vector<144x8xf32>
    tpu.vector_store %arg6[%c0_2, %c0_3], %6 {strides = array<i32>} : memref<144x72xf32, #tpu.memory_space<vmem>>, vector<144x8xf32>,
    %c0_i32_4 = arith.constant 0 : i32
    %8 = arith.addi %1, %c0_i32_4 : i32
    %c1_i32 = arith.constant 1 : i32
    %9 = arith.addi %8, %c1_i32 : i32
    %c0_5 = arith.constant 0 : index
    %10 = arith.index_cast %9 : i32 to index
    %c0_6 = arith.constant 0 : index
    %11 = vector.load %arg2[%c0_5, %10, %c0_6] : memref<1x342x8xf32, #tpu.memory_space<vmem>>, vector<1x144x8xf32>
    %12 = vector.shape_cast %11 : vector<1x144x8xf32> to vector<144x8xf32>
    %c0_7 = arith.constant 0 : index
    %c8 = arith.constant 8 : index
    %13 = vector.load %arg6[%c0_7, %c8] : memref<144x72xf32, #tpu.memory_space<vmem>>, vector<144x8xf32>
    tpu.vector_store %arg6[%c0_7, %c8], %12 {strides = array<i32>} : memref<144x72xf32, #tpu.memory_space<vmem>>, vector<144x8xf32>,
    %c0_i32_8 = arith.constant 0 : i32
    %14 = arith.addi %1, %c0_i32_8 : i32
    %c2_i32 = arith.constant 2 : i32
    %15 = arith.addi %14, %c2_i32 : i32
    %c0_9 = arith.constant 0 : index
    %16 = arith.index_cast %15 : i32 to index
    %c0_10 = arith.constant 0 : index
    %17 = vector.load %arg2[%c0_9, %16, %c0_10] : memref<1x342x8xf32, #tpu.memory_space<vmem>>, vector<1x144x8xf32>
    %18 = vector.shape_cast %17 : vector<1x144x8xf32> to vector<144x8xf32>
    %c0_11 = arith.constant 0 : index
    %c16 = arith.constant 16 : index
    %19 = vector.load %arg6[%c0_11, %c16] : memref<144x72xf32, #tpu.memory_space<vmem>>, vector<144x8xf32>
    tpu.vector_store %arg6[%c0_11, %c16], %18 {strides = array<i32>} : memref<144x72xf32, #tpu.memory_space<vmem>>, vector<144x8xf32>,
    %c18_i32 = arith.constant 18 : i32
    %20 = arith.addi %1, %c18_i32 : i32
    %c0_i32_12 = arith.constant 0 : i32
    %21 = arith.addi %20, %c0_i32_12 : i32
    %c0_13 = arith.constant 0 : index
    %22 = arith.index_cast %21 : i32 to index
    %c0_14 = arith.constant 0 : index
    %23 = vector.load %arg2[%c0_13, %22, %c0_14] : memref<1x342x8xf32, #tpu.memory_space<vmem>>, vector<1x144x8xf32>
    %24 = vector.shape_cast %23 : vector<1x144x8xf32> to vector<144x8xf32>
    %c0_15 = arith.constant 0 : index
    %c24 = arith.constant 24 : index
    %25 = vector.load %arg6[%c0_15, %c24] : memref<144x72xf32, #tpu.memory_space<vmem>>, vector<144x8xf32>
    tpu.vector_store %arg6[%c0_15, %c24], %24 {strides = array<i32>} : memref<144x72xf32, #tpu.memory_space<vmem>>, vector<144x8xf32>,
    %c18_i32_16 = arith.constant 18 : i32
    %26 = arith.addi %1, %c18_i32_16 : i32
    %c1_i32_17 = arith.constant 1 : i32
    %27 = arith.addi %26, %c1_i32_17 : i32
    %c0_18 = arith.constant 0 : index
    %28 = arith.index_cast %27 : i32 to index
    %c0_19 = arith.constant 0 : index
    %29 = vector.load %arg2[%c0_18, %28, %c0_19] : memref<1x342x8xf32, #tpu.memory_space<vmem>>, vector<1x144x8xf32>
    %30 = vector.shape_cast %29 : vector<1x144x8xf32> to vector<144x8xf32>
    %c0_20 = arith.constant 0 : index
    %c32 = arith.constant 32 : index
    %31 = vector.load %arg6[%c0_20, %c32] : memref<144x72xf32, #tpu.memory_space<vmem>>, vector<144x8xf32>
    tpu.vector_store %arg6[%c0_20, %c32], %30 {strides = array<i32>} : memref<144x72xf32, #tpu.memory_space<vmem>>, vector<144x8xf32>,
    %c18_i32_21 = arith.constant 18 : i32
    %32 = arith.addi %1, %c18_i32_21 : i32
    %c2_i32_22 = arith.constant 2 : i32
    %33 = arith.addi %32, %c2_i32_22 : i32
    %c0_23 = arith.constant 0 : index
    %34 = arith.index_cast %33 : i32 to index
    %c0_24 = arith.constant 0 : index
    %35 = vector.load %arg2[%c0_23, %34, %c0_24] : memref<1x342x8xf32, #tpu.memory_space<vmem>>, vector<1x144x8xf32>
    %36 = vector.shape_cast %35 : vector<1x144x8xf32> to vector<144x8xf32>
    %c0_25 = arith.constant 0 : index
    %c40 = arith.constant 40 : index
    %37 = vector.load %arg6[%c0_25, %c40] : memref<144x72xf32, #tpu.memory_space<vmem>>, vector<144x8xf32>
    tpu.vector_store %arg6[%c0_25, %c40], %36 {strides = array<i32>} : memref<144x72xf32, #tpu.memory_space<vmem>>, vector<144x8xf32>,
    %c36_i32 = arith.constant 36 : i32
    %38 = arith.addi %1, %c36_i32 : i32
    %c0_i32_26 = arith.constant 0 : i32
    %39 = arith.addi %38, %c0_i32_26 : i32
    %c0_27 = arith.constant 0 : index
    %40 = arith.index_cast %39 : i32 to index
    %c0_28 = arith.constant 0 : index
    %41 = vector.load %arg2[%c0_27, %40, %c0_28] : memref<1x342x8xf32, #tpu.memory_space<vmem>>, vector<1x144x8xf32>
    %42 = vector.shape_cast %41 : vector<1x144x8xf32> to vector<144x8xf32>
    %c0_29 = arith.constant 0 : index
    %c48 = arith.constant 48 : index
    %43 = vector.load %arg6[%c0_29, %c48] : memref<144x72xf32, #tpu.memory_space<vmem>>, vector<144x8xf32>
    tpu.vector_store %arg6[%c0_29, %c48], %42 {strides = array<i32>} : memref<144x72xf32, #tpu.memory_space<vmem>>, vector<144x8xf32>,
    %c36_i32_30 = arith.constant 36 : i32
    %44 = arith.addi %1, %c36_i32_30 : i32
    %c1_i32_31 = arith.constant 1 : i32
    %45 = arith.addi %44, %c1_i32_31 : i32
    %c0_32 = arith.constant 0 : index
    %46 = arith.index_cast %45 : i32 to index
    %c0_33 = arith.constant 0 : index
    %47 = vector.load %arg2[%c0_32, %46, %c0_33] : memref<1x342x8xf32, #tpu.memory_space<vmem>>, vector<1x144x8xf32>
    %48 = vector.shape_cast %47 : vector<1x144x8xf32> to vector<144x8xf32>
    %c0_34 = arith.constant 0 : index
    %c56 = arith.constant 56 : index
    %49 = vector.load %arg6[%c0_34, %c56] : memref<144x72xf32, #tpu.memory_space<vmem>>, vector<144x8xf32>
    tpu.vector_store %arg6[%c0_34, %c56], %48 {strides = array<i32>} : memref<144x72xf32, #tpu.memory_space<vmem>>, vector<144x8xf32>,
    %c36_i32_35 = arith.constant 36 : i32
    %50 = arith.addi %1, %c36_i32_35 : i32
    %c2_i32_36 = arith.constant 2 : i32
    %51 = arith.addi %50, %c2_i32_36 : i32
    %c0_37 = arith.constant 0 : index
    %52 = arith.index_cast %51 : i32 to index
    %c0_38 = arith.constant 0 : index
    %53 = vector.load %arg2[%c0_37, %52, %c0_38] : memref<1x342x8xf32, #tpu.memory_space<vmem>>, vector<1x144x8xf32>
    %54 = vector.shape_cast %53 : vector<1x144x8xf32> to vector<144x8xf32>
    %c0_39 = arith.constant 0 : index
    %c64 = arith.constant 64 : index
    %55 = vector.load %arg6[%c0_39, %c64] : memref<144x72xf32, #tpu.memory_space<vmem>>, vector<144x8xf32>
    tpu.vector_store %arg6[%c0_39, %c64], %54 {strides = array<i32>} : memref<144x72xf32, #tpu.memory_space<vmem>>, vector<144x8xf32>,
    %c0_40 = arith.constant 0 : index
    %c0_41 = arith.constant 0 : index
    %56 = vector.load %arg6[%c0_40, %c0_41] : memref<144x72xf32, #tpu.memory_space<vmem>>, vector<144x72xf32>
    %c0_42 = arith.constant 0 : index
    %c0_43 = arith.constant 0 : index
    %57 = vector.load %arg3[%c0_42, %c0_43] : memref<72x128xf32, #tpu.memory_space<vmem>>, vector<72x128xf32>
    %cst = arith.constant dense<0.000000e+00> : vector<144x128xf32>
    %58 = tpu.matmul %56, %57, %cst {dimension_numbers = #tpu.dot_dimension_numbers<[1], [0], [0], [1], [0, 0, 1, 1], [], []>} : vector<144x72xf32>, vector<72x128xf32>, vector<144x128xf32> -> vector<144x128xf32>
    %c0_44 = arith.constant 0 : index
    %c0_45 = arith.constant 0 : index
    %c0_46 = arith.constant 0 : index
    %59 = vector.load %arg4[%c0_44, %c0_45, %c0_46] : memref<1x144x128xf32, #tpu.memory_space<vmem>>, vector<1x144x128xf32>
    %60 = vector.shape_cast %59 : vector<1x144x128xf32> to vector<144x128xf32>
    %61 = vector.shape_cast %58 : vector<144x128xf32> to vector<1x144x128xf32>
    tpu.vector_store %arg4[%c0_44, %c0_45, %c0_46], %61 {strides = array<i32>} : memref<1x144x128xf32, #tpu.memory_space<vmem>>, vector<1x144x128xf32>,
    %62 = tpu.iota {dimensions = array<i32: 0>} : vector<144x1xi32>
    %c18_i32_47 = arith.constant 18 : i32
    %c0_i32_48 = arith.constant 0 : i32
    %63 = arith.cmpi eq, %c18_i32_47, %c0_i32_48 : i32
    %c1_i32_49 = arith.constant 1 : i32
    %64 = arith.select %63, %c1_i32_49, %c18_i32_47 : i32
    %65 = vector.broadcast %64 : i32 to vector<144x1xi32>
    %66 = arith.remsi %62, %65 : vector<144x1xi32>
    %c0_i32_50 = arith.constant 0 : i32
    %67 = vector.broadcast %c0_i32_50 : i32 to vector<144x1xi32>
    %68 = arith.cmpi ne, %66, %67 : vector<144x1xi32>
    %c0_i32_51 = arith.constant 0 : i32
    %69 = vector.broadcast %c0_i32_51 : i32 to vector<144x1xi32>
    %70 = arith.cmpi slt, %66, %69 : vector<144x1xi32>
    %c0_i32_52 = arith.constant 0 : i32
    %71 = arith.cmpi slt, %64, %c0_i32_52 : i32
    %72 = vector.broadcast %71 : i1 to vector<144x1xi1>
    %73 = vector.broadcast %72 : vector<144x1xi1> to vector<144x1xi1>
    %74 = arith.xori %70, %73 : vector<144x1xi1>
    %75 = arith.andi %74, %68 : vector<144x1xi1>
    %76 = vector.broadcast %64 : i32 to vector<144x1xi32>
    %77 = arith.addi %66, %76 : vector<144x1xi32>
    %78 = arith.select %75, %77, %66 : vector<144x1xi1>, vector<144x1xi32>
    %c16_i32 = arith.constant 16 : i32
    %79 = vector.broadcast %c16_i32 : i32 to vector<144x1xi32>
    %80 = arith.cmpi slt, %78, %79 : vector<144x1xi32>
    %cst_53 = arith.constant 0.000000e+00 : f32
    %81 = vector.shape_cast %80 : vector<144x1xi1> to vector<144x1xi1>
    %82 = vector.broadcast %81 : vector<144x1xi1> to vector<144x128xi1>
    %83 = vector.broadcast %cst_53 : f32 to vector<144x128xf32>
    %84 = arith.select %82, %58, %83 : vector<144x128xi1>, vector<144x128xf32>
    %cst_54 = arith.constant dense<0.000000e+00> : vector<128xf32>
    %85 = vector.multi_reduction <add>, %84, %cst_54 [0] : vector<144x128xf32> to vector<128xf32>
    %86 = vector.shape_cast %85 : vector<128xf32> to vector<1x128xf32>
    %87 = arith.mulf %84, %84 : vector<144x128xf32>
    %cst_55 = arith.constant dense<0.000000e+00> : vector<128xf32>
    %88 = vector.multi_reduction <add>, %87, %cst_55 [0] : vector<144x128xf32> to vector<128xf32>
    %89 = vector.shape_cast %88 : vector<128xf32> to vector<1x128xf32>
    %c0_i32_56 = arith.constant 0 : i32
    %90 = arith.cmpi eq, %arg1, %c0_i32_56 : i32
    %91 = arith.extui %90 : i1 to i32
    %c0_i32_57 = arith.constant 0 : i32
    %92 = arith.cmpi ne, %91, %c0_i32_57 : i32
    scf.if %92 {
      %c0_60 = arith.constant 0 : index
      %c0_61 = arith.constant 0 : index
      %c0_62 = arith.constant 0 : index
      %96 = vector.load %arg5[%c0_60, %c0_61, %c0_62] : memref<1x2x128xf32, #tpu.memory_space<vmem>>, vector<1x1x128xf32>
      %97 = vector.shape_cast %96 : vector<1x1x128xf32> to vector<1x128xf32>
      %98 = vector.shape_cast %86 : vector<1x128xf32> to vector<1x1x128xf32>
      tpu.vector_store %arg5[%c0_60, %c0_61, %c0_62], %98 {strides = array<i32>} : memref<1x2x128xf32, #tpu.memory_space<vmem>>, vector<1x1x128xf32>,
      %c0_63 = arith.constant 0 : index
      %c1 = arith.constant 1 : index
      %c0_64 = arith.constant 0 : index
      %99 = vector.load %arg5[%c0_63, %c1, %c0_64] : memref<1x2x128xf32, #tpu.memory_space<vmem>>, vector<1x1x128xf32>
      %100 = vector.shape_cast %99 : vector<1x1x128xf32> to vector<1x128xf32>
      %101 = vector.shape_cast %89 : vector<1x128xf32> to vector<1x1x128xf32>
      tpu.vector_store %arg5[%c0_63, %c1, %c0_64], %101 {strides = array<i32>} : memref<1x2x128xf32, #tpu.memory_space<vmem>>, vector<1x1x128xf32>,
    } else {
    }
    %c0_i32_58 = arith.constant 0 : i32
    %93 = arith.cmpi sgt, %arg1, %c0_i32_58 : i32
    %94 = arith.extui %93 : i1 to i32
    %c0_i32_59 = arith.constant 0 : i32
    %95 = arith.cmpi ne, %94, %c0_i32_59 : i32
    scf.if %95 {
      %c0_60 = arith.constant 0 : index
      %c0_61 = arith.constant 0 : index
      %c0_62 = arith.constant 0 : index
      %96 = vector.load %arg5[%c0_60, %c0_61, %c0_62] : memref<1x2x128xf32, #tpu.memory_space<vmem>>, vector<1x1x128xf32>
      %97 = vector.shape_cast %96 : vector<1x1x128xf32> to vector<1x128xf32>
      %98 = arith.addf %97, %86 : vector<1x128xf32>
      %c0_63 = arith.constant 0 : index
      %c0_64 = arith.constant 0 : index
      %c0_65 = arith.constant 0 : index
      %99 = vector.load %arg5[%c0_63, %c0_64, %c0_65] : memref<1x2x128xf32, #tpu.memory_space<vmem>>, vector<1x1x128xf32>
      %100 = vector.shape_cast %99 : vector<1x1x128xf32> to vector<1x128xf32>
      %101 = vector.shape_cast %98 : vector<1x128xf32> to vector<1x1x128xf32>
      tpu.vector_store %arg5[%c0_63, %c0_64, %c0_65], %101 {strides = array<i32>} : memref<1x2x128xf32, #tpu.memory_space<vmem>>, vector<1x1x128xf32>,
      %c0_66 = arith.constant 0 : index
      %c1 = arith.constant 1 : index
      %c0_67 = arith.constant 0 : index
      %102 = vector.load %arg5[%c0_66, %c1, %c0_67] : memref<1x2x128xf32, #tpu.memory_space<vmem>>, vector<1x1x128xf32>
      %103 = vector.shape_cast %102 : vector<1x1x128xf32> to vector<1x128xf32>
      %104 = arith.addf %103, %89 : vector<1x128xf32>
      %c0_68 = arith.constant 0 : index
      %c1_69 = arith.constant 1 : index
      %c0_70 = arith.constant 0 : index
      %105 = vector.load %arg5[%c0_68, %c1_69, %c0_70] : memref<1x2x128xf32, #tpu.memory_space<vmem>>, vector<1x1x128xf32>
      %106 = vector.shape_cast %105 : vector<1x1x128xf32> to vector<1x128xf32>
      %107 = vector.shape_cast %104 : vector<1x128xf32> to vector<1x1x128xf32>
      tpu.vector_store %arg5[%c0_68, %c1_69, %c0_70], %107 {strides = array<i32>} : memref<1x2x128xf32, #tpu.memory_space<vmem>>, vector<1x1x128xf32>,
    } else {
    }
    return
  }
  func.func @transform_0(%arg0: i32, %arg1: i32) -> (i32, i32, i32) {
    %c0_i32 = arith.constant 0 : i32
    %c0_i32_0 = arith.constant 0 : i32
    %c0_i32_1 = arith.constant 0 : i32
    return %arg0, %c0_i32, %c0_i32_0 : i32, i32, i32
  }
  func.func @transform_1(%arg0: i32, %arg1: i32) -> (i32, i32) {
    %c0_i32 = arith.constant 0 : i32
    %c0_i32_0 = arith.constant 0 : i32
    %c0_i32_1 = arith.constant 0 : i32
    return %c0_i32, %c0_i32_0 : i32, i32
  }
  func.func @transform_2(%arg0: i32, %arg1: i32) -> (i32, i32, i32) {
    %c0_i32 = arith.constant 0 : i32
    %c0_i32_0 = arith.constant 0 : i32
    return %arg0, %arg1, %c0_i32 : i32, i32, i32
  }
  func.func @transform_3(%arg0: i32, %arg1: i32) -> (i32, i32, i32) {
    %c0_i32 = arith.constant 0 : i32
    %c0_i32_0 = arith.constant 0 : i32
    %c0_i32_1 = arith.constant 0 : i32
    return %arg0, %c0_i32, %c0_i32_0 : i32, i32, i32
  }
}

module attributes {stable_mosaic.version = 11 : i64} {
  func.func @_conv_stats_kernel(%arg0: i32, %arg1: i32, %arg2: memref<1x342x32xf32, #tpu.memory_space<vmem>>, %arg3: memref<288x128xf32, #tpu.memory_space<vmem>>, %arg4: memref<1x144x128xf32, #tpu.memory_space<vmem>>, %arg5: memref<1x2x128xf32, #tpu.memory_space<vmem>>, %arg6: memref<144x288xf32, #tpu.memory_space<vmem>>) attributes {dimension_semantics = [#tpu.dimension_semantics<parallel>, #tpu.dimension_semantics<arbitrary>], iteration_bounds = array<i64: 2, 2>, scalar_prefetch = 0 : i64, scratch_operands = 1 : i64, tpu.core_type = #tpu.core_type<tc>, window_params = [{transform_indices = @transform_0, window_bounds = array<i64: 1, 342, 32>}, {pipeline_mode = #tpu.pipeline_mode<synchronous>, transform_indices = @transform_1, window_bounds = array<i64: 288, 128>}, {transform_indices = @transform_2, window_bounds = array<i64: 1, 144, 128>}, {transform_indices = @transform_3, window_bounds = array<i64: 1, 2, 128>}]} {
    %c144_i32 = arith.constant 144 : i32
    %0 = arith.muli %arg1, %c144_i32 : i32
    %1 = tpu.assume_multiple %0, 8 : i32
    %c0_i32 = arith.constant 0 : i32
    %2 = arith.addi %1, %c0_i32 : i32
    %c0_i32_0 = arith.constant 0 : i32
    %3 = arith.addi %2, %c0_i32_0 : i32
    %c0 = arith.constant 0 : index
    %4 = arith.index_cast %3 : i32 to index
    %c0_1 = arith.constant 0 : index
    %5 = vector.load %arg2[%c0, %4, %c0_1] : memref<1x342x32xf32, #tpu.memory_space<vmem>>, vector<1x144x32xf32>
    %6 = vector.shape_cast %5 : vector<1x144x32xf32> to vector<144x32xf32>
    %c0_2 = arith.constant 0 : index
    %c0_3 = arith.constant 0 : index
    %7 = vector.load %arg6[%c0_2, %c0_3] : memref<144x288xf32, #tpu.memory_space<vmem>>, vector<144x32xf32>
    tpu.vector_store %arg6[%c0_2, %c0_3], %6 {strides = array<i32>} : memref<144x288xf32, #tpu.memory_space<vmem>>, vector<144x32xf32>,
    %c0_i32_4 = arith.constant 0 : i32
    %8 = arith.addi %1, %c0_i32_4 : i32
    %c1_i32 = arith.constant 1 : i32
    %9 = arith.addi %8, %c1_i32 : i32
    %c0_5 = arith.constant 0 : index
    %10 = arith.index_cast %9 : i32 to index
    %c0_6 = arith.constant 0 : index
    %11 = vector.load %arg2[%c0_5, %10, %c0_6] : memref<1x342x32xf32, #tpu.memory_space<vmem>>, vector<1x144x32xf32>
    %12 = vector.shape_cast %11 : vector<1x144x32xf32> to vector<144x32xf32>
    %c0_7 = arith.constant 0 : index
    %c32 = arith.constant 32 : index
    %13 = vector.load %arg6[%c0_7, %c32] : memref<144x288xf32, #tpu.memory_space<vmem>>, vector<144x32xf32>
    tpu.vector_store %arg6[%c0_7, %c32], %12 {strides = array<i32>} : memref<144x288xf32, #tpu.memory_space<vmem>>, vector<144x32xf32>,
    %c0_i32_8 = arith.constant 0 : i32
    %14 = arith.addi %1, %c0_i32_8 : i32
    %c2_i32 = arith.constant 2 : i32
    %15 = arith.addi %14, %c2_i32 : i32
    %c0_9 = arith.constant 0 : index
    %16 = arith.index_cast %15 : i32 to index
    %c0_10 = arith.constant 0 : index
    %17 = vector.load %arg2[%c0_9, %16, %c0_10] : memref<1x342x32xf32, #tpu.memory_space<vmem>>, vector<1x144x32xf32>
    %18 = vector.shape_cast %17 : vector<1x144x32xf32> to vector<144x32xf32>
    %c0_11 = arith.constant 0 : index
    %c64 = arith.constant 64 : index
    %19 = vector.load %arg6[%c0_11, %c64] : memref<144x288xf32, #tpu.memory_space<vmem>>, vector<144x32xf32>
    tpu.vector_store %arg6[%c0_11, %c64], %18 {strides = array<i32>} : memref<144x288xf32, #tpu.memory_space<vmem>>, vector<144x32xf32>,
    %c18_i32 = arith.constant 18 : i32
    %20 = arith.addi %1, %c18_i32 : i32
    %c0_i32_12 = arith.constant 0 : i32
    %21 = arith.addi %20, %c0_i32_12 : i32
    %c0_13 = arith.constant 0 : index
    %22 = arith.index_cast %21 : i32 to index
    %c0_14 = arith.constant 0 : index
    %23 = vector.load %arg2[%c0_13, %22, %c0_14] : memref<1x342x32xf32, #tpu.memory_space<vmem>>, vector<1x144x32xf32>
    %24 = vector.shape_cast %23 : vector<1x144x32xf32> to vector<144x32xf32>
    %c0_15 = arith.constant 0 : index
    %c96 = arith.constant 96 : index
    %25 = vector.load %arg6[%c0_15, %c96] : memref<144x288xf32, #tpu.memory_space<vmem>>, vector<144x32xf32>
    tpu.vector_store %arg6[%c0_15, %c96], %24 {strides = array<i32>} : memref<144x288xf32, #tpu.memory_space<vmem>>, vector<144x32xf32>,
    %c18_i32_16 = arith.constant 18 : i32
    %26 = arith.addi %1, %c18_i32_16 : i32
    %c1_i32_17 = arith.constant 1 : i32
    %27 = arith.addi %26, %c1_i32_17 : i32
    %c0_18 = arith.constant 0 : index
    %28 = arith.index_cast %27 : i32 to index
    %c0_19 = arith.constant 0 : index
    %29 = vector.load %arg2[%c0_18, %28, %c0_19] : memref<1x342x32xf32, #tpu.memory_space<vmem>>, vector<1x144x32xf32>
    %30 = vector.shape_cast %29 : vector<1x144x32xf32> to vector<144x32xf32>
    %c0_20 = arith.constant 0 : index
    %c128 = arith.constant 128 : index
    %31 = vector.load %arg6[%c0_20, %c128] : memref<144x288xf32, #tpu.memory_space<vmem>>, vector<144x32xf32>
    tpu.vector_store %arg6[%c0_20, %c128], %30 {strides = array<i32>} : memref<144x288xf32, #tpu.memory_space<vmem>>, vector<144x32xf32>,
    %c18_i32_21 = arith.constant 18 : i32
    %32 = arith.addi %1, %c18_i32_21 : i32
    %c2_i32_22 = arith.constant 2 : i32
    %33 = arith.addi %32, %c2_i32_22 : i32
    %c0_23 = arith.constant 0 : index
    %34 = arith.index_cast %33 : i32 to index
    %c0_24 = arith.constant 0 : index
    %35 = vector.load %arg2[%c0_23, %34, %c0_24] : memref<1x342x32xf32, #tpu.memory_space<vmem>>, vector<1x144x32xf32>
    %36 = vector.shape_cast %35 : vector<1x144x32xf32> to vector<144x32xf32>
    %c0_25 = arith.constant 0 : index
    %c160 = arith.constant 160 : index
    %37 = vector.load %arg6[%c0_25, %c160] : memref<144x288xf32, #tpu.memory_space<vmem>>, vector<144x32xf32>
    tpu.vector_store %arg6[%c0_25, %c160], %36 {strides = array<i32>} : memref<144x288xf32, #tpu.memory_space<vmem>>, vector<144x32xf32>,
    %c36_i32 = arith.constant 36 : i32
    %38 = arith.addi %1, %c36_i32 : i32
    %c0_i32_26 = arith.constant 0 : i32
    %39 = arith.addi %38, %c0_i32_26 : i32
    %c0_27 = arith.constant 0 : index
    %40 = arith.index_cast %39 : i32 to index
    %c0_28 = arith.constant 0 : index
    %41 = vector.load %arg2[%c0_27, %40, %c0_28] : memref<1x342x32xf32, #tpu.memory_space<vmem>>, vector<1x144x32xf32>
    %42 = vector.shape_cast %41 : vector<1x144x32xf32> to vector<144x32xf32>
    %c0_29 = arith.constant 0 : index
    %c192 = arith.constant 192 : index
    %43 = vector.load %arg6[%c0_29, %c192] : memref<144x288xf32, #tpu.memory_space<vmem>>, vector<144x32xf32>
    tpu.vector_store %arg6[%c0_29, %c192], %42 {strides = array<i32>} : memref<144x288xf32, #tpu.memory_space<vmem>>, vector<144x32xf32>,
    %c36_i32_30 = arith.constant 36 : i32
    %44 = arith.addi %1, %c36_i32_30 : i32
    %c1_i32_31 = arith.constant 1 : i32
    %45 = arith.addi %44, %c1_i32_31 : i32
    %c0_32 = arith.constant 0 : index
    %46 = arith.index_cast %45 : i32 to index
    %c0_33 = arith.constant 0 : index
    %47 = vector.load %arg2[%c0_32, %46, %c0_33] : memref<1x342x32xf32, #tpu.memory_space<vmem>>, vector<1x144x32xf32>
    %48 = vector.shape_cast %47 : vector<1x144x32xf32> to vector<144x32xf32>
    %c0_34 = arith.constant 0 : index
    %c224 = arith.constant 224 : index
    %49 = vector.load %arg6[%c0_34, %c224] : memref<144x288xf32, #tpu.memory_space<vmem>>, vector<144x32xf32>
    tpu.vector_store %arg6[%c0_34, %c224], %48 {strides = array<i32>} : memref<144x288xf32, #tpu.memory_space<vmem>>, vector<144x32xf32>,
    %c36_i32_35 = arith.constant 36 : i32
    %50 = arith.addi %1, %c36_i32_35 : i32
    %c2_i32_36 = arith.constant 2 : i32
    %51 = arith.addi %50, %c2_i32_36 : i32
    %c0_37 = arith.constant 0 : index
    %52 = arith.index_cast %51 : i32 to index
    %c0_38 = arith.constant 0 : index
    %53 = vector.load %arg2[%c0_37, %52, %c0_38] : memref<1x342x32xf32, #tpu.memory_space<vmem>>, vector<1x144x32xf32>
    %54 = vector.shape_cast %53 : vector<1x144x32xf32> to vector<144x32xf32>
    %c0_39 = arith.constant 0 : index
    %c256 = arith.constant 256 : index
    %55 = vector.load %arg6[%c0_39, %c256] : memref<144x288xf32, #tpu.memory_space<vmem>>, vector<144x32xf32>
    tpu.vector_store %arg6[%c0_39, %c256], %54 {strides = array<i32>} : memref<144x288xf32, #tpu.memory_space<vmem>>, vector<144x32xf32>,
    %c0_40 = arith.constant 0 : index
    %c0_41 = arith.constant 0 : index
    %56 = vector.load %arg6[%c0_40, %c0_41] : memref<144x288xf32, #tpu.memory_space<vmem>>, vector<144x288xf32>
    %c0_42 = arith.constant 0 : index
    %c0_43 = arith.constant 0 : index
    %57 = vector.load %arg3[%c0_42, %c0_43] : memref<288x128xf32, #tpu.memory_space<vmem>>, vector<288x128xf32>
    %cst = arith.constant dense<0.000000e+00> : vector<144x128xf32>
    %58 = tpu.matmul %56, %57, %cst {dimension_numbers = #tpu.dot_dimension_numbers<[1], [0], [0], [1], [0, 0, 1, 1], [], []>} : vector<144x288xf32>, vector<288x128xf32>, vector<144x128xf32> -> vector<144x128xf32>
    %c0_44 = arith.constant 0 : index
    %c0_45 = arith.constant 0 : index
    %c0_46 = arith.constant 0 : index
    %59 = vector.load %arg4[%c0_44, %c0_45, %c0_46] : memref<1x144x128xf32, #tpu.memory_space<vmem>>, vector<1x144x128xf32>
    %60 = vector.shape_cast %59 : vector<1x144x128xf32> to vector<144x128xf32>
    %61 = vector.shape_cast %58 : vector<144x128xf32> to vector<1x144x128xf32>
    tpu.vector_store %arg4[%c0_44, %c0_45, %c0_46], %61 {strides = array<i32>} : memref<1x144x128xf32, #tpu.memory_space<vmem>>, vector<1x144x128xf32>,
    %62 = tpu.iota {dimensions = array<i32: 0>} : vector<144x1xi32>
    %c18_i32_47 = arith.constant 18 : i32
    %c0_i32_48 = arith.constant 0 : i32
    %63 = arith.cmpi eq, %c18_i32_47, %c0_i32_48 : i32
    %c1_i32_49 = arith.constant 1 : i32
    %64 = arith.select %63, %c1_i32_49, %c18_i32_47 : i32
    %65 = vector.broadcast %64 : i32 to vector<144x1xi32>
    %66 = arith.remsi %62, %65 : vector<144x1xi32>
    %c0_i32_50 = arith.constant 0 : i32
    %67 = vector.broadcast %c0_i32_50 : i32 to vector<144x1xi32>
    %68 = arith.cmpi ne, %66, %67 : vector<144x1xi32>
    %c0_i32_51 = arith.constant 0 : i32
    %69 = vector.broadcast %c0_i32_51 : i32 to vector<144x1xi32>
    %70 = arith.cmpi slt, %66, %69 : vector<144x1xi32>
    %c0_i32_52 = arith.constant 0 : i32
    %71 = arith.cmpi slt, %64, %c0_i32_52 : i32
    %72 = vector.broadcast %71 : i1 to vector<144x1xi1>
    %73 = vector.broadcast %72 : vector<144x1xi1> to vector<144x1xi1>
    %74 = arith.xori %70, %73 : vector<144x1xi1>
    %75 = arith.andi %74, %68 : vector<144x1xi1>
    %76 = vector.broadcast %64 : i32 to vector<144x1xi32>
    %77 = arith.addi %66, %76 : vector<144x1xi32>
    %78 = arith.select %75, %77, %66 : vector<144x1xi1>, vector<144x1xi32>
    %c16_i32 = arith.constant 16 : i32
    %79 = vector.broadcast %c16_i32 : i32 to vector<144x1xi32>
    %80 = arith.cmpi slt, %78, %79 : vector<144x1xi32>
    %cst_53 = arith.constant 0.000000e+00 : f32
    %81 = vector.shape_cast %80 : vector<144x1xi1> to vector<144x1xi1>
    %82 = vector.broadcast %81 : vector<144x1xi1> to vector<144x128xi1>
    %83 = vector.broadcast %cst_53 : f32 to vector<144x128xf32>
    %84 = arith.select %82, %58, %83 : vector<144x128xi1>, vector<144x128xf32>
    %cst_54 = arith.constant dense<0.000000e+00> : vector<128xf32>
    %85 = vector.multi_reduction <add>, %84, %cst_54 [0] : vector<144x128xf32> to vector<128xf32>
    %86 = vector.shape_cast %85 : vector<128xf32> to vector<1x128xf32>
    %87 = arith.mulf %84, %84 : vector<144x128xf32>
    %cst_55 = arith.constant dense<0.000000e+00> : vector<128xf32>
    %88 = vector.multi_reduction <add>, %87, %cst_55 [0] : vector<144x128xf32> to vector<128xf32>
    %89 = vector.shape_cast %88 : vector<128xf32> to vector<1x128xf32>
    %c0_i32_56 = arith.constant 0 : i32
    %90 = arith.cmpi eq, %arg1, %c0_i32_56 : i32
    %91 = arith.extui %90 : i1 to i32
    %c0_i32_57 = arith.constant 0 : i32
    %92 = arith.cmpi ne, %91, %c0_i32_57 : i32
    scf.if %92 {
      %c0_60 = arith.constant 0 : index
      %c0_61 = arith.constant 0 : index
      %c0_62 = arith.constant 0 : index
      %96 = vector.load %arg5[%c0_60, %c0_61, %c0_62] : memref<1x2x128xf32, #tpu.memory_space<vmem>>, vector<1x1x128xf32>
      %97 = vector.shape_cast %96 : vector<1x1x128xf32> to vector<1x128xf32>
      %98 = vector.shape_cast %86 : vector<1x128xf32> to vector<1x1x128xf32>
      tpu.vector_store %arg5[%c0_60, %c0_61, %c0_62], %98 {strides = array<i32>} : memref<1x2x128xf32, #tpu.memory_space<vmem>>, vector<1x1x128xf32>,
      %c0_63 = arith.constant 0 : index
      %c1 = arith.constant 1 : index
      %c0_64 = arith.constant 0 : index
      %99 = vector.load %arg5[%c0_63, %c1, %c0_64] : memref<1x2x128xf32, #tpu.memory_space<vmem>>, vector<1x1x128xf32>
      %100 = vector.shape_cast %99 : vector<1x1x128xf32> to vector<1x128xf32>
      %101 = vector.shape_cast %89 : vector<1x128xf32> to vector<1x1x128xf32>
      tpu.vector_store %arg5[%c0_63, %c1, %c0_64], %101 {strides = array<i32>} : memref<1x2x128xf32, #tpu.memory_space<vmem>>, vector<1x1x128xf32>,
    } else {
    }
    %c0_i32_58 = arith.constant 0 : i32
    %93 = arith.cmpi sgt, %arg1, %c0_i32_58 : i32
    %94 = arith.extui %93 : i1 to i32
    %c0_i32_59 = arith.constant 0 : i32
    %95 = arith.cmpi ne, %94, %c0_i32_59 : i32
    scf.if %95 {
      %c0_60 = arith.constant 0 : index
      %c0_61 = arith.constant 0 : index
      %c0_62 = arith.constant 0 : index
      %96 = vector.load %arg5[%c0_60, %c0_61, %c0_62] : memref<1x2x128xf32, #tpu.memory_space<vmem>>, vector<1x1x128xf32>
      %97 = vector.shape_cast %96 : vector<1x1x128xf32> to vector<1x128xf32>
      %98 = arith.addf %97, %86 : vector<1x128xf32>
      %c0_63 = arith.constant 0 : index
      %c0_64 = arith.constant 0 : index
      %c0_65 = arith.constant 0 : index
      %99 = vector.load %arg5[%c0_63, %c0_64, %c0_65] : memref<1x2x128xf32, #tpu.memory_space<vmem>>, vector<1x1x128xf32>
      %100 = vector.shape_cast %99 : vector<1x1x128xf32> to vector<1x128xf32>
      %101 = vector.shape_cast %98 : vector<1x128xf32> to vector<1x1x128xf32>
      tpu.vector_store %arg5[%c0_63, %c0_64, %c0_65], %101 {strides = array<i32>} : memref<1x2x128xf32, #tpu.memory_space<vmem>>, vector<1x1x128xf32>,
      %c0_66 = arith.constant 0 : index
      %c1 = arith.constant 1 : index
      %c0_67 = arith.constant 0 : index
      %102 = vector.load %arg5[%c0_66, %c1, %c0_67] : memref<1x2x128xf32, #tpu.memory_space<vmem>>, vector<1x1x128xf32>
      %103 = vector.shape_cast %102 : vector<1x1x128xf32> to vector<1x128xf32>
      %104 = arith.addf %103, %89 : vector<1x128xf32>
      %c0_68 = arith.constant 0 : index
      %c1_69 = arith.constant 1 : index
      %c0_70 = arith.constant 0 : index
      %105 = vector.load %arg5[%c0_68, %c1_69, %c0_70] : memref<1x2x128xf32, #tpu.memory_space<vmem>>, vector<1x1x128xf32>
      %106 = vector.shape_cast %105 : vector<1x1x128xf32> to vector<1x128xf32>
      %107 = vector.shape_cast %104 : vector<1x128xf32> to vector<1x1x128xf32>
      tpu.vector_store %arg5[%c0_68, %c1_69, %c0_70], %107 {strides = array<i32>} : memref<1x2x128xf32, #tpu.memory_space<vmem>>, vector<1x1x128xf32>,
    } else {
    }
    return
  }
  func.func @transform_0(%arg0: i32, %arg1: i32) -> (i32, i32, i32) {
    %c0_i32 = arith.constant 0 : i32
    %c0_i32_0 = arith.constant 0 : i32
    %c0_i32_1 = arith.constant 0 : i32
    return %arg0, %c0_i32, %c0_i32_0 : i32, i32, i32
  }
  func.func @transform_1(%arg0: i32, %arg1: i32) -> (i32, i32) {
    %c0_i32 = arith.constant 0 : i32
    %c0_i32_0 = arith.constant 0 : i32
    %c0_i32_1 = arith.constant 0 : i32
    return %c0_i32, %c0_i32_0 : i32, i32
  }
  func.func @transform_2(%arg0: i32, %arg1: i32) -> (i32, i32, i32) {
    %c0_i32 = arith.constant 0 : i32
    %c0_i32_0 = arith.constant 0 : i32
    return %arg0, %arg1, %c0_i32 : i32, i32, i32
  }
  func.func @transform_3(%arg0: i32, %arg1: i32) -> (i32, i32, i32) {
    %c0_i32 = arith.constant 0 : i32
    %c0_i32_0 = arith.constant 0 : i32
    %c0_i32_1 = arith.constant 0 : i32
    return %arg0, %c0_i32, %c0_i32_0 : i32, i32, i32
  }
}

</mosaic_0001>

<llo_original>
// kernel: inception2d.10
$region0: #{inception2d.10}
  #allocation0 [shape = 'u32[]', space=smem, size = 0x4, offset = 0x4, fixed_abs, tag = 'smem constant byte address 0x4 - core index']
  #allocation1 [shape = 'u32[72,128]{1,0:T(1,128)}', space=vmem, size = 0x9000, scoped, tag = 'internal scratch']
  %s0 = inlined_call_operand.hbm [shape: f32[2,256,32], index: 0, kind: input, shape index: {}]
  %s1 = inlined_call_operand.vmem [shape: f32[32,128], index: 1, kind: input, shape index: {}]
  %s2 = inlined_call_operand.vmem [shape: f32[2,256,128], index: 2, kind: output, shape index: {0}]
  %s3 = inlined_call_operand.vmem [shape: f32[2,2,128], index: 3, kind: output, shape index: {1}]
  %4 = xla_tuple %s2, %s3
  %s5 = sld [smem:[#allocation0]]
  $region61: #{inception2d.10} parent=0
    _
  %s7 = ssub.s32 1, %s5
  %s8 = scalar_select 0, %s7, %s5
  $region1: #{inception2d.10} parent=0
    #allocation2 [shape = 'u8[262144]{0}', space=vmem, size = 0x40000, scoped, tag = 'input window, operand 0']
    #allocation3 [shape = 's32[2]{0}', space=sflag, size = 0x8, scoped, tag = 'scoped memory for inception2d.10']
    %9 = vsyncpa [#allocation3], 0
    %s10 = scalar_lea.sflag [#allocation3], 1
    %11 = vsyncpa %s10, 0
    loop: start=0, step=1, limit=4
    $region2: #{inception2d.10} parent=1 // loop_pre_header
      _
    $region3: #{inception2d.10} parent=1 // loop_header
      %s13 = sphi 0, %s17
      %p14 = scmp.ge.s32.totalorder %s13, 4
      %s20 = sphi 0, %s32
      %s21 = sphi 0, %s28
      %s22 = sphi 0, %s20
      %s23 = sphi 0, %s21
      %s24 = sphi 0, %s22
      %s25 = sphi 0, %s23
      %s35 = sphi 0, %s37
      %s38 = sphi 0, %s35
      %s39 = sphi 0, %s38
      %s55 = sphi 0, %s39
      %s59 = sphi 0, %s59
      %s61 = sphi 0, %s59
      %s62 = sphi 0, %s61
      %s76 = sphi 0, %s62
      %s84 = sphi 0, %s86
      %s87 = sphi 0, %s84
      %s88 = sphi 0, %s87
      %s104 = sphi 0, %s88
      %s110 = sphi 0, %s112
      %s113 = sphi 0, %s110
      %s114 = sphi 0, %s113
      %s130 = sphi 0, %s114
    $region4: #{inception2d.10} parent=1 // loop_header_branch
      %16 = sbr.rel (%p14) target = $region8
    $region5: #{inception2d.10} parent=1 // loop_body
      %s18 = ssub.s32 %s13, 1
      %s19 = ssub.s32 %s13, 2
      %s26 = sadd.s32 1, %s21
      %p27 = scmp.ge.s32.totalorder %s26, 1
      %s28 = scalar_select %p27, 0, %s26
      %s29 = sadd.s32 1, %s20
      %s30 = scalar_select %p27, %s29, %s20
      %p31 = scmp.ge.s32.totalorder %s30, 2
      %s32 = scalar_select %p31, 0, %s30
      %s33 = ssub.s32 %s20, %s32
      %p34 = scmp.eq.s32.totalorder %s33, 0
      %s36 = sadd.s32 %s35, 1
      %s37 = scalar_select %p34, %s35, %s36
      %p40 = pneg %p34
      %p41 = scmp.eq.s32.totalorder %s13, 1
      %p42 = por %p40, %p41
      %p43 = scmp.ne.s32.totalorder %s35, %s38
      %p44 = scmp.eq.s32.totalorder %s13, 0
      %p45 = por %p43, %p44
      %p46 = scmp.ne.s32.totalorder %s35, %s38
      %p47 = scmp.eq.s32.totalorder %s18, 1
      %p48 = por %p46, %p47
      %p49 = scmp.ne.s32.totalorder %s38, %s39
      %p50 = scmp.eq.s32.totalorder %s18, 0
      %p51 = por %p49, %p50
      %p52 = scmp.ne.s32.totalorder %s38, %s39
      %p53 = scmp.eq.s32.totalorder %s19, 1
      %p54 = por %p52, %p53
      %p56 = scmp.ne.s32.totalorder %s39, %s55
      %p57 = scmp.eq.s32.totalorder %s19, 0
      %p58 = por %p56, %p57
      %s60 = sadd.s32 %s59, 1
      %p63 = scmp.eq.s32.totalorder %s13, 1
      %p64 = scmp.ne.s32.totalorder %s59, %s61
      %p65 = scmp.eq.s32.totalorder %s13, 0
      %p66 = por %p64, %p65
      %p67 = scmp.ne.s32.totalorder %s59, %s61
      %p68 = scmp.eq.s32.totalorder %s18, 1
      %p69 = por %p67, %p68
      %p70 = scmp.ne.s32.totalorder %s61, %s62
      %p71 = scmp.eq.s32.totalorder %s18, 0
      %p72 = por %p70, %p71
      %p73 = scmp.ne.s32.totalorder %s61, %s62
      %p74 = scmp.eq.s32.totalorder %s19, 1
      %p75 = por %p73, %p74
      %p77 = scmp.ne.s32.totalorder %s62, %s76
      %p78 = scmp.eq.s32.totalorder %s19, 0
      %p79 = por %p77, %p78
      %s80 = ssub.s32 %s20, %s32
      %s81 = ssub.s32 %s21, %s28
      %s82 = sor.u32 %s80, %s81
      %p83 = scmp.eq.s32.totalorder %s82, 0
      %s85 = sadd.s32 %s84, 1
      %s86 = scalar_select %p83, %s84, %s85
      %p89 = pneg %p83
      %p90 = scmp.eq.s32.totalorder %s13, 1
      %p91 = por %p89, %p90
      %p92 = scmp.ne.s32.totalorder %s84, %s87
      %p93 = scmp.eq.s32.totalorder %s13, 0
      %p94 = por %p92, %p93
      %p95 = scmp.ne.s32.totalorder %s84, %s87
      %p96 = scmp.eq.s32.totalorder %s18, 1
      %p97 = por %p95, %p96
      %p98 = scmp.ne.s32.totalorder %s87, %s88
      %p99 = scmp.eq.s32.totalorder %s18, 0
      %p100 = por %p98, %p99
      %p101 = scmp.ne.s32.totalorder %s87, %s88
      %p102 = scmp.eq.s32.totalorder %s19, 1
      %p103 = por %p101, %p102
      %p105 = scmp.ne.s32.totalorder %s88, %s104
      %p106 = scmp.eq.s32.totalorder %s19, 0
      %p107 = por %p105, %p106
      %s108 = ssub.s32 %s20, %s32
      %p109 = scmp.eq.s32.totalorder %s108, 0
      %s111 = sadd.s32 %s110, 1
      %s112 = scalar_select %p109, %s110, %s111
      %p115 = pneg %p109
      %p116 = scmp.eq.s32.totalorder %s13, 1
      %p117 = por %p115, %p116
      %p118 = scmp.ne.s32.totalorder %s110, %s113
      %p119 = scmp.eq.s32.totalorder %s13, 0
      %p120 = por %p118, %p119
      %p121 = scmp.ne.s32.totalorder %s110, %s113
      %p122 = scmp.eq.s32.totalorder %s18, 1
      %p123 = por %p121, %p122
      %p124 = scmp.ne.s32.totalorder %s113, %s114
      %p125 = scmp.eq.s32.totalorder %s18, 0
      %p126 = por %p124, %p125
      %p127 = scmp.ne.s32.totalorder %s113, %s114
      %p128 = scmp.eq.s32.totalorder %s19, 1
      %p129 = por %p127, %p128
      %p131 = scmp.ne.s32.totalorder %s114, %s130
      %p132 = scmp.eq.s32.totalorder %s19, 0
      %p133 = por %p131, %p132
      %p134 = scmp.le.s32.totalorder 1, %s13
      %p135 = scmp.lt.s32.totalorder %s13, 3
      %p136 = pnand %p134, %p135
      %p137 = pneg %p136
      // Predicated region
      $region9: #{inception2d.10} parent=5 // pred_check
        _
      $region10: #{inception2d.10} parent=5 // pred_check_branch
        %139 = sbr.rel (%p136) target = $region12
      $region11: #{inception2d.10} parent=5 // pred_region
        %s140 = ssub.s32 %s13, 1
        // Predicated region
        $region13: #{inception2d.10} parent=11 // pred_check
          %p141 = pneg %p72
        $region14: #{inception2d.10} parent=11 // pred_check_branch
          %143 = sbr.rel (%p141) target = $region16
        $region15: #{inception2d.10} parent=11 // pred_region
          _
        $region16: #{inception2d.10} parent=11 // pred_fallthru
          _
      $region12: #{inception2d.10} parent=5 // pred_fallthru
        _
      %p144 = scmp.lt.s32.totalorder %s13, 2
      // Predicated region
      $region17: #{inception2d.10} parent=5 // pred_check
        %p145 = pneg %p144
      $region18: #{inception2d.10} parent=5 // pred_check_branch
        %147 = sbr.rel (%p145) target = $region20
      $region19: #{inception2d.10} parent=5 // pred_region
        // Predicated region
        $region21: #{inception2d.10} parent=19 // pred_check
          %p148 = pneg %p45
        $region22: #{inception2d.10} parent=19 // pred_check_branch
          %150 = sbr.rel (%p148) target = $region24
        $region23: #{inception2d.10} parent=19 // pred_region
          %s151 = sand.u32 %s35, 1
          %s152 = scalar_lea.sflag [#allocation3], %s151
          %s153 = sand.u32 %s35, 1
          %s154 = smul.addr %s153, 256
          %s155 = scalar_lea.vmem [#allocation2], %s154
          %157 = vsyncadd %s152, 0
          %s158 = smul.addr %s20, 32
          %s159 = smul.addr %s158, 8
          %s160 = scalar_lea.hbm %s0, %s159
          %s161 = sshll.u32 %s160, 4
          %s162 = int_to_ptr.hbm [resolvable:$true] %s161
          %s163 = sshll.u32 %s155, 4
          %s164 = int_to_ptr.vmem [resolvable:$true] %s163
          %169 = dma.hbm_to_vmem [thread:$0]  %s162, 4096, %s164, %s152, 128, 128, 8
        $region24: #{inception2d.10} parent=19 // pred_fallthru
          _
      $region20: #{inception2d.10} parent=5 // pred_fallthru
        _
      %p170 = scmp.le.s32.totalorder 1, %s13
      %p171 = scmp.lt.s32.totalorder %s13, 3
      %p172 = pnand %p170, %p171
      %p173 = pneg %p172
      // Predicated region
      $region25: #{inception2d.10} parent=5 // pred_check
        _
      $region26: #{inception2d.10} parent=5 // pred_check_branch
        %175 = sbr.rel (%p172) target = $region28
      $region27: #{inception2d.10} parent=5 // pred_region
        %s176 = ssub.s32 %s13, 1
        %s177 = sand.u32 %s38, 1
        %s178 = scalar_lea.sflag [#allocation3], %s177
        %s179 = sand.u32 %s38, 1
        %s180 = smul.addr %s179, 256
        %s181 = scalar_lea.vmem [#allocation2], %s180
        // Predicated region
        $region29: #{inception2d.10} parent=27 // pred_check
          %p182 = pneg %p51
        $region30: #{inception2d.10} parent=27 // pred_check_branch
          %184 = sbr.rel (%p182) target = $region32
        $region31: #{inception2d.10} parent=27 // pred_region
          %186 = dma.done %s178, 4096
        $region32: #{inception2d.10} parent=27 // pred_fallthru
          _
        %s187 = sand.u32 %s38, 1
        %s188 = scalar_lea.sflag [#allocation3], %s187
        %s189 = sand.u32 %s38, 1
        %s190 = smul.addr %s189, 256
        %s191 = scalar_lea.vmem [#allocation2], %s190
        %p192 = pneg %p51
        %p193 = pneg %p48
        %p194 = pneg %p72
        %p195 = pneg %p69
        %p196 = pneg %p100
        %p197 = pneg %p97
        %s198 = smul.u32 32, %s23
        %p199 = scmp.lt.s32.totalorder %s22, 1
        %s200 = scalar_select %p199, %s22, 1
        %p201 = scmp.lt.s32.totalorder %s198, 31
        %s202 = scalar_select %p201, %s198, 31
        %s203 = smul.addr %s200, 32
        %s204 = sadd.s32 %s202, %s203
        %s205 = smul.addr %s204, 8
        %s206 = scalar_lea.vmem %s2, %s205
        %p207 = pneg %p126
        %p208 = pneg %p123
        %p209 = scmp.lt.s32.totalorder %s22, 1
        %s210 = scalar_select %p209, %s22, 1
        %s211 = smul.addr %s210, 2
        %s212 = scalar_lea.vmem %s3, %s211
        %s213 = smul.u32 32, %s23
        %p214 = scmp.lt.s32.totalorder %s22, 1
        %s215 = scalar_select %p214, %s22, 1
        %p216 = scmp.lt.s32.totalorder %s213, 31
        %s217 = scalar_select %p216, %s213, 31
        %s218 = smul.addr %s215, 32
        %s219 = sadd.s32 %s217, %s218
        %s220 = smul.addr %s219, 8
        %s221 = scalar_lea.vmem %s2, %s220
        %s222 = smul.u32 32, %s23
        %p223 = scmp.lt.s32.totalorder %s22, 1
        %s224 = scalar_select %p223, %s22, 1
        %s225 = smul.addr %s224, 2
        %s226 = scalar_lea.vmem %s3, %s225
        %s227 = smul.u32 %s23, 256
        %s228 = scalar_lea.vmem %s181, %s227 [#allocation2]
        %v229 = vld [vmem:[%s228] sm:$0xff]
        %v230 = vld [vmem:[%s228 + $0x8] sm:$0xff]
        %v231 = vld [vmem:[%s228 + $0x10] sm:$0xff]
        %v232 = vld [vmem:[%s228 + $0x18] sm:$0xff]
        %v233 = vld [vmem:[%s228 + $0x20] sm:$0xff]
        %v234 = vld [vmem:[%s228 + $0x28] sm:$0xff]
        %v235 = vld [vmem:[%s228 + $0x30] sm:$0xff]
        %v236 = vld [vmem:[%s228 + $0x38] sm:$0xff]
        %v237 = vld [vmem:[%s228 + $0x40] sm:$0xff]
        %v238 = vld [vmem:[%s228 + $0x48] sm:$0xff]
        %v239 = vld [vmem:[%s228 + $0x50] sm:$0xff]
        %v240 = vld [vmem:[%s228 + $0x58] sm:$0xff]
        %v241 = vld [vmem:[%s228 + $0x60] sm:$0xff]
        %v242 = vld [vmem:[%s228 + $0x68] sm:$0xff]
        %v243 = vld [vmem:[%s228 + $0x70] sm:$0xff]
        %v244 = vld [vmem:[%s228 + $0x78] sm:$0xff]
        %v245 = vld [vmem:[%s228 + $0x80] sm:$0xff]
        %v246 = vld [vmem:[%s228 + $0x88] sm:$0xff]
        %v247 = vld [vmem:[%s228 + $0x90] sm:$0xff]
        %v248 = vld [vmem:[%s228 + $0x98] sm:$0xff]
        %v249 = vld [vmem:[%s228 + $0xa0] sm:$0xff]
        %v250 = vld [vmem:[%s228 + $0xa8] sm:$0xff]
        %v251 = vld [vmem:[%s228 + $0xb0] sm:$0xff]
        %v252 = vld [vmem:[%s228 + $0xb8] sm:$0xff]
        %v253 = vld [vmem:[%s228 + $0xc0] sm:$0xff]
        %v254 = vld [vmem:[%s228 + $0xc8] sm:$0xff]
        %v255 = vld [vmem:[%s228 + $0xd0] sm:$0xff]
        %v256 = vld [vmem:[%s228 + $0xd8] sm:$0xff]
        %v257 = vld [vmem:[%s228 + $0xe0] sm:$0xff]
        %v258 = vld [vmem:[%s228 + $0xe8] sm:$0xff]
        %v259 = vld [vmem:[%s228 + $0xf0] sm:$0xff]
        %v260 = vld [vmem:[%s228 + $0xf8] sm:$0xff]
        %v261 = vld [vmem:[%s1] sm:$0xff]
        %v262 = vld [vmem:[%s1 + $0x8] sm:$0xff]
        %v263 = vld [vmem:[%s1 + $0x10] sm:$0xff]
        %v264 = vld [vmem:[%s1 + $0x18] sm:$0xff]
        %vm265 = vcmask 261120
        %v267 = vsel %vm265, %v229, 0
        %v270 = vsel %vm265, %v230, 0
        %v273 = vsel %vm265, %v231, 0
        %v276 = vsel %vm265, %v232, 0
        %v279 = vsel %vm265, %v233, 0
        %v282 = vsel %vm265, %v234, 0
        %v285 = vsel %vm265, %v235, 0
        %v288 = vsel %vm265, %v236, 0
        %v291 = vsel %vm265, %v237, 0
        %v294 = vsel %vm265, %v238, 0
        %v297 = vsel %vm265, %v239, 0
        %v300 = vsel %vm265, %v240, 0
        %v303 = vsel %vm265, %v241, 0
        %v306 = vsel %vm265, %v242, 0
        %v309 = vsel %vm265, %v243, 0
        %v312 = vsel %vm265, %v244, 0
        %v315 = vsel %vm265, %v245, 0
        %v318 = vsel %vm265, %v246, 0
        %v321 = vsel %vm265, %v247, 0
        %v324 = vsel %vm265, %v248, 0
        %v327 = vsel %vm265, %v249, 0
        %v330 = vsel %vm265, %v250, 0
        %v333 = vsel %vm265, %v251, 0
        %v336 = vsel %vm265, %v252, 0
        %v339 = vsel %vm265, %v253, 0
        %v342 = vsel %vm265, %v254, 0
        %v345 = vsel %vm265, %v255, 0
        %v348 = vsel %vm265, %v256, 0
        %v351 = vsel %vm265, %v257, 0
        %v354 = vsel %vm265, %v258, 0
        %v357 = vsel %vm265, %v259, 0
        %v360 = vsel %vm265, %v260, 0
        %362 = vmatpush.msra.mxu0 0.0
        %363 = vmatpush.msra.mxu0 0.0
        %364 = vmatpush.msra.mxu0 0.0
        %365 = vmatpush.msra.mxu0 0.0
        %366 = vmatpush.msra.mxu0 0.0
        %367 = vmatpush.msra.mxu0 0.0
        %368 = vmatpush.msra.mxu0 0.0
        %369 = vmatpush.msra.mxu0 0.0
        %370 = vmatpush.msra.mxu0 0.0
        %371 = vmatpush.msra.mxu0 0.0
        %372 = vmatpush.msra.mxu0 0.0
        %373 = vmatpush.msra.mxu0 0.0
        %374 = vmatpush.msra.mxu0 %v264
        %375 = vmatpush.msra.mxu0 %v263
        %376 = vmatpush.msra.mxu0 %v262
        %377 = vmatpush.msra.mxu0 %v261
        %378 = vmatmul.f32.gmra.mxu0 %v267
        %v379 = vpop.f32.mrf.mxu0
        %v380 = vadd.f32 0.0, %v379
        %381 = vmatmul.f32.gmra.mxu0 %v270
        %v382 = vpop.f32.mrf.mxu0
        %v383 = vadd.f32 0.0, %v382
        %384 = vmatmul.f32.gmra.mxu0 %v273
        %v385 = vpop.f32.mrf.mxu0
        %v386 = vadd.f32 0.0, %v385
        %387 = vmatmul.f32.gmra.mxu0 %v276
        %v388 = vpop.f32.mrf.mxu0
        %v389 = vadd.f32 0.0, %v388
        %390 = vmatmul.f32.gmra.mxu0 %v279
        %v391 = vpop.f32.mrf.mxu0
        %v392 = vadd.f32 0.0, %v391
        %393 = vmatmul.f32.gmra.mxu0 %v282
        %v394 = vpop.f32.mrf.mxu0
        %v395 = vadd.f32 0.0, %v394
        %396 = vmatmul.f32.gmra.mxu0 %v285
        %v397 = vpop.f32.mrf.mxu0
        %v398 = vadd.f32 0.0, %v397
        %399 = vmatmul.f32.gmra.mxu0 %v288
        %v400 = vpop.f32.mrf.mxu0
        %v401 = vadd.f32 0.0, %v400
        %402 = vmatmul.f32.gmra.mxu0 %v291
        %v403 = vpop.f32.mrf.mxu0
        %v404 = vadd.f32 0.0, %v403
        %405 = vmatmul.f32.gmra.mxu0 %v294
        %v406 = vpop.f32.mrf.mxu0
        %v407 = vadd.f32 0.0, %v406
        %408 = vmatmul.f32.gmra.mxu0 %v297
        %v409 = vpop.f32.mrf.mxu0
        %v410 = vadd.f32 0.0, %v409
        %411 = vmatmul.f32.gmra.mxu0 %v300
        %v412 = vpop.f32.mrf.mxu0
        %v413 = vadd.f32 0.0, %v412
        %414 = vmatmul.f32.gmra.mxu0 %v303
        %v415 = vpop.f32.mrf.mxu0
        %v416 = vadd.f32 0.0, %v415
        %417 = vmatmul.f32.gmra.mxu0 %v306
        %v418 = vpop.f32.mrf.mxu0
        %v419 = vadd.f32 0.0, %v418
        %420 = vmatmul.f32.gmra.mxu0 %v309
        %v421 = vpop.f32.mrf.mxu0
        %v422 = vadd.f32 0.0, %v421
        %423 = vmatmul.f32.gmra.mxu0 %v312
        %v424 = vpop.f32.mrf.mxu0
        %v425 = vadd.f32 0.0, %v424
        %426 = vmatmul.f32.gmra.mxu0 %v315
        %v427 = vpop.f32.mrf.mxu0
        %v428 = vadd.f32 0.0, %v427
        %429 = vmatmul.f32.gmra.mxu0 %v318
        %v430 = vpop.f32.mrf.mxu0
        %v431 = vadd.f32 0.0, %v430
        %432 = vmatmul.f32.gmra.mxu0 %v321
        %v433 = vpop.f32.mrf.mxu0
        %v434 = vadd.f32 0.0, %v433
        %435 = vmatmul.f32.gmra.mxu0 %v324
        %v436 = vpop.f32.mrf.mxu0
        %v437 = vadd.f32 0.0, %v436
        %438 = vmatmul.f32.gmra.mxu0 %v327
        %v439 = vpop.f32.mrf.mxu0
        %v440 = vadd.f32 0.0, %v439
        %441 = vmatmul.f32.gmra.mxu0 %v330
        %v442 = vpop.f32.mrf.mxu0
        %v443 = vadd.f32 0.0, %v442
        %444 = vmatmul.f32.gmra.mxu0 %v333
        %v445 = vpop.f32.mrf.mxu0
        %v446 = vadd.f32 0.0, %v445
        %447 = vmatmul.f32.gmra.mxu0 %v336
        %v448 = vpop.f32.mrf.mxu0
        %v449 = vadd.f32 0.0, %v448
        %450 = vmatmul.f32.gmra.mxu0 %v339
        %v451 = vpop.f32.mrf.mxu0
        %v452 = vadd.f32 0.0, %v451
        %453 = vmatmul.f32.gmra.mxu0 %v342
        %v454 = vpop.f32.mrf.mxu0
        %v455 = vadd.f32 0.0, %v454
        %456 = vmatmul.f32.gmra.mxu0 %v345
        %v457 = vpop.f32.mrf.mxu0
        %v458 = vadd.f32 0.0, %v457
        %459 = vmatmul.f32.gmra.mxu0 %v348
        %v460 = vpop.f32.mrf.mxu0
        %v461 = vadd.f32 0.0, %v460
        %462 = vmatmul.f32.gmra.mxu0 %v351
        %v463 = vpop.f32.mrf.mxu0
        %v464 = vadd.f32 0.0, %v463
        %465 = vmatmul.f32.gmra.mxu0 %v354
        %v466 = vpop.f32.mrf.mxu0
        %v467 = vadd.f32 0.0, %v466
        %468 = vmatmul.f32.gmra.mxu0 %v357
        %v469 = vpop.f32.mrf.mxu0
        %v470 = vadd.f32 0.0, %v469
        %471 = vmatmul.f32.gmra.mxu0 %v360
        %v472 = vpop.f32.mrf.mxu0
        %v473 = vadd.f32 0.0, %v472
        %474 = vdwg.mxu0
        %475 = vst [vmem:[%s221] sm:$0xff] %v380
        %476 = vst [vmem:[%s221 + $0x8] sm:$0xff] %v383
        %477 = vst [vmem:[%s221 + $0x10] sm:$0xff] %v386
        %478 = vst [vmem:[%s221 + $0x18] sm:$0xff] %v389
        %479 = vst [vmem:[%s221 + $0x20] sm:$0xff] %v392
        %480 = vst [vmem:[%s221 + $0x28] sm:$0xff] %v395
        %481 = vst [vmem:[%s221 + $0x30] sm:$0xff] %v398
        %482 = vst [vmem:[%s221 + $0x38] sm:$0xff] %v401
        %483 = vst [vmem:[%s221 + $0x40] sm:$0xff] %v404
        %484 = vst [vmem:[%s221 + $0x48] sm:$0xff] %v407
        %485 = vst [vmem:[%s221 + $0x50] sm:$0xff] %v410
        %486 = vst [vmem:[%s221 + $0x58] sm:$0xff] %v413
        %487 = vst [vmem:[%s221 + $0x60] sm:$0xff] %v416
        %488 = vst [vmem:[%s221 + $0x68] sm:$0xff] %v419
        %489 = vst [vmem:[%s221 + $0x70] sm:$0xff] %v422
        %490 = vst [vmem:[%s221 + $0x78] sm:$0xff] %v425
        %491 = vst [vmem:[%s221 + $0x80] sm:$0xff] %v428
        %492 = vst [vmem:[%s221 + $0x88] sm:$0xff] %v431
        %493 = vst [vmem:[%s221 + $0x90] sm:$0xff] %v434
        %494 = vst [vmem:[%s221 + $0x98] sm:$0xff] %v437
        %495 = vst [vmem:[%s221 + $0xa0] sm:$0xff] %v440
        %496 = vst [vmem:[%s221 + $0xa8] sm:$0xff] %v443
        %497 = vst [vmem:[%s221 + $0xb0] sm:$0xff] %v446
        %498 = vst [vmem:[%s221 + $0xb8] sm:$0xff] %v449
        %499 = vst [vmem:[%s221 + $0xc0] sm:$0xff] %v452
        %500 = vst [vmem:[%s221 + $0xc8] sm:$0xff] %v455
        %501 = vst [vmem:[%s221 + $0xd0] sm:$0xff] %v458
        %502 = vst [vmem:[%s221 + $0xd8] sm:$0xff] %v461
        %503 = vst [vmem:[%s221 + $0xe0] sm:$0xff] %v464
        %504 = vst [vmem:[%s221 + $0xe8] sm:$0xff] %v467
        %505 = vst [vmem:[%s221 + $0xf0] sm:$0xff] %v470
        %506 = vst [vmem:[%s221 + $0xf8] sm:$0xff] %v473
        %v507 = vadd.f32 %v380, %v383
        %v508 = vadd.f32 %v507, %v386
        %v509 = vadd.f32 %v508, %v389
        %v510 = vadd.f32 %v509, %v392
        %v511 = vadd.f32 %v510, %v395
        %v512 = vadd.f32 %v511, %v398
        %v513 = vadd.f32 %v512, %v401
        %v514 = vadd.f32 %v513, %v404
        %v515 = vadd.f32 %v514, %v407
        %v516 = vadd.f32 %v515, %v410
        %v517 = vadd.f32 %v516, %v413
        %v518 = vadd.f32 %v517, %v416
        %v519 = vadd.f32 %v518, %v419
        %v520 = vadd.f32 %v519, %v422
        %v521 = vadd.f32 %v520, %v425
        %v522 = vadd.f32 %v521, %v428
        %v523 = vadd.f32 %v522, %v431
        %v524 = vadd.f32 %v523, %v434
        %v525 = vadd.f32 %v524, %v437
        %v526 = vadd.f32 %v525, %v440
        %v527 = vadd.f32 %v526, %v443
        %v528 = vadd.f32 %v527, %v446
        %v529 = vadd.f32 %v528, %v449
        %v530 = vadd.f32 %v529, %v452
        %v531 = vadd.f32 %v530, %v455
        %v532 = vadd.f32 %v531, %v458
        %v533 = vadd.f32 %v532, %v461
        %v534 = vadd.f32 %v533, %v464
        %v535 = vadd.f32 %v534, %v467
        %v536 = vadd.f32 %v535, %v470
        %v537 = vadd.f32 %v536, %v473
        %v538 = vrot.slane %v537, 4
        %v539 = vadd.f32 %v537, %v538
        %v540 = vrot.slane %v539, 2
        %v541 = vadd.f32 %v539, %v540
        %v542 = vrot.slane %v541, 1
        %v543 = vadd.f32 %v541, %v542
        %v544 = vmul.f32 %v380, %v380
        %v545 = vmul.f32 %v383, %v383
        %v546 = vmul.f32 %v386, %v386
        %v547 = vmul.f32 %v389, %v389
        %v548 = vmul.f32 %v392, %v392
        %v549 = vmul.f32 %v395, %v395
        %v550 = vmul.f32 %v398, %v398
        %v551 = vmul.f32 %v401, %v401
        %v552 = vmul.f32 %v404, %v404
        %v553 = vmul.f32 %v407, %v407
        %v554 = vmul.f32 %v410, %v410
        %v555 = vmul.f32 %v413, %v413
        %v556 = vmul.f32 %v416, %v416
        %v557 = vmul.f32 %v419, %v419
        %v558 = vmul.f32 %v422, %v422
        %v559 = vmul.f32 %v425, %v425
        %v560 = vmul.f32 %v428, %v428
        %v561 = vmul.f32 %v431, %v431
        %v562 = vmul.f32 %v434, %v434
        %v563 = vmul.f32 %v437, %v437
        %v564 = vmul.f32 %v440, %v440
        %v565 = vmul.f32 %v443, %v443
        %v566 = vmul.f32 %v446, %v446
        %v567 = vmul.f32 %v449, %v449
        %v568 = vmul.f32 %v452, %v452
        %v569 = vmul.f32 %v455, %v455
        %v570 = vmul.f32 %v458, %v458
        %v571 = vmul.f32 %v461, %v461
        %v572 = vmul.f32 %v464, %v464
        %v573 = vmul.f32 %v467, %v467
        %v574 = vmul.f32 %v470, %v470
        %v575 = vmul.f32 %v473, %v473
        %v576 = vadd.f32 %v544, %v545
        %v577 = vadd.f32 %v576, %v546
        %v578 = vadd.f32 %v577, %v547
        %v579 = vadd.f32 %v578, %v548
        %v580 = vadd.f32 %v579, %v549
        %v581 = vadd.f32 %v580, %v550
        %v582 = vadd.f32 %v581, %v551
        %v583 = vadd.f32 %v582, %v552
        %v584 = vadd.f32 %v583, %v553
        %v585 = vadd.f32 %v584, %v554
        %v586 = vadd.f32 %v585, %v555
        %v587 = vadd.f32 %v586, %v556
        %v588 = vadd.f32 %v587, %v557
        %v589 = vadd.f32 %v588, %v558
        %v590 = vadd.f32 %v589, %v559
        %v591 = vadd.f32 %v590, %v560
        %v592 = vadd.f32 %v591, %v561
        %v593 = vadd.f32 %v592, %v562
        %v594 = vadd.f32 %v593, %v563
        %v595 = vadd.f32 %v594, %v564
        %v596 = vadd.f32 %v595, %v565
        %v597 = vadd.f32 %v596, %v566
        %v598 = vadd.f32 %v597, %v567
        %v599 = vadd.f32 %v598, %v568
        %v600 = vadd.f32 %v599, %v569
        %v601 = vadd.f32 %v600, %v570
        %v602 = vadd.f32 %v601, %v571
        %v603 = vadd.f32 %v602, %v572
        %v604 = vadd.f32 %v603, %v573
        %v605 = vadd.f32 %v604, %v574
        %v606 = vadd.f32 %v605, %v575
        %v607 = vrot.slane %v606, 4
        %v608 = vadd.f32 %v606, %v607
        %v609 = vrot.slane %v608, 2
        %v610 = vadd.f32 %v608, %v609
        %v611 = vrot.slane %v610, 1
        %v612 = vadd.f32 %v610, %v611
        %p613 = scmp.eq.s32.totalorder %s23, 0
        // Predicated region
        $region33: #{inception2d.10} parent=27 // pred_check
          %p614 = pneg %p613
        $region34: #{inception2d.10} parent=27 // pred_check_branch
          %616 = sbr.rel (%p614) target = $region36
        $region35: #{inception2d.10} parent=27 // pred_region
          %617 = vst [vmem:[%s226] sm:$0x1] %v543
          %618 = vst [vmem:[%s226 + $0x1] sm:$0x1] %v612
        $region36: #{inception2d.10} parent=27 // pred_fallthru
          _
        %p619 = scmp.gt.s32.totalorder %s23, 0
        // Predicated region
        $region37: #{inception2d.10} parent=27 // pred_check
          %p620 = pneg %p619
        $region38: #{inception2d.10} parent=27 // pred_check_branch
          %622 = sbr.rel (%p620) target = $region40
        $region39: #{inception2d.10} parent=27 // pred_region
          %v623 = vld [vmem:[%s226] sm:$0x1]
          %v624 = vadd.f32 %v623, %v543
          %625 = vst [vmem:[%s226] sm:$0x1] %v624
          %v626 = vld [vmem:[%s226 + $0x1] sm:$0x1]
          %v627 = vadd.f32 %v626, %v612
          %628 = vst [vmem:[%s226 + $0x1] sm:$0x1] %v627
        $region40: #{inception2d.10} parent=27 // pred_fallthru
          _
        %s629 = smul.u32 32, %s23
        %p630 = scmp.lt.s32.totalorder %s22, 1
        %s631 = scalar_select %p630, %s22, 1
        %p632 = scmp.lt.s32.totalorder %s629, 31
        %s633 = scalar_select %p632, %s629, 31
        %s634 = smul.addr %s631, 32
        %s635 = sadd.s32 %s633, %s634
        %s636 = smul.addr %s635, 8
        %s637 = scalar_lea.vmem %s2, %s636
        %p638 = scmp.lt.s32.totalorder %s22, 1
        %s639 = scalar_select %p638, %s22, 1
        %s640 = smul.addr %s639, 2
        %s641 = scalar_lea.vmem %s3, %s640
        // Predicated region
        $region41: #{inception2d.10} parent=27 // pred_check
          %p642 = pneg %p97
        $region42: #{inception2d.10} parent=27 // pred_check_branch
          %644 = sbr.rel (%p642) target = $region44
        $region43: #{inception2d.10} parent=27 // pred_region
          %s645 = smul.u32 32, %s23
        $region44: #{inception2d.10} parent=27 // pred_fallthru
          _
        // Predicated region
        $region45: #{inception2d.10} parent=27 // pred_check
          %p646 = pneg %p123
        $region46: #{inception2d.10} parent=27 // pred_check_branch
          %648 = sbr.rel (%p646) target = $region48
        $region47: #{inception2d.10} parent=27 // pred_region
          _
        $region48: #{inception2d.10} parent=27 // pred_fallthru
          _
      $region28: #{inception2d.10} parent=5 // pred_fallthru
        _
      %p649 = scmp.le.s32.totalorder 2, %s13
      // Predicated region
      $region49: #{inception2d.10} parent=5 // pred_check
        %p650 = pneg %p649
      $region50: #{inception2d.10} parent=5 // pred_check_branch
        %652 = sbr.rel (%p650) target = $region52
      $region51: #{inception2d.10} parent=5 // pred_region
        %s653 = ssub.s32 %s13, 2
        // Predicated region
        $region53: #{inception2d.10} parent=51 // pred_check
          %p654 = pneg %p103
        $region54: #{inception2d.10} parent=51 // pred_check_branch
          %656 = sbr.rel (%p654) target = $region56
        $region55: #{inception2d.10} parent=51 // pred_region
          %s657 = smul.u32 32, %s25
          %p658 = scmp.lt.s32.totalorder %s24, 1
          %s659 = scalar_select %p658, %s24, 1
          %p660 = scmp.lt.s32.totalorder %s657, 31
          %s661 = scalar_select %p660, %s657, 31
          %s662 = smul.addr %s659, 32
          %s663 = sadd.s32 %s661, %s662
          %s664 = smul.addr %s663, 8
          %s665 = scalar_lea.vmem %s2, %s664
        $region56: #{inception2d.10} parent=51 // pred_fallthru
          _
        // Predicated region
        $region57: #{inception2d.10} parent=51 // pred_check
          %p666 = pneg %p129
        $region58: #{inception2d.10} parent=51 // pred_check_branch
          %668 = sbr.rel (%p666) target = $region60
        $region59: #{inception2d.10} parent=51 // pred_region
          %p669 = scmp.lt.s32.totalorder %s24, 1
          %s670 = scalar_select %p669, %s24, 1
          %s671 = smul.addr %s670, 2
          %s672 = scalar_lea.vmem %s3, %s671
        $region60: #{inception2d.10} parent=51 // pred_fallthru
          _
      $region52: #{inception2d.10} parent=5 // pred_fallthru
        _
    $region6: #{inception2d.10} parent=1 // loop_footer
      %s17 = sadd.s32 1, %s13
    $region7: #{inception2d.10} parent=1 // loop_footer_branch
      %12 = sbr.rel target = $region3
    $region8: #{inception2d.10} parent=1 // loop_exit
      _
    %673 = vsyncpa [#allocation3], 1
    %s674 = scalar_lea.sflag [#allocation3], 1
    %675 = vsyncpa %s674, 1

// kernel: inception2d.11
$region0: #{inception2d.11}
  #allocation0 [shape = 'u32[]', space=smem, size = 0x4, offset = 0x4, fixed_abs, tag = 'smem constant byte address 0x4 - core index']
  #allocation1 [shape = 'u32[72,128]{1,0:T(1,128)}', space=vmem, size = 0x9000, scoped, tag = 'internal scratch']
  %s0 = inlined_call_operand.vmem [shape: f32[2,256,128], index: 0, kind: input, shape index: {}, may-alias: {0,2}]
  %s1 = inlined_call_operand.vmem [shape: f32[2,128], index: 1, kind: input, shape index: {}]
  %s2 = inlined_call_operand.vmem [shape: f32[2,256,128], index: 2, kind: output, shape index: {}, may-alias: {0,2}]
  %s3 = sld [smem:[#allocation0]]
  $region41: #{inception2d.11} parent=0
    _
  %s5 = ssub.s32 1, %s3
  %s6 = scalar_select 0, %s5, %s3
  loop: start=0, step=1, limit=4
  $region2: #{inception2d.11} parent=0 // loop_pre_header
    _
  $region3: #{inception2d.11} parent=0 // loop_header
    %s8 = sphi 0, %s12
    %p9 = scmp.ge.s32.totalorder %s8, 4
    %s15 = sphi 0, %s27
    %s16 = sphi 0, %s23
    %s17 = sphi 0, %s15
    %s18 = sphi 0, %s16
    %s19 = sphi 0, %s17
    %s20 = sphi 0, %s18
    %s32 = sphi 0, %s34
    %s35 = sphi 0, %s32
    %s36 = sphi 0, %s35
    %s52 = sphi 0, %s36
    %s56 = sphi 0, %s56
    %s58 = sphi 0, %s56
    %s59 = sphi 0, %s58
    %s73 = sphi 0, %s59
    %s81 = sphi 0, %s83
    %s84 = sphi 0, %s81
    %s85 = sphi 0, %s84
    %s101 = sphi 0, %s85
  $region4: #{inception2d.11} parent=0 // loop_header_branch
    %11 = sbr.rel (%p9) target = $region8
  $region5: #{inception2d.11} parent=0 // loop_body
    %s13 = ssub.s32 %s8, 1
    %s14 = ssub.s32 %s8, 2
    %s21 = sadd.s32 1, %s16
    %p22 = scmp.ge.s32.totalorder %s21, 1
    %s23 = scalar_select %p22, 0, %s21
    %s24 = sadd.s32 1, %s15
    %s25 = scalar_select %p22, %s24, %s15
    %p26 = scmp.ge.s32.totalorder %s25, 2
    %s27 = scalar_select %p26, 0, %s25
    %s28 = ssub.s32 %s15, %s27
    %s29 = ssub.s32 %s16, %s23
    %s30 = sor.u32 %s28, %s29
    %p31 = scmp.eq.s32.totalorder %s30, 0
    %s33 = sadd.s32 %s32, 1
    %s34 = scalar_select %p31, %s32, %s33
    %p37 = pneg %p31
    %p38 = scmp.eq.s32.totalorder %s8, 1
    %p39 = por %p37, %p38
    %p40 = scmp.ne.s32.totalorder %s32, %s35
    %p41 = scmp.eq.s32.totalorder %s8, 0
    %p42 = por %p40, %p41
    %p43 = scmp.ne.s32.totalorder %s32, %s35
    %p44 = scmp.eq.s32.totalorder %s13, 1
    %p45 = por %p43, %p44
    %p46 = scmp.ne.s32.totalorder %s35, %s36
    %p47 = scmp.eq.s32.totalorder %s13, 0
    %p48 = por %p46, %p47
    %p49 = scmp.ne.s32.totalorder %s35, %s36
    %p50 = scmp.eq.s32.totalorder %s14, 1
    %p51 = por %p49, %p50
    %p53 = scmp.ne.s32.totalorder %s36, %s52
    %p54 = scmp.eq.s32.totalorder %s14, 0
    %p55 = por %p53, %p54
    %s57 = sadd.s32 %s56, 1
    %p60 = scmp.eq.s32.totalorder %s8, 1
    %p61 = scmp.ne.s32.totalorder %s56, %s58
    %p62 = scmp.eq.s32.totalorder %s8, 0
    %p63 = por %p61, %p62
    %p64 = scmp.ne.s32.totalorder %s56, %s58
    %p65 = scmp.eq.s32.totalorder %s13, 1
    %p66 = por %p64, %p65
    %p67 = scmp.ne.s32.totalorder %s58, %s59
    %p68 = scmp.eq.s32.totalorder %s13, 0
    %p69 = por %p67, %p68
    %p70 = scmp.ne.s32.totalorder %s58, %s59
    %p71 = scmp.eq.s32.totalorder %s14, 1
    %p72 = por %p70, %p71
    %p74 = scmp.ne.s32.totalorder %s59, %s73
    %p75 = scmp.eq.s32.totalorder %s14, 0
    %p76 = por %p74, %p75
    %s77 = ssub.s32 %s15, %s27
    %s78 = ssub.s32 %s16, %s23
    %s79 = sor.u32 %s77, %s78
    %p80 = scmp.eq.s32.totalorder %s79, 0
    %s82 = sadd.s32 %s81, 1
    %s83 = scalar_select %p80, %s81, %s82
    %p86 = pneg %p80
    %p87 = scmp.eq.s32.totalorder %s8, 1
    %p88 = por %p86, %p87
    %p89 = scmp.ne.s32.totalorder %s81, %s84
    %p90 = scmp.eq.s32.totalorder %s8, 0
    %p91 = por %p89, %p90
    %p92 = scmp.ne.s32.totalorder %s81, %s84
    %p93 = scmp.eq.s32.totalorder %s13, 1
    %p94 = por %p92, %p93
    %p95 = scmp.ne.s32.totalorder %s84, %s85
    %p96 = scmp.eq.s32.totalorder %s13, 0
    %p97 = por %p95, %p96
    %p98 = scmp.ne.s32.totalorder %s84, %s85
    %p99 = scmp.eq.s32.totalorder %s14, 1
    %p100 = por %p98, %p99
    %p102 = scmp.ne.s32.totalorder %s85, %s101
    %p103 = scmp.eq.s32.totalorder %s14, 0
    %p104 = por %p102, %p103
    %p105 = scmp.le.s32.totalorder 1, %s8
    %p106 = scmp.lt.s32.totalorder %s8, 3
    %p107 = pnand %p105, %p106
    %p108 = pneg %p107
    // Predicated region
    $region9: #{inception2d.11} parent=5 // pred_check
      _
    $region10: #{inception2d.11} parent=5 // pred_check_branch
      %110 = sbr.rel (%p107) target = $region12
    $region11: #{inception2d.11} parent=5 // pred_region
      %s111 = ssub.s32 %s8, 1
      // Predicated region
      $region13: #{inception2d.11} parent=11 // pred_check
        %p112 = pneg %p69
      $region14: #{inception2d.11} parent=11 // pred_check_branch
        %114 = sbr.rel (%p112) target = $region16
      $region15: #{inception2d.11} parent=11 // pred_region
        _
      $region16: #{inception2d.11} parent=11 // pred_fallthru
        _
    $region12: #{inception2d.11} parent=5 // pred_fallthru
      _
    %p115 = scmp.lt.s32.totalorder %s8, 2
    // Predicated region
    $region17: #{inception2d.11} parent=5 // pred_check
      %p116 = pneg %p115
    $region18: #{inception2d.11} parent=5 // pred_check_branch
      %118 = sbr.rel (%p116) target = $region20
    $region19: #{inception2d.11} parent=5 // pred_region
      // Predicated region
      $region21: #{inception2d.11} parent=19 // pred_check
        %p119 = pneg %p42
      $region22: #{inception2d.11} parent=19 // pred_check_branch
        %121 = sbr.rel (%p119) target = $region24
      $region23: #{inception2d.11} parent=19 // pred_region
        %s122 = smul.u32 32, %s16
        %p123 = scmp.lt.s32.totalorder %s15, 1
        %s124 = scalar_select %p123, %s15, 1
        %p125 = scmp.lt.s32.totalorder %s122, 31
        %s126 = scalar_select %p125, %s122, 31
        %s127 = smul.addr %s124, 32
        %s128 = sadd.s32 %s126, %s127
        %s129 = smul.addr %s128, 8
        %s130 = scalar_lea.vmem %s0, %s129
        %s131 = smul.u32 32, %s16
      $region24: #{inception2d.11} parent=19 // pred_fallthru
        _
    $region20: #{inception2d.11} parent=5 // pred_fallthru
      _
    %p132 = scmp.le.s32.totalorder 1, %s8
    %p133 = scmp.lt.s32.totalorder %s8, 3
    %p134 = pnand %p132, %p133
    %p135 = pneg %p134
    // Predicated region
    $region25: #{inception2d.11} parent=5 // pred_check
      _
    $region26: #{inception2d.11} parent=5 // pred_check_branch
      %137 = sbr.rel (%p134) target = $region28
    $region27: #{inception2d.11} parent=5 // pred_region
      %s138 = ssub.s32 %s8, 1
      %s139 = smul.u32 32, %s18
      %p140 = scmp.lt.s32.totalorder %s17, 1
      %s141 = scalar_select %p140, %s17, 1
      %p142 = scmp.lt.s32.totalorder %s139, 31
      %s143 = scalar_select %p142, %s139, 31
      %s144 = smul.addr %s141, 32
      %s145 = sadd.s32 %s143, %s144
      %s146 = smul.addr %s145, 8
      %s147 = scalar_lea.vmem %s0, %s146
      %p148 = pneg %p48
      %p149 = pneg %p45
      %p150 = pneg %p69
      %p151 = pneg %p66
      %p152 = pneg %p97
      %p153 = pneg %p94
      %s154 = smul.u32 32, %s18
      %p155 = scmp.lt.s32.totalorder %s17, 1
      %s156 = scalar_select %p155, %s17, 1
      %p157 = scmp.lt.s32.totalorder %s154, 31
      %s158 = scalar_select %p157, %s154, 31
      %s159 = smul.addr %s156, 32
      %s160 = sadd.s32 %s158, %s159
      %s161 = smul.addr %s160, 8
      %s162 = scalar_lea.vmem %s2, %s161
      %s163 = smul.u32 32, %s18
      %p164 = scmp.lt.s32.totalorder %s17, 1
      %s165 = scalar_select %p164, %s17, 1
      %p166 = scmp.lt.s32.totalorder %s163, 31
      %s167 = scalar_select %p166, %s163, 31
      %s168 = smul.addr %s165, 32
      %s169 = sadd.s32 %s167, %s168
      %s170 = smul.addr %s169, 8
      %s171 = scalar_lea.vmem %s0, %s170
      %s172 = smul.u32 32, %s18
      %s173 = smul.u32 32, %s18
      %p174 = scmp.lt.s32.totalorder %s17, 1
      %s175 = scalar_select %p174, %s17, 1
      %p176 = scmp.lt.s32.totalorder %s173, 31
      %s177 = scalar_select %p176, %s173, 31
      %s178 = smul.addr %s175, 32
      %s179 = sadd.s32 %s177, %s178
      %s180 = smul.addr %s179, 8
      %s181 = scalar_lea.vmem %s2, %s180
      %s182 = smul.u32 32, %s18
      %v183 = vld [vmem:[%s171] sm:$0xff]
      %v184 = vld [vmem:[%s171 + $0x8] sm:$0xff]
      %v185 = vld [vmem:[%s171 + $0x10] sm:$0xff]
      %v186 = vld [vmem:[%s171 + $0x18] sm:$0xff]
      %v187 = vld [vmem:[%s171 + $0x20] sm:$0xff]
      %v188 = vld [vmem:[%s171 + $0x28] sm:$0xff]
      %v189 = vld [vmem:[%s171 + $0x30] sm:$0xff]
      %v190 = vld [vmem:[%s171 + $0x38] sm:$0xff]
      %v191 = vld [vmem:[%s171 + $0x40] sm:$0xff]
      %v192 = vld [vmem:[%s171 + $0x48] sm:$0xff]
      %v193 = vld [vmem:[%s171 + $0x50] sm:$0xff]
      %v194 = vld [vmem:[%s171 + $0x58] sm:$0xff]
      %v195 = vld [vmem:[%s171 + $0x60] sm:$0xff]
      %v196 = vld [vmem:[%s171 + $0x68] sm:$0xff]
      %v197 = vld [vmem:[%s171 + $0x70] sm:$0xff]
      %v198 = vld [vmem:[%s171 + $0x78] sm:$0xff]
      %v199 = vld [vmem:[%s171 + $0x80] sm:$0xff]
      %v200 = vld [vmem:[%s171 + $0x88] sm:$0xff]
      %v201 = vld [vmem:[%s171 + $0x90] sm:$0xff]
      %v202 = vld [vmem:[%s171 + $0x98] sm:$0xff]
      %v203 = vld [vmem:[%s171 + $0xa0] sm:$0xff]
      %v204 = vld [vmem:[%s171 + $0xa8] sm:$0xff]
      %v205 = vld [vmem:[%s171 + $0xb0] sm:$0xff]
      %v206 = vld [vmem:[%s171 + $0xb8] sm:$0xff]
      %v207 = vld [vmem:[%s171 + $0xc0] sm:$0xff]
      %v208 = vld [vmem:[%s171 + $0xc8] sm:$0xff]
      %v209 = vld [vmem:[%s171 + $0xd0] sm:$0xff]
      %v210 = vld [vmem:[%s171 + $0xd8] sm:$0xff]
      %v211 = vld [vmem:[%s171 + $0xe0] sm:$0xff]
      %v212 = vld [vmem:[%s171 + $0xe8] sm:$0xff]
      %v213 = vld [vmem:[%s171 + $0xf0] sm:$0xff]
      %v214 = vld [vmem:[%s171 + $0xf8] sm:$0xff]
      %v215 = vld [vmem:[%s1] sm:$0x1]
      %v216 = vperm.slane %v215, 0
      %v217 = vmul.f32 %v183, %v216
      %v218 = vmul.f32 %v184, %v216
      %v219 = vmul.f32 %v185, %v216
      %v220 = vmul.f32 %v186, %v216
      %v221 = vmul.f32 %v187, %v216
      %v222 = vmul.f32 %v188, %v216
      %v223 = vmul.f32 %v189, %v216
      %v224 = vmul.f32 %v190, %v216
      %v225 = vmul.f32 %v191, %v216
      %v226 = vmul.f32 %v192, %v216
      %v227 = vmul.f32 %v193, %v216
      %v228 = vmul.f32 %v194, %v216
      %v229 = vmul.f32 %v195, %v216
      %v230 = vmul.f32 %v196, %v216
      %v231 = vmul.f32 %v197, %v216
      %v232 = vmul.f32 %v198, %v216
      %v233 = vmul.f32 %v199, %v216
      %v234 = vmul.f32 %v200, %v216
      %v235 = vmul.f32 %v201, %v216
      %v236 = vmul.f32 %v202, %v216
      %v237 = vmul.f32 %v203, %v216
      %v238 = vmul.f32 %v204, %v216
      %v239 = vmul.f32 %v205, %v216
      %v240 = vmul.f32 %v206, %v216
      %v241 = vmul.f32 %v207, %v216
      %v242 = vmul.f32 %v208, %v216
      %v243 = vmul.f32 %v209, %v216
      %v244 = vmul.f32 %v210, %v216
      %v245 = vmul.f32 %v211, %v216
      %v246 = vmul.f32 %v212, %v216
      %v247 = vmul.f32 %v213, %v216
      %v248 = vmul.f32 %v214, %v216
      %v249 = vld [vmem:[%s1 + $0x1] sm:$0x1]
      %v250 = vperm.slane %v249, 0
      %v251 = vadd.f32 %v217, %v250
      %v252 = vadd.f32 %v218, %v250
      %v253 = vadd.f32 %v219, %v250
      %v254 = vadd.f32 %v220, %v250
      %v255 = vadd.f32 %v221, %v250
      %v256 = vadd.f32 %v222, %v250
      %v257 = vadd.f32 %v223, %v250
      %v258 = vadd.f32 %v224, %v250
      %v259 = vadd.f32 %v225, %v250
      %v260 = vadd.f32 %v226, %v250
      %v261 = vadd.f32 %v227, %v250
      %v262 = vadd.f32 %v228, %v250
      %v263 = vadd.f32 %v229, %v250
      %v264 = vadd.f32 %v230, %v250
      %v265 = vadd.f32 %v231, %v250
      %v266 = vadd.f32 %v232, %v250
      %v267 = vadd.f32 %v233, %v250
      %v268 = vadd.f32 %v234, %v250
      %v269 = vadd.f32 %v235, %v250
      %v270 = vadd.f32 %v236, %v250
      %v271 = vadd.f32 %v237, %v250
      %v272 = vadd.f32 %v238, %v250
      %v273 = vadd.f32 %v239, %v250
      %v274 = vadd.f32 %v240, %v250
      %v275 = vadd.f32 %v241, %v250
      %v276 = vadd.f32 %v242, %v250
      %v277 = vadd.f32 %v243, %v250
      %v278 = vadd.f32 %v244, %v250
      %v279 = vadd.f32 %v245, %v250
      %v280 = vadd.f32 %v246, %v250
      %v281 = vadd.f32 %v247, %v250
      %v282 = vadd.f32 %v248, %v250
      %v283 = vmax.f32 %v251, 0.0
      %v284 = vmax.f32 %v252, 0.0
      %v285 = vmax.f32 %v253, 0.0
      %v286 = vmax.f32 %v254, 0.0
      %v287 = vmax.f32 %v255, 0.0
      %v288 = vmax.f32 %v256, 0.0
      %v289 = vmax.f32 %v257, 0.0
      %v290 = vmax.f32 %v258, 0.0
      %v291 = vmax.f32 %v259, 0.0
      %v292 = vmax.f32 %v260, 0.0
      %v293 = vmax.f32 %v261, 0.0
      %v294 = vmax.f32 %v262, 0.0
      %v295 = vmax.f32 %v263, 0.0
      %v296 = vmax.f32 %v264, 0.0
      %v297 = vmax.f32 %v265, 0.0
      %v298 = vmax.f32 %v266, 0.0
      %v299 = vmax.f32 %v267, 0.0
      %v300 = vmax.f32 %v268, 0.0
      %v301 = vmax.f32 %v269, 0.0
      %v302 = vmax.f32 %v270, 0.0
      %v303 = vmax.f32 %v271, 0.0
      %v304 = vmax.f32 %v272, 0.0
      %v305 = vmax.f32 %v273, 0.0
      %v306 = vmax.f32 %v274, 0.0
      %v307 = vmax.f32 %v275, 0.0
      %v308 = vmax.f32 %v276, 0.0
      %v309 = vmax.f32 %v277, 0.0
      %v310 = vmax.f32 %v278, 0.0
      %v311 = vmax.f32 %v279, 0.0
      %v312 = vmax.f32 %v280, 0.0
      %v313 = vmax.f32 %v281, 0.0
      %v314 = vmax.f32 %v282, 0.0
      %315 = vst [vmem:[%s181] sm:$0xff] %v283
      %316 = vst [vmem:[%s181 + $0x8] sm:$0xff] %v284
      %317 = vst [vmem:[%s181 + $0x10] sm:$0xff] %v285
      %318 = vst [vmem:[%s181 + $0x18] sm:$0xff] %v286
      %319 = vst [vmem:[%s181 + $0x20] sm:$0xff] %v287
      %320 = vst [vmem:[%s181 + $0x28] sm:$0xff] %v288
      %321 = vst [vmem:[%s181 + $0x30] sm:$0xff] %v289
      %322 = vst [vmem:[%s181 + $0x38] sm:$0xff] %v290
      %323 = vst [vmem:[%s181 + $0x40] sm:$0xff] %v291
      %324 = vst [vmem:[%s181 + $0x48] sm:$0xff] %v292
      %325 = vst [vmem:[%s181 + $0x50] sm:$0xff] %v293
      %326 = vst [vmem:[%s181 + $0x58] sm:$0xff] %v294
      %327 = vst [vmem:[%s181 + $0x60] sm:$0xff] %v295
      %328 = vst [vmem:[%s181 + $0x68] sm:$0xff] %v296
      %329 = vst [vmem:[%s181 + $0x70] sm:$0xff] %v297
      %330 = vst [vmem:[%s181 + $0x78] sm:$0xff] %v298
      %331 = vst [vmem:[%s181 + $0x80] sm:$0xff] %v299
      %332 = vst [vmem:[%s181 + $0x88] sm:$0xff] %v300
      %333 = vst [vmem:[%s181 + $0x90] sm:$0xff] %v301
      %334 = vst [vmem:[%s181 + $0x98] sm:$0xff] %v302
      %335 = vst [vmem:[%s181 + $0xa0] sm:$0xff] %v303
      %336 = vst [vmem:[%s181 + $0xa8] sm:$0xff] %v304
      %337 = vst [vmem:[%s181 + $0xb0] sm:$0xff] %v305
      %338 = vst [vmem:[%s181 + $0xb8] sm:$0xff] %v306
      %339 = vst [vmem:[%s181 + $0xc0] sm:$0xff] %v307
      %340 = vst [vmem:[%s181 + $0xc8] sm:$0xff] %v308
      %341 = vst [vmem:[%s181 + $0xd0] sm:$0xff] %v309
      %342 = vst [vmem:[%s181 + $0xd8] sm:$0xff] %v310
      %343 = vst [vmem:[%s181 + $0xe0] sm:$0xff] %v311
      %344 = vst [vmem:[%s181 + $0xe8] sm:$0xff] %v312
      %345 = vst [vmem:[%s181 + $0xf0] sm:$0xff] %v313
      %346 = vst [vmem:[%s181 + $0xf8] sm:$0xff] %v314
      %s347 = smul.u32 32, %s18
      %p348 = scmp.lt.s32.totalorder %s17, 1
      %s349 = scalar_select %p348, %s17, 1
      %p350 = scmp.lt.s32.totalorder %s347, 31
      %s351 = scalar_select %p350, %s347, 31
      %s352 = smul.addr %s349, 32
      %s353 = sadd.s32 %s351, %s352
      %s354 = smul.addr %s353, 8
      %s355 = scalar_lea.vmem %s2, %s354
      // Predicated region
      $region29: #{inception2d.11} parent=27 // pred_check
        %p356 = pneg %p94
      $region30: #{inception2d.11} parent=27 // pred_check_branch
        %358 = sbr.rel (%p356) target = $region32
      $region31: #{inception2d.11} parent=27 // pred_region
        %s359 = smul.u32 32, %s18
      $region32: #{inception2d.11} parent=27 // pred_fallthru
        _
    $region28: #{inception2d.11} parent=5 // pred_fallthru
      _
    %p360 = scmp.le.s32.totalorder 2, %s8
    // Predicated region
    $region33: #{inception2d.11} parent=5 // pred_check
      %p361 = pneg %p360
    $region34: #{inception2d.11} parent=5 // pred_check_branch
      %363 = sbr.rel (%p361) target = $region36
    $region35: #{inception2d.11} parent=5 // pred_region
      %s364 = ssub.s32 %s8, 2
      // Predicated region
      $region37: #{inception2d.11} parent=35 // pred_check
        %p365 = pneg %p100
      $region38: #{inception2d.11} parent=35 // pred_check_branch
        %367 = sbr.rel (%p365) target = $region40
      $region39: #{inception2d.11} parent=35 // pred_region
        %s368 = smul.u32 32, %s20
        %p369 = scmp.lt.s32.totalorder %s19, 1
        %s370 = scalar_select %p369, %s19, 1
        %p371 = scmp.lt.s32.totalorder %s368, 31
        %s372 = scalar_select %p371, %s368, 31
        %s373 = smul.addr %s370, 32
        %s374 = sadd.s32 %s372, %s373
        %s375 = smul.addr %s374, 8
        %s376 = scalar_lea.vmem %s2, %s375
      $region40: #{inception2d.11} parent=35 // pred_fallthru
        _
    $region36: #{inception2d.11} parent=5 // pred_fallthru
      _
  $region6: #{inception2d.11} parent=0 // loop_footer
    %s12 = sadd.s32 1, %s8
  $region7: #{inception2d.11} parent=0 // loop_footer_branch
    %7 = sbr.rel target = $region3
  $region8: #{inception2d.11} parent=0 // loop_exit
    _

// kernel: inception2d.17
$region0: #{inception2d.17}
  #allocation0 [shape = 'u32[]', space=smem, size = 0x4, offset = 0x4, fixed_abs, tag = 'smem constant byte address 0x4 - core index']
  #allocation1 [shape = 'u32[72,128]{1,0:T(1,128)}', space=vmem, size = 0x9000, scoped, tag = 'internal scratch']
  %s0 = inlined_call_operand.vmem [shape: f32[2,288,128], index: 0, kind: input, shape index: {}, may-alias: {0,2}]
  %s1 = inlined_call_operand.vmem [shape: f32[2,128], index: 1, kind: input, shape index: {}]
  %s2 = inlined_call_operand.vmem [shape: f32[2,288,128], index: 2, kind: output, shape index: {}, may-alias: {0,2}]
  %s3 = sld [smem:[#allocation0]]
  $region41: #{inception2d.17} parent=0
    _
  %s5 = ssub.s32 1, %s3
  %s6 = scalar_select 0, %s5, %s3
  loop: start=0, step=1, limit=4
  $region2: #{inception2d.17} parent=0 // loop_pre_header
    _
  $region3: #{inception2d.17} parent=0 // loop_header
    %s8 = sphi 0, %s12
    %p9 = scmp.ge.s32.totalorder %s8, 4
    %s15 = sphi 0, %s27
    %s16 = sphi 0, %s23
    %s17 = sphi 0, %s15
    %s18 = sphi 0, %s16
    %s19 = sphi 0, %s17
    %s20 = sphi 0, %s18
    %s32 = sphi 0, %s34
    %s35 = sphi 0, %s32
    %s36 = sphi 0, %s35
    %s52 = sphi 0, %s36
    %s56 = sphi 0, %s56
    %s58 = sphi 0, %s56
    %s59 = sphi 0, %s58
    %s73 = sphi 0, %s59
    %s81 = sphi 0, %s83
    %s84 = sphi 0, %s81
    %s85 = sphi 0, %s84
    %s101 = sphi 0, %s85
  $region4: #{inception2d.17} parent=0 // loop_header_branch
    %11 = sbr.rel (%p9) target = $region8
  $region5: #{inception2d.17} parent=0 // loop_body
    %s13 = ssub.s32 %s8, 1
    %s14 = ssub.s32 %s8, 2
    %s21 = sadd.s32 1, %s16
    %p22 = scmp.ge.s32.totalorder %s21, 1
    %s23 = scalar_select %p22, 0, %s21
    %s24 = sadd.s32 1, %s15
    %s25 = scalar_select %p22, %s24, %s15
    %p26 = scmp.ge.s32.totalorder %s25, 2
    %s27 = scalar_select %p26, 0, %s25
    %s28 = ssub.s32 %s15, %s27
    %s29 = ssub.s32 %s16, %s23
    %s30 = sor.u32 %s28, %s29
    %p31 = scmp.eq.s32.totalorder %s30, 0
    %s33 = sadd.s32 %s32, 1
    %s34 = scalar_select %p31, %s32, %s33
    %p37 = pneg %p31
    %p38 = scmp.eq.s32.totalorder %s8, 1
    %p39 = por %p37, %p38
    %p40 = scmp.ne.s32.totalorder %s32, %s35
    %p41 = scmp.eq.s32.totalorder %s8, 0
    %p42 = por %p40, %p41
    %p43 = scmp.ne.s32.totalorder %s32, %s35
    %p44 = scmp.eq.s32.totalorder %s13, 1
    %p45 = por %p43, %p44
    %p46 = scmp.ne.s32.totalorder %s35, %s36
    %p47 = scmp.eq.s32.totalorder %s13, 0
    %p48 = por %p46, %p47
    %p49 = scmp.ne.s32.totalorder %s35, %s36
    %p50 = scmp.eq.s32.totalorder %s14, 1
    %p51 = por %p49, %p50
    %p53 = scmp.ne.s32.totalorder %s36, %s52
    %p54 = scmp.eq.s32.totalorder %s14, 0
    %p55 = por %p53, %p54
    %s57 = sadd.s32 %s56, 1
    %p60 = scmp.eq.s32.totalorder %s8, 1
    %p61 = scmp.ne.s32.totalorder %s56, %s58
    %p62 = scmp.eq.s32.totalorder %s8, 0
    %p63 = por %p61, %p62
    %p64 = scmp.ne.s32.totalorder %s56, %s58
    %p65 = scmp.eq.s32.totalorder %s13, 1
    %p66 = por %p64, %p65
    %p67 = scmp.ne.s32.totalorder %s58, %s59
    %p68 = scmp.eq.s32.totalorder %s13, 0
    %p69 = por %p67, %p68
    %p70 = scmp.ne.s32.totalorder %s58, %s59
    %p71 = scmp.eq.s32.totalorder %s14, 1
    %p72 = por %p70, %p71
    %p74 = scmp.ne.s32.totalorder %s59, %s73
    %p75 = scmp.eq.s32.totalorder %s14, 0
    %p76 = por %p74, %p75
    %s77 = ssub.s32 %s15, %s27
    %s78 = ssub.s32 %s16, %s23
    %s79 = sor.u32 %s77, %s78
    %p80 = scmp.eq.s32.totalorder %s79, 0
    %s82 = sadd.s32 %s81, 1
    %s83 = scalar_select %p80, %s81, %s82
    %p86 = pneg %p80
    %p87 = scmp.eq.s32.totalorder %s8, 1
    %p88 = por %p86, %p87
    %p89 = scmp.ne.s32.totalorder %s81, %s84
    %p90 = scmp.eq.s32.totalorder %s8, 0
    %p91 = por %p89, %p90
    %p92 = scmp.ne.s32.totalorder %s81, %s84
    %p93 = scmp.eq.s32.totalorder %s13, 1
    %p94 = por %p92, %p93
    %p95 = scmp.ne.s32.totalorder %s84, %s85
    %p96 = scmp.eq.s32.totalorder %s13, 0
    %p97 = por %p95, %p96
    %p98 = scmp.ne.s32.totalorder %s84, %s85
    %p99 = scmp.eq.s32.totalorder %s14, 1
    %p100 = por %p98, %p99
    %p102 = scmp.ne.s32.totalorder %s85, %s101
    %p103 = scmp.eq.s32.totalorder %s14, 0
    %p104 = por %p102, %p103
    %p105 = scmp.le.s32.totalorder 1, %s8
    %p106 = scmp.lt.s32.totalorder %s8, 3
    %p107 = pnand %p105, %p106
    %p108 = pneg %p107
    // Predicated region
    $region9: #{inception2d.17} parent=5 // pred_check
      _
    $region10: #{inception2d.17} parent=5 // pred_check_branch
      %110 = sbr.rel (%p107) target = $region12
    $region11: #{inception2d.17} parent=5 // pred_region
      %s111 = ssub.s32 %s8, 1
      // Predicated region
      $region13: #{inception2d.17} parent=11 // pred_check
        %p112 = pneg %p69
      $region14: #{inception2d.17} parent=11 // pred_check_branch
        %114 = sbr.rel (%p112) target = $region16
      $region15: #{inception2d.17} parent=11 // pred_region
        _
      $region16: #{inception2d.17} parent=11 // pred_fallthru
        _
    $region12: #{inception2d.17} parent=5 // pred_fallthru
      _
    %p115 = scmp.lt.s32.totalorder %s8, 2
    // Predicated region
    $region17: #{inception2d.17} parent=5 // pred_check
      %p116 = pneg %p115
    $region18: #{inception2d.17} parent=5 // pred_check_branch
      %118 = sbr.rel (%p116) target = $region20
    $region19: #{inception2d.17} parent=5 // pred_region
      // Predicated region
      $region21: #{inception2d.17} parent=19 // pred_check
        %p119 = pneg %p42
      $region22: #{inception2d.17} parent=19 // pred_check_branch
        %121 = sbr.rel (%p119) target = $region24
      $region23: #{inception2d.17} parent=19 // pred_region
        %s122 = smul.u32 36, %s16
        %p123 = scmp.lt.s32.totalorder %s15, 1
        %s124 = scalar_select %p123, %s15, 1
        %p125 = scmp.lt.s32.totalorder %s122, 35
        %s126 = scalar_select %p125, %s122, 35
        %s127 = smul.addr %s124, 36
        %s128 = sadd.s32 %s126, %s127
        %s129 = smul.addr %s128, 8
        %s130 = scalar_lea.vmem %s0, %s129
        %s131 = smul.u32 36, %s16
      $region24: #{inception2d.17} parent=19 // pred_fallthru
        _
    $region20: #{inception2d.17} parent=5 // pred_fallthru
      _
    %p132 = scmp.le.s32.totalorder 1, %s8
    %p133 = scmp.lt.s32.totalorder %s8, 3
    %p134 = pnand %p132, %p133
    %p135 = pneg %p134
    // Predicated region
    $region25: #{inception2d.17} parent=5 // pred_check
      _
    $region26: #{inception2d.17} parent=5 // pred_check_branch
      %137 = sbr.rel (%p134) target = $region28
    $region27: #{inception2d.17} parent=5 // pred_region
      %s138 = ssub.s32 %s8, 1
      %s139 = smul.u32 36, %s18
      %p140 = scmp.lt.s32.totalorder %s17, 1
      %s141 = scalar_select %p140, %s17, 1
      %p142 = scmp.lt.s32.totalorder %s139, 35
      %s143 = scalar_select %p142, %s139, 35
      %s144 = smul.addr %s141, 36
      %s145 = sadd.s32 %s143, %s144
      %s146 = smul.addr %s145, 8
      %s147 = scalar_lea.vmem %s0, %s146
      %p148 = pneg %p48
      %p149 = pneg %p45
      %p150 = pneg %p69
      %p151 = pneg %p66
      %p152 = pneg %p97
      %p153 = pneg %p94
      %s154 = smul.u32 36, %s18
      %p155 = scmp.lt.s32.totalorder %s17, 1
      %s156 = scalar_select %p155, %s17, 1
      %p157 = scmp.lt.s32.totalorder %s154, 35
      %s158 = scalar_select %p157, %s154, 35
      %s159 = smul.addr %s156, 36
      %s160 = sadd.s32 %s158, %s159
      %s161 = smul.addr %s160, 8
      %s162 = scalar_lea.vmem %s2, %s161
      %s163 = smul.u32 36, %s18
      %p164 = scmp.lt.s32.totalorder %s17, 1
      %s165 = scalar_select %p164, %s17, 1
      %p166 = scmp.lt.s32.totalorder %s163, 35
      %s167 = scalar_select %p166, %s163, 35
      %s168 = smul.addr %s165, 36
      %s169 = sadd.s32 %s167, %s168
      %s170 = smul.addr %s169, 8
      %s171 = scalar_lea.vmem %s0, %s170
      %s172 = smul.u32 36, %s18
      %s173 = smul.u32 36, %s18
      %p174 = scmp.lt.s32.totalorder %s17, 1
      %s175 = scalar_select %p174, %s17, 1
      %p176 = scmp.lt.s32.totalorder %s173, 35
      %s177 = scalar_select %p176, %s173, 35
      %s178 = smul.addr %s175, 36
      %s179 = sadd.s32 %s177, %s178
      %s180 = smul.addr %s179, 8
      %s181 = scalar_lea.vmem %s2, %s180
      %s182 = smul.u32 36, %s18
      %v183 = vld [vmem:[%s171] sm:$0xff]
      %v184 = vld [vmem:[%s171 + $0x8] sm:$0xff]
      %v185 = vld [vmem:[%s171 + $0x10] sm:$0xff]
      %v186 = vld [vmem:[%s171 + $0x18] sm:$0xff]
      %v187 = vld [vmem:[%s171 + $0x20] sm:$0xff]
      %v188 = vld [vmem:[%s171 + $0x28] sm:$0xff]
      %v189 = vld [vmem:[%s171 + $0x30] sm:$0xff]
      %v190 = vld [vmem:[%s171 + $0x38] sm:$0xff]
      %v191 = vld [vmem:[%s171 + $0x40] sm:$0xff]
      %v192 = vld [vmem:[%s171 + $0x48] sm:$0xff]
      %v193 = vld [vmem:[%s171 + $0x50] sm:$0xff]
      %v194 = vld [vmem:[%s171 + $0x58] sm:$0xff]
      %v195 = vld [vmem:[%s171 + $0x60] sm:$0xff]
      %v196 = vld [vmem:[%s171 + $0x68] sm:$0xff]
      %v197 = vld [vmem:[%s171 + $0x70] sm:$0xff]
      %v198 = vld [vmem:[%s171 + $0x78] sm:$0xff]
      %v199 = vld [vmem:[%s171 + $0x80] sm:$0xff]
      %v200 = vld [vmem:[%s171 + $0x88] sm:$0xff]
      %v201 = vld [vmem:[%s171 + $0x90] sm:$0xff]
      %v202 = vld [vmem:[%s171 + $0x98] sm:$0xff]
      %v203 = vld [vmem:[%s171 + $0xa0] sm:$0xff]
      %v204 = vld [vmem:[%s171 + $0xa8] sm:$0xff]
      %v205 = vld [vmem:[%s171 + $0xb0] sm:$0xff]
      %v206 = vld [vmem:[%s171 + $0xb8] sm:$0xff]
      %v207 = vld [vmem:[%s171 + $0xc0] sm:$0xff]
      %v208 = vld [vmem:[%s171 + $0xc8] sm:$0xff]
      %v209 = vld [vmem:[%s171 + $0xd0] sm:$0xff]
      %v210 = vld [vmem:[%s171 + $0xd8] sm:$0xff]
      %v211 = vld [vmem:[%s171 + $0xe0] sm:$0xff]
      %v212 = vld [vmem:[%s171 + $0xe8] sm:$0xff]
      %v213 = vld [vmem:[%s171 + $0xf0] sm:$0xff]
      %v214 = vld [vmem:[%s171 + $0xf8] sm:$0xff]
      %v215 = vld [vmem:[%s171 + $0x100] sm:$0xff]
      %v216 = vld [vmem:[%s171 + $0x108] sm:$0xff]
      %v217 = vld [vmem:[%s171 + $0x110] sm:$0xff]
      %v218 = vld [vmem:[%s171 + $0x118] sm:$0xff]
      %v219 = vld [vmem:[%s1] sm:$0x1]
      %v220 = vperm.slane %v219, 0
      %v221 = vmul.f32 %v183, %v220
      %v222 = vmul.f32 %v184, %v220
      %v223 = vmul.f32 %v185, %v220
      %v224 = vmul.f32 %v186, %v220
      %v225 = vmul.f32 %v187, %v220
      %v226 = vmul.f32 %v188, %v220
      %v227 = vmul.f32 %v189, %v220
      %v228 = vmul.f32 %v190, %v220
      %v229 = vmul.f32 %v191, %v220
      %v230 = vmul.f32 %v192, %v220
      %v231 = vmul.f32 %v193, %v220
      %v232 = vmul.f32 %v194, %v220
      %v233 = vmul.f32 %v195, %v220
      %v234 = vmul.f32 %v196, %v220
      %v235 = vmul.f32 %v197, %v220
      %v236 = vmul.f32 %v198, %v220
      %v237 = vmul.f32 %v199, %v220
      %v238 = vmul.f32 %v200, %v220
      %v239 = vmul.f32 %v201, %v220
      %v240 = vmul.f32 %v202, %v220
      %v241 = vmul.f32 %v203, %v220
      %v242 = vmul.f32 %v204, %v220
      %v243 = vmul.f32 %v205, %v220
      %v244 = vmul.f32 %v206, %v220
      %v245 = vmul.f32 %v207, %v220
      %v246 = vmul.f32 %v208, %v220
      %v247 = vmul.f32 %v209, %v220
      %v248 = vmul.f32 %v210, %v220
      %v249 = vmul.f32 %v211, %v220
      %v250 = vmul.f32 %v212, %v220
      %v251 = vmul.f32 %v213, %v220
      %v252 = vmul.f32 %v214, %v220
      %v253 = vmul.f32 %v215, %v220
      %v254 = vmul.f32 %v216, %v220
      %v255 = vmul.f32 %v217, %v220
      %v256 = vmul.f32 %v218, %v220
      %v257 = vld [vmem:[%s1 + $0x1] sm:$0x1]
      %v258 = vperm.slane %v257, 0
      %v259 = vadd.f32 %v221, %v258
      %v260 = vadd.f32 %v222, %v258
      %v261 = vadd.f32 %v223, %v258
      %v262 = vadd.f32 %v224, %v258
      %v263 = vadd.f32 %v225, %v258
      %v264 = vadd.f32 %v226, %v258
      %v265 = vadd.f32 %v227, %v258
      %v266 = vadd.f32 %v228, %v258
      %v267 = vadd.f32 %v229, %v258
      %v268 = vadd.f32 %v230, %v258
      %v269 = vadd.f32 %v231, %v258
      %v270 = vadd.f32 %v232, %v258
      %v271 = vadd.f32 %v233, %v258
      %v272 = vadd.f32 %v234, %v258
      %v273 = vadd.f32 %v235, %v258
      %v274 = vadd.f32 %v236, %v258
      %v275 = vadd.f32 %v237, %v258
      %v276 = vadd.f32 %v238, %v258
      %v277 = vadd.f32 %v239, %v258
      %v278 = vadd.f32 %v240, %v258
      %v279 = vadd.f32 %v241, %v258
      %v280 = vadd.f32 %v242, %v258
      %v281 = vadd.f32 %v243, %v258
      %v282 = vadd.f32 %v244, %v258
      %v283 = vadd.f32 %v245, %v258
      %v284 = vadd.f32 %v246, %v258
      %v285 = vadd.f32 %v247, %v258
      %v286 = vadd.f32 %v248, %v258
      %v287 = vadd.f32 %v249, %v258
      %v288 = vadd.f32 %v250, %v258
      %v289 = vadd.f32 %v251, %v258
      %v290 = vadd.f32 %v252, %v258
      %v291 = vadd.f32 %v253, %v258
      %v292 = vadd.f32 %v254, %v258
      %v293 = vadd.f32 %v255, %v258
      %v294 = vadd.f32 %v256, %v258
      %v295 = vmax.f32 %v259, 0.0
      %v296 = vmax.f32 %v260, 0.0
      %v297 = vmax.f32 %v261, 0.0
      %v298 = vmax.f32 %v262, 0.0
      %v299 = vmax.f32 %v263, 0.0
      %v300 = vmax.f32 %v264, 0.0
      %v301 = vmax.f32 %v265, 0.0
      %v302 = vmax.f32 %v266, 0.0
      %v303 = vmax.f32 %v267, 0.0
      %v304 = vmax.f32 %v268, 0.0
      %v305 = vmax.f32 %v269, 0.0
      %v306 = vmax.f32 %v270, 0.0
      %v307 = vmax.f32 %v271, 0.0
      %v308 = vmax.f32 %v272, 0.0
      %v309 = vmax.f32 %v273, 0.0
      %v310 = vmax.f32 %v274, 0.0
      %v311 = vmax.f32 %v275, 0.0
      %v312 = vmax.f32 %v276, 0.0
      %v313 = vmax.f32 %v277, 0.0
      %v314 = vmax.f32 %v278, 0.0
      %v315 = vmax.f32 %v279, 0.0
      %v316 = vmax.f32 %v280, 0.0
      %v317 = vmax.f32 %v281, 0.0
      %v318 = vmax.f32 %v282, 0.0
      %v319 = vmax.f32 %v283, 0.0
      %v320 = vmax.f32 %v284, 0.0
      %v321 = vmax.f32 %v285, 0.0
      %v322 = vmax.f32 %v286, 0.0
      %v323 = vmax.f32 %v287, 0.0
      %v324 = vmax.f32 %v288, 0.0
      %v325 = vmax.f32 %v289, 0.0
      %v326 = vmax.f32 %v290, 0.0
      %v327 = vmax.f32 %v291, 0.0
      %v328 = vmax.f32 %v292, 0.0
      %v329 = vmax.f32 %v293, 0.0
      %v330 = vmax.f32 %v294, 0.0
      %331 = vst [vmem:[%s181] sm:$0xff] %v295
      %332 = vst [vmem:[%s181 + $0x8] sm:$0xff] %v296
      %333 = vst [vmem:[%s181 + $0x10] sm:$0xff] %v297
      %334 = vst [vmem:[%s181 + $0x18] sm:$0xff] %v298
      %335 = vst [vmem:[%s181 + $0x20] sm:$0xff] %v299
      %336 = vst [vmem:[%s181 + $0x28] sm:$0xff] %v300
      %337 = vst [vmem:[%s181 + $0x30] sm:$0xff] %v301
      %338 = vst [vmem:[%s181 + $0x38] sm:$0xff] %v302
      %339 = vst [vmem:[%s181 + $0x40] sm:$0xff] %v303
      %340 = vst [vmem:[%s181 + $0x48] sm:$0xff] %v304
      %341 = vst [vmem:[%s181 + $0x50] sm:$0xff] %v305
      %342 = vst [vmem:[%s181 + $0x58] sm:$0xff] %v306
      %343 = vst [vmem:[%s181 + $0x60] sm:$0xff] %v307
      %344 = vst [vmem:[%s181 + $0x68] sm:$0xff] %v308
      %345 = vst [vmem:[%s181 + $0x70] sm:$0xff] %v309
      %346 = vst [vmem:[%s181 + $0x78] sm:$0xff] %v310
      %347 = vst [vmem:[%s181 + $0x80] sm:$0xff] %v311
      %348 = vst [vmem:[%s181 + $0x88] sm:$0xff] %v312
      %349 = vst [vmem:[%s181 + $0x90] sm:$0xff] %v313
      %350 = vst [vmem:[%s181 + $0x98] sm:$0xff] %v314
      %351 = vst [vmem:[%s181 + $0xa0] sm:$0xff] %v315
      %352 = vst [vmem:[%s181 + $0xa8] sm:$0xff] %v316
      %353 = vst [vmem:[%s181 + $0xb0] sm:$0xff] %v317
      %354 = vst [vmem:[%s181 + $0xb8] sm:$0xff] %v318
      %355 = vst [vmem:[%s181 + $0xc0] sm:$0xff] %v319
      %356 = vst [vmem:[%s181 + $0xc8] sm:$0xff] %v320
      %357 = vst [vmem:[%s181 + $0xd0] sm:$0xff] %v321
      %358 = vst [vmem:[%s181 + $0xd8] sm:$0xff] %v322
      %359 = vst [vmem:[%s181 + $0xe0] sm:$0xff] %v323
      %360 = vst [vmem:[%s181 + $0xe8] sm:$0xff] %v324
      %361 = vst [vmem:[%s181 + $0xf0] sm:$0xff] %v325
      %362 = vst [vmem:[%s181 + $0xf8] sm:$0xff] %v326
      %363 = vst [vmem:[%s181 + $0x100] sm:$0xff] %v327
      %364 = vst [vmem:[%s181 + $0x108] sm:$0xff] %v328
      %365 = vst [vmem:[%s181 + $0x110] sm:$0xff] %v329
      %366 = vst [vmem:[%s181 + $0x118] sm:$0xff] %v330
      %s367 = smul.u32 36, %s18
      %p368 = scmp.lt.s32.totalorder %s17, 1
      %s369 = scalar_select %p368, %s17, 1
      %p370 = scmp.lt.s32.totalorder %s367, 35
      %s371 = scalar_select %p370, %s367, 35
      %s372 = smul.addr %s369, 36
      %s373 = sadd.s32 %s371, %s372
      %s374 = smul.addr %s373, 8
      %s375 = scalar_lea.vmem %s2, %s374
      // Predicated region
      $region29: #{inception2d.17} parent=27 // pred_check
        %p376 = pneg %p94
      $region30: #{inception2d.17} parent=27 // pred_check_branch
        %378 = sbr.rel (%p376) target = $region32
      $region31: #{inception2d.17} parent=27 // pred_region
        %s379 = smul.u32 36, %s18
      $region32: #{inception2d.17} parent=27 // pred_fallthru
        _
    $region28: #{inception2d.17} parent=5 // pred_fallthru
      _
    %p380 = scmp.le.s32.totalorder 2, %s8
    // Predicated region
    $region33: #{inception2d.17} parent=5 // pred_check
      %p381 = pneg %p380
    $region34: #{inception2d.17} parent=5 // pred_check_branch
      %383 = sbr.rel (%p381) target = $region36
    $region35: #{inception2d.17} parent=5 // pred_region
      %s384 = ssub.s32 %s8, 2
      // Predicated region
      $region37: #{inception2d.17} parent=35 // pred_check
        %p385 = pneg %p100
      $region38: #{inception2d.17} parent=35 // pred_check_branch
        %387 = sbr.rel (%p385) target = $region40
      $region39: #{inception2d.17} parent=35 // pred_region
        %s388 = smul.u32 36, %s20
        %p389 = scmp.lt.s32.totalorder %s19, 1
        %s390 = scalar_select %p389, %s19, 1
        %p391 = scmp.lt.s32.totalorder %s388, 35
        %s392 = scalar_select %p391, %s388, 35
        %s393 = smul.addr %s390, 36
        %s394 = sadd.s32 %s392, %s393
        %s395 = smul.addr %s394, 8
        %s396 = scalar_lea.vmem %s2, %s395
      $region40: #{inception2d.17} parent=35 // pred_fallthru
        _
    $region36: #{inception2d.17} parent=5 // pred_fallthru
      _
  $region6: #{inception2d.17} parent=0 // loop_footer
    %s12 = sadd.s32 1, %s8
  $region7: #{inception2d.17} parent=0 // loop_footer_branch
    %7 = sbr.rel target = $region3
  $region8: #{inception2d.17} parent=0 // loop_exit
    _

// kernel: inception2d.16
$region0: #{inception2d.16}
  #allocation0 [shape = 'u32[]', space=smem, size = 0x4, offset = 0x4, fixed_abs, tag = 'smem constant byte address 0x4 - core index']
  #allocation1 [shape = 'u32[72,128]{1,0:T(1,128)}', space=vmem, size = 0x9000, scoped, tag = 'internal scratch']
  #allocation2 [shape = 'f32[144,36]{1,0:T(8,128)}', space=vmem, size = 0x12000, scoped, tag = 'scratch operand']
  %s0 = inlined_call_operand.vmem [shape: f32[2,342,4], index: 0, kind: input, shape index: {}]
  %s1 = inlined_call_operand.vmem [shape: f32[36,128], index: 1, kind: input, shape index: {}]
  %s2 = inlined_call_operand.vmem [shape: f32[2,288,128], index: 2, kind: output, shape index: {0}]
  %s3 = inlined_call_operand.vmem [shape: f32[2,2,128], index: 3, kind: output, shape index: {1}]
  %4 = xla_tuple %s2, %s3
  %s5 = sld [smem:[#allocation0]]
  $region57: #{inception2d.16} parent=0
    _
  %s7 = ssub.s32 1, %s5
  %s8 = scalar_select 0, %s7, %s5
  loop: start=0, step=1, limit=6
  $region2: #{inception2d.16} parent=0 // loop_pre_header
    _
  $region3: #{inception2d.16} parent=0 // loop_header
    %s10 = sphi 0, %s14
    %p11 = scmp.ge.s32.totalorder %s10, 6
    %s17 = sphi 0, %s29
    %s18 = sphi 0, %s25
    %s19 = sphi 0, %s17
    %s20 = sphi 0, %s18
    %s21 = sphi 0, %s19
    %s22 = sphi 0, %s20
    %s32 = sphi 0, %s34
    %s35 = sphi 0, %s32
    %s36 = sphi 0, %s35
    %s52 = sphi 0, %s36
    %s56 = sphi 0, %s56
    %s58 = sphi 0, %s56
    %s59 = sphi 0, %s58
    %s73 = sphi 0, %s59
    %s81 = sphi 0, %s83
    %s84 = sphi 0, %s81
    %s85 = sphi 0, %s84
    %s101 = sphi 0, %s85
    %s107 = sphi 0, %s109
    %s110 = sphi 0, %s107
    %s111 = sphi 0, %s110
    %s127 = sphi 0, %s111
  $region4: #{inception2d.16} parent=0 // loop_header_branch
    %13 = sbr.rel (%p11) target = $region8
  $region5: #{inception2d.16} parent=0 // loop_body
    %s15 = ssub.s32 %s10, 1
    %s16 = ssub.s32 %s10, 2
    %s23 = sadd.s32 1, %s18
    %p24 = scmp.ge.s32.totalorder %s23, 2
    %s25 = scalar_select %p24, 0, %s23
    %s26 = sadd.s32 1, %s17
    %s27 = scalar_select %p24, %s26, %s17
    %p28 = scmp.ge.s32.totalorder %s27, 2
    %s29 = scalar_select %p28, 0, %s27
    %s30 = ssub.s32 %s17, %s29
    %p31 = scmp.eq.s32.totalorder %s30, 0
    %s33 = sadd.s32 %s32, 1
    %s34 = scalar_select %p31, %s32, %s33
    %p37 = pneg %p31
    %p38 = scmp.eq.s32.totalorder %s10, 3
    %p39 = por %p37, %p38
    %p40 = scmp.ne.s32.totalorder %s32, %s35
    %p41 = scmp.eq.s32.totalorder %s10, 0
    %p42 = por %p40, %p41
    %p43 = scmp.ne.s32.totalorder %s32, %s35
    %p44 = scmp.eq.s32.totalorder %s15, 3
    %p45 = por %p43, %p44
    %p46 = scmp.ne.s32.totalorder %s35, %s36
    %p47 = scmp.eq.s32.totalorder %s15, 0
    %p48 = por %p46, %p47
    %p49 = scmp.ne.s32.totalorder %s35, %s36
    %p50 = scmp.eq.s32.totalorder %s16, 3
    %p51 = por %p49, %p50
    %p53 = scmp.ne.s32.totalorder %s36, %s52
    %p54 = scmp.eq.s32.totalorder %s16, 0
    %p55 = por %p53, %p54
    %s57 = sadd.s32 %s56, 1
    %p60 = scmp.eq.s32.totalorder %s10, 3
    %p61 = scmp.ne.s32.totalorder %s56, %s58
    %p62 = scmp.eq.s32.totalorder %s10, 0
    %p63 = por %p61, %p62
    %p64 = scmp.ne.s32.totalorder %s56, %s58
    %p65 = scmp.eq.s32.totalorder %s15, 3
    %p66 = por %p64, %p65
    %p67 = scmp.ne.s32.totalorder %s58, %s59
    %p68 = scmp.eq.s32.totalorder %s15, 0
    %p69 = por %p67, %p68
    %p70 = scmp.ne.s32.totalorder %s58, %s59
    %p71 = scmp.eq.s32.totalorder %s16, 3
    %p72 = por %p70, %p71
    %p74 = scmp.ne.s32.totalorder %s59, %s73
    %p75 = scmp.eq.s32.totalorder %s16, 0
    %p76 = por %p74, %p75
    %s77 = ssub.s32 %s17, %s29
    %s78 = ssub.s32 %s18, %s25
    %s79 = sor.u32 %s77, %s78
    %p80 = scmp.eq.s32.totalorder %s79, 0
    %s82 = sadd.s32 %s81, 1
    %s83 = scalar_select %p80, %s81, %s82
    %p86 = pneg %p80
    %p87 = scmp.eq.s32.totalorder %s10, 3
    %p88 = por %p86, %p87
    %p89 = scmp.ne.s32.totalorder %s81, %s84
    %p90 = scmp.eq.s32.totalorder %s10, 0
    %p91 = por %p89, %p90
    %p92 = scmp.ne.s32.totalorder %s81, %s84
    %p93 = scmp.eq.s32.totalorder %s15, 3
    %p94 = por %p92, %p93
    %p95 = scmp.ne.s32.totalorder %s84, %s85
    %p96 = scmp.eq.s32.totalorder %s15, 0
    %p97 = por %p95, %p96
    %p98 = scmp.ne.s32.totalorder %s84, %s85
    %p99 = scmp.eq.s32.totalorder %s16, 3
    %p100 = por %p98, %p99
    %p102 = scmp.ne.s32.totalorder %s85, %s101
    %p103 = scmp.eq.s32.totalorder %s16, 0
    %p104 = por %p102, %p103
    %s105 = ssub.s32 %s17, %s29
    %p106 = scmp.eq.s32.totalorder %s105, 0
    %s108 = sadd.s32 %s107, 1
    %s109 = scalar_select %p106, %s107, %s108
    %p112 = pneg %p106
    %p113 = scmp.eq.s32.totalorder %s10, 3
    %p114 = por %p112, %p113
    %p115 = scmp.ne.s32.totalorder %s107, %s110
    %p116 = scmp.eq.s32.totalorder %s10, 0
    %p117 = por %p115, %p116
    %p118 = scmp.ne.s32.totalorder %s107, %s110
    %p119 = scmp.eq.s32.totalorder %s15, 3
    %p120 = por %p118, %p119
    %p121 = scmp.ne.s32.totalorder %s110, %s111
    %p122 = scmp.eq.s32.totalorder %s15, 0
    %p123 = por %p121, %p122
    %p124 = scmp.ne.s32.totalorder %s110, %s111
    %p125 = scmp.eq.s32.totalorder %s16, 3
    %p126 = por %p124, %p125
    %p128 = scmp.ne.s32.totalorder %s111, %s127
    %p129 = scmp.eq.s32.totalorder %s16, 0
    %p130 = por %p128, %p129
    %p131 = scmp.le.s32.totalorder 1, %s10
    %p132 = scmp.lt.s32.totalorder %s10, 5
    %p133 = pnand %p131, %p132
    %p134 = pneg %p133
    // Predicated region
    $region9: #{inception2d.16} parent=5 // pred_check
      _
    $region10: #{inception2d.16} parent=5 // pred_check_branch
      %136 = sbr.rel (%p133) target = $region12
    $region11: #{inception2d.16} parent=5 // pred_region
      %s137 = ssub.s32 %s10, 1
      // Predicated region
      $region13: #{inception2d.16} parent=11 // pred_check
        %p138 = pneg %p69
      $region14: #{inception2d.16} parent=11 // pred_check_branch
        %140 = sbr.rel (%p138) target = $region16
      $region15: #{inception2d.16} parent=11 // pred_region
        _
      $region16: #{inception2d.16} parent=11 // pred_fallthru
        _
    $region12: #{inception2d.16} parent=5 // pred_fallthru
      _
    %p141 = scmp.lt.s32.totalorder %s10, 4
    // Predicated region
    $region17: #{inception2d.16} parent=5 // pred_check
      %p142 = pneg %p141
    $region18: #{inception2d.16} parent=5 // pred_check_branch
      %144 = sbr.rel (%p142) target = $region20
    $region19: #{inception2d.16} parent=5 // pred_region
      // Predicated region
      $region21: #{inception2d.16} parent=19 // pred_check
        %p145 = pneg %p42
      $region22: #{inception2d.16} parent=19 // pred_check_branch
        %147 = sbr.rel (%p145) target = $region24
      $region23: #{inception2d.16} parent=19 // pred_region
        %p148 = scmp.lt.s32.totalorder %s17, 1
        %s149 = scalar_select %p148, %s17, 1
        %s150 = smul.addr %s149, 43
        %s151 = smul.addr %s150, 8
        %s152 = scalar_lea.vmem %s0, %s151
      $region24: #{inception2d.16} parent=19 // pred_fallthru
        _
    $region20: #{inception2d.16} parent=5 // pred_fallthru
      _
    %p153 = scmp.le.s32.totalorder 1, %s10
    %p154 = scmp.lt.s32.totalorder %s10, 5
    %p155 = pnand %p153, %p154
    %p156 = pneg %p155
    // Predicated region
    $region25: #{inception2d.16} parent=5 // pred_check
      _
    $region26: #{inception2d.16} parent=5 // pred_check_branch
      %158 = sbr.rel (%p155) target = $region28
    $region27: #{inception2d.16} parent=5 // pred_region
      %s159 = ssub.s32 %s10, 1
      %p160 = scmp.lt.s32.totalorder %s19, 1
      %s161 = scalar_select %p160, %s19, 1
      %s162 = smul.addr %s161, 43
      %s163 = smul.addr %s162, 8
      %s164 = scalar_lea.vmem %s0, %s163
      %p165 = pneg %p48
      %p166 = pneg %p45
      %p167 = pneg %p69
      %p168 = pneg %p66
      %p169 = pneg %p97
      %p170 = pneg %p94
      %s171 = smul.u32 18, %s20
      %p172 = scmp.lt.s32.totalorder %s19, 1
      %s173 = scalar_select %p172, %s19, 1
      %p174 = scmp.lt.s32.totalorder %s171, 35
      %s175 = scalar_select %p174, %s171, 35
      %s176 = smul.addr %s173, 36
      %s177 = sadd.s32 %s175, %s176
      %s178 = smul.addr %s177, 8
      %s179 = scalar_lea.vmem %s2, %s178
      %p180 = pneg %p123
      %p181 = pneg %p120
      %p182 = scmp.lt.s32.totalorder %s19, 1
      %s183 = scalar_select %p182, %s19, 1
      %s184 = smul.addr %s183, 2
      %s185 = scalar_lea.vmem %s3, %s184
      %p186 = scmp.lt.s32.totalorder %s19, 1
      %s187 = scalar_select %p186, %s19, 1
      %s188 = smul.addr %s187, 43
      %s189 = smul.addr %s188, 8
      %s190 = scalar_lea.vmem %s0, %s189
      %s191 = smul.u32 18, %s20
      %p192 = scmp.lt.s32.totalorder %s19, 1
      %s193 = scalar_select %p192, %s19, 1
      %p194 = scmp.lt.s32.totalorder %s191, 35
      %s195 = scalar_select %p194, %s191, 35
      %s196 = smul.addr %s193, 36
      %s197 = sadd.s32 %s195, %s196
      %s198 = smul.addr %s197, 8
      %s199 = scalar_lea.vmem %s2, %s198
      %s200 = smul.u32 18, %s20
      %p201 = scmp.lt.s32.totalorder %s19, 1
      %s202 = scalar_select %p201, %s19, 1
      %s203 = smul.addr %s202, 2
      %s204 = scalar_lea.vmem %s3, %s203
      %s205 = smul.u32 %s20, 144
      %s206 = scalar_lea.vmem %s190, %s205
      %v207 = vld [vmem:[%s206] sm:$0xff]
      %v208 = vld [vmem:[%s206 + $0x8] sm:$0xff]
      %v209 = vld [vmem:[%s206 + $0x10] sm:$0xff]
      %v210 = vld [vmem:[%s206 + $0x18] sm:$0xff]
      %v211 = vld [vmem:[%s206 + $0x20] sm:$0xff]
      %v212 = vld [vmem:[%s206 + $0x28] sm:$0xff]
      %v213 = vld [vmem:[%s206 + $0x30] sm:$0xff]
      %v214 = vld [vmem:[%s206 + $0x38] sm:$0xff]
      %v215 = vld [vmem:[%s206 + $0x40] sm:$0xff]
      %v216 = vld [vmem:[%s206 + $0x48] sm:$0xff]
      %v217 = vld [vmem:[%s206 + $0x50] sm:$0xff]
      %v218 = vld [vmem:[%s206 + $0x58] sm:$0xff]
      %v219 = vld [vmem:[%s206 + $0x60] sm:$0xff]
      %v220 = vld [vmem:[%s206 + $0x68] sm:$0xff]
      %v221 = vld [vmem:[%s206 + $0x70] sm:$0xff]
      %v222 = vld [vmem:[%s206 + $0x78] sm:$0xff]
      %v223 = vld [vmem:[%s206 + $0x80] sm:$0xff]
      %v224 = vld [vmem:[%s206 + $0x88] sm:$0xff]
      %vm225 = vcmask 31744
      %226 = vst.msk [vmem:[#allocation2] sm:$0xff] %vm225, %v207
      %227 = vst.msk [vmem:[#allocation2 + $0x8] sm:$0xff] %vm225, %v208
      %228 = vst.msk [vmem:[#allocation2 + $0x10] sm:$0xff] %vm225, %v209
      %229 = vst.msk [vmem:[#allocation2 + $0x18] sm:$0xff] %vm225, %v210
      %230 = vst.msk [vmem:[#allocation2 + $0x20] sm:$0xff] %vm225, %v211
      %231 = vst.msk [vmem:[#allocation2 + $0x28] sm:$0xff] %vm225, %v212
      %232 = vst.msk [vmem:[#allocation2 + $0x30] sm:$0xff] %vm225, %v213
      %233 = vst.msk [vmem:[#allocation2 + $0x38] sm:$0xff] %vm225, %v214
      %234 = vst.msk [vmem:[#allocation2 + $0x40] sm:$0xff] %vm225, %v215
      %235 = vst.msk [vmem:[#allocation2 + $0x48] sm:$0xff] %vm225, %v216
      %236 = vst.msk [vmem:[#allocation2 + $0x50] sm:$0xff] %vm225, %v217
      %237 = vst.msk [vmem:[#allocation2 + $0x58] sm:$0xff] %vm225, %v218
      %238 = vst.msk [vmem:[#allocation2 + $0x60] sm:$0xff] %vm225, %v219
      %239 = vst.msk [vmem:[#allocation2 + $0x68] sm:$0xff] %vm225, %v220
      %240 = vst.msk [vmem:[#allocation2 + $0x70] sm:$0xff] %vm225, %v221
      %241 = vst.msk [vmem:[#allocation2 + $0x78] sm:$0xff] %vm225, %v222
      %242 = vst.msk [vmem:[#allocation2 + $0x80] sm:$0xff] %vm225, %v223
      %243 = vst.msk [vmem:[#allocation2 + $0x88] sm:$0xff] %vm225, %v224
      %s244 = sadd.s32 %s205, 1
      %s245 = scalar_lea.vmem %s190, %s244
      %v246 = vld [vmem:[%s245] sm:$0xff]
      %v247 = vld [vmem:[%s245 + $0x8] sm:$0xff]
      %v248 = vld [vmem:[%s245 + $0x10] sm:$0xff]
      %v249 = vld [vmem:[%s245 + $0x18] sm:$0xff]
      %v250 = vld [vmem:[%s245 + $0x20] sm:$0xff]
      %v251 = vld [vmem:[%s245 + $0x28] sm:$0xff]
      %v252 = vld [vmem:[%s245 + $0x30] sm:$0xff]
      %v253 = vld [vmem:[%s245 + $0x38] sm:$0xff]
      %v254 = vld [vmem:[%s245 + $0x40] sm:$0xff]
      %v255 = vld [vmem:[%s245 + $0x48] sm:$0xff]
      %v256 = vld [vmem:[%s245 + $0x50] sm:$0xff]
      %v257 = vld [vmem:[%s245 + $0x58] sm:$0xff]
      %v258 = vld [vmem:[%s245 + $0x60] sm:$0xff]
      %v259 = vld [vmem:[%s245 + $0x68] sm:$0xff]
      %v260 = vld [vmem:[%s245 + $0x70] sm:$0xff]
      %v261 = vld [vmem:[%s245 + $0x78] sm:$0xff]
      %v262 = vld [vmem:[%s245 + $0x80] sm:$0xff]
      %v263 = vld [vmem:[%s245 + $0x88] sm:$0xff]
      %282 = vrot.lane.b32.xlu0 %v246, 4
      %v283 = vpop.permute.xlu0 %282
      %284 = vrot.lane.b32.xlu0 %v247, 4
      %v285 = vpop.permute.xlu0 %284
      %286 = vrot.lane.b32.xlu0 %v248, 4
      %v287 = vpop.permute.xlu0 %286
      %288 = vrot.lane.b32.xlu0 %v249, 4
      %v289 = vpop.permute.xlu0 %288
      %290 = vrot.lane.b32.xlu0 %v250, 4
      %v291 = vpop.permute.xlu0 %290
      %292 = vrot.lane.b32.xlu0 %v251, 4
      %v293 = vpop.permute.xlu0 %292
      %294 = vrot.lane.b32.xlu0 %v252, 4
      %v295 = vpop.permute.xlu0 %294
      %296 = vrot.lane.b32.xlu0 %v253, 4
      %v297 = vpop.permute.xlu0 %296
      %298 = vrot.lane.b32.xlu0 %v254, 4
      %v299 = vpop.permute.xlu0 %298
      %300 = vrot.lane.b32.xlu0 %v255, 4
      %v301 = vpop.permute.xlu0 %300
      %302 = vrot.lane.b32.xlu0 %v256, 4
      %v303 = vpop.permute.xlu0 %302
      %304 = vrot.lane.b32.xlu0 %v257, 4
      %v305 = vpop.permute.xlu0 %304
      %306 = vrot.lane.b32.xlu0 %v258, 4
      %v307 = vpop.permute.xlu0 %306
      %308 = vrot.lane.b32.xlu0 %v259, 4
      %v309 = vpop.permute.xlu0 %308
      %310 = vrot.lane.b32.xlu0 %v260, 4
      %v311 = vpop.permute.xlu0 %310
      %312 = vrot.lane.b32.xlu0 %v261, 4
      %v313 = vpop.permute.xlu0 %312
      %314 = vrot.lane.b32.xlu0 %v262, 4
      %v315 = vpop.permute.xlu0 %314
      %316 = vrot.lane.b32.xlu0 %v263, 4
      %v317 = vpop.permute.xlu0 %316
      %vm336 = vcmask 64544
      %337 = vst.msk [vmem:[#allocation2] sm:$0xff] %vm336, %v283
      %338 = vst.msk [vmem:[#allocation2 + $0x8] sm:$0xff] %vm336, %v285
      %339 = vst.msk [vmem:[#allocation2 + $0x10] sm:$0xff] %vm336, %v287
      %340 = vst.msk [vmem:[#allocation2 + $0x18] sm:$0xff] %vm336, %v289
      %341 = vst.msk [vmem:[#allocation2 + $0x20] sm:$0xff] %vm336, %v291
      %342 = vst.msk [vmem:[#allocation2 + $0x28] sm:$0xff] %vm336, %v293
      %343 = vst.msk [vmem:[#allocation2 + $0x30] sm:$0xff] %vm336, %v295
      %344 = vst.msk [vmem:[#allocation2 + $0x38] sm:$0xff] %vm336, %v297
      %345 = vst.msk [vmem:[#allocation2 + $0x40] sm:$0xff] %vm336, %v299
      %346 = vst.msk [vmem:[#allocation2 + $0x48] sm:$0xff] %vm336, %v301
      %347 = vst.msk [vmem:[#allocation2 + $0x50] sm:$0xff] %vm336, %v303
      %348 = vst.msk [vmem:[#allocation2 + $0x58] sm:$0xff] %vm336, %v305
      %349 = vst.msk [vmem:[#allocation2 + $0x60] sm:$0xff] %vm336, %v307
      %350 = vst.msk [vmem:[#allocation2 + $0x68] sm:$0xff] %vm336, %v309
      %351 = vst.msk [vmem:[#allocation2 + $0x70] sm:$0xff] %vm336, %v311
      %352 = vst.msk [vmem:[#allocation2 + $0x78] sm:$0xff] %vm336, %v313
      %353 = vst.msk [vmem:[#allocation2 + $0x80] sm:$0xff] %vm336, %v315
      %354 = vst.msk [vmem:[#allocation2 + $0x88] sm:$0xff] %vm336, %v317
      %s355 = sadd.s32 %s205, 2
      %s356 = scalar_lea.vmem %s190, %s355
      %v357 = vld [vmem:[%s356] sm:$0xff]
      %v358 = vld [vmem:[%s356 + $0x8] sm:$0xff]
      %v359 = vld [vmem:[%s356 + $0x10] sm:$0xff]
      %v360 = vld [vmem:[%s356 + $0x18] sm:$0xff]
      %v361 = vld [vmem:[%s356 + $0x20] sm:$0xff]
      %v362 = vld [vmem:[%s356 + $0x28] sm:$0xff]
      %v363 = vld [vmem:[%s356 + $0x30] sm:$0xff]
      %v364 = vld [vmem:[%s356 + $0x38] sm:$0xff]
      %v365 = vld [vmem:[%s356 + $0x40] sm:$0xff]
      %v366 = vld [vmem:[%s356 + $0x48] sm:$0xff]
      %v367 = vld [vmem:[%s356 + $0x50] sm:$0xff]
      %v368 = vld [vmem:[%s356 + $0x58] sm:$0xff]
      %v369 = vld [vmem:[%s356 + $0x60] sm:$0xff]
      %v370 = vld [vmem:[%s356 + $0x68] sm:$0xff]
      %v371 = vld [vmem:[%s356 + $0x70] sm:$0xff]
      %v372 = vld [vmem:[%s356 + $0x78] sm:$0xff]
      %v373 = vld [vmem:[%s356 + $0x80] sm:$0xff]
      %v374 = vld [vmem:[%s356 + $0x88] sm:$0xff]
      %393 = vrot.lane.b32.xlu0 %v357, 8
      %v394 = vpop.permute.xlu0 %393
      %395 = vrot.lane.b32.xlu0 %v358, 8
      %v396 = vpop.permute.xlu0 %395
      %397 = vrot.lane.b32.xlu0 %v359, 8
      %v398 = vpop.permute.xlu0 %397
      %399 = vrot.lane.b32.xlu0 %v360, 8
      %v400 = vpop.permute.xlu0 %399
      %401 = vrot.lane.b32.xlu0 %v361, 8
      %v402 = vpop.permute.xlu0 %401
      %403 = vrot.lane.b32.xlu0 %v362, 8
      %v404 = vpop.permute.xlu0 %403
      %405 = vrot.lane.b32.xlu0 %v363, 8
      %v406 = vpop.permute.xlu0 %405
      %407 = vrot.lane.b32.xlu0 %v364, 8
      %v408 = vpop.permute.xlu0 %407
      %409 = vrot.lane.b32.xlu0 %v365, 8
      %v410 = vpop.permute.xlu0 %409
      %411 = vrot.lane.b32.xlu0 %v366, 8
      %v412 = vpop.permute.xlu0 %411
      %413 = vrot.lane.b32.xlu0 %v367, 8
      %v414 = vpop.permute.xlu0 %413
      %415 = vrot.lane.b32.xlu0 %v368, 8
      %v416 = vpop.permute.xlu0 %415
      %417 = vrot.lane.b32.xlu0 %v369, 8
      %v418 = vpop.permute.xlu0 %417
      %419 = vrot.lane.b32.xlu0 %v370, 8
      %v420 = vpop.permute.xlu0 %419
      %421 = vrot.lane.b32.xlu0 %v371, 8
      %v422 = vpop.permute.xlu0 %421
      %423 = vrot.lane.b32.xlu0 %v372, 8
      %v424 = vpop.permute.xlu0 %423
      %425 = vrot.lane.b32.xlu0 %v373, 8
      %v426 = vpop.permute.xlu0 %425
      %427 = vrot.lane.b32.xlu0 %v374, 8
      %v428 = vpop.permute.xlu0 %427
      %vm447 = vcmask 97344
      %448 = vst.msk [vmem:[#allocation2] sm:$0xff] %vm447, %v394
      %449 = vst.msk [vmem:[#allocation2 + $0x8] sm:$0xff] %vm447, %v396
      %450 = vst.msk [vmem:[#allocation2 + $0x10] sm:$0xff] %vm447, %v398
      %451 = vst.msk [vmem:[#allocation2 + $0x18] sm:$0xff] %vm447, %v400
      %452 = vst.msk [vmem:[#allocation2 + $0x20] sm:$0xff] %vm447, %v402
      %453 = vst.msk [vmem:[#allocation2 + $0x28] sm:$0xff] %vm447, %v404
      %454 = vst.msk [vmem:[#allocation2 + $0x30] sm:$0xff] %vm447, %v406
      %455 = vst.msk [vmem:[#allocation2 + $0x38] sm:$0xff] %vm447, %v408
      %456 = vst.msk [vmem:[#allocation2 + $0x40] sm:$0xff] %vm447, %v410
      %457 = vst.msk [vmem:[#allocation2 + $0x48] sm:$0xff] %vm447, %v412
      %458 = vst.msk [vmem:[#allocation2 + $0x50] sm:$0xff] %vm447, %v414
      %459 = vst.msk [vmem:[#allocation2 + $0x58] sm:$0xff] %vm447, %v416
      %460 = vst.msk [vmem:[#allocation2 + $0x60] sm:$0xff] %vm447, %v418
      %461 = vst.msk [vmem:[#allocation2 + $0x68] sm:$0xff] %vm447, %v420
      %462 = vst.msk [vmem:[#allocation2 + $0x70] sm:$0xff] %vm447, %v422
      %463 = vst.msk [vmem:[#allocation2 + $0x78] sm:$0xff] %vm447, %v424
      %464 = vst.msk [vmem:[#allocation2 + $0x80] sm:$0xff] %vm447, %v426
      %465 = vst.msk [vmem:[#allocation2 + $0x88] sm:$0xff] %vm447, %v428
      %s466 = sadd.s32 %s205, 18
      %s467 = scalar_lea.vmem %s190, %s466
      %v468 = vld [vmem:[%s467] sm:$0xff]
      %v469 = vld [vmem:[%s467 + $0x8] sm:$0xff]
      %v470 = vld [vmem:[%s467 + $0x10] sm:$0xff]
      %v471 = vld [vmem:[%s467 + $0x18] sm:$0xff]
      %v472 = vld [vmem:[%s467 + $0x20] sm:$0xff]
      %v473 = vld [vmem:[%s467 + $0x28] sm:$0xff]
      %v474 = vld [vmem:[%s467 + $0x30] sm:$0xff]
      %v475 = vld [vmem:[%s467 + $0x38] sm:$0xff]
      %v476 = vld [vmem:[%s467 + $0x40] sm:$0xff]
      %v477 = vld [vmem:[%s467 + $0x48] sm:$0xff]
      %v478 = vld [vmem:[%s467 + $0x50] sm:$0xff]
      %v479 = vld [vmem:[%s467 + $0x58] sm:$0xff]
      %v480 = vld [vmem:[%s467 + $0x60] sm:$0xff]
      %v481 = vld [vmem:[%s467 + $0x68] sm:$0xff]
      %v482 = vld [vmem:[%s467 + $0x70] sm:$0xff]
      %v483 = vld [vmem:[%s467 + $0x78] sm:$0xff]
      %v484 = vld [vmem:[%s467 + $0x80] sm:$0xff]
      %v485 = vld [vmem:[%s467 + $0x88] sm:$0xff]
      %504 = vrot.lane.b32.xlu0 %v468, 12
      %v505 = vpop.permute.xlu0 %504
      %506 = vrot.lane.b32.xlu0 %v469, 12
      %v507 = vpop.permute.xlu0 %506
      %508 = vrot.lane.b32.xlu0 %v470, 12
      %v509 = vpop.permute.xlu0 %508
      %510 = vrot.lane.b32.xlu0 %v471, 12
      %v511 = vpop.permute.xlu0 %510
      %512 = vrot.lane.b32.xlu0 %v472, 12
      %v513 = vpop.permute.xlu0 %512
      %514 = vrot.lane.b32.xlu0 %v473, 12
      %v515 = vpop.permute.xlu0 %514
      %516 = vrot.lane.b32.xlu0 %v474, 12
      %v517 = vpop.permute.xlu0 %516
      %518 = vrot.lane.b32.xlu0 %v475, 12
      %v519 = vpop.permute.xlu0 %518
      %520 = vrot.lane.b32.xlu0 %v476, 12
      %v521 = vpop.permute.xlu0 %520
      %522 = vrot.lane.b32.xlu0 %v477, 12
      %v523 = vpop.permute.xlu0 %522
      %524 = vrot.lane.b32.xlu0 %v478, 12
      %v525 = vpop.permute.xlu0 %524
      %526 = vrot.lane.b32.xlu0 %v479, 12
      %v527 = vpop.permute.xlu0 %526
      %528 = vrot.lane.b32.xlu0 %v480, 12
      %v529 = vpop.permute.xlu0 %528
      %530 = vrot.lane.b32.xlu0 %v481, 12
      %v531 = vpop.permute.xlu0 %530
      %532 = vrot.lane.b32.xlu0 %v482, 12
      %v533 = vpop.permute.xlu0 %532
      %534 = vrot.lane.b32.xlu0 %v483, 12
      %v535 = vpop.permute.xlu0 %534
      %536 = vrot.lane.b32.xlu0 %v484, 12
      %v537 = vpop.permute.xlu0 %536
      %538 = vrot.lane.b32.xlu0 %v485, 12
      %v539 = vpop.permute.xlu0 %538
      %vm558 = vcmask 130144
      %559 = vst.msk [vmem:[#allocation2] sm:$0xff] %vm558, %v505
      %560 = vst.msk [vmem:[#allocation2 + $0x8] sm:$0xff] %vm558, %v507
      %561 = vst.msk [vmem:[#allocation2 + $0x10] sm:$0xff] %vm558, %v509
      %562 = vst.msk [vmem:[#allocation2 + $0x18] sm:$0xff] %vm558, %v511
      %563 = vst.msk [vmem:[#allocation2 + $0x20] sm:$0xff] %vm558, %v513
      %564 = vst.msk [vmem:[#allocation2 + $0x28] sm:$0xff] %vm558, %v515
      %565 = vst.msk [vmem:[#allocation2 + $0x30] sm:$0xff] %vm558, %v517
      %566 = vst.msk [vmem:[#allocation2 + $0x38] sm:$0xff] %vm558, %v519
      %567 = vst.msk [vmem:[#allocation2 + $0x40] sm:$0xff] %vm558, %v521
      %568 = vst.msk [vmem:[#allocation2 + $0x48] sm:$0xff] %vm558, %v523
      %569 = vst.msk [vmem:[#allocation2 + $0x50] sm:$0xff] %vm558, %v525
      %570 = vst.msk [vmem:[#allocation2 + $0x58] sm:$0xff] %vm558, %v527
      %571 = vst.msk [vmem:[#allocation2 + $0x60] sm:$0xff] %vm558, %v529
      %572 = vst.msk [vmem:[#allocation2 + $0x68] sm:$0xff] %vm558, %v531
      %573 = vst.msk [vmem:[#allocation2 + $0x70] sm:$0xff] %vm558, %v533
      %574 = vst.msk [vmem:[#allocation2 + $0x78] sm:$0xff] %vm558, %v535
      %575 = vst.msk [vmem:[#allocation2 + $0x80] sm:$0xff] %vm558, %v537
      %576 = vst.msk [vmem:[#allocation2 + $0x88] sm:$0xff] %vm558, %v539
      %s577 = sadd.s32 %s205, 19
      %s578 = scalar_lea.vmem %s190, %s577
      %v579 = vld [vmem:[%s578] sm:$0xff]
      %v580 = vld [vmem:[%s578 + $0x8] sm:$0xff]
      %v581 = vld [vmem:[%s578 + $0x10] sm:$0xff]
      %v582 = vld [vmem:[%s578 + $0x18] sm:$0xff]
      %v583 = vld [vmem:[%s578 + $0x20] sm:$0xff]
      %v584 = vld [vmem:[%s578 + $0x28] sm:$0xff]
      %v585 = vld [vmem:[%s578 + $0x30] sm:$0xff]
      %v586 = vld [vmem:[%s578 + $0x38] sm:$0xff]
      %v587 = vld [vmem:[%s578 + $0x40] sm:$0xff]
      %v588 = vld [vmem:[%s578 + $0x48] sm:$0xff]
      %v589 = vld [vmem:[%s578 + $0x50] sm:$0xff]
      %v590 = vld [vmem:[%s578 + $0x58] sm:$0xff]
      %v591 = vld [vmem:[%s578 + $0x60] sm:$0xff]
      %v592 = vld [vmem:[%s578 + $0x68] sm:$0xff]
      %v593 = vld [vmem:[%s578 + $0x70] sm:$0xff]
      %v594 = vld [vmem:[%s578 + $0x78] sm:$0xff]
      %v595 = vld [vmem:[%s578 + $0x80] sm:$0xff]
      %v596 = vld [vmem:[%s578 + $0x88] sm:$0xff]
      %615 = vrot.lane.b32.xlu0 %v579, 16
      %v616 = vpop.permute.xlu0 %615
      %617 = vrot.lane.b32.xlu0 %v580, 16
      %v618 = vpop.permute.xlu0 %617
      %619 = vrot.lane.b32.xlu0 %v581, 16
      %v620 = vpop.permute.xlu0 %619
      %621 = vrot.lane.b32.xlu0 %v582, 16
      %v622 = vpop.permute.xlu0 %621
      %623 = vrot.lane.b32.xlu0 %v583, 16
      %v624 = vpop.permute.xlu0 %623
      %625 = vrot.lane.b32.xlu0 %v584, 16
      %v626 = vpop.permute.xlu0 %625
      %627 = vrot.lane.b32.xlu0 %v585, 16
      %v628 = vpop.permute.xlu0 %627
      %629 = vrot.lane.b32.xlu0 %v586, 16
      %v630 = vpop.permute.xlu0 %629
      %631 = vrot.lane.b32.xlu0 %v587, 16
      %v632 = vpop.permute.xlu0 %631
      %633 = vrot.lane.b32.xlu0 %v588, 16
      %v634 = vpop.permute.xlu0 %633
      %635 = vrot.lane.b32.xlu0 %v589, 16
      %v636 = vpop.permute.xlu0 %635
      %637 = vrot.lane.b32.xlu0 %v590, 16
      %v638 = vpop.permute.xlu0 %637
      %639 = vrot.lane.b32.xlu0 %v591, 16
      %v640 = vpop.permute.xlu0 %639
      %641 = vrot.lane.b32.xlu0 %v592, 16
      %v642 = vpop.permute.xlu0 %641
      %643 = vrot.lane.b32.xlu0 %v593, 16
      %v644 = vpop.permute.xlu0 %643
      %645 = vrot.lane.b32.xlu0 %v594, 16
      %v646 = vpop.permute.xlu0 %645
      %647 = vrot.lane.b32.xlu0 %v595, 16
      %v648 = vpop.permute.xlu0 %647
      %649 = vrot.lane.b32.xlu0 %v596, 16
      %v650 = vpop.permute.xlu0 %649
      %vm669 = vcmask 162944
      %670 = vst.msk [vmem:[#allocation2] sm:$0xff] %vm669, %v616
      %671 = vst.msk [vmem:[#allocation2 + $0x8] sm:$0xff] %vm669, %v618
      %672 = vst.msk [vmem:[#allocation2 + $0x10] sm:$0xff] %vm669, %v620
      %673 = vst.msk [vmem:[#allocation2 + $0x18] sm:$0xff] %vm669, %v622
      %674 = vst.msk [vmem:[#allocation2 + $0x20] sm:$0xff] %vm669, %v624
      %675 = vst.msk [vmem:[#allocation2 + $0x28] sm:$0xff] %vm669, %v626
      %676 = vst.msk [vmem:[#allocation2 + $0x30] sm:$0xff] %vm669, %v628
      %677 = vst.msk [vmem:[#allocation2 + $0x38] sm:$0xff] %vm669, %v630
      %678 = vst.msk [vmem:[#allocation2 + $0x40] sm:$0xff] %vm669, %v632
      %679 = vst.msk [vmem:[#allocation2 + $0x48] sm:$0xff] %vm669, %v634
      %680 = vst.msk [vmem:[#allocation2 + $0x50] sm:$0xff] %vm669, %v636
      %681 = vst.msk [vmem:[#allocation2 + $0x58] sm:$0xff] %vm669, %v638
      %682 = vst.msk [vmem:[#allocation2 + $0x60] sm:$0xff] %vm669, %v640
      %683 = vst.msk [vmem:[#allocation2 + $0x68] sm:$0xff] %vm669, %v642
      %684 = vst.msk [vmem:[#allocation2 + $0x70] sm:$0xff] %vm669, %v644
      %685 = vst.msk [vmem:[#allocation2 + $0x78] sm:$0xff] %vm669, %v646
      %686 = vst.msk [vmem:[#allocation2 + $0x80] sm:$0xff] %vm669, %v648
      %687 = vst.msk [vmem:[#allocation2 + $0x88] sm:$0xff] %vm669, %v650
      %s688 = sadd.s32 %s205, 20
      %s689 = scalar_lea.vmem %s190, %s688
      %v690 = vld [vmem:[%s689] sm:$0xff]
      %v691 = vld [vmem:[%s689 + $0x8] sm:$0xff]
      %v692 = vld [vmem:[%s689 + $0x10] sm:$0xff]
      %v693 = vld [vmem:[%s689 + $0x18] sm:$0xff]
      %v694 = vld [vmem:[%s689 + $0x20] sm:$0xff]
      %v695 = vld [vmem:[%s689 + $0x28] sm:$0xff]
      %v696 = vld [vmem:[%s689 + $0x30] sm:$0xff]
      %v697 = vld [vmem:[%s689 + $0x38] sm:$0xff]
      %v698 = vld [vmem:[%s689 + $0x40] sm:$0xff]
      %v699 = vld [vmem:[%s689 + $0x48] sm:$0xff]
      %v700 = vld [vmem:[%s689 + $0x50] sm:$0xff]
      %v701 = vld [vmem:[%s689 + $0x58] sm:$0xff]
      %v702 = vld [vmem:[%s689 + $0x60] sm:$0xff]
      %v703 = vld [vmem:[%s689 + $0x68] sm:$0xff]
      %v704 = vld [vmem:[%s689 + $0x70] sm:$0xff]
      %v705 = vld [vmem:[%s689 + $0x78] sm:$0xff]
      %v706 = vld [vmem:[%s689 + $0x80] sm:$0xff]
      %v707 = vld [vmem:[%s689 + $0x88] sm:$0xff]
      %726 = vrot.lane.b32.xlu0 %v690, 20
      %v727 = vpop.permute.xlu0 %726
      %728 = vrot.lane.b32.xlu0 %v691, 20
      %v729 = vpop.permute.xlu0 %728
      %730 = vrot.lane.b32.xlu0 %v692, 20
      %v731 = vpop.permute.xlu0 %730
      %732 = vrot.lane.b32.xlu0 %v693, 20
      %v733 = vpop.permute.xlu0 %732
      %734 = vrot.lane.b32.xlu0 %v694, 20
      %v735 = vpop.permute.xlu0 %734
      %736 = vrot.lane.b32.xlu0 %v695, 20
      %v737 = vpop.permute.xlu0 %736
      %738 = vrot.lane.b32.xlu0 %v696, 20
      %v739 = vpop.permute.xlu0 %738
      %740 = vrot.lane.b32.xlu0 %v697, 20
      %v741 = vpop.permute.xlu0 %740
      %742 = vrot.lane.b32.xlu0 %v698, 20
      %v743 = vpop.permute.xlu0 %742
      %744 = vrot.lane.b32.xlu0 %v699, 20
      %v745 = vpop.permute.xlu0 %744
      %746 = vrot.lane.b32.xlu0 %v700, 20
      %v747 = vpop.permute.xlu0 %746
      %748 = vrot.lane.b32.xlu0 %v701, 20
      %v749 = vpop.permute.xlu0 %748
      %750 = vrot.lane.b32.xlu0 %v702, 20
      %v751 = vpop.permute.xlu0 %750
      %752 = vrot.lane.b32.xlu0 %v703, 20
      %v753 = vpop.permute.xlu0 %752
      %754 = vrot.lane.b32.xlu0 %v704, 20
      %v755 = vpop.permute.xlu0 %754
      %756 = vrot.lane.b32.xlu0 %v705, 20
      %v757 = vpop.permute.xlu0 %756
      %758 = vrot.lane.b32.xlu0 %v706, 20
      %v759 = vpop.permute.xlu0 %758
      %760 = vrot.lane.b32.xlu0 %v707, 20
      %v761 = vpop.permute.xlu0 %760
      %vm780 = vcmask 195744
      %781 = vst.msk [vmem:[#allocation2] sm:$0xff] %vm780, %v727
      %782 = vst.msk [vmem:[#allocation2 + $0x8] sm:$0xff] %vm780, %v729
      %783 = vst.msk [vmem:[#allocation2 + $0x10] sm:$0xff] %vm780, %v731
      %784 = vst.msk [vmem:[#allocation2 + $0x18] sm:$0xff] %vm780, %v733
      %785 = vst.msk [vmem:[#allocation2 + $0x20] sm:$0xff] %vm780, %v735
      %786 = vst.msk [vmem:[#allocation2 + $0x28] sm:$0xff] %vm780, %v737
      %787 = vst.msk [vmem:[#allocation2 + $0x30] sm:$0xff] %vm780, %v739
      %788 = vst.msk [vmem:[#allocation2 + $0x38] sm:$0xff] %vm780, %v741
      %789 = vst.msk [vmem:[#allocation2 + $0x40] sm:$0xff] %vm780, %v743
      %790 = vst.msk [vmem:[#allocation2 + $0x48] sm:$0xff] %vm780, %v745
      %791 = vst.msk [vmem:[#allocation2 + $0x50] sm:$0xff] %vm780, %v747
      %792 = vst.msk [vmem:[#allocation2 + $0x58] sm:$0xff] %vm780, %v749
      %793 = vst.msk [vmem:[#allocation2 + $0x60] sm:$0xff] %vm780, %v751
      %794 = vst.msk [vmem:[#allocation2 + $0x68] sm:$0xff] %vm780, %v753
      %795 = vst.msk [vmem:[#allocation2 + $0x70] sm:$0xff] %vm780, %v755
      %796 = vst.msk [vmem:[#allocation2 + $0x78] sm:$0xff] %vm780, %v757
      %797 = vst.msk [vmem:[#allocation2 + $0x80] sm:$0xff] %vm780, %v759
      %798 = vst.msk [vmem:[#allocation2 + $0x88] sm:$0xff] %vm780, %v761
      %s799 = sadd.s32 %s205, 36
      %s800 = scalar_lea.vmem %s190, %s799
      %v801 = vld [vmem:[%s800] sm:$0xff]
      %v802 = vld [vmem:[%s800 + $0x8] sm:$0xff]
      %v803 = vld [vmem:[%s800 + $0x10] sm:$0xff]
      %v804 = vld [vmem:[%s800 + $0x18] sm:$0xff]
      %v805 = vld [vmem:[%s800 + $0x20] sm:$0xff]
      %v806 = vld [vmem:[%s800 + $0x28] sm:$0xff]
      %v807 = vld [vmem:[%s800 + $0x30] sm:$0xff]
      %v808 = vld [vmem:[%s800 + $0x38] sm:$0xff]
      %v809 = vld [vmem:[%s800 + $0x40] sm:$0xff]
      %v810 = vld [vmem:[%s800 + $0x48] sm:$0xff]
      %v811 = vld [vmem:[%s800 + $0x50] sm:$0xff]
      %v812 = vld [vmem:[%s800 + $0x58] sm:$0xff]
      %v813 = vld [vmem:[%s800 + $0x60] sm:$0xff]
      %v814 = vld [vmem:[%s800 + $0x68] sm:$0xff]
      %v815 = vld [vmem:[%s800 + $0x70] sm:$0xff]
      %v816 = vld [vmem:[%s800 + $0x78] sm:$0xff]
      %v817 = vld [vmem:[%s800 + $0x80] sm:$0xff]
      %v818 = vld [vmem:[%s800 + $0x88] sm:$0xff]
      %837 = vrot.lane.b32.xlu0 %v801, 24
      %v838 = vpop.permute.xlu0 %837
      %839 = vrot.lane.b32.xlu0 %v802, 24
      %v840 = vpop.permute.xlu0 %839
      %841 = vrot.lane.b32.xlu0 %v803, 24
      %v842 = vpop.permute.xlu0 %841
      %843 = vrot.lane.b32.xlu0 %v804, 24
      %v844 = vpop.permute.xlu0 %843
      %845 = vrot.lane.b32.xlu0 %v805, 24
      %v846 = vpop.permute.xlu0 %845
      %847 = vrot.lane.b32.xlu0 %v806, 24
      %v848 = vpop.permute.xlu0 %847
      %849 = vrot.lane.b32.xlu0 %v807, 24
      %v850 = vpop.permute.xlu0 %849
      %851 = vrot.lane.b32.xlu0 %v808, 24
      %v852 = vpop.permute.xlu0 %851
      %853 = vrot.lane.b32.xlu0 %v809, 24
      %v854 = vpop.permute.xlu0 %853
      %855 = vrot.lane.b32.xlu0 %v810, 24
      %v856 = vpop.permute.xlu0 %855
      %857 = vrot.lane.b32.xlu0 %v811, 24
      %v858 = vpop.permute.xlu0 %857
      %859 = vrot.lane.b32.xlu0 %v812, 24
      %v860 = vpop.permute.xlu0 %859
      %861 = vrot.lane.b32.xlu0 %v813, 24
      %v862 = vpop.permute.xlu0 %861
      %863 = vrot.lane.b32.xlu0 %v814, 24
      %v864 = vpop.permute.xlu0 %863
      %865 = vrot.lane.b32.xlu0 %v815, 24
      %v866 = vpop.permute.xlu0 %865
      %867 = vrot.lane.b32.xlu0 %v816, 24
      %v868 = vpop.permute.xlu0 %867
      %869 = vrot.lane.b32.xlu0 %v817, 24
      %v870 = vpop.permute.xlu0 %869
      %871 = vrot.lane.b32.xlu0 %v818, 24
      %v872 = vpop.permute.xlu0 %871
      %vm891 = vcmask 228544
      %892 = vst.msk [vmem:[#allocation2] sm:$0xff] %vm891, %v838
      %893 = vst.msk [vmem:[#allocation2 + $0x8] sm:$0xff] %vm891, %v840
      %894 = vst.msk [vmem:[#allocation2 + $0x10] sm:$0xff] %vm891, %v842
      %895 = vst.msk [vmem:[#allocation2 + $0x18] sm:$0xff] %vm891, %v844
      %896 = vst.msk [vmem:[#allocation2 + $0x20] sm:$0xff] %vm891, %v846
      %897 = vst.msk [vmem:[#allocation2 + $0x28] sm:$0xff] %vm891, %v848
      %898 = vst.msk [vmem:[#allocation2 + $0x30] sm:$0xff] %vm891, %v850
      %899 = vst.msk [vmem:[#allocation2 + $0x38] sm:$0xff] %vm891, %v852
      %900 = vst.msk [vmem:[#allocation2 + $0x40] sm:$0xff] %vm891, %v854
      %901 = vst.msk [vmem:[#allocation2 + $0x48] sm:$0xff] %vm891, %v856
      %902 = vst.msk [vmem:[#allocation2 + $0x50] sm:$0xff] %vm891, %v858
      %903 = vst.msk [vmem:[#allocation2 + $0x58] sm:$0xff] %vm891, %v860
      %904 = vst.msk [vmem:[#allocation2 + $0x60] sm:$0xff] %vm891, %v862
      %905 = vst.msk [vmem:[#allocation2 + $0x68] sm:$0xff] %vm891, %v864
      %906 = vst.msk [vmem:[#allocation2 + $0x70] sm:$0xff] %vm891, %v866
      %907 = vst.msk [vmem:[#allocation2 + $0x78] sm:$0xff] %vm891, %v868
      %908 = vst.msk [vmem:[#allocation2 + $0x80] sm:$0xff] %vm891, %v870
      %909 = vst.msk [vmem:[#allocation2 + $0x88] sm:$0xff] %vm891, %v872
      %s910 = sadd.s32 %s205, 37
      %s911 = scalar_lea.vmem %s190, %s910
      %v912 = vld [vmem:[%s911] sm:$0xff]
      %v913 = vld [vmem:[%s911 + $0x8] sm:$0xff]
      %v914 = vld [vmem:[%s911 + $0x10] sm:$0xff]
      %v915 = vld [vmem:[%s911 + $0x18] sm:$0xff]
      %v916 = vld [vmem:[%s911 + $0x20] sm:$0xff]
      %v917 = vld [vmem:[%s911 + $0x28] sm:$0xff]
      %v918 = vld [vmem:[%s911 + $0x30] sm:$0xff]
      %v919 = vld [vmem:[%s911 + $0x38] sm:$0xff]
      %v920 = vld [vmem:[%s911 + $0x40] sm:$0xff]
      %v921 = vld [vmem:[%s911 + $0x48] sm:$0xff]
      %v922 = vld [vmem:[%s911 + $0x50] sm:$0xff]
      %v923 = vld [vmem:[%s911 + $0x58] sm:$0xff]
      %v924 = vld [vmem:[%s911 + $0x60] sm:$0xff]
      %v925 = vld [vmem:[%s911 + $0x68] sm:$0xff]
      %v926 = vld [vmem:[%s911 + $0x70] sm:$0xff]
      %v927 = vld [vmem:[%s911 + $0x78] sm:$0xff]
      %v928 = vld [vmem:[%s911 + $0x80] sm:$0xff]
      %v929 = vld [vmem:[%s911 + $0x88] sm:$0xff]
      %948 = vrot.lane.b32.xlu0 %v912, 28
      %v949 = vpop.permute.xlu0 %948
      %950 = vrot.lane.b32.xlu0 %v913, 28
      %v951 = vpop.permute.xlu0 %950
      %952 = vrot.lane.b32.xlu0 %v914, 28
      %v953 = vpop.permute.xlu0 %952
      %954 = vrot.lane.b32.xlu0 %v915, 28
      %v955 = vpop.permute.xlu0 %954
      %956 = vrot.lane.b32.xlu0 %v916, 28
      %v957 = vpop.permute.xlu0 %956
      %958 = vrot.lane.b32.xlu0 %v917, 28
      %v959 = vpop.permute.xlu0 %958
      %960 = vrot.lane.b32.xlu0 %v918, 28
      %v961 = vpop.permute.xlu0 %960
      %962 = vrot.lane.b32.xlu0 %v919, 28
      %v963 = vpop.permute.xlu0 %962
      %964 = vrot.lane.b32.xlu0 %v920, 28
      %v965 = vpop.permute.xlu0 %964
      %966 = vrot.lane.b32.xlu0 %v921, 28
      %v967 = vpop.permute.xlu0 %966
      %968 = vrot.lane.b32.xlu0 %v922, 28
      %v969 = vpop.permute.xlu0 %968
      %970 = vrot.lane.b32.xlu0 %v923, 28
      %v971 = vpop.permute.xlu0 %970
      %972 = vrot.lane.b32.xlu0 %v924, 28
      %v973 = vpop.permute.xlu0 %972
      %974 = vrot.lane.b32.xlu0 %v925, 28
      %v975 = vpop.permute.xlu0 %974
      %976 = vrot.lane.b32.xlu0 %v926, 28
      %v977 = vpop.permute.xlu0 %976
      %978 = vrot.lane.b32.xlu0 %v927, 28
      %v979 = vpop.permute.xlu0 %978
      %980 = vrot.lane.b32.xlu0 %v928, 28
      %v981 = vpop.permute.xlu0 %980
      %982 = vrot.lane.b32.xlu0 %v929, 28
      %v983 = vpop.permute.xlu0 %982
      %vm1002 = vcmask 261344
      %1003 = vst.msk [vmem:[#allocation2] sm:$0xff] %vm1002, %v949
      %1004 = vst.msk [vmem:[#allocation2 + $0x8] sm:$0xff] %vm1002, %v951
      %1005 = vst.msk [vmem:[#allocation2 + $0x10] sm:$0xff] %vm1002, %v953
      %1006 = vst.msk [vmem:[#allocation2 + $0x18] sm:$0xff] %vm1002, %v955
      %1007 = vst.msk [vmem:[#allocation2 + $0x20] sm:$0xff] %vm1002, %v957
      %1008 = vst.msk [vmem:[#allocation2 + $0x28] sm:$0xff] %vm1002, %v959
      %1009 = vst.msk [vmem:[#allocation2 + $0x30] sm:$0xff] %vm1002, %v961
      %1010 = vst.msk [vmem:[#allocation2 + $0x38] sm:$0xff] %vm1002, %v963
      %1011 = vst.msk [vmem:[#allocation2 + $0x40] sm:$0xff] %vm1002, %v965
      %1012 = vst.msk [vmem:[#allocation2 + $0x48] sm:$0xff] %vm1002, %v967
      %1013 = vst.msk [vmem:[#allocation2 + $0x50] sm:$0xff] %vm1002, %v969
      %1014 = vst.msk [vmem:[#allocation2 + $0x58] sm:$0xff] %vm1002, %v971
      %1015 = vst.msk [vmem:[#allocation2 + $0x60] sm:$0xff] %vm1002, %v973
      %1016 = vst.msk [vmem:[#allocation2 + $0x68] sm:$0xff] %vm1002, %v975
      %1017 = vst.msk [vmem:[#allocation2 + $0x70] sm:$0xff] %vm1002, %v977
      %1018 = vst.msk [vmem:[#allocation2 + $0x78] sm:$0xff] %vm1002, %v979
      %1019 = vst.msk [vmem:[#allocation2 + $0x80] sm:$0xff] %vm1002, %v981
      %1020 = vst.msk [vmem:[#allocation2 + $0x88] sm:$0xff] %vm1002, %v983
      %s1021 = sadd.s32 %s205, 38
      %s1022 = scalar_lea.vmem %s190, %s1021
      %v1023 = vld [vmem:[%s1022] sm:$0xff]
      %v1024 = vld [vmem:[%s1022 + $0x8] sm:$0xff]
      %v1025 = vld [vmem:[%s1022 + $0x10] sm:$0xff]
      %v1026 = vld [vmem:[%s1022 + $0x18] sm:$0xff]
      %v1027 = vld [vmem:[%s1022 + $0x20] sm:$0xff]
      %v1028 = vld [vmem:[%s1022 + $0x28] sm:$0xff]
      %v1029 = vld [vmem:[%s1022 + $0x30] sm:$0xff]
      %v1030 = vld [vmem:[%s1022 + $0x38] sm:$0xff]
      %v1031 = vld [vmem:[%s1022 + $0x40] sm:$0xff]
      %v1032 = vld [vmem:[%s1022 + $0x48] sm:$0xff]
      %v1033 = vld [vmem:[%s1022 + $0x50] sm:$0xff]
      %v1034 = vld [vmem:[%s1022 + $0x58] sm:$0xff]
      %v1035 = vld [vmem:[%s1022 + $0x60] sm:$0xff]
      %v1036 = vld [vmem:[%s1022 + $0x68] sm:$0xff]
      %v1037 = vld [vmem:[%s1022 + $0x70] sm:$0xff]
      %v1038 = vld [vmem:[%s1022 + $0x78] sm:$0xff]
      %v1039 = vld [vmem:[%s1022 + $0x80] sm:$0xff]
      %v1040 = vld [vmem:[%s1022 + $0x88] sm:$0xff]
      %1059 = vrot.lane.b32.xlu0 %v1023, 32
      %v1060 = vpop.permute.xlu0 %1059
      %1061 = vrot.lane.b32.xlu0 %v1024, 32
      %v1062 = vpop.permute.xlu0 %1061
      %1063 = vrot.lane.b32.xlu0 %v1025, 32
      %v1064 = vpop.permute.xlu0 %1063
      %1065 = vrot.lane.b32.xlu0 %v1026, 32
      %v1066 = vpop.permute.xlu0 %1065
      %1067 = vrot.lane.b32.xlu0 %v1027, 32
      %v1068 = vpop.permute.xlu0 %1067
      %1069 = vrot.lane.b32.xlu0 %v1028, 32
      %v1070 = vpop.permute.xlu0 %1069
      %1071 = vrot.lane.b32.xlu0 %v1029, 32
      %v1072 = vpop.permute.xlu0 %1071
      %1073 = vrot.lane.b32.xlu0 %v1030, 32
      %v1074 = vpop.permute.xlu0 %1073
      %1075 = vrot.lane.b32.xlu0 %v1031, 32
      %v1076 = vpop.permute.xlu0 %1075
      %1077 = vrot.lane.b32.xlu0 %v1032, 32
      %v1078 = vpop.permute.xlu0 %1077
      %1079 = vrot.lane.b32.xlu0 %v1033, 32
      %v1080 = vpop.permute.xlu0 %1079
      %1081 = vrot.lane.b32.xlu0 %v1034, 32
      %v1082 = vpop.permute.xlu0 %1081
      %1083 = vrot.lane.b32.xlu0 %v1035, 32
      %v1084 = vpop.permute.xlu0 %1083
      %1085 = vrot.lane.b32.xlu0 %v1036, 32
      %v1086 = vpop.permute.xlu0 %1085
      %1087 = vrot.lane.b32.xlu0 %v1037, 32
      %v1088 = vpop.permute.xlu0 %1087
      %1089 = vrot.lane.b32.xlu0 %v1038, 32
      %v1090 = vpop.permute.xlu0 %1089
      %1091 = vrot.lane.b32.xlu0 %v1039, 32
      %v1092 = vpop.permute.xlu0 %1091
      %1093 = vrot.lane.b32.xlu0 %v1040, 32
      %v1094 = vpop.permute.xlu0 %1093
      %vm1113 = vcmask 294144
      %1114 = vst.msk [vmem:[#allocation2] sm:$0xff] %vm1113, %v1060
      %1115 = vst.msk [vmem:[#allocation2 + $0x8] sm:$0xff] %vm1113, %v1062
      %1116 = vst.msk [vmem:[#allocation2 + $0x10] sm:$0xff] %vm1113, %v1064
      %1117 = vst.msk [vmem:[#allocation2 + $0x18] sm:$0xff] %vm1113, %v1066
      %1118 = vst.msk [vmem:[#allocation2 + $0x20] sm:$0xff] %vm1113, %v1068
      %1119 = vst.msk [vmem:[#allocation2 + $0x28] sm:$0xff] %vm1113, %v1070
      %1120 = vst.msk [vmem:[#allocation2 + $0x30] sm:$0xff] %vm1113, %v1072
      %1121 = vst.msk [vmem:[#allocation2 + $0x38] sm:$0xff] %vm1113, %v1074
      %1122 = vst.msk [vmem:[#allocation2 + $0x40] sm:$0xff] %vm1113, %v1076
      %1123 = vst.msk [vmem:[#allocation2 + $0x48] sm:$0xff] %vm1113, %v1078
      %1124 = vst.msk [vmem:[#allocation2 + $0x50] sm:$0xff] %vm1113, %v1080
      %1125 = vst.msk [vmem:[#allocation2 + $0x58] sm:$0xff] %vm1113, %v1082
      %1126 = vst.msk [vmem:[#allocation2 + $0x60] sm:$0xff] %vm1113, %v1084
      %1127 = vst.msk [vmem:[#allocation2 + $0x68] sm:$0xff] %vm1113, %v1086
      %1128 = vst.msk [vmem:[#allocation2 + $0x70] sm:$0xff] %vm1113, %v1088
      %1129 = vst.msk [vmem:[#allocation2 + $0x78] sm:$0xff] %vm1113, %v1090
      %1130 = vst.msk [vmem:[#allocation2 + $0x80] sm:$0xff] %vm1113, %v1092
      %1131 = vst.msk [vmem:[#allocation2 + $0x88] sm:$0xff] %vm1113, %v1094
      %v1132 = vld [vmem:[#allocation2] sm:$0xff]
      %v1133 = vld [vmem:[#allocation2 + $0x8] sm:$0xff]
      %v1134 = vld [vmem:[#allocation2 + $0x10] sm:$0xff]
      %v1135 = vld [vmem:[#allocation2 + $0x18] sm:$0xff]
      %v1136 = vld [vmem:[#allocation2 + $0x20] sm:$0xff]
      %v1137 = vld [vmem:[#allocation2 + $0x28] sm:$0xff]
      %v1138 = vld [vmem:[#allocation2 + $0x30] sm:$0xff]
      %v1139 = vld [vmem:[#allocation2 + $0x38] sm:$0xff]
      %v1140 = vld [vmem:[#allocation2 + $0x40] sm:$0xff]
      %v1141 = vld [vmem:[#allocation2 + $0x48] sm:$0xff]
      %v1142 = vld [vmem:[#allocation2 + $0x50] sm:$0xff]
      %v1143 = vld [vmem:[#allocation2 + $0x58] sm:$0xff]
      %v1144 = vld [vmem:[#allocation2 + $0x60] sm:$0xff]
      %v1145 = vld [vmem:[#allocation2 + $0x68] sm:$0xff]
      %v1146 = vld [vmem:[#allocation2 + $0x70] sm:$0xff]
      %v1147 = vld [vmem:[#allocation2 + $0x78] sm:$0xff]
      %v1148 = vld [vmem:[#allocation2 + $0x80] sm:$0xff]
      %v1149 = vld [vmem:[#allocation2 + $0x88] sm:$0xff]
      %v1150 = vld [vmem:[%s1] sm:$0xff]
      %v1151 = vld [vmem:[%s1 + $0x8] sm:$0xff]
      %v1152 = vld [vmem:[%s1 + $0x10] sm:$0xff]
      %v1153 = vld [vmem:[%s1 + $0x18] sm:$0xff]
      %v1154 = vld [vmem:[%s1 + $0x20] sm:$0xf]
      %vm1155 = vcmask 293888
      %v1157 = vsel %vm1155, %v1132, 0
      %v1160 = vsel %vm1155, %v1133, 0
      %v1163 = vsel %vm1155, %v1134, 0
      %v1166 = vsel %vm1155, %v1135, 0
      %v1169 = vsel %vm1155, %v1136, 0
      %v1172 = vsel %vm1155, %v1137, 0
      %v1175 = vsel %vm1155, %v1138, 0
      %v1178 = vsel %vm1155, %v1139, 0
      %v1181 = vsel %vm1155, %v1140, 0
      %v1184 = vsel %vm1155, %v1141, 0
      %v1187 = vsel %vm1155, %v1142, 0
      %v1190 = vsel %vm1155, %v1143, 0
      %v1193 = vsel %vm1155, %v1144, 0
      %v1196 = vsel %vm1155, %v1145, 0
      %v1199 = vsel %vm1155, %v1146, 0
      %v1202 = vsel %vm1155, %v1147, 0
      %v1205 = vsel %vm1155, %v1148, 0
      %v1208 = vsel %vm1155, %v1149, 0
      %vm1210 = vcmask 1043456
      %v1212 = vsel %vm1210, %v1154, 0
      %1214 = vmatpush.msra.mxu0 0.0
      %1215 = vmatpush.msra.mxu0 0.0
      %1216 = vmatpush.msra.mxu0 0.0
      %1217 = vmatpush.msra.mxu0 0.0
      %1218 = vmatpush.msra.mxu0 0.0
      %1219 = vmatpush.msra.mxu0 0.0
      %1220 = vmatpush.msra.mxu0 0.0
      %1221 = vmatpush.msra.mxu0 0.0
      %1222 = vmatpush.msra.mxu0 0.0
      %1223 = vmatpush.msra.mxu0 0.0
      %1224 = vmatpush.msra.mxu0 0.0
      %1225 = vmatpush.msra.mxu0 %v1212
      %1226 = vmatpush.msra.mxu0 %v1153
      %1227 = vmatpush.msra.mxu0 %v1152
      %1228 = vmatpush.msra.mxu0 %v1151
      %1229 = vmatpush.msra.mxu0 %v1150
      %1230 = vmatmul.f32.gmra.mxu0 %v1157
      %v1231 = vpop.f32.mrf.mxu0
      %v1232 = vadd.f32 0.0, %v1231
      %1233 = vmatmul.f32.gmra.mxu0 %v1160
      %v1234 = vpop.f32.mrf.mxu0
      %v1235 = vadd.f32 0.0, %v1234
      %1236 = vmatmul.f32.gmra.mxu0 %v1163
      %v1237 = vpop.f32.mrf.mxu0
      %v1238 = vadd.f32 0.0, %v1237
      %1239 = vmatmul.f32.gmra.mxu0 %v1166
      %v1240 = vpop.f32.mrf.mxu0
      %v1241 = vadd.f32 0.0, %v1240
      %1242 = vmatmul.f32.gmra.mxu0 %v1169
      %v1243 = vpop.f32.mrf.mxu0
      %v1244 = vadd.f32 0.0, %v1243
      %1245 = vmatmul.f32.gmra.mxu0 %v1172
      %v1246 = vpop.f32.mrf.mxu0
      %v1247 = vadd.f32 0.0, %v1246
      %1248 = vmatmul.f32.gmra.mxu0 %v1175
      %v1249 = vpop.f32.mrf.mxu0
      %v1250 = vadd.f32 0.0, %v1249
      %1251 = vmatmul.f32.gmra.mxu0 %v1178
      %v1252 = vpop.f32.mrf.mxu0
      %v1253 = vadd.f32 0.0, %v1252
      %1254 = vmatmul.f32.gmra.mxu0 %v1181
      %v1255 = vpop.f32.mrf.mxu0
      %v1256 = vadd.f32 0.0, %v1255
      %1257 = vmatmul.f32.gmra.mxu0 %v1184
      %v1258 = vpop.f32.mrf.mxu0
      %v1259 = vadd.f32 0.0, %v1258
      %1260 = vmatmul.f32.gmra.mxu0 %v1187
      %v1261 = vpop.f32.mrf.mxu0
      %v1262 = vadd.f32 0.0, %v1261
      %1263 = vmatmul.f32.gmra.mxu0 %v1190
      %v1264 = vpop.f32.mrf.mxu0
      %v1265 = vadd.f32 0.0, %v1264
      %1266 = vmatmul.f32.gmra.mxu0 %v1193
      %v1267 = vpop.f32.mrf.mxu0
      %v1268 = vadd.f32 0.0, %v1267
      %1269 = vmatmul.f32.gmra.mxu0 %v1196
      %v1270 = vpop.f32.mrf.mxu0
      %v1271 = vadd.f32 0.0, %v1270
      %1272 = vmatmul.f32.gmra.mxu0 %v1199
      %v1273 = vpop.f32.mrf.mxu0
      %v1274 = vadd.f32 0.0, %v1273
      %1275 = vmatmul.f32.gmra.mxu0 %v1202
      %v1276 = vpop.f32.mrf.mxu0
      %v1277 = vadd.f32 0.0, %v1276
      %1278 = vmatmul.f32.gmra.mxu0 %v1205
      %v1279 = vpop.f32.mrf.mxu0
      %v1280 = vadd.f32 0.0, %v1279
      %1281 = vmatmul.f32.gmra.mxu0 %v1208
      %v1282 = vpop.f32.mrf.mxu0
      %v1283 = vadd.f32 0.0, %v1282
      %1284 = vdwg.mxu0
      %1285 = vst [vmem:[%s199] sm:$0xff] %v1232
      %1286 = vst [vmem:[%s199 + $0x8] sm:$0xff] %v1235
      %1287 = vst [vmem:[%s199 + $0x10] sm:$0xff] %v1238
      %1288 = vst [vmem:[%s199 + $0x18] sm:$0xff] %v1241
      %1289 = vst [vmem:[%s199 + $0x20] sm:$0xff] %v1244
      %1290 = vst [vmem:[%s199 + $0x28] sm:$0xff] %v1247
      %1291 = vst [vmem:[%s199 + $0x30] sm:$0xff] %v1250
      %1292 = vst [vmem:[%s199 + $0x38] sm:$0xff] %v1253
      %1293 = vst [vmem:[%s199 + $0x40] sm:$0xff] %v1256
      %1294 = vst [vmem:[%s199 + $0x48] sm:$0xff] %v1259
      %1295 = vst [vmem:[%s199 + $0x50] sm:$0xff] %v1262
      %1296 = vst [vmem:[%s199 + $0x58] sm:$0xff] %v1265
      %1297 = vst [vmem:[%s199 + $0x60] sm:$0xff] %v1268
      %1298 = vst [vmem:[%s199 + $0x68] sm:$0xff] %v1271
      %1299 = vst [vmem:[%s199 + $0x70] sm:$0xff] %v1274
      %1300 = vst [vmem:[%s199 + $0x78] sm:$0xff] %v1277
      %1301 = vst [vmem:[%s199 + $0x80] sm:$0xff] %v1280
      %1302 = vst [vmem:[%s199 + $0x88] sm:$0xff] %v1283
      %v1303 = vlaneseq
      %v1304 = vshrl.u32 %v1303, 7
      %v1305 = vadd.s32 %v1304, 8
      %v1306 = vadd.s32 %v1304, 16
      %v1307 = vadd.s32 %v1304, 24
      %v1308 = vadd.s32 %v1304, 32
      %v1309 = vadd.s32 %v1304, 40
      %v1310 = vadd.s32 %v1304, 48
      %v1311 = vadd.s32 %v1304, 56
      %v1312 = vadd.s32 %v1304, 64
      %v1313 = vadd.s32 %v1304, 72
      %v1314 = vadd.s32 %v1304, 80
      %v1315 = vadd.s32 %v1304, 88
      %v1316 = vadd.s32 %v1304, 96
      %v1317 = vadd.s32 %v1304, 104
      %v1318 = vadd.s32 %v1304, 112
      %v1319 = vadd.s32 %v1304, 120
      %v1320 = vadd.s32 %v1304, 128
      %v1321 = vadd.s32 %v1304, 136
      %vm1322 = vcmp.lt.s32.totalorder %v1304, 0
      %v1323 = vsub.s32 0, %v1304
      %v1324 = vsel %vm1322, %v1323, %v1304
      %v1325 = vand.u32 %v1324, 65535
      %v1326 = vshrl.u32 %v1324, 16
      %v1328 = vmul.u32 %v1325, 14564
      %v1329 = vmul.u32 %v1325, 58254
      %v1330 = vmul.u32 %v1326, 14564
      %v1331 = vmul.u32 %v1326, 58254
      %v1332 = vshll.u32 %v1329, 16
      %v1333 = vshrl.u32 %v1329, 16
      %v1334 = vshll.u32 %v1330, 16
      %v1335 = vshrl.u32 %v1330, 16
      %vm1336 = vc.u32 %v1328, %v1332
      %v1337 = vsel %vm1336, 1, 0
      %v1338 = vadd.s32 %v1328, %v1332
      %v1339 = vadd.s32 %v1331, %v1337
      %vm1340 = vc.u32 %v1338, %v1334
      %v1341 = vsel %vm1340, 1, 0
      %v1342 = vadd.s32 %v1338, %v1334
      %v1343 = vadd.s32 %v1339, %v1341
      %v1344 = vadd.s32 %v1343, %v1333
      %v1345 = vadd.s32 %v1344, %v1335
      %v1346 = vshrl.u32 %v1345, 4
      %v1347 = vmul.u32 %v1346, 18
      %v1348 = vsub.s32 %v1324, %v1347
      %v1349 = vsub.s32 0, %v1348
      %v1350 = vsel %vm1322, %v1349, %v1348
      %vm1351 = vcmp.lt.s32.totalorder %v1305, 0
      %v1352 = vsub.s32 0, %v1305
      %v1353 = vsel %vm1351, %v1352, %v1305
      %v1354 = vand.u32 %v1353, 65535
      %v1355 = vshrl.u32 %v1353, 16
      %v1357 = vmul.u32 %v1354, 14564
      %v1358 = vmul.u32 %v1354, 58254
      %v1359 = vmul.u32 %v1355, 14564
      %v1360 = vmul.u32 %v1355, 58254
      %v1361 = vshll.u32 %v1358, 16
      %v1362 = vshrl.u32 %v1358, 16
      %v1363 = vshll.u32 %v1359, 16
      %v1364 = vshrl.u32 %v1359, 16
      %vm1365 = vc.u32 %v1357, %v1361
      %v1366 = vsel %vm1365, 1, 0
      %v1367 = vadd.s32 %v1357, %v1361
      %v1368 = vadd.s32 %v1360, %v1366
      %vm1369 = vc.u32 %v1367, %v1363
      %v1370 = vsel %vm1369, 1, 0
      %v1371 = vadd.s32 %v1367, %v1363
      %v1372 = vadd.s32 %v1368, %v1370
      %v1373 = vadd.s32 %v1372, %v1362
      %v1374 = vadd.s32 %v1373, %v1364
      %v1375 = vshrl.u32 %v1374, 4
      %v1376 = vmul.u32 %v1375, 18
      %v1377 = vsub.s32 %v1353, %v1376
      %v1378 = vsub.s32 0, %v1377
      %v1379 = vsel %vm1351, %v1378, %v1377
      %vm1380 = vcmp.lt.s32.totalorder %v1306, 0
      %v1381 = vsub.s32 0, %v1306
      %v1382 = vsel %vm1380, %v1381, %v1306
      %v1383 = vand.u32 %v1382, 65535
      %v1384 = vshrl.u32 %v1382, 16
      %v1386 = vmul.u32 %v1383, 14564
      %v1387 = vmul.u32 %v1383, 58254
      %v1388 = vmul.u32 %v1384, 14564
      %v1389 = vmul.u32 %v1384, 58254
      %v1390 = vshll.u32 %v1387, 16
      %v1391 = vshrl.u32 %v1387, 16
      %v1392 = vshll.u32 %v1388, 16
      %v1393 = vshrl.u32 %v1388, 16
      %vm1394 = vc.u32 %v1386, %v1390
      %v1395 = vsel %vm1394, 1, 0
      %v1396 = vadd.s32 %v1386, %v1390
      %v1397 = vadd.s32 %v1389, %v1395
      %vm1398 = vc.u32 %v1396, %v1392
      %v1399 = vsel %vm1398, 1, 0
      %v1400 = vadd.s32 %v1396, %v1392
      %v1401 = vadd.s32 %v1397, %v1399
      %v1402 = vadd.s32 %v1401, %v1391
      %v1403 = vadd.s32 %v1402, %v1393
      %v1404 = vshrl.u32 %v1403, 4
      %v1405 = vmul.u32 %v1404, 18
      %v1406 = vsub.s32 %v1382, %v1405
      %v1407 = vsub.s32 0, %v1406
      %v1408 = vsel %vm1380, %v1407, %v1406
      %vm1409 = vcmp.lt.s32.totalorder %v1307, 0
      %v1410 = vsub.s32 0, %v1307
      %v1411 = vsel %vm1409, %v1410, %v1307
      %v1412 = vand.u32 %v1411, 65535
      %v1413 = vshrl.u32 %v1411, 16
      %v1415 = vmul.u32 %v1412, 14564
      %v1416 = vmul.u32 %v1412, 58254
      %v1417 = vmul.u32 %v1413, 14564
      %v1418 = vmul.u32 %v1413, 58254
      %v1419 = vshll.u32 %v1416, 16
      %v1420 = vshrl.u32 %v1416, 16
      %v1421 = vshll.u32 %v1417, 16
      %v1422 = vshrl.u32 %v1417, 16
      %vm1423 = vc.u32 %v1415, %v1419
      %v1424 = vsel %vm1423, 1, 0
      %v1425 = vadd.s32 %v1415, %v1419
      %v1426 = vadd.s32 %v1418, %v1424
      %vm1427 = vc.u32 %v1425, %v1421
      %v1428 = vsel %vm1427, 1, 0
      %v1429 = vadd.s32 %v1425, %v1421
      %v1430 = vadd.s32 %v1426, %v1428
      %v1431 = vadd.s32 %v1430, %v1420
      %v1432 = vadd.s32 %v1431, %v1422
      %v1433 = vshrl.u32 %v1432, 4
      %v1434 = vmul.u32 %v1433, 18
      %v1435 = vsub.s32 %v1411, %v1434
      %v1436 = vsub.s32 0, %v1435
      %v1437 = vsel %vm1409, %v1436, %v1435
      %vm1438 = vcmp.lt.s32.totalorder %v1308, 0
      %v1439 = vsub.s32 0, %v1308
      %v1440 = vsel %vm1438, %v1439, %v1308
      %v1441 = vand.u32 %v1440, 65535
      %v1442 = vshrl.u32 %v1440, 16
      %v1444 = vmul.u32 %v1441, 14564
      %v1445 = vmul.u32 %v1441, 58254
      %v1446 = vmul.u32 %v1442, 14564
      %v1447 = vmul.u32 %v1442, 58254
      %v1448 = vshll.u32 %v1445, 16
      %v1449 = vshrl.u32 %v1445, 16
      %v1450 = vshll.u32 %v1446, 16
      %v1451 = vshrl.u32 %v1446, 16
      %vm1452 = vc.u32 %v1444, %v1448
      %v1453 = vsel %vm1452, 1, 0
      %v1454 = vadd.s32 %v1444, %v1448
      %v1455 = vadd.s32 %v1447, %v1453
      %vm1456 = vc.u32 %v1454, %v1450
      %v1457 = vsel %vm1456, 1, 0
      %v1458 = vadd.s32 %v1454, %v1450
      %v1459 = vadd.s32 %v1455, %v1457
      %v1460 = vadd.s32 %v1459, %v1449
      %v1461 = vadd.s32 %v1460, %v1451
      %v1462 = vshrl.u32 %v1461, 4
      %v1463 = vmul.u32 %v1462, 18
      %v1464 = vsub.s32 %v1440, %v1463
      %v1465 = vsub.s32 0, %v1464
      %v1466 = vsel %vm1438, %v1465, %v1464
      %vm1467 = vcmp.lt.s32.totalorder %v1309, 0
      %v1468 = vsub.s32 0, %v1309
      %v1469 = vsel %vm1467, %v1468, %v1309
      %v1470 = vand.u32 %v1469, 65535
      %v1471 = vshrl.u32 %v1469, 16
      %v1473 = vmul.u32 %v1470, 14564
      %v1474 = vmul.u32 %v1470, 58254
      %v1475 = vmul.u32 %v1471, 14564
      %v1476 = vmul.u32 %v1471, 58254
      %v1477 = vshll.u32 %v1474, 16
      %v1478 = vshrl.u32 %v1474, 16
      %v1479 = vshll.u32 %v1475, 16
      %v1480 = vshrl.u32 %v1475, 16
      %vm1481 = vc.u32 %v1473, %v1477
      %v1482 = vsel %vm1481, 1, 0
      %v1483 = vadd.s32 %v1473, %v1477
      %v1484 = vadd.s32 %v1476, %v1482
      %vm1485 = vc.u32 %v1483, %v1479
      %v1486 = vsel %vm1485, 1, 0
      %v1487 = vadd.s32 %v1483, %v1479
      %v1488 = vadd.s32 %v1484, %v1486
      %v1489 = vadd.s32 %v1488, %v1478
      %v1490 = vadd.s32 %v1489, %v1480
      %v1491 = vshrl.u32 %v1490, 4
      %v1492 = vmul.u32 %v1491, 18
      %v1493 = vsub.s32 %v1469, %v1492
      %v1494 = vsub.s32 0, %v1493
      %v1495 = vsel %vm1467, %v1494, %v1493
      %vm1496 = vcmp.lt.s32.totalorder %v1310, 0
      %v1497 = vsub.s32 0, %v1310
      %v1498 = vsel %vm1496, %v1497, %v1310
      %v1499 = vand.u32 %v1498, 65535
      %v1500 = vshrl.u32 %v1498, 16
      %v1502 = vmul.u32 %v1499, 14564
      %v1503 = vmul.u32 %v1499, 58254
      %v1504 = vmul.u32 %v1500, 14564
      %v1505 = vmul.u32 %v1500, 58254
      %v1506 = vshll.u32 %v1503, 16
      %v1507 = vshrl.u32 %v1503, 16
      %v1508 = vshll.u32 %v1504, 16
      %v1509 = vshrl.u32 %v1504, 16
      %vm1510 = vc.u32 %v1502, %v1506
      %v1511 = vsel %vm1510, 1, 0
      %v1512 = vadd.s32 %v1502, %v1506
      %v1513 = vadd.s32 %v1505, %v1511
      %vm1514 = vc.u32 %v1512, %v1508
      %v1515 = vsel %vm1514, 1, 0
      %v1516 = vadd.s32 %v1512, %v1508
      %v1517 = vadd.s32 %v1513, %v1515
      %v1518 = vadd.s32 %v1517, %v1507
      %v1519 = vadd.s32 %v1518, %v1509
      %v1520 = vshrl.u32 %v1519, 4
      %v1521 = vmul.u32 %v1520, 18
      %v1522 = vsub.s32 %v1498, %v1521
      %v1523 = vsub.s32 0, %v1522
      %v1524 = vsel %vm1496, %v1523, %v1522
      %vm1525 = vcmp.lt.s32.totalorder %v1311, 0
      %v1526 = vsub.s32 0, %v1311
      %v1527 = vsel %vm1525, %v1526, %v1311
      %v1528 = vand.u32 %v1527, 65535
      %v1529 = vshrl.u32 %v1527, 16
      %v1531 = vmul.u32 %v1528, 14564
      %v1532 = vmul.u32 %v1528, 58254
      %v1533 = vmul.u32 %v1529, 14564
      %v1534 = vmul.u32 %v1529, 58254
      %v1535 = vshll.u32 %v1532, 16
      %v1536 = vshrl.u32 %v1532, 16
      %v1537 = vshll.u32 %v1533, 16
      %v1538 = vshrl.u32 %v1533, 16
      %vm1539 = vc.u32 %v1531, %v1535
      %v1540 = vsel %vm1539, 1, 0
      %v1541 = vadd.s32 %v1531, %v1535
      %v1542 = vadd.s32 %v1534, %v1540
      %vm1543 = vc.u32 %v1541, %v1537
      %v1544 = vsel %vm1543, 1, 0
      %v1545 = vadd.s32 %v1541, %v1537
      %v1546 = vadd.s32 %v1542, %v1544
      %v1547 = vadd.s32 %v1546, %v1536
      %v1548 = vadd.s32 %v1547, %v1538
      %v1549 = vshrl.u32 %v1548, 4
      %v1550 = vmul.u32 %v1549, 18
      %v1551 = vsub.s32 %v1527, %v1550
      %v1552 = vsub.s32 0, %v1551
      %v1553 = vsel %vm1525, %v1552, %v1551
      %vm1554 = vcmp.lt.s32.totalorder %v1312, 0
      %v1555 = vsub.s32 0, %v1312
      %v1556 = vsel %vm1554, %v1555, %v1312
      %v1557 = vand.u32 %v1556, 65535
      %v1558 = vshrl.u32 %v1556, 16
      %v1560 = vmul.u32 %v1557, 14564
      %v1561 = vmul.u32 %v1557, 58254
      %v1562 = vmul.u32 %v1558, 14564
      %v1563 = vmul.u32 %v1558, 58254
      %v1564 = vshll.u32 %v1561, 16
      %v1565 = vshrl.u32 %v1561, 16
      %v1566 = vshll.u32 %v1562, 16
      %v1567 = vshrl.u32 %v1562, 16
      %vm1568 = vc.u32 %v1560, %v1564
      %v1569 = vsel %vm1568, 1, 0
      %v1570 = vadd.s32 %v1560, %v1564
      %v1571 = vadd.s32 %v1563, %v1569
      %vm1572 = vc.u32 %v1570, %v1566
      %v1573 = vsel %vm1572, 1, 0
      %v1574 = vadd.s32 %v1570, %v1566
      %v1575 = vadd.s32 %v1571, %v1573
      %v1576 = vadd.s32 %v1575, %v1565
      %v1577 = vadd.s32 %v1576, %v1567
      %v1578 = vshrl.u32 %v1577, 4
      %v1579 = vmul.u32 %v1578, 18
      %v1580 = vsub.s32 %v1556, %v1579
      %v1581 = vsub.s32 0, %v1580
      %v1582 = vsel %vm1554, %v1581, %v1580
      %vm1583 = vcmp.lt.s32.totalorder %v1313, 0
      %v1584 = vsub.s32 0, %v1313
      %v1585 = vsel %vm1583, %v1584, %v1313
      %v1586 = vand.u32 %v1585, 65535
      %v1587 = vshrl.u32 %v1585, 16
      %v1589 = vmul.u32 %v1586, 14564
      %v1590 = vmul.u32 %v1586, 58254
      %v1591 = vmul.u32 %v1587, 14564
      %v1592 = vmul.u32 %v1587, 58254
      %v1593 = vshll.u32 %v1590, 16
      %v1594 = vshrl.u32 %v1590, 16
      %v1595 = vshll.u32 %v1591, 16
      %v1596 = vshrl.u32 %v1591, 16
      %vm1597 = vc.u32 %v1589, %v1593
      %v1598 = vsel %vm1597, 1, 0
      %v1599 = vadd.s32 %v1589, %v1593
      %v1600 = vadd.s32 %v1592, %v1598
      %vm1601 = vc.u32 %v1599, %v1595
      %v1602 = vsel %vm1601, 1, 0
      %v1603 = vadd.s32 %v1599, %v1595
      %v1604 = vadd.s32 %v1600, %v1602
      %v1605 = vadd.s32 %v1604, %v1594
      %v1606 = vadd.s32 %v1605, %v1596
      %v1607 = vshrl.u32 %v1606, 4
      %v1608 = vmul.u32 %v1607, 18
      %v1609 = vsub.s32 %v1585, %v1608
      %v1610 = vsub.s32 0, %v1609
      %v1611 = vsel %vm1583, %v1610, %v1609
      %vm1612 = vcmp.lt.s32.totalorder %v1314, 0
      %v1613 = vsub.s32 0, %v1314
      %v1614 = vsel %vm1612, %v1613, %v1314
      %v1615 = vand.u32 %v1614, 65535
      %v1616 = vshrl.u32 %v1614, 16
      %v1618 = vmul.u32 %v1615, 14564
      %v1619 = vmul.u32 %v1615, 58254
      %v1620 = vmul.u32 %v1616, 14564
      %v1621 = vmul.u32 %v1616, 58254
      %v1622 = vshll.u32 %v1619, 16
      %v1623 = vshrl.u32 %v1619, 16
      %v1624 = vshll.u32 %v1620, 16
      %v1625 = vshrl.u32 %v1620, 16
      %vm1626 = vc.u32 %v1618, %v1622
      %v1627 = vsel %vm1626, 1, 0
      %v1628 = vadd.s32 %v1618, %v1622
      %v1629 = vadd.s32 %v1621, %v1627
      %vm1630 = vc.u32 %v1628, %v1624
      %v1631 = vsel %vm1630, 1, 0
      %v1632 = vadd.s32 %v1628, %v1624
      %v1633 = vadd.s32 %v1629, %v1631
      %v1634 = vadd.s32 %v1633, %v1623
      %v1635 = vadd.s32 %v1634, %v1625
      %v1636 = vshrl.u32 %v1635, 4
      %v1637 = vmul.u32 %v1636, 18
      %v1638 = vsub.s32 %v1614, %v1637
      %v1639 = vsub.s32 0, %v1638
      %v1640 = vsel %vm1612, %v1639, %v1638
      %vm1641 = vcmp.lt.s32.totalorder %v1315, 0
      %v1642 = vsub.s32 0, %v1315
      %v1643 = vsel %vm1641, %v1642, %v1315
      %v1644 = vand.u32 %v1643, 65535
      %v1645 = vshrl.u32 %v1643, 16
      %v1647 = vmul.u32 %v1644, 14564
      %v1648 = vmul.u32 %v1644, 58254
      %v1649 = vmul.u32 %v1645, 14564
      %v1650 = vmul.u32 %v1645, 58254
      %v1651 = vshll.u32 %v1648, 16
      %v1652 = vshrl.u32 %v1648, 16
      %v1653 = vshll.u32 %v1649, 16
      %v1654 = vshrl.u32 %v1649, 16
      %vm1655 = vc.u32 %v1647, %v1651
      %v1656 = vsel %vm1655, 1, 0
      %v1657 = vadd.s32 %v1647, %v1651
      %v1658 = vadd.s32 %v1650, %v1656
      %vm1659 = vc.u32 %v1657, %v1653
      %v1660 = vsel %vm1659, 1, 0
      %v1661 = vadd.s32 %v1657, %v1653
      %v1662 = vadd.s32 %v1658, %v1660
      %v1663 = vadd.s32 %v1662, %v1652
      %v1664 = vadd.s32 %v1663, %v1654
      %v1665 = vshrl.u32 %v1664, 4
      %v1666 = vmul.u32 %v1665, 18
      %v1667 = vsub.s32 %v1643, %v1666
      %v1668 = vsub.s32 0, %v1667
      %v1669 = vsel %vm1641, %v1668, %v1667
      %vm1670 = vcmp.lt.s32.totalorder %v1316, 0
      %v1671 = vsub.s32 0, %v1316
      %v1672 = vsel %vm1670, %v1671, %v1316
      %v1673 = vand.u32 %v1672, 65535
      %v1674 = vshrl.u32 %v1672, 16
      %v1676 = vmul.u32 %v1673, 14564
      %v1677 = vmul.u32 %v1673, 58254
      %v1678 = vmul.u32 %v1674, 14564
      %v1679 = vmul.u32 %v1674, 58254
      %v1680 = vshll.u32 %v1677, 16
      %v1681 = vshrl.u32 %v1677, 16
      %v1682 = vshll.u32 %v1678, 16
      %v1683 = vshrl.u32 %v1678, 16
      %vm1684 = vc.u32 %v1676, %v1680
      %v1685 = vsel %vm1684, 1, 0
      %v1686 = vadd.s32 %v1676, %v1680
      %v1687 = vadd.s32 %v1679, %v1685
      %vm1688 = vc.u32 %v1686, %v1682
      %v1689 = vsel %vm1688, 1, 0
      %v1690 = vadd.s32 %v1686, %v1682
      %v1691 = vadd.s32 %v1687, %v1689
      %v1692 = vadd.s32 %v1691, %v1681
      %v1693 = vadd.s32 %v1692, %v1683
      %v1694 = vshrl.u32 %v1693, 4
      %v1695 = vmul.u32 %v1694, 18
      %v1696 = vsub.s32 %v1672, %v1695
      %v1697 = vsub.s32 0, %v1696
      %v1698 = vsel %vm1670, %v1697, %v1696
      %vm1699 = vcmp.lt.s32.totalorder %v1317, 0
      %v1700 = vsub.s32 0, %v1317
      %v1701 = vsel %vm1699, %v1700, %v1317
      %v1702 = vand.u32 %v1701, 65535
      %v1703 = vshrl.u32 %v1701, 16
      %v1705 = vmul.u32 %v1702, 14564
      %v1706 = vmul.u32 %v1702, 58254
      %v1707 = vmul.u32 %v1703, 14564
      %v1708 = vmul.u32 %v1703, 58254
      %v1709 = vshll.u32 %v1706, 16
      %v1710 = vshrl.u32 %v1706, 16
      %v1711 = vshll.u32 %v1707, 16
      %v1712 = vshrl.u32 %v1707, 16
      %vm1713 = vc.u32 %v1705, %v1709
      %v1714 = vsel %vm1713, 1, 0
      %v1715 = vadd.s32 %v1705, %v1709
      %v1716 = vadd.s32 %v1708, %v1714
      %vm1717 = vc.u32 %v1715, %v1711
      %v1718 = vsel %vm1717, 1, 0
      %v1719 = vadd.s32 %v1715, %v1711
      %v1720 = vadd.s32 %v1716, %v1718
      %v1721 = vadd.s32 %v1720, %v1710
      %v1722 = vadd.s32 %v1721, %v1712
      %v1723 = vshrl.u32 %v1722, 4
      %v1724 = vmul.u32 %v1723, 18
      %v1725 = vsub.s32 %v1701, %v1724
      %v1726 = vsub.s32 0, %v1725
      %v1727 = vsel %vm1699, %v1726, %v1725
      %vm1728 = vcmp.lt.s32.totalorder %v1318, 0
      %v1729 = vsub.s32 0, %v1318
      %v1730 = vsel %vm1728, %v1729, %v1318
      %v1731 = vand.u32 %v1730, 65535
      %v1732 = vshrl.u32 %v1730, 16
      %v1734 = vmul.u32 %v1731, 14564
      %v1735 = vmul.u32 %v1731, 58254
      %v1736 = vmul.u32 %v1732, 14564
      %v1737 = vmul.u32 %v1732, 58254
      %v1738 = vshll.u32 %v1735, 16
      %v1739 = vshrl.u32 %v1735, 16
      %v1740 = vshll.u32 %v1736, 16
      %v1741 = vshrl.u32 %v1736, 16
      %vm1742 = vc.u32 %v1734, %v1738
      %v1743 = vsel %vm1742, 1, 0
      %v1744 = vadd.s32 %v1734, %v1738
      %v1745 = vadd.s32 %v1737, %v1743
      %vm1746 = vc.u32 %v1744, %v1740
      %v1747 = vsel %vm1746, 1, 0
      %v1748 = vadd.s32 %v1744, %v1740
      %v1749 = vadd.s32 %v1745, %v1747
      %v1750 = vadd.s32 %v1749, %v1739
      %v1751 = vadd.s32 %v1750, %v1741
      %v1752 = vshrl.u32 %v1751, 4
      %v1753 = vmul.u32 %v1752, 18
      %v1754 = vsub.s32 %v1730, %v1753
      %v1755 = vsub.s32 0, %v1754
      %v1756 = vsel %vm1728, %v1755, %v1754
      %vm1757 = vcmp.lt.s32.totalorder %v1319, 0
      %v1758 = vsub.s32 0, %v1319
      %v1759 = vsel %vm1757, %v1758, %v1319
      %v1760 = vand.u32 %v1759, 65535
      %v1761 = vshrl.u32 %v1759, 16
      %v1763 = vmul.u32 %v1760, 14564
      %v1764 = vmul.u32 %v1760, 58254
      %v1765 = vmul.u32 %v1761, 14564
      %v1766 = vmul.u32 %v1761, 58254
      %v1767 = vshll.u32 %v1764, 16
      %v1768 = vshrl.u32 %v1764, 16
      %v1769 = vshll.u32 %v1765, 16
      %v1770 = vshrl.u32 %v1765, 16
      %vm1771 = vc.u32 %v1763, %v1767
      %v1772 = vsel %vm1771, 1, 0
      %v1773 = vadd.s32 %v1763, %v1767
      %v1774 = vadd.s32 %v1766, %v1772
      %vm1775 = vc.u32 %v1773, %v1769
      %v1776 = vsel %vm1775, 1, 0
      %v1777 = vadd.s32 %v1773, %v1769
      %v1778 = vadd.s32 %v1774, %v1776
      %v1779 = vadd.s32 %v1778, %v1768
      %v1780 = vadd.s32 %v1779, %v1770
      %v1781 = vshrl.u32 %v1780, 4
      %v1782 = vmul.u32 %v1781, 18
      %v1783 = vsub.s32 %v1759, %v1782
      %v1784 = vsub.s32 0, %v1783
      %v1785 = vsel %vm1757, %v1784, %v1783
      %vm1786 = vcmp.lt.s32.totalorder %v1320, 0
      %v1787 = vsub.s32 0, %v1320
      %v1788 = vsel %vm1786, %v1787, %v1320
      %v1789 = vand.u32 %v1788, 65535
      %v1790 = vshrl.u32 %v1788, 16
      %v1792 = vmul.u32 %v1789, 14564
      %v1793 = vmul.u32 %v1789, 58254
      %v1794 = vmul.u32 %v1790, 14564
      %v1795 = vmul.u32 %v1790, 58254
      %v1796 = vshll.u32 %v1793, 16
      %v1797 = vshrl.u32 %v1793, 16
      %v1798 = vshll.u32 %v1794, 16
      %v1799 = vshrl.u32 %v1794, 16
      %vm1800 = vc.u32 %v1792, %v1796
      %v1801 = vsel %vm1800, 1, 0
      %v1802 = vadd.s32 %v1792, %v1796
      %v1803 = vadd.s32 %v1795, %v1801
      %vm1804 = vc.u32 %v1802, %v1798
      %v1805 = vsel %vm1804, 1, 0
      %v1806 = vadd.s32 %v1802, %v1798
      %v1807 = vadd.s32 %v1803, %v1805
      %v1808 = vadd.s32 %v1807, %v1797
      %v1809 = vadd.s32 %v1808, %v1799
      %v1810 = vshrl.u32 %v1809, 4
      %v1811 = vmul.u32 %v1810, 18
      %v1812 = vsub.s32 %v1788, %v1811
      %v1813 = vsub.s32 0, %v1812
      %v1814 = vsel %vm1786, %v1813, %v1812
      %vm1815 = vcmp.lt.s32.totalorder %v1321, 0
      %v1816 = vsub.s32 0, %v1321
      %v1817 = vsel %vm1815, %v1816, %v1321
      %v1818 = vand.u32 %v1817, 65535
      %v1819 = vshrl.u32 %v1817, 16
      %v1821 = vmul.u32 %v1818, 14564
      %v1822 = vmul.u32 %v1818, 58254
      %v1823 = vmul.u32 %v1819, 14564
      %v1824 = vmul.u32 %v1819, 58254
      %v1825 = vshll.u32 %v1822, 16
      %v1826 = vshrl.u32 %v1822, 16
      %v1827 = vshll.u32 %v1823, 16
      %v1828 = vshrl.u32 %v1823, 16
      %vm1829 = vc.u32 %v1821, %v1825
      %v1830 = vsel %vm1829, 1, 0
      %v1831 = vadd.s32 %v1821, %v1825
      %v1832 = vadd.s32 %v1824, %v1830
      %vm1833 = vc.u32 %v1831, %v1827
      %v1834 = vsel %vm1833, 1, 0
      %v1835 = vadd.s32 %v1831, %v1827
      %v1836 = vadd.s32 %v1832, %v1834
      %v1837 = vadd.s32 %v1836, %v1826
      %v1838 = vadd.s32 %v1837, %v1828
      %v1839 = vshrl.u32 %v1838, 4
      %v1840 = vmul.u32 %v1839, 18
      %v1841 = vsub.s32 %v1817, %v1840
      %v1842 = vsub.s32 0, %v1841
      %v1843 = vsel %vm1815, %v1842, %v1841
      %vm1844 = vcmp.ne.s32.totalorder %v1350, 0
      %vm1845 = vcmp.ne.s32.totalorder %v1379, 0
      %vm1846 = vcmp.ne.s32.totalorder %v1408, 0
      %vm1847 = vcmp.ne.s32.totalorder %v1437, 0
      %vm1848 = vcmp.ne.s32.totalorder %v1466, 0
      %vm1849 = vcmp.ne.s32.totalorder %v1495, 0
      %vm1850 = vcmp.ne.s32.totalorder %v1524, 0
      %vm1851 = vcmp.ne.s32.totalorder %v1553, 0
      %vm1852 = vcmp.ne.s32.totalorder %v1582, 0
      %vm1853 = vcmp.ne.s32.totalorder %v1611, 0
      %vm1854 = vcmp.ne.s32.totalorder %v1640, 0
      %vm1855 = vcmp.ne.s32.totalorder %v1669, 0
      %vm1856 = vcmp.ne.s32.totalorder %v1698, 0
      %vm1857 = vcmp.ne.s32.totalorder %v1727, 0
      %vm1858 = vcmp.ne.s32.totalorder %v1756, 0
      %vm1859 = vcmp.ne.s32.totalorder %v1785, 0
      %vm1860 = vcmp.ne.s32.totalorder %v1814, 0
      %vm1861 = vcmp.ne.s32.totalorder %v1843, 0
      %vm1862 = vcmp.lt.s32.totalorder %v1350, 0
      %vm1863 = vcmp.lt.s32.totalorder %v1379, 0
      %vm1864 = vcmp.lt.s32.totalorder %v1408, 0
      %vm1865 = vcmp.lt.s32.totalorder %v1437, 0
      %vm1866 = vcmp.lt.s32.totalorder %v1466, 0
      %vm1867 = vcmp.lt.s32.totalorder %v1495, 0
      %vm1868 = vcmp.lt.s32.totalorder %v1524, 0
      %vm1869 = vcmp.lt.s32.totalorder %v1553, 0
      %vm1870 = vcmp.lt.s32.totalorder %v1582, 0
      %vm1871 = vcmp.lt.s32.totalorder %v1611, 0
      %vm1872 = vcmp.lt.s32.totalorder %v1640, 0
      %vm1873 = vcmp.lt.s32.totalorder %v1669, 0
      %vm1874 = vcmp.lt.s32.totalorder %v1698, 0
      %vm1875 = vcmp.lt.s32.totalorder %v1727, 0
      %vm1876 = vcmp.lt.s32.totalorder %v1756, 0
      %vm1877 = vcmp.lt.s32.totalorder %v1785, 0
      %vm1878 = vcmp.lt.s32.totalorder %v1814, 0
      %vm1879 = vcmp.lt.s32.totalorder %v1843, 0
      %vm1880 = vmand %vm1862, %vm1844
      %vm1881 = vmand %vm1863, %vm1845
      %vm1882 = vmand %vm1864, %vm1846
      %vm1883 = vmand %vm1865, %vm1847
      %vm1884 = vmand %vm1866, %vm1848
      %vm1885 = vmand %vm1867, %vm1849
      %vm1886 = vmand %vm1868, %vm1850
      %vm1887 = vmand %vm1869, %vm1851
      %vm1888 = vmand %vm1870, %vm1852
      %vm1889 = vmand %vm1871, %vm1853
      %vm1890 = vmand %vm1872, %vm1854
      %vm1891 = vmand %vm1873, %vm1855
      %vm1892 = vmand %vm1874, %vm1856
      %vm1893 = vmand %vm1875, %vm1857
      %vm1894 = vmand %vm1876, %vm1858
      %vm1895 = vmand %vm1877, %vm1859
      %vm1896 = vmand %vm1878, %vm1860
      %vm1897 = vmand %vm1879, %vm1861
      %v1898 = vadd.s32 %v1350, 18
      %v1899 = vadd.s32 %v1379, 18
      %v1900 = vadd.s32 %v1408, 18
      %v1901 = vadd.s32 %v1437, 18
      %v1902 = vadd.s32 %v1466, 18
      %v1903 = vadd.s32 %v1495, 18
      %v1904 = vadd.s32 %v1524, 18
      %v1905 = vadd.s32 %v1553, 18
      %v1906 = vadd.s32 %v1582, 18
      %v1907 = vadd.s32 %v1611, 18
      %v1908 = vadd.s32 %v1640, 18
      %v1909 = vadd.s32 %v1669, 18
      %v1910 = vadd.s32 %v1698, 18
      %v1911 = vadd.s32 %v1727, 18
      %v1912 = vadd.s32 %v1756, 18
      %v1913 = vadd.s32 %v1785, 18
      %v1914 = vadd.s32 %v1814, 18
      %v1915 = vadd.s32 %v1843, 18
      %v1916 = vsel %vm1880, %v1898, %v1350
      %v1917 = vsel %vm1881, %v1899, %v1379
      %v1918 = vsel %vm1882, %v1900, %v1408
      %v1919 = vsel %vm1883, %v1901, %v1437
      %v1920 = vsel %vm1884, %v1902, %v1466
      %v1921 = vsel %vm1885, %v1903, %v1495
      %v1922 = vsel %vm1886, %v1904, %v1524
      %v1923 = vsel %vm1887, %v1905, %v1553
      %v1924 = vsel %vm1888, %v1906, %v1582
      %v1925 = vsel %vm1889, %v1907, %v1611
      %v1926 = vsel %vm1890, %v1908, %v1640
      %v1927 = vsel %vm1891, %v1909, %v1669
      %v1928 = vsel %vm1892, %v1910, %v1698
      %v1929 = vsel %vm1893, %v1911, %v1727
      %v1930 = vsel %vm1894, %v1912, %v1756
      %v1931 = vsel %vm1895, %v1913, %v1785
      %v1932 = vsel %vm1896, %v1914, %v1814
      %v1933 = vsel %vm1897, %v1915, %v1843
      %vm1934 = vcmp.lt.s32.totalorder %v1916, 16
      %vm1935 = vcmp.lt.s32.totalorder %v1917, 16
      %vm1936 = vcmp.lt.s32.totalorder %v1918, 16
      %vm1937 = vcmp.lt.s32.totalorder %v1919, 16
      %vm1938 = vcmp.lt.s32.totalorder %v1920, 16
      %vm1939 = vcmp.lt.s32.totalorder %v1921, 16
      %vm1940 = vcmp.lt.s32.totalorder %v1922, 16
      %vm1941 = vcmp.lt.s32.totalorder %v1923, 16
      %vm1942 = vcmp.lt.s32.totalorder %v1924, 16
      %vm1943 = vcmp.lt.s32.totalorder %v1925, 16
      %vm1944 = vcmp.lt.s32.totalorder %v1926, 16
      %vm1945 = vcmp.lt.s32.totalorder %v1927, 16
      %vm1946 = vcmp.lt.s32.totalorder %v1928, 16
      %vm1947 = vcmp.lt.s32.totalorder %v1929, 16
      %vm1948 = vcmp.lt.s32.totalorder %v1930, 16
      %vm1949 = vcmp.lt.s32.totalorder %v1931, 16
      %vm1950 = vcmp.lt.s32.totalorder %v1932, 16
      %vm1951 = vcmp.lt.s32.totalorder %v1933, 16
      %v1952 = vsel %vm1934, 1, 0
      %v1953 = vsel %vm1935, 1, 0
      %v1954 = vsel %vm1936, 1, 0
      %v1955 = vsel %vm1937, 1, 0
      %v1956 = vsel %vm1938, 1, 0
      %v1957 = vsel %vm1939, 1, 0
      %v1958 = vsel %vm1940, 1, 0
      %v1959 = vsel %vm1941, 1, 0
      %v1960 = vsel %vm1942, 1, 0
      %v1961 = vsel %vm1943, 1, 0
      %v1962 = vsel %vm1944, 1, 0
      %v1963 = vsel %vm1945, 1, 0
      %v1964 = vsel %vm1946, 1, 0
      %v1965 = vsel %vm1947, 1, 0
      %v1966 = vsel %vm1948, 1, 0
      %v1967 = vsel %vm1949, 1, 0
      %v1968 = vsel %vm1950, 1, 0
      %v1969 = vsel %vm1951, 1, 0
      %vm1970 = vcmp.eq.s32.totalorder %v1952, 1
      %vm1971 = vcmp.eq.s32.totalorder %v1953, 1
      %vm1972 = vcmp.eq.s32.totalorder %v1954, 1
      %vm1973 = vcmp.eq.s32.totalorder %v1955, 1
      %vm1974 = vcmp.eq.s32.totalorder %v1956, 1
      %vm1975 = vcmp.eq.s32.totalorder %v1957, 1
      %vm1976 = vcmp.eq.s32.totalorder %v1958, 1
      %vm1977 = vcmp.eq.s32.totalorder %v1959, 1
      %vm1978 = vcmp.eq.s32.totalorder %v1960, 1
      %vm1979 = vcmp.eq.s32.totalorder %v1961, 1
      %vm1980 = vcmp.eq.s32.totalorder %v1962, 1
      %vm1981 = vcmp.eq.s32.totalorder %v1963, 1
      %vm1982 = vcmp.eq.s32.totalorder %v1964, 1
      %vm1983 = vcmp.eq.s32.totalorder %v1965, 1
      %vm1984 = vcmp.eq.s32.totalorder %v1966, 1
      %vm1985 = vcmp.eq.s32.totalorder %v1967, 1
      %vm1986 = vcmp.eq.s32.totalorder %v1968, 1
      %vm1987 = vcmp.eq.s32.totalorder %v1969, 1
      %v1988 = vsel %vm1970, %v1232, 0.0
      %v1989 = vsel %vm1971, %v1235, 0.0
      %v1990 = vsel %vm1972, %v1238, 0.0
      %v1991 = vsel %vm1973, %v1241, 0.0
      %v1992 = vsel %vm1974, %v1244, 0.0
      %v1993 = vsel %vm1975, %v1247, 0.0
      %v1994 = vsel %vm1976, %v1250, 0.0
      %v1995 = vsel %vm1977, %v1253, 0.0
      %v1996 = vsel %vm1978, %v1256, 0.0
      %v1997 = vsel %vm1979, %v1259, 0.0
      %v1998 = vsel %vm1980, %v1262, 0.0
      %v1999 = vsel %vm1981, %v1265, 0.0
      %v2000 = vsel %vm1982, %v1268, 0.0
      %v2001 = vsel %vm1983, %v1271, 0.0
      %v2002 = vsel %vm1984, %v1274, 0.0
      %v2003 = vsel %vm1985, %v1277, 0.0
      %v2004 = vsel %vm1986, %v1280, 0.0
      %v2005 = vsel %vm1987, %v1283, 0.0
      %v2006 = vadd.f32 %v1988, %v1989
      %v2007 = vadd.f32 %v2006, %v1990
      %v2008 = vadd.f32 %v2007, %v1991
      %v2009 = vadd.f32 %v2008, %v1992
      %v2010 = vadd.f32 %v2009, %v1993
      %v2011 = vadd.f32 %v2010, %v1994
      %v2012 = vadd.f32 %v2011, %v1995
      %v2013 = vadd.f32 %v2012, %v1996
      %v2014 = vadd.f32 %v2013, %v1997
      %v2015 = vadd.f32 %v2014, %v1998
      %v2016 = vadd.f32 %v2015, %v1999
      %v2017 = vadd.f32 %v2016, %v2000
      %v2018 = vadd.f32 %v2017, %v2001
      %v2019 = vadd.f32 %v2018, %v2002
      %v2020 = vadd.f32 %v2019, %v2003
      %v2021 = vadd.f32 %v2020, %v2004
      %v2022 = vadd.f32 %v2021, %v2005
      %v2023 = vrot.slane %v2022, 4
      %v2024 = vadd.f32 %v2022, %v2023
      %v2025 = vrot.slane %v2024, 2
      %v2026 = vadd.f32 %v2024, %v2025
      %v2027 = vrot.slane %v2026, 1
      %v2028 = vadd.f32 %v2026, %v2027
      %v2029 = vmul.f32 %v1988, %v1988
      %v2030 = vmul.f32 %v1989, %v1989
      %v2031 = vmul.f32 %v1990, %v1990
      %v2032 = vmul.f32 %v1991, %v1991
      %v2033 = vmul.f32 %v1992, %v1992
      %v2034 = vmul.f32 %v1993, %v1993
      %v2035 = vmul.f32 %v1994, %v1994
      %v2036 = vmul.f32 %v1995, %v1995
      %v2037 = vmul.f32 %v1996, %v1996
      %v2038 = vmul.f32 %v1997, %v1997
      %v2039 = vmul.f32 %v1998, %v1998
      %v2040 = vmul.f32 %v1999, %v1999
      %v2041 = vmul.f32 %v2000, %v2000
      %v2042 = vmul.f32 %v2001, %v2001
      %v2043 = vmul.f32 %v2002, %v2002
      %v2044 = vmul.f32 %v2003, %v2003
      %v2045 = vmul.f32 %v2004, %v2004
      %v2046 = vmul.f32 %v2005, %v2005
      %v2047 = vadd.f32 %v2029, %v2030
      %v2048 = vadd.f32 %v2047, %v2031
      %v2049 = vadd.f32 %v2048, %v2032
      %v2050 = vadd.f32 %v2049, %v2033
      %v2051 = vadd.f32 %v2050, %v2034
      %v2052 = vadd.f32 %v2051, %v2035
      %v2053 = vadd.f32 %v2052, %v2036
      %v2054 = vadd.f32 %v2053, %v2037
      %v2055 = vadd.f32 %v2054, %v2038
      %v2056 = vadd.f32 %v2055, %v2039
      %v2057 = vadd.f32 %v2056, %v2040
      %v2058 = vadd.f32 %v2057, %v2041
      %v2059 = vadd.f32 %v2058, %v2042
      %v2060 = vadd.f32 %v2059, %v2043
      %v2061 = vadd.f32 %v2060, %v2044
      %v2062 = vadd.f32 %v2061, %v2045
      %v2063 = vadd.f32 %v2062, %v2046
      %v2064 = vrot.slane %v2063, 4
      %v2065 = vadd.f32 %v2063, %v2064
      %v2066 = vrot.slane %v2065, 2
      %v2067 = vadd.f32 %v2065, %v2066
      %v2068 = vrot.slane %v2067, 1
      %v2069 = vadd.f32 %v2067, %v2068
      %p2070 = scmp.eq.s32.totalorder %s20, 0
      // Predicated region
      $region29: #{inception2d.16} parent=27 // pred_check
        %p2071 = pneg %p2070
      $region30: #{inception2d.16} parent=27 // pred_check_branch
        %2073 = sbr.rel (%p2071) target = $region32
      $region31: #{inception2d.16} parent=27 // pred_region
        %2074 = vst [vmem:[%s204] sm:$0x1] %v2028
        %2075 = vst [vmem:[%s204 + $0x1] sm:$0x1] %v2069
      $region32: #{inception2d.16} parent=27 // pred_fallthru
        _
      %p2076 = scmp.gt.s32.totalorder %s20, 0
      // Predicated region
      $region33: #{inception2d.16} parent=27 // pred_check
        %p2077 = pneg %p2076
      $region34: #{inception2d.16} parent=27 // pred_check_branch
        %2079 = sbr.rel (%p2077) target = $region36
      $region35: #{inception2d.16} parent=27 // pred_region
        %v2080 = vld [vmem:[%s204] sm:$0x1]
        %v2081 = vadd.f32 %v2080, %v2028
        %2082 = vst [vmem:[%s204] sm:$0x1] %v2081
        %v2083 = vld [vmem:[%s204 + $0x1] sm:$0x1]
        %v2084 = vadd.f32 %v2083, %v2069
        %2085 = vst [vmem:[%s204 + $0x1] sm:$0x1] %v2084
      $region36: #{inception2d.16} parent=27 // pred_fallthru
        _
      %s2086 = smul.u32 18, %s20
      %p2087 = scmp.lt.s32.totalorder %s19, 1
      %s2088 = scalar_select %p2087, %s19, 1
      %p2089 = scmp.lt.s32.totalorder %s2086, 35
      %s2090 = scalar_select %p2089, %s2086, 35
      %s2091 = smul.addr %s2088, 36
      %s2092 = sadd.s32 %s2090, %s2091
      %s2093 = smul.addr %s2092, 8
      %s2094 = scalar_lea.vmem %s2, %s2093
      %p2095 = scmp.lt.s32.totalorder %s19, 1
      %s2096 = scalar_select %p2095, %s19, 1
      %s2097 = smul.addr %s2096, 2
      %s2098 = scalar_lea.vmem %s3, %s2097
      // Predicated region
      $region37: #{inception2d.16} parent=27 // pred_check
        %p2099 = pneg %p94
      $region38: #{inception2d.16} parent=27 // pred_check_branch
        %2101 = sbr.rel (%p2099) target = $region40
      $region39: #{inception2d.16} parent=27 // pred_region
        %s2102 = smul.u32 18, %s20
      $region40: #{inception2d.16} parent=27 // pred_fallthru
        _
      // Predicated region
      $region41: #{inception2d.16} parent=27 // pred_check
        %p2103 = pneg %p120
      $region42: #{inception2d.16} parent=27 // pred_check_branch
        %2105 = sbr.rel (%p2103) target = $region44
      $region43: #{inception2d.16} parent=27 // pred_region
        _
      $region44: #{inception2d.16} parent=27 // pred_fallthru
        _
    $region28: #{inception2d.16} parent=5 // pred_fallthru
      _
    %p2106 = scmp.le.s32.totalorder 2, %s10
    // Predicated region
    $region45: #{inception2d.16} parent=5 // pred_check
      %p2107 = pneg %p2106
    $region46: #{inception2d.16} parent=5 // pred_check_branch
      %2109 = sbr.rel (%p2107) target = $region48
    $region47: #{inception2d.16} parent=5 // pred_region
      %s2110 = ssub.s32 %s10, 2
      // Predicated region
      $region49: #{inception2d.16} parent=47 // pred_check
        %p2111 = pneg %p100
      $region50: #{inception2d.16} parent=47 // pred_check_branch
        %2113 = sbr.rel (%p2111) target = $region52
      $region51: #{inception2d.16} parent=47 // pred_region
        %s2114 = smul.u32 18, %s22
        %p2115 = scmp.lt.s32.totalorder %s21, 1
        %s2116 = scalar_select %p2115, %s21, 1
        %p2117 = scmp.lt.s32.totalorder %s2114, 35
        %s2118 = scalar_select %p2117, %s2114, 35
        %s2119 = smul.addr %s2116, 36
        %s2120 = sadd.s32 %s2118, %s2119
        %s2121 = smul.addr %s2120, 8
        %s2122 = scalar_lea.vmem %s2, %s2121
      $region52: #{inception2d.16} parent=47 // pred_fallthru
        _
      // Predicated region
      $region53: #{inception2d.16} parent=47 // pred_check
        %p2123 = pneg %p126
      $region54: #{inception2d.16} parent=47 // pred_check_branch
        %2125 = sbr.rel (%p2123) target = $region56
      $region55: #{inception2d.16} parent=47 // pred_region
        %p2126 = scmp.lt.s32.totalorder %s21, 1
        %s2127 = scalar_select %p2126, %s21, 1
        %s2128 = smul.addr %s2127, 2
        %s2129 = scalar_lea.vmem %s3, %s2128
      $region56: #{inception2d.16} parent=47 // pred_fallthru
        _
    $region48: #{inception2d.16} parent=5 // pred_fallthru
      _
  $region6: #{inception2d.16} parent=0 // loop_footer
    %s14 = sadd.s32 1, %s10
  $region7: #{inception2d.16} parent=0 // loop_footer_branch
    %9 = sbr.rel target = $region3
  $region8: #{inception2d.16} parent=0 // loop_exit
    _

// kernel: inception2d.18
$region0: #{inception2d.18}
  #allocation0 [shape = 'u32[]', space=smem, size = 0x4, offset = 0x4, fixed_abs, tag = 'smem constant byte address 0x4 - core index']
  #allocation1 [shape = 'u32[72,128]{1,0:T(1,128)}', space=vmem, size = 0x9000, scoped, tag = 'internal scratch']
  #allocation2 [shape = 'f32[144,72]{1,0:T(8,128)}', space=vmem, size = 0x12000, scoped, tag = 'scratch operand']
  %s0 = inlined_call_operand.vmem [shape: f32[2,342,8], index: 0, kind: input, shape index: {}]
  %s1 = inlined_call_operand.vmem [shape: f32[72,128], index: 1, kind: input, shape index: {}]
  %s2 = inlined_call_operand.vmem [shape: f32[2,288,128], index: 2, kind: output, shape index: {0}]
  %s3 = inlined_call_operand.vmem [shape: f32[2,2,128], index: 3, kind: output, shape index: {1}]
  %4 = xla_tuple %s2, %s3
  %s5 = sld [smem:[#allocation0]]
  $region57: #{inception2d.18} parent=0
    _
  %s7 = ssub.s32 1, %s5
  %s8 = scalar_select 0, %s7, %s5
  loop: start=0, step=1, limit=6
  $region2: #{inception2d.18} parent=0 // loop_pre_header
    _
  $region3: #{inception2d.18} parent=0 // loop_header
    %s10 = sphi 0, %s14
    %p11 = scmp.ge.s32.totalorder %s10, 6
    %s17 = sphi 0, %s29
    %s18 = sphi 0, %s25
    %s19 = sphi 0, %s17
    %s20 = sphi 0, %s18
    %s21 = sphi 0, %s19
    %s22 = sphi 0, %s20
    %s32 = sphi 0, %s34
    %s35 = sphi 0, %s32
    %s36 = sphi 0, %s35
    %s52 = sphi 0, %s36
    %s56 = sphi 0, %s56
    %s58 = sphi 0, %s56
    %s59 = sphi 0, %s58
    %s73 = sphi 0, %s59
    %s81 = sphi 0, %s83
    %s84 = sphi 0, %s81
    %s85 = sphi 0, %s84
    %s101 = sphi 0, %s85
    %s107 = sphi 0, %s109
    %s110 = sphi 0, %s107
    %s111 = sphi 0, %s110
    %s127 = sphi 0, %s111
  $region4: #{inception2d.18} parent=0 // loop_header_branch
    %13 = sbr.rel (%p11) target = $region8
  $region5: #{inception2d.18} parent=0 // loop_body
    %s15 = ssub.s32 %s10, 1
    %s16 = ssub.s32 %s10, 2
    %s23 = sadd.s32 1, %s18
    %p24 = scmp.ge.s32.totalorder %s23, 2
    %s25 = scalar_select %p24, 0, %s23
    %s26 = sadd.s32 1, %s17
    %s27 = scalar_select %p24, %s26, %s17
    %p28 = scmp.ge.s32.totalorder %s27, 2
    %s29 = scalar_select %p28, 0, %s27
    %s30 = ssub.s32 %s17, %s29
    %p31 = scmp.eq.s32.totalorder %s30, 0
    %s33 = sadd.s32 %s32, 1
    %s34 = scalar_select %p31, %s32, %s33
    %p37 = pneg %p31
    %p38 = scmp.eq.s32.totalorder %s10, 3
    %p39 = por %p37, %p38
    %p40 = scmp.ne.s32.totalorder %s32, %s35
    %p41 = scmp.eq.s32.totalorder %s10, 0
    %p42 = por %p40, %p41
    %p43 = scmp.ne.s32.totalorder %s32, %s35
    %p44 = scmp.eq.s32.totalorder %s15, 3
    %p45 = por %p43, %p44
    %p46 = scmp.ne.s32.totalorder %s35, %s36
    %p47 = scmp.eq.s32.totalorder %s15, 0
    %p48 = por %p46, %p47
    %p49 = scmp.ne.s32.totalorder %s35, %s36
    %p50 = scmp.eq.s32.totalorder %s16, 3
    %p51 = por %p49, %p50
    %p53 = scmp.ne.s32.totalorder %s36, %s52
    %p54 = scmp.eq.s32.totalorder %s16, 0
    %p55 = por %p53, %p54
    %s57 = sadd.s32 %s56, 1
    %p60 = scmp.eq.s32.totalorder %s10, 3
    %p61 = scmp.ne.s32.totalorder %s56, %s58
    %p62 = scmp.eq.s32.totalorder %s10, 0
    %p63 = por %p61, %p62
    %p64 = scmp.ne.s32.totalorder %s56, %s58
    %p65 = scmp.eq.s32.totalorder %s15, 3
    %p66 = por %p64, %p65
    %p67 = scmp.ne.s32.totalorder %s58, %s59
    %p68 = scmp.eq.s32.totalorder %s15, 0
    %p69 = por %p67, %p68
    %p70 = scmp.ne.s32.totalorder %s58, %s59
    %p71 = scmp.eq.s32.totalorder %s16, 3
    %p72 = por %p70, %p71
    %p74 = scmp.ne.s32.totalorder %s59, %s73
    %p75 = scmp.eq.s32.totalorder %s16, 0
    %p76 = por %p74, %p75
    %s77 = ssub.s32 %s17, %s29
    %s78 = ssub.s32 %s18, %s25
    %s79 = sor.u32 %s77, %s78
    %p80 = scmp.eq.s32.totalorder %s79, 0
    %s82 = sadd.s32 %s81, 1
    %s83 = scalar_select %p80, %s81, %s82
    %p86 = pneg %p80
    %p87 = scmp.eq.s32.totalorder %s10, 3
    %p88 = por %p86, %p87
    %p89 = scmp.ne.s32.totalorder %s81, %s84
    %p90 = scmp.eq.s32.totalorder %s10, 0
    %p91 = por %p89, %p90
    %p92 = scmp.ne.s32.totalorder %s81, %s84
    %p93 = scmp.eq.s32.totalorder %s15, 3
    %p94 = por %p92, %p93
    %p95 = scmp.ne.s32.totalorder %s84, %s85
    %p96 = scmp.eq.s32.totalorder %s15, 0
    %p97 = por %p95, %p96
    %p98 = scmp.ne.s32.totalorder %s84, %s85
    %p99 = scmp.eq.s32.totalorder %s16, 3
    %p100 = por %p98, %p99
    %p102 = scmp.ne.s32.totalorder %s85, %s101
    %p103 = scmp.eq.s32.totalorder %s16, 0
    %p104 = por %p102, %p103
    %s105 = ssub.s32 %s17, %s29
    %p106 = scmp.eq.s32.totalorder %s105, 0
    %s108 = sadd.s32 %s107, 1
    %s109 = scalar_select %p106, %s107, %s108
    %p112 = pneg %p106
    %p113 = scmp.eq.s32.totalorder %s10, 3
    %p114 = por %p112, %p113
    %p115 = scmp.ne.s32.totalorder %s107, %s110
    %p116 = scmp.eq.s32.totalorder %s10, 0
    %p117 = por %p115, %p116
    %p118 = scmp.ne.s32.totalorder %s107, %s110
    %p119 = scmp.eq.s32.totalorder %s15, 3
    %p120 = por %p118, %p119
    %p121 = scmp.ne.s32.totalorder %s110, %s111
    %p122 = scmp.eq.s32.totalorder %s15, 0
    %p123 = por %p121, %p122
    %p124 = scmp.ne.s32.totalorder %s110, %s111
    %p125 = scmp.eq.s32.totalorder %s16, 3
    %p126 = por %p124, %p125
    %p128 = scmp.ne.s32.totalorder %s111, %s127
    %p129 = scmp.eq.s32.totalorder %s16, 0
    %p130 = por %p128, %p129
    %p131 = scmp.le.s32.totalorder 1, %s10
    %p132 = scmp.lt.s32.totalorder %s10, 5
    %p133 = pnand %p131, %p132
    %p134 = pneg %p133
    // Predicated region
    $region9: #{inception2d.18} parent=5 // pred_check
      _
    $region10: #{inception2d.18} parent=5 // pred_check_branch
      %136 = sbr.rel (%p133) target = $region12
    $region11: #{inception2d.18} parent=5 // pred_region
      %s137 = ssub.s32 %s10, 1
      // Predicated region
      $region13: #{inception2d.18} parent=11 // pred_check
        %p138 = pneg %p69
      $region14: #{inception2d.18} parent=11 // pred_check_branch
        %140 = sbr.rel (%p138) target = $region16
      $region15: #{inception2d.18} parent=11 // pred_region
        _
      $region16: #{inception2d.18} parent=11 // pred_fallthru
        _
    $region12: #{inception2d.18} parent=5 // pred_fallthru
      _
    %p141 = scmp.lt.s32.totalorder %s10, 4
    // Predicated region
    $region17: #{inception2d.18} parent=5 // pred_check
      %p142 = pneg %p141
    $region18: #{inception2d.18} parent=5 // pred_check_branch
      %144 = sbr.rel (%p142) target = $region20
    $region19: #{inception2d.18} parent=5 // pred_region
      // Predicated region
      $region21: #{inception2d.18} parent=19 // pred_check
        %p145 = pneg %p42
      $region22: #{inception2d.18} parent=19 // pred_check_branch
        %147 = sbr.rel (%p145) target = $region24
      $region23: #{inception2d.18} parent=19 // pred_region
        %p148 = scmp.lt.s32.totalorder %s17, 1
        %s149 = scalar_select %p148, %s17, 1
        %s150 = smul.addr %s149, 43
        %s151 = smul.addr %s150, 8
        %s152 = scalar_lea.vmem %s0, %s151
      $region24: #{inception2d.18} parent=19 // pred_fallthru
        _
    $region20: #{inception2d.18} parent=5 // pred_fallthru
      _
    %p153 = scmp.le.s32.totalorder 1, %s10
    %p154 = scmp.lt.s32.totalorder %s10, 5
    %p155 = pnand %p153, %p154
    %p156 = pneg %p155
    // Predicated region
    $region25: #{inception2d.18} parent=5 // pred_check
      _
    $region26: #{inception2d.18} parent=5 // pred_check_branch
      %158 = sbr.rel (%p155) target = $region28
    $region27: #{inception2d.18} parent=5 // pred_region
      %s159 = ssub.s32 %s10, 1
      %p160 = scmp.lt.s32.totalorder %s19, 1
      %s161 = scalar_select %p160, %s19, 1
      %s162 = smul.addr %s161, 43
      %s163 = smul.addr %s162, 8
      %s164 = scalar_lea.vmem %s0, %s163
      %p165 = pneg %p48
      %p166 = pneg %p45
      %p167 = pneg %p69
      %p168 = pneg %p66
      %p169 = pneg %p97
      %p170 = pneg %p94
      %s171 = smul.u32 18, %s20
      %p172 = scmp.lt.s32.totalorder %s19, 1
      %s173 = scalar_select %p172, %s19, 1
      %p174 = scmp.lt.s32.totalorder %s171, 35
      %s175 = scalar_select %p174, %s171, 35
      %s176 = smul.addr %s173, 36
      %s177 = sadd.s32 %s175, %s176
      %s178 = smul.addr %s177, 8
      %s179 = scalar_lea.vmem %s2, %s178
      %p180 = pneg %p123
      %p181 = pneg %p120
      %p182 = scmp.lt.s32.totalorder %s19, 1
      %s183 = scalar_select %p182, %s19, 1
      %s184 = smul.addr %s183, 2
      %s185 = scalar_lea.vmem %s3, %s184
      %p186 = scmp.lt.s32.totalorder %s19, 1
      %s187 = scalar_select %p186, %s19, 1
      %s188 = smul.addr %s187, 43
      %s189 = smul.addr %s188, 8
      %s190 = scalar_lea.vmem %s0, %s189
      %s191 = smul.u32 18, %s20
      %p192 = scmp.lt.s32.totalorder %s19, 1
      %s193 = scalar_select %p192, %s19, 1
      %p194 = scmp.lt.s32.totalorder %s191, 35
      %s195 = scalar_select %p194, %s191, 35
      %s196 = smul.addr %s193, 36
      %s197 = sadd.s32 %s195, %s196
      %s198 = smul.addr %s197, 8
      %s199 = scalar_lea.vmem %s2, %s198
      %s200 = smul.u32 18, %s20
      %p201 = scmp.lt.s32.totalorder %s19, 1
      %s202 = scalar_select %p201, %s19, 1
      %s203 = smul.addr %s202, 2
      %s204 = scalar_lea.vmem %s3, %s203
      %s205 = smul.u32 %s20, 144
      %s206 = scalar_lea.vmem %s190, %s205
      %v207 = vld [vmem:[%s206] sm:$0xff]
      %v208 = vld [vmem:[%s206 + $0x8] sm:$0xff]
      %v209 = vld [vmem:[%s206 + $0x10] sm:$0xff]
      %v210 = vld [vmem:[%s206 + $0x18] sm:$0xff]
      %v211 = vld [vmem:[%s206 + $0x20] sm:$0xff]
      %v212 = vld [vmem:[%s206 + $0x28] sm:$0xff]
      %v213 = vld [vmem:[%s206 + $0x30] sm:$0xff]
      %v214 = vld [vmem:[%s206 + $0x38] sm:$0xff]
      %v215 = vld [vmem:[%s206 + $0x40] sm:$0xff]
      %v216 = vld [vmem:[%s206 + $0x48] sm:$0xff]
      %v217 = vld [vmem:[%s206 + $0x50] sm:$0xff]
      %v218 = vld [vmem:[%s206 + $0x58] sm:$0xff]
      %v219 = vld [vmem:[%s206 + $0x60] sm:$0xff]
      %v220 = vld [vmem:[%s206 + $0x68] sm:$0xff]
      %v221 = vld [vmem:[%s206 + $0x70] sm:$0xff]
      %v222 = vld [vmem:[%s206 + $0x78] sm:$0xff]
      %v223 = vld [vmem:[%s206 + $0x80] sm:$0xff]
      %v224 = vld [vmem:[%s206 + $0x88] sm:$0xff]
      %vm225 = vcmask 64512
      %226 = vst.msk [vmem:[#allocation2] sm:$0xff] %vm225, %v207
      %227 = vst.msk [vmem:[#allocation2 + $0x8] sm:$0xff] %vm225, %v208
      %228 = vst.msk [vmem:[#allocation2 + $0x10] sm:$0xff] %vm225, %v209
      %229 = vst.msk [vmem:[#allocation2 + $0x18] sm:$0xff] %vm225, %v210
      %230 = vst.msk [vmem:[#allocation2 + $0x20] sm:$0xff] %vm225, %v211
      %231 = vst.msk [vmem:[#allocation2 + $0x28] sm:$0xff] %vm225, %v212
      %232 = vst.msk [vmem:[#allocation2 + $0x30] sm:$0xff] %vm225, %v213
      %233 = vst.msk [vmem:[#allocation2 + $0x38] sm:$0xff] %vm225, %v214
      %234 = vst.msk [vmem:[#allocation2 + $0x40] sm:$0xff] %vm225, %v215
      %235 = vst.msk [vmem:[#allocation2 + $0x48] sm:$0xff] %vm225, %v216
      %236 = vst.msk [vmem:[#allocation2 + $0x50] sm:$0xff] %vm225, %v217
      %237 = vst.msk [vmem:[#allocation2 + $0x58] sm:$0xff] %vm225, %v218
      %238 = vst.msk [vmem:[#allocation2 + $0x60] sm:$0xff] %vm225, %v219
      %239 = vst.msk [vmem:[#allocation2 + $0x68] sm:$0xff] %vm225, %v220
      %240 = vst.msk [vmem:[#allocation2 + $0x70] sm:$0xff] %vm225, %v221
      %241 = vst.msk [vmem:[#allocation2 + $0x78] sm:$0xff] %vm225, %v222
      %242 = vst.msk [vmem:[#allocation2 + $0x80] sm:$0xff] %vm225, %v223
      %243 = vst.msk [vmem:[#allocation2 + $0x88] sm:$0xff] %vm225, %v224
      %s244 = sadd.s32 %s205, 1
      %s245 = scalar_lea.vmem %s190, %s244
      %v246 = vld [vmem:[%s245] sm:$0xff]
      %v247 = vld [vmem:[%s245 + $0x8] sm:$0xff]
      %v248 = vld [vmem:[%s245 + $0x10] sm:$0xff]
      %v249 = vld [vmem:[%s245 + $0x18] sm:$0xff]
      %v250 = vld [vmem:[%s245 + $0x20] sm:$0xff]
      %v251 = vld [vmem:[%s245 + $0x28] sm:$0xff]
      %v252 = vld [vmem:[%s245 + $0x30] sm:$0xff]
      %v253 = vld [vmem:[%s245 + $0x38] sm:$0xff]
      %v254 = vld [vmem:[%s245 + $0x40] sm:$0xff]
      %v255 = vld [vmem:[%s245 + $0x48] sm:$0xff]
      %v256 = vld [vmem:[%s245 + $0x50] sm:$0xff]
      %v257 = vld [vmem:[%s245 + $0x58] sm:$0xff]
      %v258 = vld [vmem:[%s245 + $0x60] sm:$0xff]
      %v259 = vld [vmem:[%s245 + $0x68] sm:$0xff]
      %v260 = vld [vmem:[%s245 + $0x70] sm:$0xff]
      %v261 = vld [vmem:[%s245 + $0x78] sm:$0xff]
      %v262 = vld [vmem:[%s245 + $0x80] sm:$0xff]
      %v263 = vld [vmem:[%s245 + $0x88] sm:$0xff]
      %282 = vrot.lane.b32.xlu0 %v246, 8
      %v283 = vpop.permute.xlu0 %282
      %284 = vrot.lane.b32.xlu0 %v247, 8
      %v285 = vpop.permute.xlu0 %284
      %286 = vrot.lane.b32.xlu0 %v248, 8
      %v287 = vpop.permute.xlu0 %286
      %288 = vrot.lane.b32.xlu0 %v249, 8
      %v289 = vpop.permute.xlu0 %288
      %290 = vrot.lane.b32.xlu0 %v250, 8
      %v291 = vpop.permute.xlu0 %290
      %292 = vrot.lane.b32.xlu0 %v251, 8
      %v293 = vpop.permute.xlu0 %292
      %294 = vrot.lane.b32.xlu0 %v252, 8
      %v295 = vpop.permute.xlu0 %294
      %296 = vrot.lane.b32.xlu0 %v253, 8
      %v297 = vpop.permute.xlu0 %296
      %298 = vrot.lane.b32.xlu0 %v254, 8
      %v299 = vpop.permute.xlu0 %298
      %300 = vrot.lane.b32.xlu0 %v255, 8
      %v301 = vpop.permute.xlu0 %300
      %302 = vrot.lane.b32.xlu0 %v256, 8
      %v303 = vpop.permute.xlu0 %302
      %304 = vrot.lane.b32.xlu0 %v257, 8
      %v305 = vpop.permute.xlu0 %304
      %306 = vrot.lane.b32.xlu0 %v258, 8
      %v307 = vpop.permute.xlu0 %306
      %308 = vrot.lane.b32.xlu0 %v259, 8
      %v309 = vpop.permute.xlu0 %308
      %310 = vrot.lane.b32.xlu0 %v260, 8
      %v311 = vpop.permute.xlu0 %310
      %312 = vrot.lane.b32.xlu0 %v261, 8
      %v313 = vpop.permute.xlu0 %312
      %314 = vrot.lane.b32.xlu0 %v262, 8
      %v315 = vpop.permute.xlu0 %314
      %316 = vrot.lane.b32.xlu0 %v263, 8
      %v317 = vpop.permute.xlu0 %316
      %vm336 = vcmask 130112
      %337 = vst.msk [vmem:[#allocation2] sm:$0xff] %vm336, %v283
      %338 = vst.msk [vmem:[#allocation2 + $0x8] sm:$0xff] %vm336, %v285
      %339 = vst.msk [vmem:[#allocation2 + $0x10] sm:$0xff] %vm336, %v287
      %340 = vst.msk [vmem:[#allocation2 + $0x18] sm:$0xff] %vm336, %v289
      %341 = vst.msk [vmem:[#allocation2 + $0x20] sm:$0xff] %vm336, %v291
      %342 = vst.msk [vmem:[#allocation2 + $0x28] sm:$0xff] %vm336, %v293
      %343 = vst.msk [vmem:[#allocation2 + $0x30] sm:$0xff] %vm336, %v295
      %344 = vst.msk [vmem:[#allocation2 + $0x38] sm:$0xff] %vm336, %v297
      %345 = vst.msk [vmem:[#allocation2 + $0x40] sm:$0xff] %vm336, %v299
      %346 = vst.msk [vmem:[#allocation2 + $0x48] sm:$0xff] %vm336, %v301
      %347 = vst.msk [vmem:[#allocation2 + $0x50] sm:$0xff] %vm336, %v303
      %348 = vst.msk [vmem:[#allocation2 + $0x58] sm:$0xff] %vm336, %v305
      %349 = vst.msk [vmem:[#allocation2 + $0x60] sm:$0xff] %vm336, %v307
      %350 = vst.msk [vmem:[#allocation2 + $0x68] sm:$0xff] %vm336, %v309
      %351 = vst.msk [vmem:[#allocation2 + $0x70] sm:$0xff] %vm336, %v311
      %352 = vst.msk [vmem:[#allocation2 + $0x78] sm:$0xff] %vm336, %v313
      %353 = vst.msk [vmem:[#allocation2 + $0x80] sm:$0xff] %vm336, %v315
      %354 = vst.msk [vmem:[#allocation2 + $0x88] sm:$0xff] %vm336, %v317
      %s355 = sadd.s32 %s205, 2
      %s356 = scalar_lea.vmem %s190, %s355
      %v357 = vld [vmem:[%s356] sm:$0xff]
      %v358 = vld [vmem:[%s356 + $0x8] sm:$0xff]
      %v359 = vld [vmem:[%s356 + $0x10] sm:$0xff]
      %v360 = vld [vmem:[%s356 + $0x18] sm:$0xff]
      %v361 = vld [vmem:[%s356 + $0x20] sm:$0xff]
      %v362 = vld [vmem:[%s356 + $0x28] sm:$0xff]
      %v363 = vld [vmem:[%s356 + $0x30] sm:$0xff]
      %v364 = vld [vmem:[%s356 + $0x38] sm:$0xff]
      %v365 = vld [vmem:[%s356 + $0x40] sm:$0xff]
      %v366 = vld [vmem:[%s356 + $0x48] sm:$0xff]
      %v367 = vld [vmem:[%s356 + $0x50] sm:$0xff]
      %v368 = vld [vmem:[%s356 + $0x58] sm:$0xff]
      %v369 = vld [vmem:[%s356 + $0x60] sm:$0xff]
      %v370 = vld [vmem:[%s356 + $0x68] sm:$0xff]
      %v371 = vld [vmem:[%s356 + $0x70] sm:$0xff]
      %v372 = vld [vmem:[%s356 + $0x78] sm:$0xff]
      %v373 = vld [vmem:[%s356 + $0x80] sm:$0xff]
      %v374 = vld [vmem:[%s356 + $0x88] sm:$0xff]
      %393 = vrot.lane.b32.xlu0 %v357, 16
      %v394 = vpop.permute.xlu0 %393
      %395 = vrot.lane.b32.xlu0 %v358, 16
      %v396 = vpop.permute.xlu0 %395
      %397 = vrot.lane.b32.xlu0 %v359, 16
      %v398 = vpop.permute.xlu0 %397
      %399 = vrot.lane.b32.xlu0 %v360, 16
      %v400 = vpop.permute.xlu0 %399
      %401 = vrot.lane.b32.xlu0 %v361, 16
      %v402 = vpop.permute.xlu0 %401
      %403 = vrot.lane.b32.xlu0 %v362, 16
      %v404 = vpop.permute.xlu0 %403
      %405 = vrot.lane.b32.xlu0 %v363, 16
      %v406 = vpop.permute.xlu0 %405
      %407 = vrot.lane.b32.xlu0 %v364, 16
      %v408 = vpop.permute.xlu0 %407
      %409 = vrot.lane.b32.xlu0 %v365, 16
      %v410 = vpop.permute.xlu0 %409
      %411 = vrot.lane.b32.xlu0 %v366, 16
      %v412 = vpop.permute.xlu0 %411
      %413 = vrot.lane.b32.xlu0 %v367, 16
      %v414 = vpop.permute.xlu0 %413
      %415 = vrot.lane.b32.xlu0 %v368, 16
      %v416 = vpop.permute.xlu0 %415
      %417 = vrot.lane.b32.xlu0 %v369, 16
      %v418 = vpop.permute.xlu0 %417
      %419 = vrot.lane.b32.xlu0 %v370, 16
      %v420 = vpop.permute.xlu0 %419
      %421 = vrot.lane.b32.xlu0 %v371, 16
      %v422 = vpop.permute.xlu0 %421
      %423 = vrot.lane.b32.xlu0 %v372, 16
      %v424 = vpop.permute.xlu0 %423
      %425 = vrot.lane.b32.xlu0 %v373, 16
      %v426 = vpop.permute.xlu0 %425
      %427 = vrot.lane.b32.xlu0 %v374, 16
      %v428 = vpop.permute.xlu0 %427
      %vm447 = vcmask 195712
      %448 = vst.msk [vmem:[#allocation2] sm:$0xff] %vm447, %v394
      %449 = vst.msk [vmem:[#allocation2 + $0x8] sm:$0xff] %vm447, %v396
      %450 = vst.msk [vmem:[#allocation2 + $0x10] sm:$0xff] %vm447, %v398
      %451 = vst.msk [vmem:[#allocation2 + $0x18] sm:$0xff] %vm447, %v400
      %452 = vst.msk [vmem:[#allocation2 + $0x20] sm:$0xff] %vm447, %v402
      %453 = vst.msk [vmem:[#allocation2 + $0x28] sm:$0xff] %vm447, %v404
      %454 = vst.msk [vmem:[#allocation2 + $0x30] sm:$0xff] %vm447, %v406
      %455 = vst.msk [vmem:[#allocation2 + $0x38] sm:$0xff] %vm447, %v408
      %456 = vst.msk [vmem:[#allocation2 + $0x40] sm:$0xff] %vm447, %v410
      %457 = vst.msk [vmem:[#allocation2 + $0x48] sm:$0xff] %vm447, %v412
      %458 = vst.msk [vmem:[#allocation2 + $0x50] sm:$0xff] %vm447, %v414
      %459 = vst.msk [vmem:[#allocation2 + $0x58] sm:$0xff] %vm447, %v416
      %460 = vst.msk [vmem:[#allocation2 + $0x60] sm:$0xff] %vm447, %v418
      %461 = vst.msk [vmem:[#allocation2 + $0x68] sm:$0xff] %vm447, %v420
      %462 = vst.msk [vmem:[#allocation2 + $0x70] sm:$0xff] %vm447, %v422
      %463 = vst.msk [vmem:[#allocation2 + $0x78] sm:$0xff] %vm447, %v424
      %464 = vst.msk [vmem:[#allocation2 + $0x80] sm:$0xff] %vm447, %v426
      %465 = vst.msk [vmem:[#allocation2 + $0x88] sm:$0xff] %vm447, %v428
      %s466 = sadd.s32 %s205, 18
      %s467 = scalar_lea.vmem %s190, %s466
      %v468 = vld [vmem:[%s467] sm:$0xff]
      %v469 = vld [vmem:[%s467 + $0x8] sm:$0xff]
      %v470 = vld [vmem:[%s467 + $0x10] sm:$0xff]
      %v471 = vld [vmem:[%s467 + $0x18] sm:$0xff]
      %v472 = vld [vmem:[%s467 + $0x20] sm:$0xff]
      %v473 = vld [vmem:[%s467 + $0x28] sm:$0xff]
      %v474 = vld [vmem:[%s467 + $0x30] sm:$0xff]
      %v475 = vld [vmem:[%s467 + $0x38] sm:$0xff]
      %v476 = vld [vmem:[%s467 + $0x40] sm:$0xff]
      %v477 = vld [vmem:[%s467 + $0x48] sm:$0xff]
      %v478 = vld [vmem:[%s467 + $0x50] sm:$0xff]
      %v479 = vld [vmem:[%s467 + $0x58] sm:$0xff]
      %v480 = vld [vmem:[%s467 + $0x60] sm:$0xff]
      %v481 = vld [vmem:[%s467 + $0x68] sm:$0xff]
      %v482 = vld [vmem:[%s467 + $0x70] sm:$0xff]
      %v483 = vld [vmem:[%s467 + $0x78] sm:$0xff]
      %v484 = vld [vmem:[%s467 + $0x80] sm:$0xff]
      %v485 = vld [vmem:[%s467 + $0x88] sm:$0xff]
      %504 = vrot.lane.b32.xlu0 %v468, 24
      %v505 = vpop.permute.xlu0 %504
      %506 = vrot.lane.b32.xlu0 %v469, 24
      %v507 = vpop.permute.xlu0 %506
      %508 = vrot.lane.b32.xlu0 %v470, 24
      %v509 = vpop.permute.xlu0 %508
      %510 = vrot.lane.b32.xlu0 %v471, 24
      %v511 = vpop.permute.xlu0 %510
      %512 = vrot.lane.b32.xlu0 %v472, 24
      %v513 = vpop.permute.xlu0 %512
      %514 = vrot.lane.b32.xlu0 %v473, 24
      %v515 = vpop.permute.xlu0 %514
      %516 = vrot.lane.b32.xlu0 %v474, 24
      %v517 = vpop.permute.xlu0 %516
      %518 = vrot.lane.b32.xlu0 %v475, 24
      %v519 = vpop.permute.xlu0 %518
      %520 = vrot.lane.b32.xlu0 %v476, 24
      %v521 = vpop.permute.xlu0 %520
      %522 = vrot.lane.b32.xlu0 %v477, 24
      %v523 = vpop.permute.xlu0 %522
      %524 = vrot.lane.b32.xlu0 %v478, 24
      %v525 = vpop.permute.xlu0 %524
      %526 = vrot.lane.b32.xlu0 %v479, 24
      %v527 = vpop.permute.xlu0 %526
      %528 = vrot.lane.b32.xlu0 %v480, 24
      %v529 = vpop.permute.xlu0 %528
      %530 = vrot.lane.b32.xlu0 %v481, 24
      %v531 = vpop.permute.xlu0 %530
      %532 = vrot.lane.b32.xlu0 %v482, 24
      %v533 = vpop.permute.xlu0 %532
      %534 = vrot.lane.b32.xlu0 %v483, 24
      %v535 = vpop.permute.xlu0 %534
      %536 = vrot.lane.b32.xlu0 %v484, 24
      %v537 = vpop.permute.xlu0 %536
      %538 = vrot.lane.b32.xlu0 %v485, 24
      %v539 = vpop.permute.xlu0 %538
      %vm558 = vcmask 261312
      %559 = vst.msk [vmem:[#allocation2] sm:$0xff] %vm558, %v505
      %560 = vst.msk [vmem:[#allocation2 + $0x8] sm:$0xff] %vm558, %v507
      %561 = vst.msk [vmem:[#allocation2 + $0x10] sm:$0xff] %vm558, %v509
      %562 = vst.msk [vmem:[#allocation2 + $0x18] sm:$0xff] %vm558, %v511
      %563 = vst.msk [vmem:[#allocation2 + $0x20] sm:$0xff] %vm558, %v513
      %564 = vst.msk [vmem:[#allocation2 + $0x28] sm:$0xff] %vm558, %v515
      %565 = vst.msk [vmem:[#allocation2 + $0x30] sm:$0xff] %vm558, %v517
      %566 = vst.msk [vmem:[#allocation2 + $0x38] sm:$0xff] %vm558, %v519
      %567 = vst.msk [vmem:[#allocation2 + $0x40] sm:$0xff] %vm558, %v521
      %568 = vst.msk [vmem:[#allocation2 + $0x48] sm:$0xff] %vm558, %v523
      %569 = vst.msk [vmem:[#allocation2 + $0x50] sm:$0xff] %vm558, %v525
      %570 = vst.msk [vmem:[#allocation2 + $0x58] sm:$0xff] %vm558, %v527
      %571 = vst.msk [vmem:[#allocation2 + $0x60] sm:$0xff] %vm558, %v529
      %572 = vst.msk [vmem:[#allocation2 + $0x68] sm:$0xff] %vm558, %v531
      %573 = vst.msk [vmem:[#allocation2 + $0x70] sm:$0xff] %vm558, %v533
      %574 = vst.msk [vmem:[#allocation2 + $0x78] sm:$0xff] %vm558, %v535
      %575 = vst.msk [vmem:[#allocation2 + $0x80] sm:$0xff] %vm558, %v537
      %576 = vst.msk [vmem:[#allocation2 + $0x88] sm:$0xff] %vm558, %v539
      %s577 = sadd.s32 %s205, 19
      %s578 = scalar_lea.vmem %s190, %s577
      %v579 = vld [vmem:[%s578] sm:$0xff]
      %v580 = vld [vmem:[%s578 + $0x8] sm:$0xff]
      %v581 = vld [vmem:[%s578 + $0x10] sm:$0xff]
      %v582 = vld [vmem:[%s578 + $0x18] sm:$0xff]
      %v583 = vld [vmem:[%s578 + $0x20] sm:$0xff]
      %v584 = vld [vmem:[%s578 + $0x28] sm:$0xff]
      %v585 = vld [vmem:[%s578 + $0x30] sm:$0xff]
      %v586 = vld [vmem:[%s578 + $0x38] sm:$0xff]
      %v587 = vld [vmem:[%s578 + $0x40] sm:$0xff]
      %v588 = vld [vmem:[%s578 + $0x48] sm:$0xff]
      %v589 = vld [vmem:[%s578 + $0x50] sm:$0xff]
      %v590 = vld [vmem:[%s578 + $0x58] sm:$0xff]
      %v591 = vld [vmem:[%s578 + $0x60] sm:$0xff]
      %v592 = vld [vmem:[%s578 + $0x68] sm:$0xff]
      %v593 = vld [vmem:[%s578 + $0x70] sm:$0xff]
      %v594 = vld [vmem:[%s578 + $0x78] sm:$0xff]
      %v595 = vld [vmem:[%s578 + $0x80] sm:$0xff]
      %v596 = vld [vmem:[%s578 + $0x88] sm:$0xff]
      %615 = vrot.lane.b32.xlu0 %v579, 32
      %v616 = vpop.permute.xlu0 %615
      %617 = vrot.lane.b32.xlu0 %v580, 32
      %v618 = vpop.permute.xlu0 %617
      %619 = vrot.lane.b32.xlu0 %v581, 32
      %v620 = vpop.permute.xlu0 %619
      %621 = vrot.lane.b32.xlu0 %v582, 32
      %v622 = vpop.permute.xlu0 %621
      %623 = vrot.lane.b32.xlu0 %v583, 32
      %v624 = vpop.permute.xlu0 %623
      %625 = vrot.lane.b32.xlu0 %v584, 32
      %v626 = vpop.permute.xlu0 %625
      %627 = vrot.lane.b32.xlu0 %v585, 32
      %v628 = vpop.permute.xlu0 %627
      %629 = vrot.lane.b32.xlu0 %v586, 32
      %v630 = vpop.permute.xlu0 %629
      %631 = vrot.lane.b32.xlu0 %v587, 32
      %v632 = vpop.permute.xlu0 %631
      %633 = vrot.lane.b32.xlu0 %v588, 32
      %v634 = vpop.permute.xlu0 %633
      %635 = vrot.lane.b32.xlu0 %v589, 32
      %v636 = vpop.permute.xlu0 %635
      %637 = vrot.lane.b32.xlu0 %v590, 32
      %v638 = vpop.permute.xlu0 %637
      %639 = vrot.lane.b32.xlu0 %v591, 32
      %v640 = vpop.permute.xlu0 %639
      %641 = vrot.lane.b32.xlu0 %v592, 32
      %v642 = vpop.permute.xlu0 %641
      %643 = vrot.lane.b32.xlu0 %v593, 32
      %v644 = vpop.permute.xlu0 %643
      %645 = vrot.lane.b32.xlu0 %v594, 32
      %v646 = vpop.permute.xlu0 %645
      %647 = vrot.lane.b32.xlu0 %v595, 32
      %v648 = vpop.permute.xlu0 %647
      %649 = vrot.lane.b32.xlu0 %v596, 32
      %v650 = vpop.permute.xlu0 %649
      %vm669 = vcmask 326912
      %670 = vst.msk [vmem:[#allocation2] sm:$0xff] %vm669, %v616
      %671 = vst.msk [vmem:[#allocation2 + $0x8] sm:$0xff] %vm669, %v618
      %672 = vst.msk [vmem:[#allocation2 + $0x10] sm:$0xff] %vm669, %v620
      %673 = vst.msk [vmem:[#allocation2 + $0x18] sm:$0xff] %vm669, %v622
      %674 = vst.msk [vmem:[#allocation2 + $0x20] sm:$0xff] %vm669, %v624
      %675 = vst.msk [vmem:[#allocation2 + $0x28] sm:$0xff] %vm669, %v626
      %676 = vst.msk [vmem:[#allocation2 + $0x30] sm:$0xff] %vm669, %v628
      %677 = vst.msk [vmem:[#allocation2 + $0x38] sm:$0xff] %vm669, %v630
      %678 = vst.msk [vmem:[#allocation2 + $0x40] sm:$0xff] %vm669, %v632
      %679 = vst.msk [vmem:[#allocation2 + $0x48] sm:$0xff] %vm669, %v634
      %680 = vst.msk [vmem:[#allocation2 + $0x50] sm:$0xff] %vm669, %v636
      %681 = vst.msk [vmem:[#allocation2 + $0x58] sm:$0xff] %vm669, %v638
      %682 = vst.msk [vmem:[#allocation2 + $0x60] sm:$0xff] %vm669, %v640
      %683 = vst.msk [vmem:[#allocation2 + $0x68] sm:$0xff] %vm669, %v642
      %684 = vst.msk [vmem:[#allocation2 + $0x70] sm:$0xff] %vm669, %v644
      %685 = vst.msk [vmem:[#allocation2 + $0x78] sm:$0xff] %vm669, %v646
      %686 = vst.msk [vmem:[#allocation2 + $0x80] sm:$0xff] %vm669, %v648
      %687 = vst.msk [vmem:[#allocation2 + $0x88] sm:$0xff] %vm669, %v650
      %s688 = sadd.s32 %s205, 20
      %s689 = scalar_lea.vmem %s190, %s688
      %v690 = vld [vmem:[%s689] sm:$0xff]
      %v691 = vld [vmem:[%s689 + $0x8] sm:$0xff]
      %v692 = vld [vmem:[%s689 + $0x10] sm:$0xff]
      %v693 = vld [vmem:[%s689 + $0x18] sm:$0xff]
      %v694 = vld [vmem:[%s689 + $0x20] sm:$0xff]
      %v695 = vld [vmem:[%s689 + $0x28] sm:$0xff]
      %v696 = vld [vmem:[%s689 + $0x30] sm:$0xff]
      %v697 = vld [vmem:[%s689 + $0x38] sm:$0xff]
      %v698 = vld [vmem:[%s689 + $0x40] sm:$0xff]
      %v699 = vld [vmem:[%s689 + $0x48] sm:$0xff]
      %v700 = vld [vmem:[%s689 + $0x50] sm:$0xff]
      %v701 = vld [vmem:[%s689 + $0x58] sm:$0xff]
      %v702 = vld [vmem:[%s689 + $0x60] sm:$0xff]
      %v703 = vld [vmem:[%s689 + $0x68] sm:$0xff]
      %v704 = vld [vmem:[%s689 + $0x70] sm:$0xff]
      %v705 = vld [vmem:[%s689 + $0x78] sm:$0xff]
      %v706 = vld [vmem:[%s689 + $0x80] sm:$0xff]
      %v707 = vld [vmem:[%s689 + $0x88] sm:$0xff]
      %726 = vrot.lane.b32.xlu0 %v690, 40
      %v727 = vpop.permute.xlu0 %726
      %728 = vrot.lane.b32.xlu0 %v691, 40
      %v729 = vpop.permute.xlu0 %728
      %730 = vrot.lane.b32.xlu0 %v692, 40
      %v731 = vpop.permute.xlu0 %730
      %732 = vrot.lane.b32.xlu0 %v693, 40
      %v733 = vpop.permute.xlu0 %732
      %734 = vrot.lane.b32.xlu0 %v694, 40
      %v735 = vpop.permute.xlu0 %734
      %736 = vrot.lane.b32.xlu0 %v695, 40
      %v737 = vpop.permute.xlu0 %736
      %738 = vrot.lane.b32.xlu0 %v696, 40
      %v739 = vpop.permute.xlu0 %738
      %740 = vrot.lane.b32.xlu0 %v697, 40
      %v741 = vpop.permute.xlu0 %740
      %742 = vrot.lane.b32.xlu0 %v698, 40
      %v743 = vpop.permute.xlu0 %742
      %744 = vrot.lane.b32.xlu0 %v699, 40
      %v745 = vpop.permute.xlu0 %744
      %746 = vrot.lane.b32.xlu0 %v700, 40
      %v747 = vpop.permute.xlu0 %746
      %748 = vrot.lane.b32.xlu0 %v701, 40
      %v749 = vpop.permute.xlu0 %748
      %750 = vrot.lane.b32.xlu0 %v702, 40
      %v751 = vpop.permute.xlu0 %750
      %752 = vrot.lane.b32.xlu0 %v703, 40
      %v753 = vpop.permute.xlu0 %752
      %754 = vrot.lane.b32.xlu0 %v704, 40
      %v755 = vpop.permute.xlu0 %754
      %756 = vrot.lane.b32.xlu0 %v705, 40
      %v757 = vpop.permute.xlu0 %756
      %758 = vrot.lane.b32.xlu0 %v706, 40
      %v759 = vpop.permute.xlu0 %758
      %760 = vrot.lane.b32.xlu0 %v707, 40
      %v761 = vpop.permute.xlu0 %760
      %vm780 = vcmask 392512
      %781 = vst.msk [vmem:[#allocation2] sm:$0xff] %vm780, %v727
      %782 = vst.msk [vmem:[#allocation2 + $0x8] sm:$0xff] %vm780, %v729
      %783 = vst.msk [vmem:[#allocation2 + $0x10] sm:$0xff] %vm780, %v731
      %784 = vst.msk [vmem:[#allocation2 + $0x18] sm:$0xff] %vm780, %v733
      %785 = vst.msk [vmem:[#allocation2 + $0x20] sm:$0xff] %vm780, %v735
      %786 = vst.msk [vmem:[#allocation2 + $0x28] sm:$0xff] %vm780, %v737
      %787 = vst.msk [vmem:[#allocation2 + $0x30] sm:$0xff] %vm780, %v739
      %788 = vst.msk [vmem:[#allocation2 + $0x38] sm:$0xff] %vm780, %v741
      %789 = vst.msk [vmem:[#allocation2 + $0x40] sm:$0xff] %vm780, %v743
      %790 = vst.msk [vmem:[#allocation2 + $0x48] sm:$0xff] %vm780, %v745
      %791 = vst.msk [vmem:[#allocation2 + $0x50] sm:$0xff] %vm780, %v747
      %792 = vst.msk [vmem:[#allocation2 + $0x58] sm:$0xff] %vm780, %v749
      %793 = vst.msk [vmem:[#allocation2 + $0x60] sm:$0xff] %vm780, %v751
      %794 = vst.msk [vmem:[#allocation2 + $0x68] sm:$0xff] %vm780, %v753
      %795 = vst.msk [vmem:[#allocation2 + $0x70] sm:$0xff] %vm780, %v755
      %796 = vst.msk [vmem:[#allocation2 + $0x78] sm:$0xff] %vm780, %v757
      %797 = vst.msk [vmem:[#allocation2 + $0x80] sm:$0xff] %vm780, %v759
      %798 = vst.msk [vmem:[#allocation2 + $0x88] sm:$0xff] %vm780, %v761
      %s799 = sadd.s32 %s205, 36
      %s800 = scalar_lea.vmem %s190, %s799
      %v801 = vld [vmem:[%s800] sm:$0xff]
      %v802 = vld [vmem:[%s800 + $0x8] sm:$0xff]
      %v803 = vld [vmem:[%s800 + $0x10] sm:$0xff]
      %v804 = vld [vmem:[%s800 + $0x18] sm:$0xff]
      %v805 = vld [vmem:[%s800 + $0x20] sm:$0xff]
      %v806 = vld [vmem:[%s800 + $0x28] sm:$0xff]
      %v807 = vld [vmem:[%s800 + $0x30] sm:$0xff]
      %v808 = vld [vmem:[%s800 + $0x38] sm:$0xff]
      %v809 = vld [vmem:[%s800 + $0x40] sm:$0xff]
      %v810 = vld [vmem:[%s800 + $0x48] sm:$0xff]
      %v811 = vld [vmem:[%s800 + $0x50] sm:$0xff]
      %v812 = vld [vmem:[%s800 + $0x58] sm:$0xff]
      %v813 = vld [vmem:[%s800 + $0x60] sm:$0xff]
      %v814 = vld [vmem:[%s800 + $0x68] sm:$0xff]
      %v815 = vld [vmem:[%s800 + $0x70] sm:$0xff]
      %v816 = vld [vmem:[%s800 + $0x78] sm:$0xff]
      %v817 = vld [vmem:[%s800 + $0x80] sm:$0xff]
      %v818 = vld [vmem:[%s800 + $0x88] sm:$0xff]
      %837 = vrot.lane.b32.xlu0 %v801, 48
      %v838 = vpop.permute.xlu0 %837
      %839 = vrot.lane.b32.xlu0 %v802, 48
      %v840 = vpop.permute.xlu0 %839
      %841 = vrot.lane.b32.xlu0 %v803, 48
      %v842 = vpop.permute.xlu0 %841
      %843 = vrot.lane.b32.xlu0 %v804, 48
      %v844 = vpop.permute.xlu0 %843
      %845 = vrot.lane.b32.xlu0 %v805, 48
      %v846 = vpop.permute.xlu0 %845
      %847 = vrot.lane.b32.xlu0 %v806, 48
      %v848 = vpop.permute.xlu0 %847
      %849 = vrot.lane.b32.xlu0 %v807, 48
      %v850 = vpop.permute.xlu0 %849
      %851 = vrot.lane.b32.xlu0 %v808, 48
      %v852 = vpop.permute.xlu0 %851
      %853 = vrot.lane.b32.xlu0 %v809, 48
      %v854 = vpop.permute.xlu0 %853
      %855 = vrot.lane.b32.xlu0 %v810, 48
      %v856 = vpop.permute.xlu0 %855
      %857 = vrot.lane.b32.xlu0 %v811, 48
      %v858 = vpop.permute.xlu0 %857
      %859 = vrot.lane.b32.xlu0 %v812, 48
      %v860 = vpop.permute.xlu0 %859
      %861 = vrot.lane.b32.xlu0 %v813, 48
      %v862 = vpop.permute.xlu0 %861
      %863 = vrot.lane.b32.xlu0 %v814, 48
      %v864 = vpop.permute.xlu0 %863
      %865 = vrot.lane.b32.xlu0 %v815, 48
      %v866 = vpop.permute.xlu0 %865
      %867 = vrot.lane.b32.xlu0 %v816, 48
      %v868 = vpop.permute.xlu0 %867
      %869 = vrot.lane.b32.xlu0 %v817, 48
      %v870 = vpop.permute.xlu0 %869
      %871 = vrot.lane.b32.xlu0 %v818, 48
      %v872 = vpop.permute.xlu0 %871
      %vm891 = vcmask 458112
      %892 = vst.msk [vmem:[#allocation2] sm:$0xff] %vm891, %v838
      %893 = vst.msk [vmem:[#allocation2 + $0x8] sm:$0xff] %vm891, %v840
      %894 = vst.msk [vmem:[#allocation2 + $0x10] sm:$0xff] %vm891, %v842
      %895 = vst.msk [vmem:[#allocation2 + $0x18] sm:$0xff] %vm891, %v844
      %896 = vst.msk [vmem:[#allocation2 + $0x20] sm:$0xff] %vm891, %v846
      %897 = vst.msk [vmem:[#allocation2 + $0x28] sm:$0xff] %vm891, %v848
      %898 = vst.msk [vmem:[#allocation2 + $0x30] sm:$0xff] %vm891, %v850
      %899 = vst.msk [vmem:[#allocation2 + $0x38] sm:$0xff] %vm891, %v852
      %900 = vst.msk [vmem:[#allocation2 + $0x40] sm:$0xff] %vm891, %v854
      %901 = vst.msk [vmem:[#allocation2 + $0x48] sm:$0xff] %vm891, %v856
      %902 = vst.msk [vmem:[#allocation2 + $0x50] sm:$0xff] %vm891, %v858
      %903 = vst.msk [vmem:[#allocation2 + $0x58] sm:$0xff] %vm891, %v860
      %904 = vst.msk [vmem:[#allocation2 + $0x60] sm:$0xff] %vm891, %v862
      %905 = vst.msk [vmem:[#allocation2 + $0x68] sm:$0xff] %vm891, %v864
      %906 = vst.msk [vmem:[#allocation2 + $0x70] sm:$0xff] %vm891, %v866
      %907 = vst.msk [vmem:[#allocation2 + $0x78] sm:$0xff] %vm891, %v868
      %908 = vst.msk [vmem:[#allocation2 + $0x80] sm:$0xff] %vm891, %v870
      %909 = vst.msk [vmem:[#allocation2 + $0x88] sm:$0xff] %vm891, %v872
      %s910 = sadd.s32 %s205, 37
      %s911 = scalar_lea.vmem %s190, %s910
      %v912 = vld [vmem:[%s911] sm:$0xff]
      %v913 = vld [vmem:[%s911 + $0x8] sm:$0xff]
      %v914 = vld [vmem:[%s911 + $0x10] sm:$0xff]
      %v915 = vld [vmem:[%s911 + $0x18] sm:$0xff]
      %v916 = vld [vmem:[%s911 + $0x20] sm:$0xff]
      %v917 = vld [vmem:[%s911 + $0x28] sm:$0xff]
      %v918 = vld [vmem:[%s911 + $0x30] sm:$0xff]
      %v919 = vld [vmem:[%s911 + $0x38] sm:$0xff]
      %v920 = vld [vmem:[%s911 + $0x40] sm:$0xff]
      %v921 = vld [vmem:[%s911 + $0x48] sm:$0xff]
      %v922 = vld [vmem:[%s911 + $0x50] sm:$0xff]
      %v923 = vld [vmem:[%s911 + $0x58] sm:$0xff]
      %v924 = vld [vmem:[%s911 + $0x60] sm:$0xff]
      %v925 = vld [vmem:[%s911 + $0x68] sm:$0xff]
      %v926 = vld [vmem:[%s911 + $0x70] sm:$0xff]
      %v927 = vld [vmem:[%s911 + $0x78] sm:$0xff]
      %v928 = vld [vmem:[%s911 + $0x80] sm:$0xff]
      %v929 = vld [vmem:[%s911 + $0x88] sm:$0xff]
      %948 = vrot.lane.b32.xlu0 %v912, 56
      %v949 = vpop.permute.xlu0 %948
      %950 = vrot.lane.b32.xlu0 %v913, 56
      %v951 = vpop.permute.xlu0 %950
      %952 = vrot.lane.b32.xlu0 %v914, 56
      %v953 = vpop.permute.xlu0 %952
      %954 = vrot.lane.b32.xlu0 %v915, 56
      %v955 = vpop.permute.xlu0 %954
      %956 = vrot.lane.b32.xlu0 %v916, 56
      %v957 = vpop.permute.xlu0 %956
      %958 = vrot.lane.b32.xlu0 %v917, 56
      %v959 = vpop.permute.xlu0 %958
      %960 = vrot.lane.b32.xlu0 %v918, 56
      %v961 = vpop.permute.xlu0 %960
      %962 = vrot.lane.b32.xlu0 %v919, 56
      %v963 = vpop.permute.xlu0 %962
      %964 = vrot.lane.b32.xlu0 %v920, 56
      %v965 = vpop.permute.xlu0 %964
      %966 = vrot.lane.b32.xlu0 %v921, 56
      %v967 = vpop.permute.xlu0 %966
      %968 = vrot.lane.b32.xlu0 %v922, 56
      %v969 = vpop.permute.xlu0 %968
      %970 = vrot.lane.b32.xlu0 %v923, 56
      %v971 = vpop.permute.xlu0 %970
      %972 = vrot.lane.b32.xlu0 %v924, 56
      %v973 = vpop.permute.xlu0 %972
      %974 = vrot.lane.b32.xlu0 %v925, 56
      %v975 = vpop.permute.xlu0 %974
      %976 = vrot.lane.b32.xlu0 %v926, 56
      %v977 = vpop.permute.xlu0 %976
      %978 = vrot.lane.b32.xlu0 %v927, 56
      %v979 = vpop.permute.xlu0 %978
      %980 = vrot.lane.b32.xlu0 %v928, 56
      %v981 = vpop.permute.xlu0 %980
      %982 = vrot.lane.b32.xlu0 %v929, 56
      %v983 = vpop.permute.xlu0 %982
      %vm1002 = vcmask 523712
      %1003 = vst.msk [vmem:[#allocation2] sm:$0xff] %vm1002, %v949
      %1004 = vst.msk [vmem:[#allocation2 + $0x8] sm:$0xff] %vm1002, %v951
      %1005 = vst.msk [vmem:[#allocation2 + $0x10] sm:$0xff] %vm1002, %v953
      %1006 = vst.msk [vmem:[#allocation2 + $0x18] sm:$0xff] %vm1002, %v955
      %1007 = vst.msk [vmem:[#allocation2 + $0x20] sm:$0xff] %vm1002, %v957
      %1008 = vst.msk [vmem:[#allocation2 + $0x28] sm:$0xff] %vm1002, %v959
      %1009 = vst.msk [vmem:[#allocation2 + $0x30] sm:$0xff] %vm1002, %v961
      %1010 = vst.msk [vmem:[#allocation2 + $0x38] sm:$0xff] %vm1002, %v963
      %1011 = vst.msk [vmem:[#allocation2 + $0x40] sm:$0xff] %vm1002, %v965
      %1012 = vst.msk [vmem:[#allocation2 + $0x48] sm:$0xff] %vm1002, %v967
      %1013 = vst.msk [vmem:[#allocation2 + $0x50] sm:$0xff] %vm1002, %v969
      %1014 = vst.msk [vmem:[#allocation2 + $0x58] sm:$0xff] %vm1002, %v971
      %1015 = vst.msk [vmem:[#allocation2 + $0x60] sm:$0xff] %vm1002, %v973
      %1016 = vst.msk [vmem:[#allocation2 + $0x68] sm:$0xff] %vm1002, %v975
      %1017 = vst.msk [vmem:[#allocation2 + $0x70] sm:$0xff] %vm1002, %v977
      %1018 = vst.msk [vmem:[#allocation2 + $0x78] sm:$0xff] %vm1002, %v979
      %1019 = vst.msk [vmem:[#allocation2 + $0x80] sm:$0xff] %vm1002, %v981
      %1020 = vst.msk [vmem:[#allocation2 + $0x88] sm:$0xff] %vm1002, %v983
      %s1021 = sadd.s32 %s205, 38
      %s1022 = scalar_lea.vmem %s190, %s1021
      %v1023 = vld [vmem:[%s1022] sm:$0xff]
      %v1024 = vld [vmem:[%s1022 + $0x8] sm:$0xff]
      %v1025 = vld [vmem:[%s1022 + $0x10] sm:$0xff]
      %v1026 = vld [vmem:[%s1022 + $0x18] sm:$0xff]
      %v1027 = vld [vmem:[%s1022 + $0x20] sm:$0xff]
      %v1028 = vld [vmem:[%s1022 + $0x28] sm:$0xff]
      %v1029 = vld [vmem:[%s1022 + $0x30] sm:$0xff]
      %v1030 = vld [vmem:[%s1022 + $0x38] sm:$0xff]
      %v1031 = vld [vmem:[%s1022 + $0x40] sm:$0xff]
      %v1032 = vld [vmem:[%s1022 + $0x48] sm:$0xff]
      %v1033 = vld [vmem:[%s1022 + $0x50] sm:$0xff]
      %v1034 = vld [vmem:[%s1022 + $0x58] sm:$0xff]
      %v1035 = vld [vmem:[%s1022 + $0x60] sm:$0xff]
      %v1036 = vld [vmem:[%s1022 + $0x68] sm:$0xff]
      %v1037 = vld [vmem:[%s1022 + $0x70] sm:$0xff]
      %v1038 = vld [vmem:[%s1022 + $0x78] sm:$0xff]
      %v1039 = vld [vmem:[%s1022 + $0x80] sm:$0xff]
      %v1040 = vld [vmem:[%s1022 + $0x88] sm:$0xff]
      %1059 = vrot.lane.b32.xlu0 %v1023, 64
      %v1060 = vpop.permute.xlu0 %1059
      %1061 = vrot.lane.b32.xlu0 %v1024, 64
      %v1062 = vpop.permute.xlu0 %1061
      %1063 = vrot.lane.b32.xlu0 %v1025, 64
      %v1064 = vpop.permute.xlu0 %1063
      %1065 = vrot.lane.b32.xlu0 %v1026, 64
      %v1066 = vpop.permute.xlu0 %1065
      %1067 = vrot.lane.b32.xlu0 %v1027, 64
      %v1068 = vpop.permute.xlu0 %1067
      %1069 = vrot.lane.b32.xlu0 %v1028, 64
      %v1070 = vpop.permute.xlu0 %1069
      %1071 = vrot.lane.b32.xlu0 %v1029, 64
      %v1072 = vpop.permute.xlu0 %1071
      %1073 = vrot.lane.b32.xlu0 %v1030, 64
      %v1074 = vpop.permute.xlu0 %1073
      %1075 = vrot.lane.b32.xlu0 %v1031, 64
      %v1076 = vpop.permute.xlu0 %1075
      %1077 = vrot.lane.b32.xlu0 %v1032, 64
      %v1078 = vpop.permute.xlu0 %1077
      %1079 = vrot.lane.b32.xlu0 %v1033, 64
      %v1080 = vpop.permute.xlu0 %1079
      %1081 = vrot.lane.b32.xlu0 %v1034, 64
      %v1082 = vpop.permute.xlu0 %1081
      %1083 = vrot.lane.b32.xlu0 %v1035, 64
      %v1084 = vpop.permute.xlu0 %1083
      %1085 = vrot.lane.b32.xlu0 %v1036, 64
      %v1086 = vpop.permute.xlu0 %1085
      %1087 = vrot.lane.b32.xlu0 %v1037, 64
      %v1088 = vpop.permute.xlu0 %1087
      %1089 = vrot.lane.b32.xlu0 %v1038, 64
      %v1090 = vpop.permute.xlu0 %1089
      %1091 = vrot.lane.b32.xlu0 %v1039, 64
      %v1092 = vpop.permute.xlu0 %1091
      %1093 = vrot.lane.b32.xlu0 %v1040, 64
      %v1094 = vpop.permute.xlu0 %1093
      %vm1113 = vcmask 589312
      %1114 = vst.msk [vmem:[#allocation2] sm:$0xff] %vm1113, %v1060
      %1115 = vst.msk [vmem:[#allocation2 + $0x8] sm:$0xff] %vm1113, %v1062
      %1116 = vst.msk [vmem:[#allocation2 + $0x10] sm:$0xff] %vm1113, %v1064
      %1117 = vst.msk [vmem:[#allocation2 + $0x18] sm:$0xff] %vm1113, %v1066
      %1118 = vst.msk [vmem:[#allocation2 + $0x20] sm:$0xff] %vm1113, %v1068
      %1119 = vst.msk [vmem:[#allocation2 + $0x28] sm:$0xff] %vm1113, %v1070
      %1120 = vst.msk [vmem:[#allocation2 + $0x30] sm:$0xff] %vm1113, %v1072
      %1121 = vst.msk [vmem:[#allocation2 + $0x38] sm:$0xff] %vm1113, %v1074
      %1122 = vst.msk [vmem:[#allocation2 + $0x40] sm:$0xff] %vm1113, %v1076
      %1123 = vst.msk [vmem:[#allocation2 + $0x48] sm:$0xff] %vm1113, %v1078
      %1124 = vst.msk [vmem:[#allocation2 + $0x50] sm:$0xff] %vm1113, %v1080
      %1125 = vst.msk [vmem:[#allocation2 + $0x58] sm:$0xff] %vm1113, %v1082
      %1126 = vst.msk [vmem:[#allocation2 + $0x60] sm:$0xff] %vm1113, %v1084
      %1127 = vst.msk [vmem:[#allocation2 + $0x68] sm:$0xff] %vm1113, %v1086
      %1128 = vst.msk [vmem:[#allocation2 + $0x70] sm:$0xff] %vm1113, %v1088
      %1129 = vst.msk [vmem:[#allocation2 + $0x78] sm:$0xff] %vm1113, %v1090
      %1130 = vst.msk [vmem:[#allocation2 + $0x80] sm:$0xff] %vm1113, %v1092
      %1131 = vst.msk [vmem:[#allocation2 + $0x88] sm:$0xff] %vm1113, %v1094
      %v1132 = vld [vmem:[#allocation2] sm:$0xff]
      %v1133 = vld [vmem:[#allocation2 + $0x8] sm:$0xff]
      %v1134 = vld [vmem:[#allocation2 + $0x10] sm:$0xff]
      %v1135 = vld [vmem:[#allocation2 + $0x18] sm:$0xff]
      %v1136 = vld [vmem:[#allocation2 + $0x20] sm:$0xff]
      %v1137 = vld [vmem:[#allocation2 + $0x28] sm:$0xff]
      %v1138 = vld [vmem:[#allocation2 + $0x30] sm:$0xff]
      %v1139 = vld [vmem:[#allocation2 + $0x38] sm:$0xff]
      %v1140 = vld [vmem:[#allocation2 + $0x40] sm:$0xff]
      %v1141 = vld [vmem:[#allocation2 + $0x48] sm:$0xff]
      %v1142 = vld [vmem:[#allocation2 + $0x50] sm:$0xff]
      %v1143 = vld [vmem:[#allocation2 + $0x58] sm:$0xff]
      %v1144 = vld [vmem:[#allocation2 + $0x60] sm:$0xff]
      %v1145 = vld [vmem:[#allocation2 + $0x68] sm:$0xff]
      %v1146 = vld [vmem:[#allocation2 + $0x70] sm:$0xff]
      %v1147 = vld [vmem:[#allocation2 + $0x78] sm:$0xff]
      %v1148 = vld [vmem:[#allocation2 + $0x80] sm:$0xff]
      %v1149 = vld [vmem:[#allocation2 + $0x88] sm:$0xff]
      %v1150 = vld [vmem:[%s1] sm:$0xff]
      %v1151 = vld [vmem:[%s1 + $0x8] sm:$0xff]
      %v1152 = vld [vmem:[%s1 + $0x10] sm:$0xff]
      %v1153 = vld [vmem:[%s1 + $0x18] sm:$0xff]
      %v1154 = vld [vmem:[%s1 + $0x20] sm:$0xff]
      %v1155 = vld [vmem:[%s1 + $0x28] sm:$0xff]
      %v1156 = vld [vmem:[%s1 + $0x30] sm:$0xff]
      %v1157 = vld [vmem:[%s1 + $0x38] sm:$0xff]
      %v1158 = vld [vmem:[%s1 + $0x40] sm:$0xff]
      %vm1159 = vcmask 588800
      %v1161 = vsel %vm1159, %v1132, 0
      %v1164 = vsel %vm1159, %v1133, 0
      %v1167 = vsel %vm1159, %v1134, 0
      %v1170 = vsel %vm1159, %v1135, 0
      %v1173 = vsel %vm1159, %v1136, 0
      %v1176 = vsel %vm1159, %v1137, 0
      %v1179 = vsel %vm1159, %v1138, 0
      %v1182 = vsel %vm1159, %v1139, 0
      %v1185 = vsel %vm1159, %v1140, 0
      %v1188 = vsel %vm1159, %v1141, 0
      %v1191 = vsel %vm1159, %v1142, 0
      %v1194 = vsel %vm1159, %v1143, 0
      %v1197 = vsel %vm1159, %v1144, 0
      %v1200 = vsel %vm1159, %v1145, 0
      %v1203 = vsel %vm1159, %v1146, 0
      %v1206 = vsel %vm1159, %v1147, 0
      %v1209 = vsel %vm1159, %v1148, 0
      %v1212 = vsel %vm1159, %v1149, 0
      %1214 = vmatpush.msra.mxu0 0.0
      %1215 = vmatpush.msra.mxu0 0.0
      %1216 = vmatpush.msra.mxu0 0.0
      %1217 = vmatpush.msra.mxu0 0.0
      %1218 = vmatpush.msra.mxu0 0.0
      %1219 = vmatpush.msra.mxu0 0.0
      %1220 = vmatpush.msra.mxu0 0.0
      %1221 = vmatpush.msra.mxu0 %v1158
      %1222 = vmatpush.msra.mxu0 %v1157
      %1223 = vmatpush.msra.mxu0 %v1156
      %1224 = vmatpush.msra.mxu0 %v1155
      %1225 = vmatpush.msra.mxu0 %v1154
      %1226 = vmatpush.msra.mxu0 %v1153
      %1227 = vmatpush.msra.mxu0 %v1152
      %1228 = vmatpush.msra.mxu0 %v1151
      %1229 = vmatpush.msra.mxu0 %v1150
      %1230 = vmatmul.f32.gmra.mxu0 %v1161
      %v1231 = vpop.f32.mrf.mxu0
      %v1232 = vadd.f32 0.0, %v1231
      %1233 = vmatmul.f32.gmra.mxu0 %v1164
      %v1234 = vpop.f32.mrf.mxu0
      %v1235 = vadd.f32 0.0, %v1234
      %1236 = vmatmul.f32.gmra.mxu0 %v1167
      %v1237 = vpop.f32.mrf.mxu0
      %v1238 = vadd.f32 0.0, %v1237
      %1239 = vmatmul.f32.gmra.mxu0 %v1170
      %v1240 = vpop.f32.mrf.mxu0
      %v1241 = vadd.f32 0.0, %v1240
      %1242 = vmatmul.f32.gmra.mxu0 %v1173
      %v1243 = vpop.f32.mrf.mxu0
      %v1244 = vadd.f32 0.0, %v1243
      %1245 = vmatmul.f32.gmra.mxu0 %v1176
      %v1246 = vpop.f32.mrf.mxu0
      %v1247 = vadd.f32 0.0, %v1246
      %1248 = vmatmul.f32.gmra.mxu0 %v1179
      %v1249 = vpop.f32.mrf.mxu0
      %v1250 = vadd.f32 0.0, %v1249
      %1251 = vmatmul.f32.gmra.mxu0 %v1182
      %v1252 = vpop.f32.mrf.mxu0
      %v1253 = vadd.f32 0.0, %v1252
      %1254 = vmatmul.f32.gmra.mxu0 %v1185
      %v1255 = vpop.f32.mrf.mxu0
      %v1256 = vadd.f32 0.0, %v1255
      %1257 = vmatmul.f32.gmra.mxu0 %v1188
      %v1258 = vpop.f32.mrf.mxu0
      %v1259 = vadd.f32 0.0, %v1258
      %1260 = vmatmul.f32.gmra.mxu0 %v1191
      %v1261 = vpop.f32.mrf.mxu0
      %v1262 = vadd.f32 0.0, %v1261
      %1263 = vmatmul.f32.gmra.mxu0 %v1194
      %v1264 = vpop.f32.mrf.mxu0
      %v1265 = vadd.f32 0.0, %v1264
      %1266 = vmatmul.f32.gmra.mxu0 %v1197
      %v1267 = vpop.f32.mrf.mxu0
      %v1268 = vadd.f32 0.0, %v1267
      %1269 = vmatmul.f32.gmra.mxu0 %v1200
      %v1270 = vpop.f32.mrf.mxu0
      %v1271 = vadd.f32 0.0, %v1270
      %1272 = vmatmul.f32.gmra.mxu0 %v1203
      %v1273 = vpop.f32.mrf.mxu0
      %v1274 = vadd.f32 0.0, %v1273
      %1275 = vmatmul.f32.gmra.mxu0 %v1206
      %v1276 = vpop.f32.mrf.mxu0
      %v1277 = vadd.f32 0.0, %v1276
      %1278 = vmatmul.f32.gmra.mxu0 %v1209
      %v1279 = vpop.f32.mrf.mxu0
      %v1280 = vadd.f32 0.0, %v1279
      %1281 = vmatmul.f32.gmra.mxu0 %v1212
      %v1282 = vpop.f32.mrf.mxu0
      %v1283 = vadd.f32 0.0, %v1282
      %1284 = vdwg.mxu0
      %1285 = vst [vmem:[%s199] sm:$0xff] %v1232
      %1286 = vst [vmem:[%s199 + $0x8] sm:$0xff] %v1235
      %1287 = vst [vmem:[%s199 + $0x10] sm:$0xff] %v1238
      %1288 = vst [vmem:[%s199 + $0x18] sm:$0xff] %v1241
      %1289 = vst [vmem:[%s199 + $0x20] sm:$0xff] %v1244
      %1290 = vst [vmem:[%s199 + $0x28] sm:$0xff] %v1247
      %1291 = vst [vmem:[%s199 + $0x30] sm:$0xff] %v1250
      %1292 = vst [vmem:[%s199 + $0x38] sm:$0xff] %v1253
      %1293 = vst [vmem:[%s199 + $0x40] sm:$0xff] %v1256
      %1294 = vst [vmem:[%s199 + $0x48] sm:$0xff] %v1259
      %1295 = vst [vmem:[%s199 + $0x50] sm:$0xff] %v1262
      %1296 = vst [vmem:[%s199 + $0x58] sm:$0xff] %v1265
      %1297 = vst [vmem:[%s199 + $0x60] sm:$0xff] %v1268
      %1298 = vst [vmem:[%s199 + $0x68] sm:$0xff] %v1271
      %1299 = vst [vmem:[%s199 + $0x70] sm:$0xff] %v1274
      %1300 = vst [vmem:[%s199 + $0x78] sm:$0xff] %v1277
      %1301 = vst [vmem:[%s199 + $0x80] sm:$0xff] %v1280
      %1302 = vst [vmem:[%s199 + $0x88] sm:$0xff] %v1283
      %v1303 = vlaneseq
      %v1304 = vshrl.u32 %v1303, 7
      %v1305 = vadd.s32 %v1304, 8
      %v1306 = vadd.s32 %v1304, 16
      %v1307 = vadd.s32 %v1304, 24
      %v1308 = vadd.s32 %v1304, 32
      %v1309 = vadd.s32 %v1304, 40
      %v1310 = vadd.s32 %v1304, 48
      %v1311 = vadd.s32 %v1304, 56
      %v1312 = vadd.s32 %v1304, 64
      %v1313 = vadd.s32 %v1304, 72
      %v1314 = vadd.s32 %v1304, 80
      %v1315 = vadd.s32 %v1304, 88
      %v1316 = vadd.s32 %v1304, 96
      %v1317 = vadd.s32 %v1304, 104
      %v1318 = vadd.s32 %v1304, 112
      %v1319 = vadd.s32 %v1304, 120
      %v1320 = vadd.s32 %v1304, 128
      %v1321 = vadd.s32 %v1304, 136
      %vm1322 = vcmp.lt.s32.totalorder %v1304, 0
      %v1323 = vsub.s32 0, %v1304
      %v1324 = vsel %vm1322, %v1323, %v1304
      %v1325 = vand.u32 %v1324, 65535
      %v1326 = vshrl.u32 %v1324, 16
      %v1328 = vmul.u32 %v1325, 14564
      %v1329 = vmul.u32 %v1325, 58254
      %v1330 = vmul.u32 %v1326, 14564
      %v1331 = vmul.u32 %v1326, 58254
      %v1332 = vshll.u32 %v1329, 16
      %v1333 = vshrl.u32 %v1329, 16
      %v1334 = vshll.u32 %v1330, 16
      %v1335 = vshrl.u32 %v1330, 16
      %vm1336 = vc.u32 %v1328, %v1332
      %v1337 = vsel %vm1336, 1, 0
      %v1338 = vadd.s32 %v1328, %v1332
      %v1339 = vadd.s32 %v1331, %v1337
      %vm1340 = vc.u32 %v1338, %v1334
      %v1341 = vsel %vm1340, 1, 0
      %v1342 = vadd.s32 %v1338, %v1334
      %v1343 = vadd.s32 %v1339, %v1341
      %v1344 = vadd.s32 %v1343, %v1333
      %v1345 = vadd.s32 %v1344, %v1335
      %v1346 = vshrl.u32 %v1345, 4
      %v1347 = vmul.u32 %v1346, 18
      %v1348 = vsub.s32 %v1324, %v1347
      %v1349 = vsub.s32 0, %v1348
      %v1350 = vsel %vm1322, %v1349, %v1348
      %vm1351 = vcmp.lt.s32.totalorder %v1305, 0
      %v1352 = vsub.s32 0, %v1305
      %v1353 = vsel %vm1351, %v1352, %v1305
      %v1354 = vand.u32 %v1353, 65535
      %v1355 = vshrl.u32 %v1353, 16
      %v1357 = vmul.u32 %v1354, 14564
      %v1358 = vmul.u32 %v1354, 58254
      %v1359 = vmul.u32 %v1355, 14564
      %v1360 = vmul.u32 %v1355, 58254
      %v1361 = vshll.u32 %v1358, 16
      %v1362 = vshrl.u32 %v1358, 16
      %v1363 = vshll.u32 %v1359, 16
      %v1364 = vshrl.u32 %v1359, 16
      %vm1365 = vc.u32 %v1357, %v1361
      %v1366 = vsel %vm1365, 1, 0
      %v1367 = vadd.s32 %v1357, %v1361
      %v1368 = vadd.s32 %v1360, %v1366
      %vm1369 = vc.u32 %v1367, %v1363
      %v1370 = vsel %vm1369, 1, 0
      %v1371 = vadd.s32 %v1367, %v1363
      %v1372 = vadd.s32 %v1368, %v1370
      %v1373 = vadd.s32 %v1372, %v1362
      %v1374 = vadd.s32 %v1373, %v1364
      %v1375 = vshrl.u32 %v1374, 4
      %v1376 = vmul.u32 %v1375, 18
      %v1377 = vsub.s32 %v1353, %v1376
      %v1378 = vsub.s32 0, %v1377
      %v1379 = vsel %vm1351, %v1378, %v1377
      %vm1380 = vcmp.lt.s32.totalorder %v1306, 0
      %v1381 = vsub.s32 0, %v1306
      %v1382 = vsel %vm1380, %v1381, %v1306
      %v1383 = vand.u32 %v1382, 65535
      %v1384 = vshrl.u32 %v1382, 16
      %v1386 = vmul.u32 %v1383, 14564
      %v1387 = vmul.u32 %v1383, 58254
      %v1388 = vmul.u32 %v1384, 14564
      %v1389 = vmul.u32 %v1384, 58254
      %v1390 = vshll.u32 %v1387, 16
      %v1391 = vshrl.u32 %v1387, 16
      %v1392 = vshll.u32 %v1388, 16
      %v1393 = vshrl.u32 %v1388, 16
      %vm1394 = vc.u32 %v1386, %v1390
      %v1395 = vsel %vm1394, 1, 0
      %v1396 = vadd.s32 %v1386, %v1390
      %v1397 = vadd.s32 %v1389, %v1395
      %vm1398 = vc.u32 %v1396, %v1392
      %v1399 = vsel %vm1398, 1, 0
      %v1400 = vadd.s32 %v1396, %v1392
      %v1401 = vadd.s32 %v1397, %v1399
      %v1402 = vadd.s32 %v1401, %v1391
      %v1403 = vadd.s32 %v1402, %v1393
      %v1404 = vshrl.u32 %v1403, 4
      %v1405 = vmul.u32 %v1404, 18
      %v1406 = vsub.s32 %v1382, %v1405
      %v1407 = vsub.s32 0, %v1406
      %v1408 = vsel %vm1380, %v1407, %v1406
      %vm1409 = vcmp.lt.s32.totalorder %v1307, 0
      %v1410 = vsub.s32 0, %v1307
      %v1411 = vsel %vm1409, %v1410, %v1307
      %v1412 = vand.u32 %v1411, 65535
      %v1413 = vshrl.u32 %v1411, 16
      %v1415 = vmul.u32 %v1412, 14564
      %v1416 = vmul.u32 %v1412, 58254
      %v1417 = vmul.u32 %v1413, 14564
      %v1418 = vmul.u32 %v1413, 58254
      %v1419 = vshll.u32 %v1416, 16
      %v1420 = vshrl.u32 %v1416, 16
      %v1421 = vshll.u32 %v1417, 16
      %v1422 = vshrl.u32 %v1417, 16
      %vm1423 = vc.u32 %v1415, %v1419
      %v1424 = vsel %vm1423, 1, 0
      %v1425 = vadd.s32 %v1415, %v1419
      %v1426 = vadd.s32 %v1418, %v1424
      %vm1427 = vc.u32 %v1425, %v1421
      %v1428 = vsel %vm1427, 1, 0
      %v1429 = vadd.s32 %v1425, %v1421
      %v1430 = vadd.s32 %v1426, %v1428
      %v1431 = vadd.s32 %v1430, %v1420
      %v1432 = vadd.s32 %v1431, %v1422
      %v1433 = vshrl.u32 %v1432, 4
      %v1434 = vmul.u32 %v1433, 18
      %v1435 = vsub.s32 %v1411, %v1434
      %v1436 = vsub.s32 0, %v1435
      %v1437 = vsel %vm1409, %v1436, %v1435
      %vm1438 = vcmp.lt.s32.totalorder %v1308, 0
      %v1439 = vsub.s32 0, %v1308
      %v1440 = vsel %vm1438, %v1439, %v1308
      %v1441 = vand.u32 %v1440, 65535
      %v1442 = vshrl.u32 %v1440, 16
      %v1444 = vmul.u32 %v1441, 14564
      %v1445 = vmul.u32 %v1441, 58254
      %v1446 = vmul.u32 %v1442, 14564
      %v1447 = vmul.u32 %v1442, 58254
      %v1448 = vshll.u32 %v1445, 16
      %v1449 = vshrl.u32 %v1445, 16
      %v1450 = vshll.u32 %v1446, 16
      %v1451 = vshrl.u32 %v1446, 16
      %vm1452 = vc.u32 %v1444, %v1448
      %v1453 = vsel %vm1452, 1, 0
      %v1454 = vadd.s32 %v1444, %v1448
      %v1455 = vadd.s32 %v1447, %v1453
      %vm1456 = vc.u32 %v1454, %v1450
      %v1457 = vsel %vm1456, 1, 0
      %v1458 = vadd.s32 %v1454, %v1450
      %v1459 = vadd.s32 %v1455, %v1457
      %v1460 = vadd.s32 %v1459, %v1449
      %v1461 = vadd.s32 %v1460, %v1451
      %v1462 = vshrl.u32 %v1461, 4
      %v1463 = vmul.u32 %v1462, 18
      %v1464 = vsub.s32 %v1440, %v1463
      %v1465 = vsub.s32 0, %v1464
      %v1466 = vsel %vm1438, %v1465, %v1464
      %vm1467 = vcmp.lt.s32.totalorder %v1309, 0
      %v1468 = vsub.s32 0, %v1309
      %v1469 = vsel %vm1467, %v1468, %v1309
      %v1470 = vand.u32 %v1469, 65535
      %v1471 = vshrl.u32 %v1469, 16
      %v1473 = vmul.u32 %v1470, 14564
      %v1474 = vmul.u32 %v1470, 58254
      %v1475 = vmul.u32 %v1471, 14564
      %v1476 = vmul.u32 %v1471, 58254
      %v1477 = vshll.u32 %v1474, 16
      %v1478 = vshrl.u32 %v1474, 16
      %v1479 = vshll.u32 %v1475, 16
      %v1480 = vshrl.u32 %v1475, 16
      %vm1481 = vc.u32 %v1473, %v1477
      %v1482 = vsel %vm1481, 1, 0
      %v1483 = vadd.s32 %v1473, %v1477
      %v1484 = vadd.s32 %v1476, %v1482
      %vm1485 = vc.u32 %v1483, %v1479
      %v1486 = vsel %vm1485, 1, 0
      %v1487 = vadd.s32 %v1483, %v1479
      %v1488 = vadd.s32 %v1484, %v1486
      %v1489 = vadd.s32 %v1488, %v1478
      %v1490 = vadd.s32 %v1489, %v1480
      %v1491 = vshrl.u32 %v1490, 4
      %v1492 = vmul.u32 %v1491, 18
      %v1493 = vsub.s32 %v1469, %v1492
      %v1494 = vsub.s32 0, %v1493
      %v1495 = vsel %vm1467, %v1494, %v1493
      %vm1496 = vcmp.lt.s32.totalorder %v1310, 0
      %v1497 = vsub.s32 0, %v1310
      %v1498 = vsel %vm1496, %v1497, %v1310
      %v1499 = vand.u32 %v1498, 65535
      %v1500 = vshrl.u32 %v1498, 16
      %v1502 = vmul.u32 %v1499, 14564
      %v1503 = vmul.u32 %v1499, 58254
      %v1504 = vmul.u32 %v1500, 14564
      %v1505 = vmul.u32 %v1500, 58254
      %v1506 = vshll.u32 %v1503, 16
      %v1507 = vshrl.u32 %v1503, 16
      %v1508 = vshll.u32 %v1504, 16
      %v1509 = vshrl.u32 %v1504, 16
      %vm1510 = vc.u32 %v1502, %v1506
      %v1511 = vsel %vm1510, 1, 0
      %v1512 = vadd.s32 %v1502, %v1506
      %v1513 = vadd.s32 %v1505, %v1511
      %vm1514 = vc.u32 %v1512, %v1508
      %v1515 = vsel %vm1514, 1, 0
      %v1516 = vadd.s32 %v1512, %v1508
      %v1517 = vadd.s32 %v1513, %v1515
      %v1518 = vadd.s32 %v1517, %v1507
      %v1519 = vadd.s32 %v1518, %v1509
      %v1520 = vshrl.u32 %v1519, 4
      %v1521 = vmul.u32 %v1520, 18
      %v1522 = vsub.s32 %v1498, %v1521
      %v1523 = vsub.s32 0, %v1522
      %v1524 = vsel %vm1496, %v1523, %v1522
      %vm1525 = vcmp.lt.s32.totalorder %v1311, 0
      %v1526 = vsub.s32 0, %v1311
      %v1527 = vsel %vm1525, %v1526, %v1311
      %v1528 = vand.u32 %v1527, 65535
      %v1529 = vshrl.u32 %v1527, 16
      %v1531 = vmul.u32 %v1528, 14564
      %v1532 = vmul.u32 %v1528, 58254
      %v1533 = vmul.u32 %v1529, 14564
      %v1534 = vmul.u32 %v1529, 58254
      %v1535 = vshll.u32 %v1532, 16
      %v1536 = vshrl.u32 %v1532, 16
      %v1537 = vshll.u32 %v1533, 16
      %v1538 = vshrl.u32 %v1533, 16
      %vm1539 = vc.u32 %v1531, %v1535
      %v1540 = vsel %vm1539, 1, 0
      %v1541 = vadd.s32 %v1531, %v1535
      %v1542 = vadd.s32 %v1534, %v1540
      %vm1543 = vc.u32 %v1541, %v1537
      %v1544 = vsel %vm1543, 1, 0
      %v1545 = vadd.s32 %v1541, %v1537
      %v1546 = vadd.s32 %v1542, %v1544
      %v1547 = vadd.s32 %v1546, %v1536
      %v1548 = vadd.s32 %v1547, %v1538
      %v1549 = vshrl.u32 %v1548, 4
      %v1550 = vmul.u32 %v1549, 18
      %v1551 = vsub.s32 %v1527, %v1550
      %v1552 = vsub.s32 0, %v1551
      %v1553 = vsel %vm1525, %v1552, %v1551
      %vm1554 = vcmp.lt.s32.totalorder %v1312, 0
      %v1555 = vsub.s32 0, %v1312
      %v1556 = vsel %vm1554, %v1555, %v1312
      %v1557 = vand.u32 %v1556, 65535
      %v1558 = vshrl.u32 %v1556, 16
      %v1560 = vmul.u32 %v1557, 14564
      %v1561 = vmul.u32 %v1557, 58254
      %v1562 = vmul.u32 %v1558, 14564
      %v1563 = vmul.u32 %v1558, 58254
      %v1564 = vshll.u32 %v1561, 16
      %v1565 = vshrl.u32 %v1561, 16
      %v1566 = vshll.u32 %v1562, 16
      %v1567 = vshrl.u32 %v1562, 16
      %vm1568 = vc.u32 %v1560, %v1564
      %v1569 = vsel %vm1568, 1, 0
      %v1570 = vadd.s32 %v1560, %v1564
      %v1571 = vadd.s32 %v1563, %v1569
      %vm1572 = vc.u32 %v1570, %v1566
      %v1573 = vsel %vm1572, 1, 0
      %v1574 = vadd.s32 %v1570, %v1566
      %v1575 = vadd.s32 %v1571, %v1573
      %v1576 = vadd.s32 %v1575, %v1565
      %v1577 = vadd.s32 %v1576, %v1567
      %v1578 = vshrl.u32 %v1577, 4
      %v1579 = vmul.u32 %v1578, 18
      %v1580 = vsub.s32 %v1556, %v1579
      %v1581 = vsub.s32 0, %v1580
      %v1582 = vsel %vm1554, %v1581, %v1580
      %vm1583 = vcmp.lt.s32.totalorder %v1313, 0
      %v1584 = vsub.s32 0, %v1313
      %v1585 = vsel %vm1583, %v1584, %v1313
      %v1586 = vand.u32 %v1585, 65535
      %v1587 = vshrl.u32 %v1585, 16
      %v1589 = vmul.u32 %v1586, 14564
      %v1590 = vmul.u32 %v1586, 58254
      %v1591 = vmul.u32 %v1587, 14564
      %v1592 = vmul.u32 %v1587, 58254
      %v1593 = vshll.u32 %v1590, 16
      %v1594 = vshrl.u32 %v1590, 16
      %v1595 = vshll.u32 %v1591, 16
      %v1596 = vshrl.u32 %v1591, 16
      %vm1597 = vc.u32 %v1589, %v1593
      %v1598 = vsel %vm1597, 1, 0
      %v1599 = vadd.s32 %v1589, %v1593
      %v1600 = vadd.s32 %v1592, %v1598
      %vm1601 = vc.u32 %v1599, %v1595
      %v1602 = vsel %vm1601, 1, 0
      %v1603 = vadd.s32 %v1599, %v1595
      %v1604 = vadd.s32 %v1600, %v1602
      %v1605 = vadd.s32 %v1604, %v1594
      %v1606 = vadd.s32 %v1605, %v1596
      %v1607 = vshrl.u32 %v1606, 4
      %v1608 = vmul.u32 %v1607, 18
      %v1609 = vsub.s32 %v1585, %v1608
      %v1610 = vsub.s32 0, %v1609
      %v1611 = vsel %vm1583, %v1610, %v1609
      %vm1612 = vcmp.lt.s32.totalorder %v1314, 0
      %v1613 = vsub.s32 0, %v1314
      %v1614 = vsel %vm1612, %v1613, %v1314
      %v1615 = vand.u32 %v1614, 65535
      %v1616 = vshrl.u32 %v1614, 16
      %v1618 = vmul.u32 %v1615, 14564
      %v1619 = vmul.u32 %v1615, 58254
      %v1620 = vmul.u32 %v1616, 14564
      %v1621 = vmul.u32 %v1616, 58254
      %v1622 = vshll.u32 %v1619, 16
      %v1623 = vshrl.u32 %v1619, 16
      %v1624 = vshll.u32 %v1620, 16
      %v1625 = vshrl.u32 %v1620, 16
      %vm1626 = vc.u32 %v1618, %v1622
      %v1627 = vsel %vm1626, 1, 0
      %v1628 = vadd.s32 %v1618, %v1622
      %v1629 = vadd.s32 %v1621, %v1627
      %vm1630 = vc.u32 %v1628, %v1624
      %v1631 = vsel %vm1630, 1, 0
      %v1632 = vadd.s32 %v1628, %v1624
      %v1633 = vadd.s32 %v1629, %v1631
      %v1634 = vadd.s32 %v1633, %v1623
      %v1635 = vadd.s32 %v1634, %v1625
      %v1636 = vshrl.u32 %v1635, 4
      %v1637 = vmul.u32 %v1636, 18
      %v1638 = vsub.s32 %v1614, %v1637
      %v1639 = vsub.s32 0, %v1638
      %v1640 = vsel %vm1612, %v1639, %v1638
      %vm1641 = vcmp.lt.s32.totalorder %v1315, 0
      %v1642 = vsub.s32 0, %v1315
      %v1643 = vsel %vm1641, %v1642, %v1315
      %v1644 = vand.u32 %v1643, 65535
      %v1645 = vshrl.u32 %v1643, 16
      %v1647 = vmul.u32 %v1644, 14564
      %v1648 = vmul.u32 %v1644, 58254
      %v1649 = vmul.u32 %v1645, 14564
      %v1650 = vmul.u32 %v1645, 58254
      %v1651 = vshll.u32 %v1648, 16
      %v1652 = vshrl.u32 %v1648, 16
      %v1653 = vshll.u32 %v1649, 16
      %v1654 = vshrl.u32 %v1649, 16
      %vm1655 = vc.u32 %v1647, %v1651
      %v1656 = vsel %vm1655, 1, 0
      %v1657 = vadd.s32 %v1647, %v1651
      %v1658 = vadd.s32 %v1650, %v1656
      %vm1659 = vc.u32 %v1657, %v1653
      %v1660 = vsel %vm1659, 1, 0
      %v1661 = vadd.s32 %v1657, %v1653
      %v1662 = vadd.s32 %v1658, %v1660
      %v1663 = vadd.s32 %v1662, %v1652
      %v1664 = vadd.s32 %v1663, %v1654
      %v1665 = vshrl.u32 %v1664, 4
      %v1666 = vmul.u32 %v1665, 18
      %v1667 = vsub.s32 %v1643, %v1666
      %v1668 = vsub.s32 0, %v1667
      %v1669 = vsel %vm1641, %v1668, %v1667
      %vm1670 = vcmp.lt.s32.totalorder %v1316, 0
      %v1671 = vsub.s32 0, %v1316
      %v1672 = vsel %vm1670, %v1671, %v1316
      %v1673 = vand.u32 %v1672, 65535
      %v1674 = vshrl.u32 %v1672, 16
      %v1676 = vmul.u32 %v1673, 14564
      %v1677 = vmul.u32 %v1673, 58254
      %v1678 = vmul.u32 %v1674, 14564
      %v1679 = vmul.u32 %v1674, 58254
      %v1680 = vshll.u32 %v1677, 16
      %v1681 = vshrl.u32 %v1677, 16
      %v1682 = vshll.u32 %v1678, 16
      %v1683 = vshrl.u32 %v1678, 16
      %vm1684 = vc.u32 %v1676, %v1680
      %v1685 = vsel %vm1684, 1, 0
      %v1686 = vadd.s32 %v1676, %v1680
      %v1687 = vadd.s32 %v1679, %v1685
      %vm1688 = vc.u32 %v1686, %v1682
      %v1689 = vsel %vm1688, 1, 0
      %v1690 = vadd.s32 %v1686, %v1682
      %v1691 = vadd.s32 %v1687, %v1689
      %v1692 = vadd.s32 %v1691, %v1681
      %v1693 = vadd.s32 %v1692, %v1683
      %v1694 = vshrl.u32 %v1693, 4
      %v1695 = vmul.u32 %v1694, 18
      %v1696 = vsub.s32 %v1672, %v1695
      %v1697 = vsub.s32 0, %v1696
      %v1698 = vsel %vm1670, %v1697, %v1696
      %vm1699 = vcmp.lt.s32.totalorder %v1317, 0
      %v1700 = vsub.s32 0, %v1317
      %v1701 = vsel %vm1699, %v1700, %v1317
      %v1702 = vand.u32 %v1701, 65535
      %v1703 = vshrl.u32 %v1701, 16
      %v1705 = vmul.u32 %v1702, 14564
      %v1706 = vmul.u32 %v1702, 58254
      %v1707 = vmul.u32 %v1703, 14564
      %v1708 = vmul.u32 %v1703, 58254
      %v1709 = vshll.u32 %v1706, 16
      %v1710 = vshrl.u32 %v1706, 16
      %v1711 = vshll.u32 %v1707, 16
      %v1712 = vshrl.u32 %v1707, 16
      %vm1713 = vc.u32 %v1705, %v1709
      %v1714 = vsel %vm1713, 1, 0
      %v1715 = vadd.s32 %v1705, %v1709
      %v1716 = vadd.s32 %v1708, %v1714
      %vm1717 = vc.u32 %v1715, %v1711
      %v1718 = vsel %vm1717, 1, 0
      %v1719 = vadd.s32 %v1715, %v1711
      %v1720 = vadd.s32 %v1716, %v1718
      %v1721 = vadd.s32 %v1720, %v1710
      %v1722 = vadd.s32 %v1721, %v1712
      %v1723 = vshrl.u32 %v1722, 4
      %v1724 = vmul.u32 %v1723, 18
      %v1725 = vsub.s32 %v1701, %v1724
      %v1726 = vsub.s32 0, %v1725
      %v1727 = vsel %vm1699, %v1726, %v1725
      %vm1728 = vcmp.lt.s32.totalorder %v1318, 0
      %v1729 = vsub.s32 0, %v1318
      %v1730 = vsel %vm1728, %v1729, %v1318
      %v1731 = vand.u32 %v1730, 65535
      %v1732 = vshrl.u32 %v1730, 16
      %v1734 = vmul.u32 %v1731, 14564
      %v1735 = vmul.u32 %v1731, 58254
      %v1736 = vmul.u32 %v1732, 14564
      %v1737 = vmul.u32 %v1732, 58254
      %v1738 = vshll.u32 %v1735, 16
      %v1739 = vshrl.u32 %v1735, 16
      %v1740 = vshll.u32 %v1736, 16
      %v1741 = vshrl.u32 %v1736, 16
      %vm1742 = vc.u32 %v1734, %v1738
      %v1743 = vsel %vm1742, 1, 0
      %v1744 = vadd.s32 %v1734, %v1738
      %v1745 = vadd.s32 %v1737, %v1743
      %vm1746 = vc.u32 %v1744, %v1740
      %v1747 = vsel %vm1746, 1, 0
      %v1748 = vadd.s32 %v1744, %v1740
      %v1749 = vadd.s32 %v1745, %v1747
      %v1750 = vadd.s32 %v1749, %v1739
      %v1751 = vadd.s32 %v1750, %v1741
      %v1752 = vshrl.u32 %v1751, 4
      %v1753 = vmul.u32 %v1752, 18
      %v1754 = vsub.s32 %v1730, %v1753
      %v1755 = vsub.s32 0, %v1754
      %v1756 = vsel %vm1728, %v1755, %v1754
      %vm1757 = vcmp.lt.s32.totalorder %v1319, 0
      %v1758 = vsub.s32 0, %v1319
      %v1759 = vsel %vm1757, %v1758, %v1319
      %v1760 = vand.u32 %v1759, 65535
      %v1761 = vshrl.u32 %v1759, 16
      %v1763 = vmul.u32 %v1760, 14564
      %v1764 = vmul.u32 %v1760, 58254
      %v1765 = vmul.u32 %v1761, 14564
      %v1766 = vmul.u32 %v1761, 58254
      %v1767 = vshll.u32 %v1764, 16
      %v1768 = vshrl.u32 %v1764, 16
      %v1769 = vshll.u32 %v1765, 16
      %v1770 = vshrl.u32 %v1765, 16
      %vm1771 = vc.u32 %v1763, %v1767
      %v1772 = vsel %vm1771, 1, 0
      %v1773 = vadd.s32 %v1763, %v1767
      %v1774 = vadd.s32 %v1766, %v1772
      %vm1775 = vc.u32 %v1773, %v1769
      %v1776 = vsel %vm1775, 1, 0
      %v1777 = vadd.s32 %v1773, %v1769
      %v1778 = vadd.s32 %v1774, %v1776
      %v1779 = vadd.s32 %v1778, %v1768
      %v1780 = vadd.s32 %v1779, %v1770
      %v1781 = vshrl.u32 %v1780, 4
      %v1782 = vmul.u32 %v1781, 18
      %v1783 = vsub.s32 %v1759, %v1782
      %v1784 = vsub.s32 0, %v1783
      %v1785 = vsel %vm1757, %v1784, %v1783
      %vm1786 = vcmp.lt.s32.totalorder %v1320, 0
      %v1787 = vsub.s32 0, %v1320
      %v1788 = vsel %vm1786, %v1787, %v1320
      %v1789 = vand.u32 %v1788, 65535
      %v1790 = vshrl.u32 %v1788, 16
      %v1792 = vmul.u32 %v1789, 14564
      %v1793 = vmul.u32 %v1789, 58254
      %v1794 = vmul.u32 %v1790, 14564
      %v1795 = vmul.u32 %v1790, 58254
      %v1796 = vshll.u32 %v1793, 16
      %v1797 = vshrl.u32 %v1793, 16
      %v1798 = vshll.u32 %v1794, 16
      %v1799 = vshrl.u32 %v1794, 16
      %vm1800 = vc.u32 %v1792, %v1796
      %v1801 = vsel %vm1800, 1, 0
      %v1802 = vadd.s32 %v1792, %v1796
      %v1803 = vadd.s32 %v1795, %v1801
      %vm1804 = vc.u32 %v1802, %v1798
      %v1805 = vsel %vm1804, 1, 0
      %v1806 = vadd.s32 %v1802, %v1798
      %v1807 = vadd.s32 %v1803, %v1805
      %v1808 = vadd.s32 %v1807, %v1797
      %v1809 = vadd.s32 %v1808, %v1799
      %v1810 = vshrl.u32 %v1809, 4
      %v1811 = vmul.u32 %v1810, 18
      %v1812 = vsub.s32 %v1788, %v1811
      %v1813 = vsub.s32 0, %v1812
      %v1814 = vsel %vm1786, %v1813, %v1812
      %vm1815 = vcmp.lt.s32.totalorder %v1321, 0
      %v1816 = vsub.s32 0, %v1321
      %v1817 = vsel %vm1815, %v1816, %v1321
      %v1818 = vand.u32 %v1817, 65535
      %v1819 = vshrl.u32 %v1817, 16
      %v1821 = vmul.u32 %v1818, 14564
      %v1822 = vmul.u32 %v1818, 58254
      %v1823 = vmul.u32 %v1819, 14564
      %v1824 = vmul.u32 %v1819, 58254
      %v1825 = vshll.u32 %v1822, 16
      %v1826 = vshrl.u32 %v1822, 16
      %v1827 = vshll.u32 %v1823, 16
      %v1828 = vshrl.u32 %v1823, 16
      %vm1829 = vc.u32 %v1821, %v1825
      %v1830 = vsel %vm1829, 1, 0
      %v1831 = vadd.s32 %v1821, %v1825
      %v1832 = vadd.s32 %v1824, %v1830
      %vm1833 = vc.u32 %v1831, %v1827
      %v1834 = vsel %vm1833, 1, 0
      %v1835 = vadd.s32 %v1831, %v1827
      %v1836 = vadd.s32 %v1832, %v1834
      %v1837 = vadd.s32 %v1836, %v1826
      %v1838 = vadd.s32 %v1837, %v1828
      %v1839 = vshrl.u32 %v1838, 4
      %v1840 = vmul.u32 %v1839, 18
      %v1841 = vsub.s32 %v1817, %v1840
      %v1842 = vsub.s32 0, %v1841
      %v1843 = vsel %vm1815, %v1842, %v1841
      %vm1844 = vcmp.ne.s32.totalorder %v1350, 0
      %vm1845 = vcmp.ne.s32.totalorder %v1379, 0
      %vm1846 = vcmp.ne.s32.totalorder %v1408, 0
      %vm1847 = vcmp.ne.s32.totalorder %v1437, 0
      %vm1848 = vcmp.ne.s32.totalorder %v1466, 0
      %vm1849 = vcmp.ne.s32.totalorder %v1495, 0
      %vm1850 = vcmp.ne.s32.totalorder %v1524, 0
      %vm1851 = vcmp.ne.s32.totalorder %v1553, 0
      %vm1852 = vcmp.ne.s32.totalorder %v1582, 0
      %vm1853 = vcmp.ne.s32.totalorder %v1611, 0
      %vm1854 = vcmp.ne.s32.totalorder %v1640, 0
      %vm1855 = vcmp.ne.s32.totalorder %v1669, 0
      %vm1856 = vcmp.ne.s32.totalorder %v1698, 0
      %vm1857 = vcmp.ne.s32.totalorder %v1727, 0
      %vm1858 = vcmp.ne.s32.totalorder %v1756, 0
      %vm1859 = vcmp.ne.s32.totalorder %v1785, 0
      %vm1860 = vcmp.ne.s32.totalorder %v1814, 0
      %vm1861 = vcmp.ne.s32.totalorder %v1843, 0
      %vm1862 = vcmp.lt.s32.totalorder %v1350, 0
      %vm1863 = vcmp.lt.s32.totalorder %v1379, 0
      %vm1864 = vcmp.lt.s32.totalorder %v1408, 0
      %vm1865 = vcmp.lt.s32.totalorder %v1437, 0
      %vm1866 = vcmp.lt.s32.totalorder %v1466, 0
      %vm1867 = vcmp.lt.s32.totalorder %v1495, 0
      %vm1868 = vcmp.lt.s32.totalorder %v1524, 0
      %vm1869 = vcmp.lt.s32.totalorder %v1553, 0
      %vm1870 = vcmp.lt.s32.totalorder %v1582, 0
      %vm1871 = vcmp.lt.s32.totalorder %v1611, 0
      %vm1872 = vcmp.lt.s32.totalorder %v1640, 0
      %vm1873 = vcmp.lt.s32.totalorder %v1669, 0
      %vm1874 = vcmp.lt.s32.totalorder %v1698, 0
      %vm1875 = vcmp.lt.s32.totalorder %v1727, 0
      %vm1876 = vcmp.lt.s32.totalorder %v1756, 0
      %vm1877 = vcmp.lt.s32.totalorder %v1785, 0
      %vm1878 = vcmp.lt.s32.totalorder %v1814, 0
      %vm1879 = vcmp.lt.s32.totalorder %v1843, 0
      %vm1880 = vmand %vm1862, %vm1844
      %vm1881 = vmand %vm1863, %vm1845
      %vm1882 = vmand %vm1864, %vm1846
      %vm1883 = vmand %vm1865, %vm1847
      %vm1884 = vmand %vm1866, %vm1848
      %vm1885 = vmand %vm1867, %vm1849
      %vm1886 = vmand %vm1868, %vm1850
      %vm1887 = vmand %vm1869, %vm1851
      %vm1888 = vmand %vm1870, %vm1852
      %vm1889 = vmand %vm1871, %vm1853
      %vm1890 = vmand %vm1872, %vm1854
      %vm1891 = vmand %vm1873, %vm1855
      %vm1892 = vmand %vm1874, %vm1856
      %vm1893 = vmand %vm1875, %vm1857
      %vm1894 = vmand %vm1876, %vm1858
      %vm1895 = vmand %vm1877, %vm1859
      %vm1896 = vmand %vm1878, %vm1860
      %vm1897 = vmand %vm1879, %vm1861
      %v1898 = vadd.s32 %v1350, 18
      %v1899 = vadd.s32 %v1379, 18
      %v1900 = vadd.s32 %v1408, 18
      %v1901 = vadd.s32 %v1437, 18
      %v1902 = vadd.s32 %v1466, 18
      %v1903 = vadd.s32 %v1495, 18
      %v1904 = vadd.s32 %v1524, 18
      %v1905 = vadd.s32 %v1553, 18
      %v1906 = vadd.s32 %v1582, 18
      %v1907 = vadd.s32 %v1611, 18
      %v1908 = vadd.s32 %v1640, 18
      %v1909 = vadd.s32 %v1669, 18
      %v1910 = vadd.s32 %v1698, 18
      %v1911 = vadd.s32 %v1727, 18
      %v1912 = vadd.s32 %v1756, 18
      %v1913 = vadd.s32 %v1785, 18
      %v1914 = vadd.s32 %v1814, 18
      %v1915 = vadd.s32 %v1843, 18
      %v1916 = vsel %vm1880, %v1898, %v1350
      %v1917 = vsel %vm1881, %v1899, %v1379
      %v1918 = vsel %vm1882, %v1900, %v1408
      %v1919 = vsel %vm1883, %v1901, %v1437
      %v1920 = vsel %vm1884, %v1902, %v1466
      %v1921 = vsel %vm1885, %v1903, %v1495
      %v1922 = vsel %vm1886, %v1904, %v1524
      %v1923 = vsel %vm1887, %v1905, %v1553
      %v1924 = vsel %vm1888, %v1906, %v1582
      %v1925 = vsel %vm1889, %v1907, %v1611
      %v1926 = vsel %vm1890, %v1908, %v1640
      %v1927 = vsel %vm1891, %v1909, %v1669
      %v1928 = vsel %vm1892, %v1910, %v1698
      %v1929 = vsel %vm1893, %v1911, %v1727
      %v1930 = vsel %vm1894, %v1912, %v1756
      %v1931 = vsel %vm1895, %v1913, %v1785
      %v1932 = vsel %vm1896, %v1914, %v1814
      %v1933 = vsel %vm1897, %v1915, %v1843
      %vm1934 = vcmp.lt.s32.totalorder %v1916, 16
      %vm1935 = vcmp.lt.s32.totalorder %v1917, 16
      %vm1936 = vcmp.lt.s32.totalorder %v1918, 16
      %vm1937 = vcmp.lt.s32.totalorder %v1919, 16
      %vm1938 = vcmp.lt.s32.totalorder %v1920, 16
      %vm1939 = vcmp.lt.s32.totalorder %v1921, 16
      %vm1940 = vcmp.lt.s32.totalorder %v1922, 16
      %vm1941 = vcmp.lt.s32.totalorder %v1923, 16
      %vm1942 = vcmp.lt.s32.totalorder %v1924, 16
      %vm1943 = vcmp.lt.s32.totalorder %v1925, 16
      %vm1944 = vcmp.lt.s32.totalorder %v1926, 16
      %vm1945 = vcmp.lt.s32.totalorder %v1927, 16
      %vm1946 = vcmp.lt.s32.totalorder %v1928, 16
      %vm1947 = vcmp.lt.s32.totalorder %v1929, 16
      %vm1948 = vcmp.lt.s32.totalorder %v1930, 16
      %vm1949 = vcmp.lt.s32.totalorder %v1931, 16
      %vm1950 = vcmp.lt.s32.totalorder %v1932, 16
      %vm1951 = vcmp.lt.s32.totalorder %v1933, 16
      %v1952 = vsel %vm1934, 1, 0
      %v1953 = vsel %vm1935, 1, 0
      %v1954 = vsel %vm1936, 1, 0
      %v1955 = vsel %vm1937, 1, 0
      %v1956 = vsel %vm1938, 1, 0
      %v1957 = vsel %vm1939, 1, 0
      %v1958 = vsel %vm1940, 1, 0
      %v1959 = vsel %vm1941, 1, 0
      %v1960 = vsel %vm1942, 1, 0
      %v1961 = vsel %vm1943, 1, 0
      %v1962 = vsel %vm1944, 1, 0
      %v1963 = vsel %vm1945, 1, 0
      %v1964 = vsel %vm1946, 1, 0
      %v1965 = vsel %vm1947, 1, 0
      %v1966 = vsel %vm1948, 1, 0
      %v1967 = vsel %vm1949, 1, 0
      %v1968 = vsel %vm1950, 1, 0
      %v1969 = vsel %vm1951, 1, 0
      %vm1970 = vcmp.eq.s32.totalorder %v1952, 1
      %vm1971 = vcmp.eq.s32.totalorder %v1953, 1
      %vm1972 = vcmp.eq.s32.totalorder %v1954, 1
      %vm1973 = vcmp.eq.s32.totalorder %v1955, 1
      %vm1974 = vcmp.eq.s32.totalorder %v1956, 1
      %vm1975 = vcmp.eq.s32.totalorder %v1957, 1
      %vm1976 = vcmp.eq.s32.totalorder %v1958, 1
      %vm1977 = vcmp.eq.s32.totalorder %v1959, 1
      %vm1978 = vcmp.eq.s32.totalorder %v1960, 1
      %vm1979 = vcmp.eq.s32.totalorder %v1961, 1
      %vm1980 = vcmp.eq.s32.totalorder %v1962, 1
      %vm1981 = vcmp.eq.s32.totalorder %v1963, 1
      %vm1982 = vcmp.eq.s32.totalorder %v1964, 1
      %vm1983 = vcmp.eq.s32.totalorder %v1965, 1
      %vm1984 = vcmp.eq.s32.totalorder %v1966, 1
      %vm1985 = vcmp.eq.s32.totalorder %v1967, 1
      %vm1986 = vcmp.eq.s32.totalorder %v1968, 1
      %vm1987 = vcmp.eq.s32.totalorder %v1969, 1
      %v1988 = vsel %vm1970, %v1232, 0.0
      %v1989 = vsel %vm1971, %v1235, 0.0
      %v1990 = vsel %vm1972, %v1238, 0.0
      %v1991 = vsel %vm1973, %v1241, 0.0
      %v1992 = vsel %vm1974, %v1244, 0.0
      %v1993 = vsel %vm1975, %v1247, 0.0
      %v1994 = vsel %vm1976, %v1250, 0.0
      %v1995 = vsel %vm1977, %v1253, 0.0
      %v1996 = vsel %vm1978, %v1256, 0.0
      %v1997 = vsel %vm1979, %v1259, 0.0
      %v1998 = vsel %vm1980, %v1262, 0.0
      %v1999 = vsel %vm1981, %v1265, 0.0
      %v2000 = vsel %vm1982, %v1268, 0.0
      %v2001 = vsel %vm1983, %v1271, 0.0
      %v2002 = vsel %vm1984, %v1274, 0.0
      %v2003 = vsel %vm1985, %v1277, 0.0
      %v2004 = vsel %vm1986, %v1280, 0.0
      %v2005 = vsel %vm1987, %v1283, 0.0
      %v2006 = vadd.f32 %v1988, %v1989
      %v2007 = vadd.f32 %v2006, %v1990
      %v2008 = vadd.f32 %v2007, %v1991
      %v2009 = vadd.f32 %v2008, %v1992
      %v2010 = vadd.f32 %v2009, %v1993
      %v2011 = vadd.f32 %v2010, %v1994
      %v2012 = vadd.f32 %v2011, %v1995
      %v2013 = vadd.f32 %v2012, %v1996
      %v2014 = vadd.f32 %v2013, %v1997
      %v2015 = vadd.f32 %v2014, %v1998
      %v2016 = vadd.f32 %v2015, %v1999
      %v2017 = vadd.f32 %v2016, %v2000
      %v2018 = vadd.f32 %v2017, %v2001
      %v2019 = vadd.f32 %v2018, %v2002
      %v2020 = vadd.f32 %v2019, %v2003
      %v2021 = vadd.f32 %v2020, %v2004
      %v2022 = vadd.f32 %v2021, %v2005
      %v2023 = vrot.slane %v2022, 4
      %v2024 = vadd.f32 %v2022, %v2023
      %v2025 = vrot.slane %v2024, 2
      %v2026 = vadd.f32 %v2024, %v2025
      %v2027 = vrot.slane %v2026, 1
      %v2028 = vadd.f32 %v2026, %v2027
      %v2029 = vmul.f32 %v1988, %v1988
      %v2030 = vmul.f32 %v1989, %v1989
      %v2031 = vmul.f32 %v1990, %v1990
      %v2032 = vmul.f32 %v1991, %v1991
      %v2033 = vmul.f32 %v1992, %v1992
      %v2034 = vmul.f32 %v1993, %v1993
      %v2035 = vmul.f32 %v1994, %v1994
      %v2036 = vmul.f32 %v1995, %v1995
      %v2037 = vmul.f32 %v1996, %v1996
      %v2038 = vmul.f32 %v1997, %v1997
      %v2039 = vmul.f32 %v1998, %v1998
      %v2040 = vmul.f32 %v1999, %v1999
      %v2041 = vmul.f32 %v2000, %v2000
      %v2042 = vmul.f32 %v2001, %v2001
      %v2043 = vmul.f32 %v2002, %v2002
      %v2044 = vmul.f32 %v2003, %v2003
      %v2045 = vmul.f32 %v2004, %v2004
      %v2046 = vmul.f32 %v2005, %v2005
      %v2047 = vadd.f32 %v2029, %v2030
      %v2048 = vadd.f32 %v2047, %v2031
      %v2049 = vadd.f32 %v2048, %v2032
      %v2050 = vadd.f32 %v2049, %v2033
      %v2051 = vadd.f32 %v2050, %v2034
      %v2052 = vadd.f32 %v2051, %v2035
      %v2053 = vadd.f32 %v2052, %v2036
      %v2054 = vadd.f32 %v2053, %v2037
      %v2055 = vadd.f32 %v2054, %v2038
      %v2056 = vadd.f32 %v2055, %v2039
      %v2057 = vadd.f32 %v2056, %v2040
      %v2058 = vadd.f32 %v2057, %v2041
      %v2059 = vadd.f32 %v2058, %v2042
      %v2060 = vadd.f32 %v2059, %v2043
      %v2061 = vadd.f32 %v2060, %v2044
      %v2062 = vadd.f32 %v2061, %v2045
      %v2063 = vadd.f32 %v2062, %v2046
      %v2064 = vrot.slane %v2063, 4
      %v2065 = vadd.f32 %v2063, %v2064
      %v2066 = vrot.slane %v2065, 2
      %v2067 = vadd.f32 %v2065, %v2066
      %v2068 = vrot.slane %v2067, 1
      %v2069 = vadd.f32 %v2067, %v2068
      %p2070 = scmp.eq.s32.totalorder %s20, 0
      // Predicated region
      $region29: #{inception2d.18} parent=27 // pred_check
        %p2071 = pneg %p2070
      $region30: #{inception2d.18} parent=27 // pred_check_branch
        %2073 = sbr.rel (%p2071) target = $region32
      $region31: #{inception2d.18} parent=27 // pred_region
        %2074 = vst [vmem:[%s204] sm:$0x1] %v2028
        %2075 = vst [vmem:[%s204 + $0x1] sm:$0x1] %v2069
      $region32: #{inception2d.18} parent=27 // pred_fallthru
        _
      %p2076 = scmp.gt.s32.totalorder %s20, 0
      // Predicated region
      $region33: #{inception2d.18} parent=27 // pred_check
        %p2077 = pneg %p2076
      $region34: #{inception2d.18} parent=27 // pred_check_branch
        %2079 = sbr.rel (%p2077) target = $region36
      $region35: #{inception2d.18} parent=27 // pred_region
        %v2080 = vld [vmem:[%s204] sm:$0x1]
        %v2081 = vadd.f32 %v2080, %v2028
        %2082 = vst [vmem:[%s204] sm:$0x1] %v2081
        %v2083 = vld [vmem:[%s204 + $0x1] sm:$0x1]
        %v2084 = vadd.f32 %v2083, %v2069
        %2085 = vst [vmem:[%s204 + $0x1] sm:$0x1] %v2084
      $region36: #{inception2d.18} parent=27 // pred_fallthru
        _
      %s2086 = smul.u32 18, %s20
      %p2087 = scmp.lt.s32.totalorder %s19, 1
      %s2088 = scalar_select %p2087, %s19, 1
      %p2089 = scmp.lt.s32.totalorder %s2086, 35
      %s2090 = scalar_select %p2089, %s2086, 35
      %s2091 = smul.addr %s2088, 36
      %s2092 = sadd.s32 %s2090, %s2091
      %s2093 = smul.addr %s2092, 8
      %s2094 = scalar_lea.vmem %s2, %s2093
      %p2095 = scmp.lt.s32.totalorder %s19, 1
      %s2096 = scalar_select %p2095, %s19, 1
      %s2097 = smul.addr %s2096, 2
      %s2098 = scalar_lea.vmem %s3, %s2097
      // Predicated region
      $region37: #{inception2d.18} parent=27 // pred_check
        %p2099 = pneg %p94
      $region38: #{inception2d.18} parent=27 // pred_check_branch
        %2101 = sbr.rel (%p2099) target = $region40
      $region39: #{inception2d.18} parent=27 // pred_region
        %s2102 = smul.u32 18, %s20
      $region40: #{inception2d.18} parent=27 // pred_fallthru
        _
      // Predicated region
      $region41: #{inception2d.18} parent=27 // pred_check
        %p2103 = pneg %p120
      $region42: #{inception2d.18} parent=27 // pred_check_branch
        %2105 = sbr.rel (%p2103) target = $region44
      $region43: #{inception2d.18} parent=27 // pred_region
        _
      $region44: #{inception2d.18} parent=27 // pred_fallthru
        _
    $region28: #{inception2d.18} parent=5 // pred_fallthru
      _
    %p2106 = scmp.le.s32.totalorder 2, %s10
    // Predicated region
    $region45: #{inception2d.18} parent=5 // pred_check
      %p2107 = pneg %p2106
    $region46: #{inception2d.18} parent=5 // pred_check_branch
      %2109 = sbr.rel (%p2107) target = $region48
    $region47: #{inception2d.18} parent=5 // pred_region
      %s2110 = ssub.s32 %s10, 2
      // Predicated region
      $region49: #{inception2d.18} parent=47 // pred_check
        %p2111 = pneg %p100
      $region50: #{inception2d.18} parent=47 // pred_check_branch
        %2113 = sbr.rel (%p2111) target = $region52
      $region51: #{inception2d.18} parent=47 // pred_region
        %s2114 = smul.u32 18, %s22
        %p2115 = scmp.lt.s32.totalorder %s21, 1
        %s2116 = scalar_select %p2115, %s21, 1
        %p2117 = scmp.lt.s32.totalorder %s2114, 35
        %s2118 = scalar_select %p2117, %s2114, 35
        %s2119 = smul.addr %s2116, 36
        %s2120 = sadd.s32 %s2118, %s2119
        %s2121 = smul.addr %s2120, 8
        %s2122 = scalar_lea.vmem %s2, %s2121
      $region52: #{inception2d.18} parent=47 // pred_fallthru
        _
      // Predicated region
      $region53: #{inception2d.18} parent=47 // pred_check
        %p2123 = pneg %p126
      $region54: #{inception2d.18} parent=47 // pred_check_branch
        %2125 = sbr.rel (%p2123) target = $region56
      $region55: #{inception2d.18} parent=47 // pred_region
        %p2126 = scmp.lt.s32.totalorder %s21, 1
        %s2127 = scalar_select %p2126, %s21, 1
        %s2128 = smul.addr %s2127, 2
        %s2129 = scalar_lea.vmem %s3, %s2128
      $region56: #{inception2d.18} parent=47 // pred_fallthru
        _
    $region48: #{inception2d.18} parent=5 // pred_fallthru
      _
  $region6: #{inception2d.18} parent=0 // loop_footer
    %s14 = sadd.s32 1, %s10
  $region7: #{inception2d.18} parent=0 // loop_footer_branch
    %9 = sbr.rel target = $region3
  $region8: #{inception2d.18} parent=0 // loop_exit
    _

// kernel: inception2d.12
$region0: #{inception2d.12}
  #allocation0 [shape = 'u32[]', space=smem, size = 0x4, offset = 0x4, fixed_abs, tag = 'smem constant byte address 0x4 - core index']
  #allocation1 [shape = 'u32[72,128]{1,0:T(1,128)}', space=vmem, size = 0x9000, scoped, tag = 'internal scratch']
  #allocation2 [shape = 'f32[144,288]{1,0:T(8,128)}', space=vmem, size = 0x36000, scoped, tag = 'scratch operand']
  %s0 = inlined_call_operand.vmem [shape: f32[2,342,32], index: 0, kind: input, shape index: {}]
  %s1 = inlined_call_operand.vmem [shape: f32[288,128], index: 1, kind: input, shape index: {}]
  %s2 = inlined_call_operand.vmem [shape: f32[2,288,128], index: 2, kind: output, shape index: {0}]
  %s3 = inlined_call_operand.vmem [shape: f32[2,2,128], index: 3, kind: output, shape index: {1}]
  %4 = xla_tuple %s2, %s3
  %s5 = sld [smem:[#allocation0]]
  $region57: #{inception2d.12} parent=0
    _
  %s7 = ssub.s32 1, %s5
  %s8 = scalar_select 0, %s7, %s5
  loop: start=0, step=1, limit=6
  $region2: #{inception2d.12} parent=0 // loop_pre_header
    _
  $region3: #{inception2d.12} parent=0 // loop_header
    %s10 = sphi 0, %s14
    %p11 = scmp.ge.s32.totalorder %s10, 6
    %s17 = sphi 0, %s29
    %s18 = sphi 0, %s25
    %s19 = sphi 0, %s17
    %s20 = sphi 0, %s18
    %s21 = sphi 0, %s19
    %s22 = sphi 0, %s20
    %s32 = sphi 0, %s34
    %s35 = sphi 0, %s32
    %s36 = sphi 0, %s35
    %s52 = sphi 0, %s36
    %s56 = sphi 0, %s56
    %s58 = sphi 0, %s56
    %s59 = sphi 0, %s58
    %s73 = sphi 0, %s59
    %s81 = sphi 0, %s83
    %s84 = sphi 0, %s81
    %s85 = sphi 0, %s84
    %s101 = sphi 0, %s85
    %s107 = sphi 0, %s109
    %s110 = sphi 0, %s107
    %s111 = sphi 0, %s110
    %s127 = sphi 0, %s111
  $region4: #{inception2d.12} parent=0 // loop_header_branch
    %13 = sbr.rel (%p11) target = $region8
  $region5: #{inception2d.12} parent=0 // loop_body
    %s15 = ssub.s32 %s10, 1
    %s16 = ssub.s32 %s10, 2
    %s23 = sadd.s32 1, %s18
    %p24 = scmp.ge.s32.totalorder %s23, 2
    %s25 = scalar_select %p24, 0, %s23
    %s26 = sadd.s32 1, %s17
    %s27 = scalar_select %p24, %s26, %s17
    %p28 = scmp.ge.s32.totalorder %s27, 2
    %s29 = scalar_select %p28, 0, %s27
    %s30 = ssub.s32 %s17, %s29
    %p31 = scmp.eq.s32.totalorder %s30, 0
    %s33 = sadd.s32 %s32, 1
    %s34 = scalar_select %p31, %s32, %s33
    %p37 = pneg %p31
    %p38 = scmp.eq.s32.totalorder %s10, 3
    %p39 = por %p37, %p38
    %p40 = scmp.ne.s32.totalorder %s32, %s35
    %p41 = scmp.eq.s32.totalorder %s10, 0
    %p42 = por %p40, %p41
    %p43 = scmp.ne.s32.totalorder %s32, %s35
    %p44 = scmp.eq.s32.totalorder %s15, 3
    %p45 = por %p43, %p44
    %p46 = scmp.ne.s32.totalorder %s35, %s36
    %p47 = scmp.eq.s32.totalorder %s15, 0
    %p48 = por %p46, %p47
    %p49 = scmp.ne.s32.totalorder %s35, %s36
    %p50 = scmp.eq.s32.totalorder %s16, 3
    %p51 = por %p49, %p50
    %p53 = scmp.ne.s32.totalorder %s36, %s52
    %p54 = scmp.eq.s32.totalorder %s16, 0
    %p55 = por %p53, %p54
    %s57 = sadd.s32 %s56, 1
    %p60 = scmp.eq.s32.totalorder %s10, 3
    %p61 = scmp.ne.s32.totalorder %s56, %s58
    %p62 = scmp.eq.s32.totalorder %s10, 0
    %p63 = por %p61, %p62
    %p64 = scmp.ne.s32.totalorder %s56, %s58
    %p65 = scmp.eq.s32.totalorder %s15, 3
    %p66 = por %p64, %p65
    %p67 = scmp.ne.s32.totalorder %s58, %s59
    %p68 = scmp.eq.s32.totalorder %s15, 0
    %p69 = por %p67, %p68
    %p70 = scmp.ne.s32.totalorder %s58, %s59
    %p71 = scmp.eq.s32.totalorder %s16, 3
    %p72 = por %p70, %p71
    %p74 = scmp.ne.s32.totalorder %s59, %s73
    %p75 = scmp.eq.s32.totalorder %s16, 0
    %p76 = por %p74, %p75
    %s77 = ssub.s32 %s17, %s29
    %s78 = ssub.s32 %s18, %s25
    %s79 = sor.u32 %s77, %s78
    %p80 = scmp.eq.s32.totalorder %s79, 0
    %s82 = sadd.s32 %s81, 1
    %s83 = scalar_select %p80, %s81, %s82
    %p86 = pneg %p80
    %p87 = scmp.eq.s32.totalorder %s10, 3
    %p88 = por %p86, %p87
    %p89 = scmp.ne.s32.totalorder %s81, %s84
    %p90 = scmp.eq.s32.totalorder %s10, 0
    %p91 = por %p89, %p90
    %p92 = scmp.ne.s32.totalorder %s81, %s84
    %p93 = scmp.eq.s32.totalorder %s15, 3
    %p94 = por %p92, %p93
    %p95 = scmp.ne.s32.totalorder %s84, %s85
    %p96 = scmp.eq.s32.totalorder %s15, 0
    %p97 = por %p95, %p96
    %p98 = scmp.ne.s32.totalorder %s84, %s85
    %p99 = scmp.eq.s32.totalorder %s16, 3
    %p100 = por %p98, %p99
    %p102 = scmp.ne.s32.totalorder %s85, %s101
    %p103 = scmp.eq.s32.totalorder %s16, 0
    %p104 = por %p102, %p103
    %s105 = ssub.s32 %s17, %s29
    %p106 = scmp.eq.s32.totalorder %s105, 0
    %s108 = sadd.s32 %s107, 1
    %s109 = scalar_select %p106, %s107, %s108
    %p112 = pneg %p106
    %p113 = scmp.eq.s32.totalorder %s10, 3
    %p114 = por %p112, %p113
    %p115 = scmp.ne.s32.totalorder %s107, %s110
    %p116 = scmp.eq.s32.totalorder %s10, 0
    %p117 = por %p115, %p116
    %p118 = scmp.ne.s32.totalorder %s107, %s110
    %p119 = scmp.eq.s32.totalorder %s15, 3
    %p120 = por %p118, %p119
    %p121 = scmp.ne.s32.totalorder %s110, %s111
    %p122 = scmp.eq.s32.totalorder %s15, 0
    %p123 = por %p121, %p122
    %p124 = scmp.ne.s32.totalorder %s110, %s111
    %p125 = scmp.eq.s32.totalorder %s16, 3
    %p126 = por %p124, %p125
    %p128 = scmp.ne.s32.totalorder %s111, %s127
    %p129 = scmp.eq.s32.totalorder %s16, 0
    %p130 = por %p128, %p129
    %p131 = scmp.le.s32.totalorder 1, %s10
    %p132 = scmp.lt.s32.totalorder %s10, 5
    %p133 = pnand %p131, %p132
    %p134 = pneg %p133
    // Predicated region
    $region9: #{inception2d.12} parent=5 // pred_check
      _
    $region10: #{inception2d.12} parent=5 // pred_check_branch
      %136 = sbr.rel (%p133) target = $region12
    $region11: #{inception2d.12} parent=5 // pred_region
      %s137 = ssub.s32 %s10, 1
      // Predicated region
      $region13: #{inception2d.12} parent=11 // pred_check
        %p138 = pneg %p69
      $region14: #{inception2d.12} parent=11 // pred_check_branch
        %140 = sbr.rel (%p138) target = $region16
      $region15: #{inception2d.12} parent=11 // pred_region
        _
      $region16: #{inception2d.12} parent=11 // pred_fallthru
        _
    $region12: #{inception2d.12} parent=5 // pred_fallthru
      _
    %p141 = scmp.lt.s32.totalorder %s10, 4
    // Predicated region
    $region17: #{inception2d.12} parent=5 // pred_check
      %p142 = pneg %p141
    $region18: #{inception2d.12} parent=5 // pred_check_branch
      %144 = sbr.rel (%p142) target = $region20
    $region19: #{inception2d.12} parent=5 // pred_region
      // Predicated region
      $region21: #{inception2d.12} parent=19 // pred_check
        %p145 = pneg %p42
      $region22: #{inception2d.12} parent=19 // pred_check_branch
        %147 = sbr.rel (%p145) target = $region24
      $region23: #{inception2d.12} parent=19 // pred_region
        %p148 = scmp.lt.s32.totalorder %s17, 1
        %s149 = scalar_select %p148, %s17, 1
        %s150 = smul.addr %s149, 43
        %s151 = smul.addr %s150, 8
        %s152 = scalar_lea.vmem %s0, %s151
      $region24: #{inception2d.12} parent=19 // pred_fallthru
        _
    $region20: #{inception2d.12} parent=5 // pred_fallthru
      _
    %p153 = scmp.le.s32.totalorder 1, %s10
    %p154 = scmp.lt.s32.totalorder %s10, 5
    %p155 = pnand %p153, %p154
    %p156 = pneg %p155
    // Predicated region
    $region25: #{inception2d.12} parent=5 // pred_check
      _
    $region26: #{inception2d.12} parent=5 // pred_check_branch
      %158 = sbr.rel (%p155) target = $region28
    $region27: #{inception2d.12} parent=5 // pred_region
      %s159 = ssub.s32 %s10, 1
      %p160 = scmp.lt.s32.totalorder %s19, 1
      %s161 = scalar_select %p160, %s19, 1
      %s162 = smul.addr %s161, 43
      %s163 = smul.addr %s162, 8
      %s164 = scalar_lea.vmem %s0, %s163
      %p165 = pneg %p48
      %p166 = pneg %p45
      %p167 = pneg %p69
      %p168 = pneg %p66
      %p169 = pneg %p97
      %p170 = pneg %p94
      %s171 = smul.u32 18, %s20
      %p172 = scmp.lt.s32.totalorder %s19, 1
      %s173 = scalar_select %p172, %s19, 1
      %p174 = scmp.lt.s32.totalorder %s171, 35
      %s175 = scalar_select %p174, %s171, 35
      %s176 = smul.addr %s173, 36
      %s177 = sadd.s32 %s175, %s176
      %s178 = smul.addr %s177, 8
      %s179 = scalar_lea.vmem %s2, %s178
      %p180 = pneg %p123
      %p181 = pneg %p120
      %p182 = scmp.lt.s32.totalorder %s19, 1
      %s183 = scalar_select %p182, %s19, 1
      %s184 = smul.addr %s183, 2
      %s185 = scalar_lea.vmem %s3, %s184
      %p186 = scmp.lt.s32.totalorder %s19, 1
      %s187 = scalar_select %p186, %s19, 1
      %s188 = smul.addr %s187, 43
      %s189 = smul.addr %s188, 8
      %s190 = scalar_lea.vmem %s0, %s189
      %s191 = smul.u32 18, %s20
      %p192 = scmp.lt.s32.totalorder %s19, 1
      %s193 = scalar_select %p192, %s19, 1
      %p194 = scmp.lt.s32.totalorder %s191, 35
      %s195 = scalar_select %p194, %s191, 35
      %s196 = smul.addr %s193, 36
      %s197 = sadd.s32 %s195, %s196
      %s198 = smul.addr %s197, 8
      %s199 = scalar_lea.vmem %s2, %s198
      %s200 = smul.u32 18, %s20
      %p201 = scmp.lt.s32.totalorder %s19, 1
      %s202 = scalar_select %p201, %s19, 1
      %s203 = smul.addr %s202, 2
      %s204 = scalar_lea.vmem %s3, %s203
      %s205 = smul.u32 %s20, 144
      %s206 = scalar_lea.vmem %s190, %s205
      %v207 = vld [vmem:[%s206] sm:$0xff]
      %v208 = vld [vmem:[%s206 + $0x8] sm:$0xff]
      %v209 = vld [vmem:[%s206 + $0x10] sm:$0xff]
      %v210 = vld [vmem:[%s206 + $0x18] sm:$0xff]
      %v211 = vld [vmem:[%s206 + $0x20] sm:$0xff]
      %v212 = vld [vmem:[%s206 + $0x28] sm:$0xff]
      %v213 = vld [vmem:[%s206 + $0x30] sm:$0xff]
      %v214 = vld [vmem:[%s206 + $0x38] sm:$0xff]
      %v215 = vld [vmem:[%s206 + $0x40] sm:$0xff]
      %v216 = vld [vmem:[%s206 + $0x48] sm:$0xff]
      %v217 = vld [vmem:[%s206 + $0x50] sm:$0xff]
      %v218 = vld [vmem:[%s206 + $0x58] sm:$0xff]
      %v219 = vld [vmem:[%s206 + $0x60] sm:$0xff]
      %v220 = vld [vmem:[%s206 + $0x68] sm:$0xff]
      %v221 = vld [vmem:[%s206 + $0x70] sm:$0xff]
      %v222 = vld [vmem:[%s206 + $0x78] sm:$0xff]
      %v223 = vld [vmem:[%s206 + $0x80] sm:$0xff]
      %v224 = vld [vmem:[%s206 + $0x88] sm:$0xff]
      %vm225 = vcmask 261120
      %226 = vst.msk [vmem:[#allocation2] sm:$0xff] %vm225, %v207
      %227 = vst.msk [vmem:[#allocation2 + $0x18] sm:$0xff] %vm225, %v208
      %228 = vst.msk [vmem:[#allocation2 + $0x30] sm:$0xff] %vm225, %v209
      %229 = vst.msk [vmem:[#allocation2 + $0x48] sm:$0xff] %vm225, %v210
      %230 = vst.msk [vmem:[#allocation2 + $0x60] sm:$0xff] %vm225, %v211
      %231 = vst.msk [vmem:[#allocation2 + $0x78] sm:$0xff] %vm225, %v212
      %232 = vst.msk [vmem:[#allocation2 + $0x90] sm:$0xff] %vm225, %v213
      %233 = vst.msk [vmem:[#allocation2 + $0xa8] sm:$0xff] %vm225, %v214
      %234 = vst.msk [vmem:[#allocation2 + $0xc0] sm:$0xff] %vm225, %v215
      %235 = vst.msk [vmem:[#allocation2 + $0xd8] sm:$0xff] %vm225, %v216
      %236 = vst.msk [vmem:[#allocation2 + $0xf0] sm:$0xff] %vm225, %v217
      %237 = vst.msk [vmem:[#allocation2 + $0x108] sm:$0xff] %vm225, %v218
      %238 = vst.msk [vmem:[#allocation2 + $0x120] sm:$0xff] %vm225, %v219
      %239 = vst.msk [vmem:[#allocation2 + $0x138] sm:$0xff] %vm225, %v220
      %240 = vst.msk [vmem:[#allocation2 + $0x150] sm:$0xff] %vm225, %v221
      %241 = vst.msk [vmem:[#allocation2 + $0x168] sm:$0xff] %vm225, %v222
      %242 = vst.msk [vmem:[#allocation2 + $0x180] sm:$0xff] %vm225, %v223
      %243 = vst.msk [vmem:[#allocation2 + $0x198] sm:$0xff] %vm225, %v224
      %s244 = sadd.s32 %s205, 1
      %s245 = scalar_lea.vmem %s190, %s244
      %v246 = vld [vmem:[%s245] sm:$0xff]
      %v247 = vld [vmem:[%s245 + $0x8] sm:$0xff]
      %v248 = vld [vmem:[%s245 + $0x10] sm:$0xff]
      %v249 = vld [vmem:[%s245 + $0x18] sm:$0xff]
      %v250 = vld [vmem:[%s245 + $0x20] sm:$0xff]
      %v251 = vld [vmem:[%s245 + $0x28] sm:$0xff]
      %v252 = vld [vmem:[%s245 + $0x30] sm:$0xff]
      %v253 = vld [vmem:[%s245 + $0x38] sm:$0xff]
      %v254 = vld [vmem:[%s245 + $0x40] sm:$0xff]
      %v255 = vld [vmem:[%s245 + $0x48] sm:$0xff]
      %v256 = vld [vmem:[%s245 + $0x50] sm:$0xff]
      %v257 = vld [vmem:[%s245 + $0x58] sm:$0xff]
      %v258 = vld [vmem:[%s245 + $0x60] sm:$0xff]
      %v259 = vld [vmem:[%s245 + $0x68] sm:$0xff]
      %v260 = vld [vmem:[%s245 + $0x70] sm:$0xff]
      %v261 = vld [vmem:[%s245 + $0x78] sm:$0xff]
      %v262 = vld [vmem:[%s245 + $0x80] sm:$0xff]
      %v263 = vld [vmem:[%s245 + $0x88] sm:$0xff]
      %282 = vrot.lane.b32.xlu0 %v246, 32
      %v283 = vpop.permute.xlu0 %282
      %284 = vrot.lane.b32.xlu0 %v247, 32
      %v285 = vpop.permute.xlu0 %284
      %286 = vrot.lane.b32.xlu0 %v248, 32
      %v287 = vpop.permute.xlu0 %286
      %288 = vrot.lane.b32.xlu0 %v249, 32
      %v289 = vpop.permute.xlu0 %288
      %290 = vrot.lane.b32.xlu0 %v250, 32
      %v291 = vpop.permute.xlu0 %290
      %292 = vrot.lane.b32.xlu0 %v251, 32
      %v293 = vpop.permute.xlu0 %292
      %294 = vrot.lane.b32.xlu0 %v252, 32
      %v295 = vpop.permute.xlu0 %294
      %296 = vrot.lane.b32.xlu0 %v253, 32
      %v297 = vpop.permute.xlu0 %296
      %298 = vrot.lane.b32.xlu0 %v254, 32
      %v299 = vpop.permute.xlu0 %298
      %300 = vrot.lane.b32.xlu0 %v255, 32
      %v301 = vpop.permute.xlu0 %300
      %302 = vrot.lane.b32.xlu0 %v256, 32
      %v303 = vpop.permute.xlu0 %302
      %304 = vrot.lane.b32.xlu0 %v257, 32
      %v305 = vpop.permute.xlu0 %304
      %306 = vrot.lane.b32.xlu0 %v258, 32
      %v307 = vpop.permute.xlu0 %306
      %308 = vrot.lane.b32.xlu0 %v259, 32
      %v309 = vpop.permute.xlu0 %308
      %310 = vrot.lane.b32.xlu0 %v260, 32
      %v311 = vpop.permute.xlu0 %310
      %312 = vrot.lane.b32.xlu0 %v261, 32
      %v313 = vpop.permute.xlu0 %312
      %314 = vrot.lane.b32.xlu0 %v262, 32
      %v315 = vpop.permute.xlu0 %314
      %316 = vrot.lane.b32.xlu0 %v263, 32
      %v317 = vpop.permute.xlu0 %316
      %vm336 = vcmask 523520
      %337 = vst.msk [vmem:[#allocation2] sm:$0xff] %vm336, %v283
      %338 = vst.msk [vmem:[#allocation2 + $0x18] sm:$0xff] %vm336, %v285
      %339 = vst.msk [vmem:[#allocation2 + $0x30] sm:$0xff] %vm336, %v287
      %340 = vst.msk [vmem:[#allocation2 + $0x48] sm:$0xff] %vm336, %v289
      %341 = vst.msk [vmem:[#allocation2 + $0x60] sm:$0xff] %vm336, %v291
      %342 = vst.msk [vmem:[#allocation2 + $0x78] sm:$0xff] %vm336, %v293
      %343 = vst.msk [vmem:[#allocation2 + $0x90] sm:$0xff] %vm336, %v295
      %344 = vst.msk [vmem:[#allocation2 + $0xa8] sm:$0xff] %vm336, %v297
      %345 = vst.msk [vmem:[#allocation2 + $0xc0] sm:$0xff] %vm336, %v299
      %346 = vst.msk [vmem:[#allocation2 + $0xd8] sm:$0xff] %vm336, %v301
      %347 = vst.msk [vmem:[#allocation2 + $0xf0] sm:$0xff] %vm336, %v303
      %348 = vst.msk [vmem:[#allocation2 + $0x108] sm:$0xff] %vm336, %v305
      %349 = vst.msk [vmem:[#allocation2 + $0x120] sm:$0xff] %vm336, %v307
      %350 = vst.msk [vmem:[#allocation2 + $0x138] sm:$0xff] %vm336, %v309
      %351 = vst.msk [vmem:[#allocation2 + $0x150] sm:$0xff] %vm336, %v311
      %352 = vst.msk [vmem:[#allocation2 + $0x168] sm:$0xff] %vm336, %v313
      %353 = vst.msk [vmem:[#allocation2 + $0x180] sm:$0xff] %vm336, %v315
      %354 = vst.msk [vmem:[#allocation2 + $0x198] sm:$0xff] %vm336, %v317
      %s355 = sadd.s32 %s205, 2
      %s356 = scalar_lea.vmem %s190, %s355
      %v357 = vld [vmem:[%s356] sm:$0xff]
      %v358 = vld [vmem:[%s356 + $0x8] sm:$0xff]
      %v359 = vld [vmem:[%s356 + $0x10] sm:$0xff]
      %v360 = vld [vmem:[%s356 + $0x18] sm:$0xff]
      %v361 = vld [vmem:[%s356 + $0x20] sm:$0xff]
      %v362 = vld [vmem:[%s356 + $0x28] sm:$0xff]
      %v363 = vld [vmem:[%s356 + $0x30] sm:$0xff]
      %v364 = vld [vmem:[%s356 + $0x38] sm:$0xff]
      %v365 = vld [vmem:[%s356 + $0x40] sm:$0xff]
      %v366 = vld [vmem:[%s356 + $0x48] sm:$0xff]
      %v367 = vld [vmem:[%s356 + $0x50] sm:$0xff]
      %v368 = vld [vmem:[%s356 + $0x58] sm:$0xff]
      %v369 = vld [vmem:[%s356 + $0x60] sm:$0xff]
      %v370 = vld [vmem:[%s356 + $0x68] sm:$0xff]
      %v371 = vld [vmem:[%s356 + $0x70] sm:$0xff]
      %v372 = vld [vmem:[%s356 + $0x78] sm:$0xff]
      %v373 = vld [vmem:[%s356 + $0x80] sm:$0xff]
      %v374 = vld [vmem:[%s356 + $0x88] sm:$0xff]
      %393 = vrot.lane.b32.xlu0 %v357, 64
      %v394 = vpop.permute.xlu0 %393
      %395 = vrot.lane.b32.xlu0 %v358, 64
      %v396 = vpop.permute.xlu0 %395
      %397 = vrot.lane.b32.xlu0 %v359, 64
      %v398 = vpop.permute.xlu0 %397
      %399 = vrot.lane.b32.xlu0 %v360, 64
      %v400 = vpop.permute.xlu0 %399
      %401 = vrot.lane.b32.xlu0 %v361, 64
      %v402 = vpop.permute.xlu0 %401
      %403 = vrot.lane.b32.xlu0 %v362, 64
      %v404 = vpop.permute.xlu0 %403
      %405 = vrot.lane.b32.xlu0 %v363, 64
      %v406 = vpop.permute.xlu0 %405
      %407 = vrot.lane.b32.xlu0 %v364, 64
      %v408 = vpop.permute.xlu0 %407
      %409 = vrot.lane.b32.xlu0 %v365, 64
      %v410 = vpop.permute.xlu0 %409
      %411 = vrot.lane.b32.xlu0 %v366, 64
      %v412 = vpop.permute.xlu0 %411
      %413 = vrot.lane.b32.xlu0 %v367, 64
      %v414 = vpop.permute.xlu0 %413
      %415 = vrot.lane.b32.xlu0 %v368, 64
      %v416 = vpop.permute.xlu0 %415
      %417 = vrot.lane.b32.xlu0 %v369, 64
      %v418 = vpop.permute.xlu0 %417
      %419 = vrot.lane.b32.xlu0 %v370, 64
      %v420 = vpop.permute.xlu0 %419
      %421 = vrot.lane.b32.xlu0 %v371, 64
      %v422 = vpop.permute.xlu0 %421
      %423 = vrot.lane.b32.xlu0 %v372, 64
      %v424 = vpop.permute.xlu0 %423
      %425 = vrot.lane.b32.xlu0 %v373, 64
      %v426 = vpop.permute.xlu0 %425
      %427 = vrot.lane.b32.xlu0 %v374, 64
      %v428 = vpop.permute.xlu0 %427
      %vm447 = vcmask 785920
      %448 = vst.msk [vmem:[#allocation2] sm:$0xff] %vm447, %v394
      %449 = vst.msk [vmem:[#allocation2 + $0x18] sm:$0xff] %vm447, %v396
      %450 = vst.msk [vmem:[#allocation2 + $0x30] sm:$0xff] %vm447, %v398
      %451 = vst.msk [vmem:[#allocation2 + $0x48] sm:$0xff] %vm447, %v400
      %452 = vst.msk [vmem:[#allocation2 + $0x60] sm:$0xff] %vm447, %v402
      %453 = vst.msk [vmem:[#allocation2 + $0x78] sm:$0xff] %vm447, %v404
      %454 = vst.msk [vmem:[#allocation2 + $0x90] sm:$0xff] %vm447, %v406
      %455 = vst.msk [vmem:[#allocation2 + $0xa8] sm:$0xff] %vm447, %v408
      %456 = vst.msk [vmem:[#allocation2 + $0xc0] sm:$0xff] %vm447, %v410
      %457 = vst.msk [vmem:[#allocation2 + $0xd8] sm:$0xff] %vm447, %v412
      %458 = vst.msk [vmem:[#allocation2 + $0xf0] sm:$0xff] %vm447, %v414
      %459 = vst.msk [vmem:[#allocation2 + $0x108] sm:$0xff] %vm447, %v416
      %460 = vst.msk [vmem:[#allocation2 + $0x120] sm:$0xff] %vm447, %v418
      %461 = vst.msk [vmem:[#allocation2 + $0x138] sm:$0xff] %vm447, %v420
      %462 = vst.msk [vmem:[#allocation2 + $0x150] sm:$0xff] %vm447, %v422
      %463 = vst.msk [vmem:[#allocation2 + $0x168] sm:$0xff] %vm447, %v424
      %464 = vst.msk [vmem:[#allocation2 + $0x180] sm:$0xff] %vm447, %v426
      %465 = vst.msk [vmem:[#allocation2 + $0x198] sm:$0xff] %vm447, %v428
      %s466 = sadd.s32 %s205, 18
      %s467 = scalar_lea.vmem %s190, %s466
      %v468 = vld [vmem:[%s467] sm:$0xff]
      %v469 = vld [vmem:[%s467 + $0x8] sm:$0xff]
      %v470 = vld [vmem:[%s467 + $0x10] sm:$0xff]
      %v471 = vld [vmem:[%s467 + $0x18] sm:$0xff]
      %v472 = vld [vmem:[%s467 + $0x20] sm:$0xff]
      %v473 = vld [vmem:[%s467 + $0x28] sm:$0xff]
      %v474 = vld [vmem:[%s467 + $0x30] sm:$0xff]
      %v475 = vld [vmem:[%s467 + $0x38] sm:$0xff]
      %v476 = vld [vmem:[%s467 + $0x40] sm:$0xff]
      %v477 = vld [vmem:[%s467 + $0x48] sm:$0xff]
      %v478 = vld [vmem:[%s467 + $0x50] sm:$0xff]
      %v479 = vld [vmem:[%s467 + $0x58] sm:$0xff]
      %v480 = vld [vmem:[%s467 + $0x60] sm:$0xff]
      %v481 = vld [vmem:[%s467 + $0x68] sm:$0xff]
      %v482 = vld [vmem:[%s467 + $0x70] sm:$0xff]
      %v483 = vld [vmem:[%s467 + $0x78] sm:$0xff]
      %v484 = vld [vmem:[%s467 + $0x80] sm:$0xff]
      %v485 = vld [vmem:[%s467 + $0x88] sm:$0xff]
      %504 = vrot.lane.b32.xlu0 %v468, 96
      %v505 = vpop.permute.xlu0 %504
      %506 = vrot.lane.b32.xlu0 %v469, 96
      %v507 = vpop.permute.xlu0 %506
      %508 = vrot.lane.b32.xlu0 %v470, 96
      %v509 = vpop.permute.xlu0 %508
      %510 = vrot.lane.b32.xlu0 %v471, 96
      %v511 = vpop.permute.xlu0 %510
      %512 = vrot.lane.b32.xlu0 %v472, 96
      %v513 = vpop.permute.xlu0 %512
      %514 = vrot.lane.b32.xlu0 %v473, 96
      %v515 = vpop.permute.xlu0 %514
      %516 = vrot.lane.b32.xlu0 %v474, 96
      %v517 = vpop.permute.xlu0 %516
      %518 = vrot.lane.b32.xlu0 %v475, 96
      %v519 = vpop.permute.xlu0 %518
      %520 = vrot.lane.b32.xlu0 %v476, 96
      %v521 = vpop.permute.xlu0 %520
      %522 = vrot.lane.b32.xlu0 %v477, 96
      %v523 = vpop.permute.xlu0 %522
      %524 = vrot.lane.b32.xlu0 %v478, 96
      %v525 = vpop.permute.xlu0 %524
      %526 = vrot.lane.b32.xlu0 %v479, 96
      %v527 = vpop.permute.xlu0 %526
      %528 = vrot.lane.b32.xlu0 %v480, 96
      %v529 = vpop.permute.xlu0 %528
      %530 = vrot.lane.b32.xlu0 %v481, 96
      %v531 = vpop.permute.xlu0 %530
      %532 = vrot.lane.b32.xlu0 %v482, 96
      %v533 = vpop.permute.xlu0 %532
      %534 = vrot.lane.b32.xlu0 %v483, 96
      %v535 = vpop.permute.xlu0 %534
      %536 = vrot.lane.b32.xlu0 %v484, 96
      %v537 = vpop.permute.xlu0 %536
      %538 = vrot.lane.b32.xlu0 %v485, 96
      %v539 = vpop.permute.xlu0 %538
      %vm558 = vcmask 1048320
      %559 = vst.msk [vmem:[#allocation2] sm:$0xff] %vm558, %v505
      %560 = vst.msk [vmem:[#allocation2 + $0x18] sm:$0xff] %vm558, %v507
      %561 = vst.msk [vmem:[#allocation2 + $0x30] sm:$0xff] %vm558, %v509
      %562 = vst.msk [vmem:[#allocation2 + $0x48] sm:$0xff] %vm558, %v511
      %563 = vst.msk [vmem:[#allocation2 + $0x60] sm:$0xff] %vm558, %v513
      %564 = vst.msk [vmem:[#allocation2 + $0x78] sm:$0xff] %vm558, %v515
      %565 = vst.msk [vmem:[#allocation2 + $0x90] sm:$0xff] %vm558, %v517
      %566 = vst.msk [vmem:[#allocation2 + $0xa8] sm:$0xff] %vm558, %v519
      %567 = vst.msk [vmem:[#allocation2 + $0xc0] sm:$0xff] %vm558, %v521
      %568 = vst.msk [vmem:[#allocation2 + $0xd8] sm:$0xff] %vm558, %v523
      %569 = vst.msk [vmem:[#allocation2 + $0xf0] sm:$0xff] %vm558, %v525
      %570 = vst.msk [vmem:[#allocation2 + $0x108] sm:$0xff] %vm558, %v527
      %571 = vst.msk [vmem:[#allocation2 + $0x120] sm:$0xff] %vm558, %v529
      %572 = vst.msk [vmem:[#allocation2 + $0x138] sm:$0xff] %vm558, %v531
      %573 = vst.msk [vmem:[#allocation2 + $0x150] sm:$0xff] %vm558, %v533
      %574 = vst.msk [vmem:[#allocation2 + $0x168] sm:$0xff] %vm558, %v535
      %575 = vst.msk [vmem:[#allocation2 + $0x180] sm:$0xff] %vm558, %v537
      %576 = vst.msk [vmem:[#allocation2 + $0x198] sm:$0xff] %vm558, %v539
      %s577 = sadd.s32 %s205, 19
      %s578 = scalar_lea.vmem %s190, %s577
      %v579 = vld [vmem:[%s578] sm:$0xff]
      %v580 = vld [vmem:[%s578 + $0x8] sm:$0xff]
      %v581 = vld [vmem:[%s578 + $0x10] sm:$0xff]
      %v582 = vld [vmem:[%s578 + $0x18] sm:$0xff]
      %v583 = vld [vmem:[%s578 + $0x20] sm:$0xff]
      %v584 = vld [vmem:[%s578 + $0x28] sm:$0xff]
      %v585 = vld [vmem:[%s578 + $0x30] sm:$0xff]
      %v586 = vld [vmem:[%s578 + $0x38] sm:$0xff]
      %v587 = vld [vmem:[%s578 + $0x40] sm:$0xff]
      %v588 = vld [vmem:[%s578 + $0x48] sm:$0xff]
      %v589 = vld [vmem:[%s578 + $0x50] sm:$0xff]
      %v590 = vld [vmem:[%s578 + $0x58] sm:$0xff]
      %v591 = vld [vmem:[%s578 + $0x60] sm:$0xff]
      %v592 = vld [vmem:[%s578 + $0x68] sm:$0xff]
      %v593 = vld [vmem:[%s578 + $0x70] sm:$0xff]
      %v594 = vld [vmem:[%s578 + $0x78] sm:$0xff]
      %v595 = vld [vmem:[%s578 + $0x80] sm:$0xff]
      %v596 = vld [vmem:[%s578 + $0x88] sm:$0xff]
      %597 = vst.msk [vmem:[#allocation2 + $0x8] sm:$0xff] %vm225, %v579
      %598 = vst.msk [vmem:[#allocation2 + $0x20] sm:$0xff] %vm225, %v580
      %599 = vst.msk [vmem:[#allocation2 + $0x38] sm:$0xff] %vm225, %v581
      %600 = vst.msk [vmem:[#allocation2 + $0x50] sm:$0xff] %vm225, %v582
      %601 = vst.msk [vmem:[#allocation2 + $0x68] sm:$0xff] %vm225, %v583
      %602 = vst.msk [vmem:[#allocation2 + $0x80] sm:$0xff] %vm225, %v584
      %603 = vst.msk [vmem:[#allocation2 + $0x98] sm:$0xff] %vm225, %v585
      %604 = vst.msk [vmem:[#allocation2 + $0xb0] sm:$0xff] %vm225, %v586
      %605 = vst.msk [vmem:[#allocation2 + $0xc8] sm:$0xff] %vm225, %v587
      %606 = vst.msk [vmem:[#allocation2 + $0xe0] sm:$0xff] %vm225, %v588
      %607 = vst.msk [vmem:[#allocation2 + $0xf8] sm:$0xff] %vm225, %v589
      %608 = vst.msk [vmem:[#allocation2 + $0x110] sm:$0xff] %vm225, %v590
      %609 = vst.msk [vmem:[#allocation2 + $0x128] sm:$0xff] %vm225, %v591
      %610 = vst.msk [vmem:[#allocation2 + $0x140] sm:$0xff] %vm225, %v592
      %611 = vst.msk [vmem:[#allocation2 + $0x158] sm:$0xff] %vm225, %v593
      %612 = vst.msk [vmem:[#allocation2 + $0x170] sm:$0xff] %vm225, %v594
      %613 = vst.msk [vmem:[#allocation2 + $0x188] sm:$0xff] %vm225, %v595
      %614 = vst.msk [vmem:[#allocation2 + $0x1a0] sm:$0xff] %vm225, %v596
      %s615 = sadd.s32 %s205, 20
      %s616 = scalar_lea.vmem %s190, %s615
      %v617 = vld [vmem:[%s616] sm:$0xff]
      %v618 = vld [vmem:[%s616 + $0x8] sm:$0xff]
      %v619 = vld [vmem:[%s616 + $0x10] sm:$0xff]
      %v620 = vld [vmem:[%s616 + $0x18] sm:$0xff]
      %v621 = vld [vmem:[%s616 + $0x20] sm:$0xff]
      %v622 = vld [vmem:[%s616 + $0x28] sm:$0xff]
      %v623 = vld [vmem:[%s616 + $0x30] sm:$0xff]
      %v624 = vld [vmem:[%s616 + $0x38] sm:$0xff]
      %v625 = vld [vmem:[%s616 + $0x40] sm:$0xff]
      %v626 = vld [vmem:[%s616 + $0x48] sm:$0xff]
      %v627 = vld [vmem:[%s616 + $0x50] sm:$0xff]
      %v628 = vld [vmem:[%s616 + $0x58] sm:$0xff]
      %v629 = vld [vmem:[%s616 + $0x60] sm:$0xff]
      %v630 = vld [vmem:[%s616 + $0x68] sm:$0xff]
      %v631 = vld [vmem:[%s616 + $0x70] sm:$0xff]
      %v632 = vld [vmem:[%s616 + $0x78] sm:$0xff]
      %v633 = vld [vmem:[%s616 + $0x80] sm:$0xff]
      %v634 = vld [vmem:[%s616 + $0x88] sm:$0xff]
      %653 = vrot.lane.b32.xlu0 %v617, 32
      %v654 = vpop.permute.xlu0 %653
      %655 = vrot.lane.b32.xlu0 %v618, 32
      %v656 = vpop.permute.xlu0 %655
      %657 = vrot.lane.b32.xlu0 %v619, 32
      %v658 = vpop.permute.xlu0 %657
      %659 = vrot.lane.b32.xlu0 %v620, 32
      %v660 = vpop.permute.xlu0 %659
      %661 = vrot.lane.b32.xlu0 %v621, 32
      %v662 = vpop.permute.xlu0 %661
      %663 = vrot.lane.b32.xlu0 %v622, 32
      %v664 = vpop.permute.xlu0 %663
      %665 = vrot.lane.b32.xlu0 %v623, 32
      %v666 = vpop.permute.xlu0 %665
      %667 = vrot.lane.b32.xlu0 %v624, 32
      %v668 = vpop.permute.xlu0 %667
      %669 = vrot.lane.b32.xlu0 %v625, 32
      %v670 = vpop.permute.xlu0 %669
      %671 = vrot.lane.b32.xlu0 %v626, 32
      %v672 = vpop.permute.xlu0 %671
      %673 = vrot.lane.b32.xlu0 %v627, 32
      %v674 = vpop.permute.xlu0 %673
      %675 = vrot.lane.b32.xlu0 %v628, 32
      %v676 = vpop.permute.xlu0 %675
      %677 = vrot.lane.b32.xlu0 %v629, 32
      %v678 = vpop.permute.xlu0 %677
      %679 = vrot.lane.b32.xlu0 %v630, 32
      %v680 = vpop.permute.xlu0 %679
      %681 = vrot.lane.b32.xlu0 %v631, 32
      %v682 = vpop.permute.xlu0 %681
      %683 = vrot.lane.b32.xlu0 %v632, 32
      %v684 = vpop.permute.xlu0 %683
      %685 = vrot.lane.b32.xlu0 %v633, 32
      %v686 = vpop.permute.xlu0 %685
      %687 = vrot.lane.b32.xlu0 %v634, 32
      %v688 = vpop.permute.xlu0 %687
      %707 = vst.msk [vmem:[#allocation2 + $0x8] sm:$0xff] %vm336, %v654
      %708 = vst.msk [vmem:[#allocation2 + $0x20] sm:$0xff] %vm336, %v656
      %709 = vst.msk [vmem:[#allocation2 + $0x38] sm:$0xff] %vm336, %v658
      %710 = vst.msk [vmem:[#allocation2 + $0x50] sm:$0xff] %vm336, %v660
      %711 = vst.msk [vmem:[#allocation2 + $0x68] sm:$0xff] %vm336, %v662
      %712 = vst.msk [vmem:[#allocation2 + $0x80] sm:$0xff] %vm336, %v664
      %713 = vst.msk [vmem:[#allocation2 + $0x98] sm:$0xff] %vm336, %v666
      %714 = vst.msk [vmem:[#allocation2 + $0xb0] sm:$0xff] %vm336, %v668
      %715 = vst.msk [vmem:[#allocation2 + $0xc8] sm:$0xff] %vm336, %v670
      %716 = vst.msk [vmem:[#allocation2 + $0xe0] sm:$0xff] %vm336, %v672
      %717 = vst.msk [vmem:[#allocation2 + $0xf8] sm:$0xff] %vm336, %v674
      %718 = vst.msk [vmem:[#allocation2 + $0x110] sm:$0xff] %vm336, %v676
      %719 = vst.msk [vmem:[#allocation2 + $0x128] sm:$0xff] %vm336, %v678
      %720 = vst.msk [vmem:[#allocation2 + $0x140] sm:$0xff] %vm336, %v680
      %721 = vst.msk [vmem:[#allocation2 + $0x158] sm:$0xff] %vm336, %v682
      %722 = vst.msk [vmem:[#allocation2 + $0x170] sm:$0xff] %vm336, %v684
      %723 = vst.msk [vmem:[#allocation2 + $0x188] sm:$0xff] %vm336, %v686
      %724 = vst.msk [vmem:[#allocation2 + $0x1a0] sm:$0xff] %vm336, %v688
      %s725 = sadd.s32 %s205, 36
      %s726 = scalar_lea.vmem %s190, %s725
      %v727 = vld [vmem:[%s726] sm:$0xff]
      %v728 = vld [vmem:[%s726 + $0x8] sm:$0xff]
      %v729 = vld [vmem:[%s726 + $0x10] sm:$0xff]
      %v730 = vld [vmem:[%s726 + $0x18] sm:$0xff]
      %v731 = vld [vmem:[%s726 + $0x20] sm:$0xff]
      %v732 = vld [vmem:[%s726 + $0x28] sm:$0xff]
      %v733 = vld [vmem:[%s726 + $0x30] sm:$0xff]
      %v734 = vld [vmem:[%s726 + $0x38] sm:$0xff]
      %v735 = vld [vmem:[%s726 + $0x40] sm:$0xff]
      %v736 = vld [vmem:[%s726 + $0x48] sm:$0xff]
      %v737 = vld [vmem:[%s726 + $0x50] sm:$0xff]
      %v738 = vld [vmem:[%s726 + $0x58] sm:$0xff]
      %v739 = vld [vmem:[%s726 + $0x60] sm:$0xff]
      %v740 = vld [vmem:[%s726 + $0x68] sm:$0xff]
      %v741 = vld [vmem:[%s726 + $0x70] sm:$0xff]
      %v742 = vld [vmem:[%s726 + $0x78] sm:$0xff]
      %v743 = vld [vmem:[%s726 + $0x80] sm:$0xff]
      %v744 = vld [vmem:[%s726 + $0x88] sm:$0xff]
      %763 = vrot.lane.b32.xlu0 %v727, 64
      %v764 = vpop.permute.xlu0 %763
      %765 = vrot.lane.b32.xlu0 %v728, 64
      %v766 = vpop.permute.xlu0 %765
      %767 = vrot.lane.b32.xlu0 %v729, 64
      %v768 = vpop.permute.xlu0 %767
      %769 = vrot.lane.b32.xlu0 %v730, 64
      %v770 = vpop.permute.xlu0 %769
      %771 = vrot.lane.b32.xlu0 %v731, 64
      %v772 = vpop.permute.xlu0 %771
      %773 = vrot.lane.b32.xlu0 %v732, 64
      %v774 = vpop.permute.xlu0 %773
      %775 = vrot.lane.b32.xlu0 %v733, 64
      %v776 = vpop.permute.xlu0 %775
      %777 = vrot.lane.b32.xlu0 %v734, 64
      %v778 = vpop.permute.xlu0 %777
      %779 = vrot.lane.b32.xlu0 %v735, 64
      %v780 = vpop.permute.xlu0 %779
      %781 = vrot.lane.b32.xlu0 %v736, 64
      %v782 = vpop.permute.xlu0 %781
      %783 = vrot.lane.b32.xlu0 %v737, 64
      %v784 = vpop.permute.xlu0 %783
      %785 = vrot.lane.b32.xlu0 %v738, 64
      %v786 = vpop.permute.xlu0 %785
      %787 = vrot.lane.b32.xlu0 %v739, 64
      %v788 = vpop.permute.xlu0 %787
      %789 = vrot.lane.b32.xlu0 %v740, 64
      %v790 = vpop.permute.xlu0 %789
      %791 = vrot.lane.b32.xlu0 %v741, 64
      %v792 = vpop.permute.xlu0 %791
      %793 = vrot.lane.b32.xlu0 %v742, 64
      %v794 = vpop.permute.xlu0 %793
      %795 = vrot.lane.b32.xlu0 %v743, 64
      %v796 = vpop.permute.xlu0 %795
      %797 = vrot.lane.b32.xlu0 %v744, 64
      %v798 = vpop.permute.xlu0 %797
      %817 = vst.msk [vmem:[#allocation2 + $0x8] sm:$0xff] %vm447, %v764
      %818 = vst.msk [vmem:[#allocation2 + $0x20] sm:$0xff] %vm447, %v766
      %819 = vst.msk [vmem:[#allocation2 + $0x38] sm:$0xff] %vm447, %v768
      %820 = vst.msk [vmem:[#allocation2 + $0x50] sm:$0xff] %vm447, %v770
      %821 = vst.msk [vmem:[#allocation2 + $0x68] sm:$0xff] %vm447, %v772
      %822 = vst.msk [vmem:[#allocation2 + $0x80] sm:$0xff] %vm447, %v774
      %823 = vst.msk [vmem:[#allocation2 + $0x98] sm:$0xff] %vm447, %v776
      %824 = vst.msk [vmem:[#allocation2 + $0xb0] sm:$0xff] %vm447, %v778
      %825 = vst.msk [vmem:[#allocation2 + $0xc8] sm:$0xff] %vm447, %v780
      %826 = vst.msk [vmem:[#allocation2 + $0xe0] sm:$0xff] %vm447, %v782
      %827 = vst.msk [vmem:[#allocation2 + $0xf8] sm:$0xff] %vm447, %v784
      %828 = vst.msk [vmem:[#allocation2 + $0x110] sm:$0xff] %vm447, %v786
      %829 = vst.msk [vmem:[#allocation2 + $0x128] sm:$0xff] %vm447, %v788
      %830 = vst.msk [vmem:[#allocation2 + $0x140] sm:$0xff] %vm447, %v790
      %831 = vst.msk [vmem:[#allocation2 + $0x158] sm:$0xff] %vm447, %v792
      %832 = vst.msk [vmem:[#allocation2 + $0x170] sm:$0xff] %vm447, %v794
      %833 = vst.msk [vmem:[#allocation2 + $0x188] sm:$0xff] %vm447, %v796
      %834 = vst.msk [vmem:[#allocation2 + $0x1a0] sm:$0xff] %vm447, %v798
      %s835 = sadd.s32 %s205, 37
      %s836 = scalar_lea.vmem %s190, %s835
      %v837 = vld [vmem:[%s836] sm:$0xff]
      %v838 = vld [vmem:[%s836 + $0x8] sm:$0xff]
      %v839 = vld [vmem:[%s836 + $0x10] sm:$0xff]
      %v840 = vld [vmem:[%s836 + $0x18] sm:$0xff]
      %v841 = vld [vmem:[%s836 + $0x20] sm:$0xff]
      %v842 = vld [vmem:[%s836 + $0x28] sm:$0xff]
      %v843 = vld [vmem:[%s836 + $0x30] sm:$0xff]
      %v844 = vld [vmem:[%s836 + $0x38] sm:$0xff]
      %v845 = vld [vmem:[%s836 + $0x40] sm:$0xff]
      %v846 = vld [vmem:[%s836 + $0x48] sm:$0xff]
      %v847 = vld [vmem:[%s836 + $0x50] sm:$0xff]
      %v848 = vld [vmem:[%s836 + $0x58] sm:$0xff]
      %v849 = vld [vmem:[%s836 + $0x60] sm:$0xff]
      %v850 = vld [vmem:[%s836 + $0x68] sm:$0xff]
      %v851 = vld [vmem:[%s836 + $0x70] sm:$0xff]
      %v852 = vld [vmem:[%s836 + $0x78] sm:$0xff]
      %v853 = vld [vmem:[%s836 + $0x80] sm:$0xff]
      %v854 = vld [vmem:[%s836 + $0x88] sm:$0xff]
      %873 = vrot.lane.b32.xlu0 %v837, 96
      %v874 = vpop.permute.xlu0 %873
      %875 = vrot.lane.b32.xlu0 %v838, 96
      %v876 = vpop.permute.xlu0 %875
      %877 = vrot.lane.b32.xlu0 %v839, 96
      %v878 = vpop.permute.xlu0 %877
      %879 = vrot.lane.b32.xlu0 %v840, 96
      %v880 = vpop.permute.xlu0 %879
      %881 = vrot.lane.b32.xlu0 %v841, 96
      %v882 = vpop.permute.xlu0 %881
      %883 = vrot.lane.b32.xlu0 %v842, 96
      %v884 = vpop.permute.xlu0 %883
      %885 = vrot.lane.b32.xlu0 %v843, 96
      %v886 = vpop.permute.xlu0 %885
      %887 = vrot.lane.b32.xlu0 %v844, 96
      %v888 = vpop.permute.xlu0 %887
      %889 = vrot.lane.b32.xlu0 %v845, 96
      %v890 = vpop.permute.xlu0 %889
      %891 = vrot.lane.b32.xlu0 %v846, 96
      %v892 = vpop.permute.xlu0 %891
      %893 = vrot.lane.b32.xlu0 %v847, 96
      %v894 = vpop.permute.xlu0 %893
      %895 = vrot.lane.b32.xlu0 %v848, 96
      %v896 = vpop.permute.xlu0 %895
      %897 = vrot.lane.b32.xlu0 %v849, 96
      %v898 = vpop.permute.xlu0 %897
      %899 = vrot.lane.b32.xlu0 %v850, 96
      %v900 = vpop.permute.xlu0 %899
      %901 = vrot.lane.b32.xlu0 %v851, 96
      %v902 = vpop.permute.xlu0 %901
      %903 = vrot.lane.b32.xlu0 %v852, 96
      %v904 = vpop.permute.xlu0 %903
      %905 = vrot.lane.b32.xlu0 %v853, 96
      %v906 = vpop.permute.xlu0 %905
      %907 = vrot.lane.b32.xlu0 %v854, 96
      %v908 = vpop.permute.xlu0 %907
      %927 = vst.msk [vmem:[#allocation2 + $0x8] sm:$0xff] %vm558, %v874
      %928 = vst.msk [vmem:[#allocation2 + $0x20] sm:$0xff] %vm558, %v876
      %929 = vst.msk [vmem:[#allocation2 + $0x38] sm:$0xff] %vm558, %v878
      %930 = vst.msk [vmem:[#allocation2 + $0x50] sm:$0xff] %vm558, %v880
      %931 = vst.msk [vmem:[#allocation2 + $0x68] sm:$0xff] %vm558, %v882
      %932 = vst.msk [vmem:[#allocation2 + $0x80] sm:$0xff] %vm558, %v884
      %933 = vst.msk [vmem:[#allocation2 + $0x98] sm:$0xff] %vm558, %v886
      %934 = vst.msk [vmem:[#allocation2 + $0xb0] sm:$0xff] %vm558, %v888
      %935 = vst.msk [vmem:[#allocation2 + $0xc8] sm:$0xff] %vm558, %v890
      %936 = vst.msk [vmem:[#allocation2 + $0xe0] sm:$0xff] %vm558, %v892
      %937 = vst.msk [vmem:[#allocation2 + $0xf8] sm:$0xff] %vm558, %v894
      %938 = vst.msk [vmem:[#allocation2 + $0x110] sm:$0xff] %vm558, %v896
      %939 = vst.msk [vmem:[#allocation2 + $0x128] sm:$0xff] %vm558, %v898
      %940 = vst.msk [vmem:[#allocation2 + $0x140] sm:$0xff] %vm558, %v900
      %941 = vst.msk [vmem:[#allocation2 + $0x158] sm:$0xff] %vm558, %v902
      %942 = vst.msk [vmem:[#allocation2 + $0x170] sm:$0xff] %vm558, %v904
      %943 = vst.msk [vmem:[#allocation2 + $0x188] sm:$0xff] %vm558, %v906
      %944 = vst.msk [vmem:[#allocation2 + $0x1a0] sm:$0xff] %vm558, %v908
      %s945 = sadd.s32 %s205, 38
      %s946 = scalar_lea.vmem %s190, %s945
      %v947 = vld [vmem:[%s946] sm:$0xff]
      %v948 = vld [vmem:[%s946 + $0x8] sm:$0xff]
      %v949 = vld [vmem:[%s946 + $0x10] sm:$0xff]
      %v950 = vld [vmem:[%s946 + $0x18] sm:$0xff]
      %v951 = vld [vmem:[%s946 + $0x20] sm:$0xff]
      %v952 = vld [vmem:[%s946 + $0x28] sm:$0xff]
      %v953 = vld [vmem:[%s946 + $0x30] sm:$0xff]
      %v954 = vld [vmem:[%s946 + $0x38] sm:$0xff]
      %v955 = vld [vmem:[%s946 + $0x40] sm:$0xff]
      %v956 = vld [vmem:[%s946 + $0x48] sm:$0xff]
      %v957 = vld [vmem:[%s946 + $0x50] sm:$0xff]
      %v958 = vld [vmem:[%s946 + $0x58] sm:$0xff]
      %v959 = vld [vmem:[%s946 + $0x60] sm:$0xff]
      %v960 = vld [vmem:[%s946 + $0x68] sm:$0xff]
      %v961 = vld [vmem:[%s946 + $0x70] sm:$0xff]
      %v962 = vld [vmem:[%s946 + $0x78] sm:$0xff]
      %v963 = vld [vmem:[%s946 + $0x80] sm:$0xff]
      %v964 = vld [vmem:[%s946 + $0x88] sm:$0xff]
      %965 = vst.msk [vmem:[#allocation2 + $0x10] sm:$0xff] %vm225, %v947
      %966 = vst.msk [vmem:[#allocation2 + $0x28] sm:$0xff] %vm225, %v948
      %967 = vst.msk [vmem:[#allocation2 + $0x40] sm:$0xff] %vm225, %v949
      %968 = vst.msk [vmem:[#allocation2 + $0x58] sm:$0xff] %vm225, %v950
      %969 = vst.msk [vmem:[#allocation2 + $0x70] sm:$0xff] %vm225, %v951
      %970 = vst.msk [vmem:[#allocation2 + $0x88] sm:$0xff] %vm225, %v952
      %971 = vst.msk [vmem:[#allocation2 + $0xa0] sm:$0xff] %vm225, %v953
      %972 = vst.msk [vmem:[#allocation2 + $0xb8] sm:$0xff] %vm225, %v954
      %973 = vst.msk [vmem:[#allocation2 + $0xd0] sm:$0xff] %vm225, %v955
      %974 = vst.msk [vmem:[#allocation2 + $0xe8] sm:$0xff] %vm225, %v956
      %975 = vst.msk [vmem:[#allocation2 + $0x100] sm:$0xff] %vm225, %v957
      %976 = vst.msk [vmem:[#allocation2 + $0x118] sm:$0xff] %vm225, %v958
      %977 = vst.msk [vmem:[#allocation2 + $0x130] sm:$0xff] %vm225, %v959
      %978 = vst.msk [vmem:[#allocation2 + $0x148] sm:$0xff] %vm225, %v960
      %979 = vst.msk [vmem:[#allocation2 + $0x160] sm:$0xff] %vm225, %v961
      %980 = vst.msk [vmem:[#allocation2 + $0x178] sm:$0xff] %vm225, %v962
      %981 = vst.msk [vmem:[#allocation2 + $0x190] sm:$0xff] %vm225, %v963
      %982 = vst.msk [vmem:[#allocation2 + $0x1a8] sm:$0xff] %vm225, %v964
      %v983 = vld [vmem:[#allocation2] sm:$0xff]
      %v984 = vld [vmem:[#allocation2 + $0x8] sm:$0xff]
      %v985 = vld [vmem:[#allocation2 + $0x10] sm:$0xff]
      %v986 = vld [vmem:[#allocation2 + $0x18] sm:$0xff]
      %v987 = vld [vmem:[#allocation2 + $0x20] sm:$0xff]
      %v988 = vld [vmem:[#allocation2 + $0x28] sm:$0xff]
      %v989 = vld [vmem:[#allocation2 + $0x30] sm:$0xff]
      %v990 = vld [vmem:[#allocation2 + $0x38] sm:$0xff]
      %v991 = vld [vmem:[#allocation2 + $0x40] sm:$0xff]
      %v992 = vld [vmem:[#allocation2 + $0x48] sm:$0xff]
      %v993 = vld [vmem:[#allocation2 + $0x50] sm:$0xff]
      %v994 = vld [vmem:[#allocation2 + $0x58] sm:$0xff]
      %v995 = vld [vmem:[#allocation2 + $0x60] sm:$0xff]
      %v996 = vld [vmem:[#allocation2 + $0x68] sm:$0xff]
      %v997 = vld [vmem:[#allocation2 + $0x70] sm:$0xff]
      %v998 = vld [vmem:[#allocation2 + $0x78] sm:$0xff]
      %v999 = vld [vmem:[#allocation2 + $0x80] sm:$0xff]
      %v1000 = vld [vmem:[#allocation2 + $0x88] sm:$0xff]
      %v1001 = vld [vmem:[#allocation2 + $0x90] sm:$0xff]
      %v1002 = vld [vmem:[#allocation2 + $0x98] sm:$0xff]
      %v1003 = vld [vmem:[#allocation2 + $0xa0] sm:$0xff]
      %v1004 = vld [vmem:[#allocation2 + $0xa8] sm:$0xff]
      %v1005 = vld [vmem:[#allocation2 + $0xb0] sm:$0xff]
      %v1006 = vld [vmem:[#allocation2 + $0xb8] sm:$0xff]
      %v1007 = vld [vmem:[#allocation2 + $0xc0] sm:$0xff]
      %v1008 = vld [vmem:[#allocation2 + $0xc8] sm:$0xff]
      %v1009 = vld [vmem:[#allocation2 + $0xd0] sm:$0xff]
      %v1010 = vld [vmem:[#allocation2 + $0xd8] sm:$0xff]
      %v1011 = vld [vmem:[#allocation2 + $0xe0] sm:$0xff]
      %v1012 = vld [vmem:[#allocation2 + $0xe8] sm:$0xff]
      %v1013 = vld [vmem:[#allocation2 + $0xf0] sm:$0xff]
      %v1014 = vld [vmem:[#allocation2 + $0xf8] sm:$0xff]
      %v1015 = vld [vmem:[#allocation2 + $0x100] sm:$0xff]
      %v1016 = vld [vmem:[#allocation2 + $0x108] sm:$0xff]
      %v1017 = vld [vmem:[#allocation2 + $0x110] sm:$0xff]
      %v1018 = vld [vmem:[#allocation2 + $0x118] sm:$0xff]
      %v1019 = vld [vmem:[#allocation2 + $0x120] sm:$0xff]
      %v1020 = vld [vmem:[#allocation2 + $0x128] sm:$0xff]
      %v1021 = vld [vmem:[#allocation2 + $0x130] sm:$0xff]
      %v1022 = vld [vmem:[#allocation2 + $0x138] sm:$0xff]
      %v1023 = vld [vmem:[#allocation2 + $0x140] sm:$0xff]
      %v1024 = vld [vmem:[#allocation2 + $0x148] sm:$0xff]
      %v1025 = vld [vmem:[#allocation2 + $0x150] sm:$0xff]
      %v1026 = vld [vmem:[#allocation2 + $0x158] sm:$0xff]
      %v1027 = vld [vmem:[#allocation2 + $0x160] sm:$0xff]
      %v1028 = vld [vmem:[#allocation2 + $0x168] sm:$0xff]
      %v1029 = vld [vmem:[#allocation2 + $0x170] sm:$0xff]
      %v1030 = vld [vmem:[#allocation2 + $0x178] sm:$0xff]
      %v1031 = vld [vmem:[#allocation2 + $0x180] sm:$0xff]
      %v1032 = vld [vmem:[#allocation2 + $0x188] sm:$0xff]
      %v1033 = vld [vmem:[#allocation2 + $0x190] sm:$0xff]
      %v1034 = vld [vmem:[#allocation2 + $0x198] sm:$0xff]
      %v1035 = vld [vmem:[#allocation2 + $0x1a0] sm:$0xff]
      %v1036 = vld [vmem:[#allocation2 + $0x1a8] sm:$0xff]
      %v1037 = vld [vmem:[%s1] sm:$0xff]
      %v1038 = vld [vmem:[%s1 + $0x8] sm:$0xff]
      %v1039 = vld [vmem:[%s1 + $0x10] sm:$0xff]
      %v1040 = vld [vmem:[%s1 + $0x18] sm:$0xff]
      %v1041 = vld [vmem:[%s1 + $0x20] sm:$0xff]
      %v1042 = vld [vmem:[%s1 + $0x28] sm:$0xff]
      %v1043 = vld [vmem:[%s1 + $0x30] sm:$0xff]
      %v1044 = vld [vmem:[%s1 + $0x38] sm:$0xff]
      %v1045 = vld [vmem:[%s1 + $0x40] sm:$0xff]
      %v1046 = vld [vmem:[%s1 + $0x48] sm:$0xff]
      %v1047 = vld [vmem:[%s1 + $0x50] sm:$0xff]
      %v1048 = vld [vmem:[%s1 + $0x58] sm:$0xff]
      %v1049 = vld [vmem:[%s1 + $0x60] sm:$0xff]
      %v1050 = vld [vmem:[%s1 + $0x68] sm:$0xff]
      %v1051 = vld [vmem:[%s1 + $0x70] sm:$0xff]
      %v1052 = vld [vmem:[%s1 + $0x78] sm:$0xff]
      %v1053 = vld [vmem:[%s1 + $0x80] sm:$0xff]
      %v1054 = vld [vmem:[%s1 + $0x88] sm:$0xff]
      %v1055 = vld [vmem:[%s1 + $0x90] sm:$0xff]
      %v1056 = vld [vmem:[%s1 + $0x98] sm:$0xff]
      %v1057 = vld [vmem:[%s1 + $0xa0] sm:$0xff]
      %v1058 = vld [vmem:[%s1 + $0xa8] sm:$0xff]
      %v1059 = vld [vmem:[%s1 + $0xb0] sm:$0xff]
      %v1060 = vld [vmem:[%s1 + $0xb8] sm:$0xff]
      %v1061 = vld [vmem:[%s1 + $0xc0] sm:$0xff]
      %v1062 = vld [vmem:[%s1 + $0xc8] sm:$0xff]
      %v1063 = vld [vmem:[%s1 + $0xd0] sm:$0xff]
      %v1064 = vld [vmem:[%s1 + $0xd8] sm:$0xff]
      %v1065 = vld [vmem:[%s1 + $0xe0] sm:$0xff]
      %v1066 = vld [vmem:[%s1 + $0xe8] sm:$0xff]
      %v1067 = vld [vmem:[%s1 + $0xf0] sm:$0xff]
      %v1068 = vld [vmem:[%s1 + $0xf8] sm:$0xff]
      %v1069 = vld [vmem:[%s1 + $0x100] sm:$0xff]
      %v1070 = vld [vmem:[%s1 + $0x108] sm:$0xff]
      %v1071 = vld [vmem:[%s1 + $0x110] sm:$0xff]
      %v1072 = vld [vmem:[%s1 + $0x118] sm:$0xff]
      %v1074 = vsel %vm225, %v985, 0
      %v1077 = vsel %vm225, %v988, 0
      %v1080 = vsel %vm225, %v991, 0
      %v1083 = vsel %vm225, %v994, 0
      %v1086 = vsel %vm225, %v997, 0
      %v1089 = vsel %vm225, %v1000, 0
      %v1092 = vsel %vm225, %v1003, 0
      %v1095 = vsel %vm225, %v1006, 0
      %v1098 = vsel %vm225, %v1009, 0
      %v1101 = vsel %vm225, %v1012, 0
      %v1104 = vsel %vm225, %v1015, 0
      %v1107 = vsel %vm225, %v1018, 0
      %v1110 = vsel %vm225, %v1021, 0
      %v1113 = vsel %vm225, %v1024, 0
      %v1116 = vsel %vm225, %v1027, 0
      %v1119 = vsel %vm225, %v1030, 0
      %v1122 = vsel %vm225, %v1033, 0
      %v1125 = vsel %vm225, %v1036, 0
      %1127 = vmatpush.msra.mxu0 %v1052
      %1128 = vmatpush.msra.mxu0 %v1051
      %1129 = vmatpush.msra.mxu0 %v1050
      %1130 = vmatpush.msra.mxu0 %v1049
      %1131 = vmatpush.msra.mxu0 %v1048
      %1132 = vmatpush.msra.mxu0 %v1047
      %1133 = vmatpush.msra.mxu0 %v1046
      %1134 = vmatpush.msra.mxu0 %v1045
      %1135 = vmatpush.msra.mxu0 %v1044
      %1136 = vmatpush.msra.mxu0 %v1043
      %1137 = vmatpush.msra.mxu0 %v1042
      %1138 = vmatpush.msra.mxu0 %v1041
      %1139 = vmatpush.msra.mxu0 %v1040
      %1140 = vmatpush.msra.mxu0 %v1039
      %1141 = vmatpush.msra.mxu0 %v1038
      %1142 = vmatpush.msra.mxu0 %v1037
      %1143 = vmatmul.f32.gmra.mxu0 %v983
      %v1144 = vpop.f32.mrf.mxu0
      %v1145 = vadd.f32 0.0, %v1144
      %1146 = vmatmul.f32.gmra.mxu0 %v986
      %v1147 = vpop.f32.mrf.mxu0
      %v1148 = vadd.f32 0.0, %v1147
      %1149 = vmatmul.f32.gmra.mxu0 %v989
      %v1150 = vpop.f32.mrf.mxu0
      %v1151 = vadd.f32 0.0, %v1150
      %1152 = vmatmul.f32.gmra.mxu0 %v992
      %v1153 = vpop.f32.mrf.mxu0
      %v1154 = vadd.f32 0.0, %v1153
      %1155 = vmatmul.f32.gmra.mxu0 %v995
      %v1156 = vpop.f32.mrf.mxu0
      %v1157 = vadd.f32 0.0, %v1156
      %1158 = vmatmul.f32.gmra.mxu0 %v998
      %v1159 = vpop.f32.mrf.mxu0
      %v1160 = vadd.f32 0.0, %v1159
      %1161 = vmatmul.f32.gmra.mxu0 %v1001
      %v1162 = vpop.f32.mrf.mxu0
      %v1163 = vadd.f32 0.0, %v1162
      %1164 = vmatmul.f32.gmra.mxu0 %v1004
      %v1165 = vpop.f32.mrf.mxu0
      %v1166 = vadd.f32 0.0, %v1165
      %1167 = vmatmul.f32.gmra.mxu0 %v1007
      %v1168 = vpop.f32.mrf.mxu0
      %v1169 = vadd.f32 0.0, %v1168
      %1170 = vmatmul.f32.gmra.mxu0 %v1010
      %v1171 = vpop.f32.mrf.mxu0
      %v1172 = vadd.f32 0.0, %v1171
      %1173 = vmatmul.f32.gmra.mxu0 %v1013
      %v1174 = vpop.f32.mrf.mxu0
      %v1175 = vadd.f32 0.0, %v1174
      %1176 = vmatmul.f32.gmra.mxu0 %v1016
      %v1177 = vpop.f32.mrf.mxu0
      %v1178 = vadd.f32 0.0, %v1177
      %1179 = vmatmul.f32.gmra.mxu0 %v1019
      %v1180 = vpop.f32.mrf.mxu0
      %v1181 = vadd.f32 0.0, %v1180
      %1182 = vmatmul.f32.gmra.mxu0 %v1022
      %v1183 = vpop.f32.mrf.mxu0
      %v1184 = vadd.f32 0.0, %v1183
      %1185 = vmatmul.f32.gmra.mxu0 %v1025
      %v1186 = vpop.f32.mrf.mxu0
      %v1187 = vadd.f32 0.0, %v1186
      %1188 = vmatmul.f32.gmra.mxu0 %v1028
      %v1189 = vpop.f32.mrf.mxu0
      %v1190 = vadd.f32 0.0, %v1189
      %1191 = vmatmul.f32.gmra.mxu0 %v1031
      %v1192 = vpop.f32.mrf.mxu0
      %v1193 = vadd.f32 0.0, %v1192
      %1194 = vmatmul.f32.gmra.mxu0 %v1034
      %v1195 = vpop.f32.mrf.mxu0
      %v1196 = vadd.f32 0.0, %v1195
      %1197 = vdwg.mxu0
      %1198 = vmatpush.msra.mxu0 %v1068
      %1199 = vmatpush.msra.mxu0 %v1067
      %1200 = vmatpush.msra.mxu0 %v1066
      %1201 = vmatpush.msra.mxu0 %v1065
      %1202 = vmatpush.msra.mxu0 %v1064
      %1203 = vmatpush.msra.mxu0 %v1063
      %1204 = vmatpush.msra.mxu0 %v1062
      %1205 = vmatpush.msra.mxu0 %v1061
      %1206 = vmatpush.msra.mxu0 %v1060
      %1207 = vmatpush.msra.mxu0 %v1059
      %1208 = vmatpush.msra.mxu0 %v1058
      %1209 = vmatpush.msra.mxu0 %v1057
      %1210 = vmatpush.msra.mxu0 %v1056
      %1211 = vmatpush.msra.mxu0 %v1055
      %1212 = vmatpush.msra.mxu0 %v1054
      %1213 = vmatpush.msra.mxu0 %v1053
      %1214 = vmatmul.f32.gmra.mxu0 %v984
      %v1215 = vpop.f32.mrf.mxu0
      %v1216 = vadd.f32 %v1145, %v1215
      %1217 = vmatmul.f32.gmra.mxu0 %v987
      %v1218 = vpop.f32.mrf.mxu0
      %v1219 = vadd.f32 %v1148, %v1218
      %1220 = vmatmul.f32.gmra.mxu0 %v990
      %v1221 = vpop.f32.mrf.mxu0
      %v1222 = vadd.f32 %v1151, %v1221
      %1223 = vmatmul.f32.gmra.mxu0 %v993
      %v1224 = vpop.f32.mrf.mxu0
      %v1225 = vadd.f32 %v1154, %v1224
      %1226 = vmatmul.f32.gmra.mxu0 %v996
      %v1227 = vpop.f32.mrf.mxu0
      %v1228 = vadd.f32 %v1157, %v1227
      %1229 = vmatmul.f32.gmra.mxu0 %v999
      %v1230 = vpop.f32.mrf.mxu0
      %v1231 = vadd.f32 %v1160, %v1230
      %1232 = vmatmul.f32.gmra.mxu0 %v1002
      %v1233 = vpop.f32.mrf.mxu0
      %v1234 = vadd.f32 %v1163, %v1233
      %1235 = vmatmul.f32.gmra.mxu0 %v1005
      %v1236 = vpop.f32.mrf.mxu0
      %v1237 = vadd.f32 %v1166, %v1236
      %1238 = vmatmul.f32.gmra.mxu0 %v1008
      %v1239 = vpop.f32.mrf.mxu0
      %v1240 = vadd.f32 %v1169, %v1239
      %1241 = vmatmul.f32.gmra.mxu0 %v1011
      %v1242 = vpop.f32.mrf.mxu0
      %v1243 = vadd.f32 %v1172, %v1242
      %1244 = vmatmul.f32.gmra.mxu0 %v1014
      %v1245 = vpop.f32.mrf.mxu0
      %v1246 = vadd.f32 %v1175, %v1245
      %1247 = vmatmul.f32.gmra.mxu0 %v1017
      %v1248 = vpop.f32.mrf.mxu0
      %v1249 = vadd.f32 %v1178, %v1248
      %1250 = vmatmul.f32.gmra.mxu0 %v1020
      %v1251 = vpop.f32.mrf.mxu0
      %v1252 = vadd.f32 %v1181, %v1251
      %1253 = vmatmul.f32.gmra.mxu0 %v1023
      %v1254 = vpop.f32.mrf.mxu0
      %v1255 = vadd.f32 %v1184, %v1254
      %1256 = vmatmul.f32.gmra.mxu0 %v1026
      %v1257 = vpop.f32.mrf.mxu0
      %v1258 = vadd.f32 %v1187, %v1257
      %1259 = vmatmul.f32.gmra.mxu0 %v1029
      %v1260 = vpop.f32.mrf.mxu0
      %v1261 = vadd.f32 %v1190, %v1260
      %1262 = vmatmul.f32.gmra.mxu0 %v1032
      %v1263 = vpop.f32.mrf.mxu0
      %v1264 = vadd.f32 %v1193, %v1263
      %1265 = vmatmul.f32.gmra.mxu0 %v1035
      %v1266 = vpop.f32.mrf.mxu0
      %v1267 = vadd.f32 %v1196, %v1266
      %1268 = vdwg.mxu0
      %1269 = vmatpush.msra.mxu0 0.0
      %1270 = vmatpush.msra.mxu0 0.0
      %1271 = vmatpush.msra.mxu0 0.0
      %1272 = vmatpush.msra.mxu0 0.0
      %1273 = vmatpush.msra.mxu0 0.0
      %1274 = vmatpush.msra.mxu0 0.0
      %1275 = vmatpush.msra.mxu0 0.0
      %1276 = vmatpush.msra.mxu0 0.0
      %1277 = vmatpush.msra.mxu0 0.0
      %1278 = vmatpush.msra.mxu0 0.0
      %1279 = vmatpush.msra.mxu0 0.0
      %1280 = vmatpush.msra.mxu0 0.0
      %1281 = vmatpush.msra.mxu0 %v1072
      %1282 = vmatpush.msra.mxu0 %v1071
      %1283 = vmatpush.msra.mxu0 %v1070
      %1284 = vmatpush.msra.mxu0 %v1069
      %1285 = vmatmul.f32.gmra.mxu0 %v1074
      %v1286 = vpop.f32.mrf.mxu0
      %v1287 = vadd.f32 %v1216, %v1286
      %1288 = vmatmul.f32.gmra.mxu0 %v1077
      %v1289 = vpop.f32.mrf.mxu0
      %v1290 = vadd.f32 %v1219, %v1289
      %1291 = vmatmul.f32.gmra.mxu0 %v1080
      %v1292 = vpop.f32.mrf.mxu0
      %v1293 = vadd.f32 %v1222, %v1292
      %1294 = vmatmul.f32.gmra.mxu0 %v1083
      %v1295 = vpop.f32.mrf.mxu0
      %v1296 = vadd.f32 %v1225, %v1295
      %1297 = vmatmul.f32.gmra.mxu0 %v1086
      %v1298 = vpop.f32.mrf.mxu0
      %v1299 = vadd.f32 %v1228, %v1298
      %1300 = vmatmul.f32.gmra.mxu0 %v1089
      %v1301 = vpop.f32.mrf.mxu0
      %v1302 = vadd.f32 %v1231, %v1301
      %1303 = vmatmul.f32.gmra.mxu0 %v1092
      %v1304 = vpop.f32.mrf.mxu0
      %v1305 = vadd.f32 %v1234, %v1304
      %1306 = vmatmul.f32.gmra.mxu0 %v1095
      %v1307 = vpop.f32.mrf.mxu0
      %v1308 = vadd.f32 %v1237, %v1307
      %1309 = vmatmul.f32.gmra.mxu0 %v1098
      %v1310 = vpop.f32.mrf.mxu0
      %v1311 = vadd.f32 %v1240, %v1310
      %1312 = vmatmul.f32.gmra.mxu0 %v1101
      %v1313 = vpop.f32.mrf.mxu0
      %v1314 = vadd.f32 %v1243, %v1313
      %1315 = vmatmul.f32.gmra.mxu0 %v1104
      %v1316 = vpop.f32.mrf.mxu0
      %v1317 = vadd.f32 %v1246, %v1316
      %1318 = vmatmul.f32.gmra.mxu0 %v1107
      %v1319 = vpop.f32.mrf.mxu0
      %v1320 = vadd.f32 %v1249, %v1319
      %1321 = vmatmul.f32.gmra.mxu0 %v1110
      %v1322 = vpop.f32.mrf.mxu0
      %v1323 = vadd.f32 %v1252, %v1322
      %1324 = vmatmul.f32.gmra.mxu0 %v1113
      %v1325 = vpop.f32.mrf.mxu0
      %v1326 = vadd.f32 %v1255, %v1325
      %1327 = vmatmul.f32.gmra.mxu0 %v1116
      %v1328 = vpop.f32.mrf.mxu0
      %v1329 = vadd.f32 %v1258, %v1328
      %1330 = vmatmul.f32.gmra.mxu0 %v1119
      %v1331 = vpop.f32.mrf.mxu0
      %v1332 = vadd.f32 %v1261, %v1331
      %1333 = vmatmul.f32.gmra.mxu0 %v1122
      %v1334 = vpop.f32.mrf.mxu0
      %v1335 = vadd.f32 %v1264, %v1334
      %1336 = vmatmul.f32.gmra.mxu0 %v1125
      %v1337 = vpop.f32.mrf.mxu0
      %v1338 = vadd.f32 %v1267, %v1337
      %1339 = vdwg.mxu0
      %1340 = vst [vmem:[%s199] sm:$0xff] %v1287
      %1341 = vst [vmem:[%s199 + $0x8] sm:$0xff] %v1290
      %1342 = vst [vmem:[%s199 + $0x10] sm:$0xff] %v1293
      %1343 = vst [vmem:[%s199 + $0x18] sm:$0xff] %v1296
      %1344 = vst [vmem:[%s199 + $0x20] sm:$0xff] %v1299
      %1345 = vst [vmem:[%s199 + $0x28] sm:$0xff] %v1302
      %1346 = vst [vmem:[%s199 + $0x30] sm:$0xff] %v1305
      %1347 = vst [vmem:[%s199 + $0x38] sm:$0xff] %v1308
      %1348 = vst [vmem:[%s199 + $0x40] sm:$0xff] %v1311
      %1349 = vst [vmem:[%s199 + $0x48] sm:$0xff] %v1314
      %1350 = vst [vmem:[%s199 + $0x50] sm:$0xff] %v1317
      %1351 = vst [vmem:[%s199 + $0x58] sm:$0xff] %v1320
      %1352 = vst [vmem:[%s199 + $0x60] sm:$0xff] %v1323
      %1353 = vst [vmem:[%s199 + $0x68] sm:$0xff] %v1326
      %1354 = vst [vmem:[%s199 + $0x70] sm:$0xff] %v1329
      %1355 = vst [vmem:[%s199 + $0x78] sm:$0xff] %v1332
      %1356 = vst [vmem:[%s199 + $0x80] sm:$0xff] %v1335
      %1357 = vst [vmem:[%s199 + $0x88] sm:$0xff] %v1338
      %v1358 = vlaneseq
      %v1359 = vshrl.u32 %v1358, 7
      %v1360 = vadd.s32 %v1359, 8
      %v1361 = vadd.s32 %v1359, 16
      %v1362 = vadd.s32 %v1359, 24
      %v1363 = vadd.s32 %v1359, 32
      %v1364 = vadd.s32 %v1359, 40
      %v1365 = vadd.s32 %v1359, 48
      %v1366 = vadd.s32 %v1359, 56
      %v1367 = vadd.s32 %v1359, 64
      %v1368 = vadd.s32 %v1359, 72
      %v1369 = vadd.s32 %v1359, 80
      %v1370 = vadd.s32 %v1359, 88
      %v1371 = vadd.s32 %v1359, 96
      %v1372 = vadd.s32 %v1359, 104
      %v1373 = vadd.s32 %v1359, 112
      %v1374 = vadd.s32 %v1359, 120
      %v1375 = vadd.s32 %v1359, 128
      %v1376 = vadd.s32 %v1359, 136
      %vm1377 = vcmp.lt.s32.totalorder %v1359, 0
      %v1378 = vsub.s32 0, %v1359
      %v1379 = vsel %vm1377, %v1378, %v1359
      %v1380 = vand.u32 %v1379, 65535
      %v1381 = vshrl.u32 %v1379, 16
      %v1383 = vmul.u32 %v1380, 14564
      %v1384 = vmul.u32 %v1380, 58254
      %v1385 = vmul.u32 %v1381, 14564
      %v1386 = vmul.u32 %v1381, 58254
      %v1387 = vshll.u32 %v1384, 16
      %v1388 = vshrl.u32 %v1384, 16
      %v1389 = vshll.u32 %v1385, 16
      %v1390 = vshrl.u32 %v1385, 16
      %vm1391 = vc.u32 %v1383, %v1387
      %v1392 = vsel %vm1391, 1, 0
      %v1393 = vadd.s32 %v1383, %v1387
      %v1394 = vadd.s32 %v1386, %v1392
      %vm1395 = vc.u32 %v1393, %v1389
      %v1396 = vsel %vm1395, 1, 0
      %v1397 = vadd.s32 %v1393, %v1389
      %v1398 = vadd.s32 %v1394, %v1396
      %v1399 = vadd.s32 %v1398, %v1388
      %v1400 = vadd.s32 %v1399, %v1390
      %v1401 = vshrl.u32 %v1400, 4
      %v1402 = vmul.u32 %v1401, 18
      %v1403 = vsub.s32 %v1379, %v1402
      %v1404 = vsub.s32 0, %v1403
      %v1405 = vsel %vm1377, %v1404, %v1403
      %vm1406 = vcmp.lt.s32.totalorder %v1360, 0
      %v1407 = vsub.s32 0, %v1360
      %v1408 = vsel %vm1406, %v1407, %v1360
      %v1409 = vand.u32 %v1408, 65535
      %v1410 = vshrl.u32 %v1408, 16
      %v1412 = vmul.u32 %v1409, 14564
      %v1413 = vmul.u32 %v1409, 58254
      %v1414 = vmul.u32 %v1410, 14564
      %v1415 = vmul.u32 %v1410, 58254
      %v1416 = vshll.u32 %v1413, 16
      %v1417 = vshrl.u32 %v1413, 16
      %v1418 = vshll.u32 %v1414, 16
      %v1419 = vshrl.u32 %v1414, 16
      %vm1420 = vc.u32 %v1412, %v1416
      %v1421 = vsel %vm1420, 1, 0
      %v1422 = vadd.s32 %v1412, %v1416
      %v1423 = vadd.s32 %v1415, %v1421
      %vm1424 = vc.u32 %v1422, %v1418
      %v1425 = vsel %vm1424, 1, 0
      %v1426 = vadd.s32 %v1422, %v1418
      %v1427 = vadd.s32 %v1423, %v1425
      %v1428 = vadd.s32 %v1427, %v1417
      %v1429 = vadd.s32 %v1428, %v1419
      %v1430 = vshrl.u32 %v1429, 4
      %v1431 = vmul.u32 %v1430, 18
      %v1432 = vsub.s32 %v1408, %v1431
      %v1433 = vsub.s32 0, %v1432
      %v1434 = vsel %vm1406, %v1433, %v1432
      %vm1435 = vcmp.lt.s32.totalorder %v1361, 0
      %v1436 = vsub.s32 0, %v1361
      %v1437 = vsel %vm1435, %v1436, %v1361
      %v1438 = vand.u32 %v1437, 65535
      %v1439 = vshrl.u32 %v1437, 16
      %v1441 = vmul.u32 %v1438, 14564
      %v1442 = vmul.u32 %v1438, 58254
      %v1443 = vmul.u32 %v1439, 14564
      %v1444 = vmul.u32 %v1439, 58254
      %v1445 = vshll.u32 %v1442, 16
      %v1446 = vshrl.u32 %v1442, 16
      %v1447 = vshll.u32 %v1443, 16
      %v1448 = vshrl.u32 %v1443, 16
      %vm1449 = vc.u32 %v1441, %v1445
      %v1450 = vsel %vm1449, 1, 0
      %v1451 = vadd.s32 %v1441, %v1445
      %v1452 = vadd.s32 %v1444, %v1450
      %vm1453 = vc.u32 %v1451, %v1447
      %v1454 = vsel %vm1453, 1, 0
      %v1455 = vadd.s32 %v1451, %v1447
      %v1456 = vadd.s32 %v1452, %v1454
      %v1457 = vadd.s32 %v1456, %v1446
      %v1458 = vadd.s32 %v1457, %v1448
      %v1459 = vshrl.u32 %v1458, 4
      %v1460 = vmul.u32 %v1459, 18
      %v1461 = vsub.s32 %v1437, %v1460
      %v1462 = vsub.s32 0, %v1461
      %v1463 = vsel %vm1435, %v1462, %v1461
      %vm1464 = vcmp.lt.s32.totalorder %v1362, 0
      %v1465 = vsub.s32 0, %v1362
      %v1466 = vsel %vm1464, %v1465, %v1362
      %v1467 = vand.u32 %v1466, 65535
      %v1468 = vshrl.u32 %v1466, 16
      %v1470 = vmul.u32 %v1467, 14564
      %v1471 = vmul.u32 %v1467, 58254
      %v1472 = vmul.u32 %v1468, 14564
      %v1473 = vmul.u32 %v1468, 58254
      %v1474 = vshll.u32 %v1471, 16
      %v1475 = vshrl.u32 %v1471, 16
      %v1476 = vshll.u32 %v1472, 16
      %v1477 = vshrl.u32 %v1472, 16
      %vm1478 = vc.u32 %v1470, %v1474
      %v1479 = vsel %vm1478, 1, 0
      %v1480 = vadd.s32 %v1470, %v1474
      %v1481 = vadd.s32 %v1473, %v1479
      %vm1482 = vc.u32 %v1480, %v1476
      %v1483 = vsel %vm1482, 1, 0
      %v1484 = vadd.s32 %v1480, %v1476
      %v1485 = vadd.s32 %v1481, %v1483
      %v1486 = vadd.s32 %v1485, %v1475
      %v1487 = vadd.s32 %v1486, %v1477
      %v1488 = vshrl.u32 %v1487, 4
      %v1489 = vmul.u32 %v1488, 18
      %v1490 = vsub.s32 %v1466, %v1489
      %v1491 = vsub.s32 0, %v1490
      %v1492 = vsel %vm1464, %v1491, %v1490
      %vm1493 = vcmp.lt.s32.totalorder %v1363, 0
      %v1494 = vsub.s32 0, %v1363
      %v1495 = vsel %vm1493, %v1494, %v1363
      %v1496 = vand.u32 %v1495, 65535
      %v1497 = vshrl.u32 %v1495, 16
      %v1499 = vmul.u32 %v1496, 14564
      %v1500 = vmul.u32 %v1496, 58254
      %v1501 = vmul.u32 %v1497, 14564
      %v1502 = vmul.u32 %v1497, 58254
      %v1503 = vshll.u32 %v1500, 16
      %v1504 = vshrl.u32 %v1500, 16
      %v1505 = vshll.u32 %v1501, 16
      %v1506 = vshrl.u32 %v1501, 16
      %vm1507 = vc.u32 %v1499, %v1503
      %v1508 = vsel %vm1507, 1, 0
      %v1509 = vadd.s32 %v1499, %v1503
      %v1510 = vadd.s32 %v1502, %v1508
      %vm1511 = vc.u32 %v1509, %v1505
      %v1512 = vsel %vm1511, 1, 0
      %v1513 = vadd.s32 %v1509, %v1505
      %v1514 = vadd.s32 %v1510, %v1512
      %v1515 = vadd.s32 %v1514, %v1504
      %v1516 = vadd.s32 %v1515, %v1506
      %v1517 = vshrl.u32 %v1516, 4
      %v1518 = vmul.u32 %v1517, 18
      %v1519 = vsub.s32 %v1495, %v1518
      %v1520 = vsub.s32 0, %v1519
      %v1521 = vsel %vm1493, %v1520, %v1519
      %vm1522 = vcmp.lt.s32.totalorder %v1364, 0
      %v1523 = vsub.s32 0, %v1364
      %v1524 = vsel %vm1522, %v1523, %v1364
      %v1525 = vand.u32 %v1524, 65535
      %v1526 = vshrl.u32 %v1524, 16
      %v1528 = vmul.u32 %v1525, 14564
      %v1529 = vmul.u32 %v1525, 58254
      %v1530 = vmul.u32 %v1526, 14564
      %v1531 = vmul.u32 %v1526, 58254
      %v1532 = vshll.u32 %v1529, 16
      %v1533 = vshrl.u32 %v1529, 16
      %v1534 = vshll.u32 %v1530, 16
      %v1535 = vshrl.u32 %v1530, 16
      %vm1536 = vc.u32 %v1528, %v1532
      %v1537 = vsel %vm1536, 1, 0
      %v1538 = vadd.s32 %v1528, %v1532
      %v1539 = vadd.s32 %v1531, %v1537
      %vm1540 = vc.u32 %v1538, %v1534
      %v1541 = vsel %vm1540, 1, 0
      %v1542 = vadd.s32 %v1538, %v1534
      %v1543 = vadd.s32 %v1539, %v1541
      %v1544 = vadd.s32 %v1543, %v1533
      %v1545 = vadd.s32 %v1544, %v1535
      %v1546 = vshrl.u32 %v1545, 4
      %v1547 = vmul.u32 %v1546, 18
      %v1548 = vsub.s32 %v1524, %v1547
      %v1549 = vsub.s32 0, %v1548
      %v1550 = vsel %vm1522, %v1549, %v1548
      %vm1551 = vcmp.lt.s32.totalorder %v1365, 0
      %v1552 = vsub.s32 0, %v1365
      %v1553 = vsel %vm1551, %v1552, %v1365
      %v1554 = vand.u32 %v1553, 65535
      %v1555 = vshrl.u32 %v1553, 16
      %v1557 = vmul.u32 %v1554, 14564
      %v1558 = vmul.u32 %v1554, 58254
      %v1559 = vmul.u32 %v1555, 14564
      %v1560 = vmul.u32 %v1555, 58254
      %v1561 = vshll.u32 %v1558, 16
      %v1562 = vshrl.u32 %v1558, 16
      %v1563 = vshll.u32 %v1559, 16
      %v1564 = vshrl.u32 %v1559, 16
      %vm1565 = vc.u32 %v1557, %v1561
      %v1566 = vsel %vm1565, 1, 0
      %v1567 = vadd.s32 %v1557, %v1561
      %v1568 = vadd.s32 %v1560, %v1566
      %vm1569 = vc.u32 %v1567, %v1563
      %v1570 = vsel %vm1569, 1, 0
      %v1571 = vadd.s32 %v1567, %v1563
      %v1572 = vadd.s32 %v1568, %v1570
      %v1573 = vadd.s32 %v1572, %v1562
      %v1574 = vadd.s32 %v1573, %v1564
      %v1575 = vshrl.u32 %v1574, 4
      %v1576 = vmul.u32 %v1575, 18
      %v1577 = vsub.s32 %v1553, %v1576
      %v1578 = vsub.s32 0, %v1577
      %v1579 = vsel %vm1551, %v1578, %v1577
      %vm1580 = vcmp.lt.s32.totalorder %v1366, 0
      %v1581 = vsub.s32 0, %v1366
      %v1582 = vsel %vm1580, %v1581, %v1366
      %v1583 = vand.u32 %v1582, 65535
      %v1584 = vshrl.u32 %v1582, 16
      %v1586 = vmul.u32 %v1583, 14564
      %v1587 = vmul.u32 %v1583, 58254
      %v1588 = vmul.u32 %v1584, 14564
      %v1589 = vmul.u32 %v1584, 58254
      %v1590 = vshll.u32 %v1587, 16
      %v1591 = vshrl.u32 %v1587, 16
      %v1592 = vshll.u32 %v1588, 16
      %v1593 = vshrl.u32 %v1588, 16
      %vm1594 = vc.u32 %v1586, %v1590
      %v1595 = vsel %vm1594, 1, 0
      %v1596 = vadd.s32 %v1586, %v1590
      %v1597 = vadd.s32 %v1589, %v1595
      %vm1598 = vc.u32 %v1596, %v1592
      %v1599 = vsel %vm1598, 1, 0
      %v1600 = vadd.s32 %v1596, %v1592
      %v1601 = vadd.s32 %v1597, %v1599
      %v1602 = vadd.s32 %v1601, %v1591
      %v1603 = vadd.s32 %v1602, %v1593
      %v1604 = vshrl.u32 %v1603, 4
      %v1605 = vmul.u32 %v1604, 18
      %v1606 = vsub.s32 %v1582, %v1605
      %v1607 = vsub.s32 0, %v1606
      %v1608 = vsel %vm1580, %v1607, %v1606
      %vm1609 = vcmp.lt.s32.totalorder %v1367, 0
      %v1610 = vsub.s32 0, %v1367
      %v1611 = vsel %vm1609, %v1610, %v1367
      %v1612 = vand.u32 %v1611, 65535
      %v1613 = vshrl.u32 %v1611, 16
      %v1615 = vmul.u32 %v1612, 14564
      %v1616 = vmul.u32 %v1612, 58254
      %v1617 = vmul.u32 %v1613, 14564
      %v1618 = vmul.u32 %v1613, 58254
      %v1619 = vshll.u32 %v1616, 16
      %v1620 = vshrl.u32 %v1616, 16
      %v1621 = vshll.u32 %v1617, 16
      %v1622 = vshrl.u32 %v1617, 16
      %vm1623 = vc.u32 %v1615, %v1619
      %v1624 = vsel %vm1623, 1, 0
      %v1625 = vadd.s32 %v1615, %v1619
      %v1626 = vadd.s32 %v1618, %v1624
      %vm1627 = vc.u32 %v1625, %v1621
      %v1628 = vsel %vm1627, 1, 0
      %v1629 = vadd.s32 %v1625, %v1621
      %v1630 = vadd.s32 %v1626, %v1628
      %v1631 = vadd.s32 %v1630, %v1620
      %v1632 = vadd.s32 %v1631, %v1622
      %v1633 = vshrl.u32 %v1632, 4
      %v1634 = vmul.u32 %v1633, 18
      %v1635 = vsub.s32 %v1611, %v1634
      %v1636 = vsub.s32 0, %v1635
      %v1637 = vsel %vm1609, %v1636, %v1635
      %vm1638 = vcmp.lt.s32.totalorder %v1368, 0
      %v1639 = vsub.s32 0, %v1368
      %v1640 = vsel %vm1638, %v1639, %v1368
      %v1641 = vand.u32 %v1640, 65535
      %v1642 = vshrl.u32 %v1640, 16
      %v1644 = vmul.u32 %v1641, 14564
      %v1645 = vmul.u32 %v1641, 58254
      %v1646 = vmul.u32 %v1642, 14564
      %v1647 = vmul.u32 %v1642, 58254
      %v1648 = vshll.u32 %v1645, 16
      %v1649 = vshrl.u32 %v1645, 16
      %v1650 = vshll.u32 %v1646, 16
      %v1651 = vshrl.u32 %v1646, 16
      %vm1652 = vc.u32 %v1644, %v1648
      %v1653 = vsel %vm1652, 1, 0
      %v1654 = vadd.s32 %v1644, %v1648
      %v1655 = vadd.s32 %v1647, %v1653
      %vm1656 = vc.u32 %v1654, %v1650
      %v1657 = vsel %vm1656, 1, 0
      %v1658 = vadd.s32 %v1654, %v1650
      %v1659 = vadd.s32 %v1655, %v1657
      %v1660 = vadd.s32 %v1659, %v1649
      %v1661 = vadd.s32 %v1660, %v1651
      %v1662 = vshrl.u32 %v1661, 4
      %v1663 = vmul.u32 %v1662, 18
      %v1664 = vsub.s32 %v1640, %v1663
      %v1665 = vsub.s32 0, %v1664
      %v1666 = vsel %vm1638, %v1665, %v1664
      %vm1667 = vcmp.lt.s32.totalorder %v1369, 0
      %v1668 = vsub.s32 0, %v1369
      %v1669 = vsel %vm1667, %v1668, %v1369
      %v1670 = vand.u32 %v1669, 65535
      %v1671 = vshrl.u32 %v1669, 16
      %v1673 = vmul.u32 %v1670, 14564
      %v1674 = vmul.u32 %v1670, 58254
      %v1675 = vmul.u32 %v1671, 14564
      %v1676 = vmul.u32 %v1671, 58254
      %v1677 = vshll.u32 %v1674, 16
      %v1678 = vshrl.u32 %v1674, 16
      %v1679 = vshll.u32 %v1675, 16
      %v1680 = vshrl.u32 %v1675, 16
      %vm1681 = vc.u32 %v1673, %v1677
      %v1682 = vsel %vm1681, 1, 0
      %v1683 = vadd.s32 %v1673, %v1677
      %v1684 = vadd.s32 %v1676, %v1682
      %vm1685 = vc.u32 %v1683, %v1679
      %v1686 = vsel %vm1685, 1, 0
      %v1687 = vadd.s32 %v1683, %v1679
      %v1688 = vadd.s32 %v1684, %v1686
      %v1689 = vadd.s32 %v1688, %v1678
      %v1690 = vadd.s32 %v1689, %v1680
      %v1691 = vshrl.u32 %v1690, 4
      %v1692 = vmul.u32 %v1691, 18
      %v1693 = vsub.s32 %v1669, %v1692
      %v1694 = vsub.s32 0, %v1693
      %v1695 = vsel %vm1667, %v1694, %v1693
      %vm1696 = vcmp.lt.s32.totalorder %v1370, 0
      %v1697 = vsub.s32 0, %v1370
      %v1698 = vsel %vm1696, %v1697, %v1370
      %v1699 = vand.u32 %v1698, 65535
      %v1700 = vshrl.u32 %v1698, 16
      %v1702 = vmul.u32 %v1699, 14564
      %v1703 = vmul.u32 %v1699, 58254
      %v1704 = vmul.u32 %v1700, 14564
      %v1705 = vmul.u32 %v1700, 58254
      %v1706 = vshll.u32 %v1703, 16
      %v1707 = vshrl.u32 %v1703, 16
      %v1708 = vshll.u32 %v1704, 16
      %v1709 = vshrl.u32 %v1704, 16
      %vm1710 = vc.u32 %v1702, %v1706
      %v1711 = vsel %vm1710, 1, 0
      %v1712 = vadd.s32 %v1702, %v1706
      %v1713 = vadd.s32 %v1705, %v1711
      %vm1714 = vc.u32 %v1712, %v1708
      %v1715 = vsel %vm1714, 1, 0
      %v1716 = vadd.s32 %v1712, %v1708
      %v1717 = vadd.s32 %v1713, %v1715
      %v1718 = vadd.s32 %v1717, %v1707
      %v1719 = vadd.s32 %v1718, %v1709
      %v1720 = vshrl.u32 %v1719, 4
      %v1721 = vmul.u32 %v1720, 18
      %v1722 = vsub.s32 %v1698, %v1721
      %v1723 = vsub.s32 0, %v1722
      %v1724 = vsel %vm1696, %v1723, %v1722
      %vm1725 = vcmp.lt.s32.totalorder %v1371, 0
      %v1726 = vsub.s32 0, %v1371
      %v1727 = vsel %vm1725, %v1726, %v1371
      %v1728 = vand.u32 %v1727, 65535
      %v1729 = vshrl.u32 %v1727, 16
      %v1731 = vmul.u32 %v1728, 14564
      %v1732 = vmul.u32 %v1728, 58254
      %v1733 = vmul.u32 %v1729, 14564
      %v1734 = vmul.u32 %v1729, 58254
      %v1735 = vshll.u32 %v1732, 16
      %v1736 = vshrl.u32 %v1732, 16
      %v1737 = vshll.u32 %v1733, 16
      %v1738 = vshrl.u32 %v1733, 16
      %vm1739 = vc.u32 %v1731, %v1735
      %v1740 = vsel %vm1739, 1, 0
      %v1741 = vadd.s32 %v1731, %v1735
      %v1742 = vadd.s32 %v1734, %v1740
      %vm1743 = vc.u32 %v1741, %v1737
      %v1744 = vsel %vm1743, 1, 0
      %v1745 = vadd.s32 %v1741, %v1737
      %v1746 = vadd.s32 %v1742, %v1744
      %v1747 = vadd.s32 %v1746, %v1736
      %v1748 = vadd.s32 %v1747, %v1738
      %v1749 = vshrl.u32 %v1748, 4
      %v1750 = vmul.u32 %v1749, 18
      %v1751 = vsub.s32 %v1727, %v1750
      %v1752 = vsub.s32 0, %v1751
      %v1753 = vsel %vm1725, %v1752, %v1751
      %vm1754 = vcmp.lt.s32.totalorder %v1372, 0
      %v1755 = vsub.s32 0, %v1372
      %v1756 = vsel %vm1754, %v1755, %v1372
      %v1757 = vand.u32 %v1756, 65535
      %v1758 = vshrl.u32 %v1756, 16
      %v1760 = vmul.u32 %v1757, 14564
      %v1761 = vmul.u32 %v1757, 58254
      %v1762 = vmul.u32 %v1758, 14564
      %v1763 = vmul.u32 %v1758, 58254
      %v1764 = vshll.u32 %v1761, 16
      %v1765 = vshrl.u32 %v1761, 16
      %v1766 = vshll.u32 %v1762, 16
      %v1767 = vshrl.u32 %v1762, 16
      %vm1768 = vc.u32 %v1760, %v1764
      %v1769 = vsel %vm1768, 1, 0
      %v1770 = vadd.s32 %v1760, %v1764
      %v1771 = vadd.s32 %v1763, %v1769
      %vm1772 = vc.u32 %v1770, %v1766
      %v1773 = vsel %vm1772, 1, 0
      %v1774 = vadd.s32 %v1770, %v1766
      %v1775 = vadd.s32 %v1771, %v1773
      %v1776 = vadd.s32 %v1775, %v1765
      %v1777 = vadd.s32 %v1776, %v1767
      %v1778 = vshrl.u32 %v1777, 4
      %v1779 = vmul.u32 %v1778, 18
      %v1780 = vsub.s32 %v1756, %v1779
      %v1781 = vsub.s32 0, %v1780
      %v1782 = vsel %vm1754, %v1781, %v1780
      %vm1783 = vcmp.lt.s32.totalorder %v1373, 0
      %v1784 = vsub.s32 0, %v1373
      %v1785 = vsel %vm1783, %v1784, %v1373
      %v1786 = vand.u32 %v1785, 65535
      %v1787 = vshrl.u32 %v1785, 16
      %v1789 = vmul.u32 %v1786, 14564
      %v1790 = vmul.u32 %v1786, 58254
      %v1791 = vmul.u32 %v1787, 14564
      %v1792 = vmul.u32 %v1787, 58254
      %v1793 = vshll.u32 %v1790, 16
      %v1794 = vshrl.u32 %v1790, 16
      %v1795 = vshll.u32 %v1791, 16
      %v1796 = vshrl.u32 %v1791, 16
      %vm1797 = vc.u32 %v1789, %v1793
      %v1798 = vsel %vm1797, 1, 0
      %v1799 = vadd.s32 %v1789, %v1793
      %v1800 = vadd.s32 %v1792, %v1798
      %vm1801 = vc.u32 %v1799, %v1795
      %v1802 = vsel %vm1801, 1, 0
      %v1803 = vadd.s32 %v1799, %v1795
      %v1804 = vadd.s32 %v1800, %v1802
      %v1805 = vadd.s32 %v1804, %v1794
      %v1806 = vadd.s32 %v1805, %v1796
      %v1807 = vshrl.u32 %v1806, 4
      %v1808 = vmul.u32 %v1807, 18
      %v1809 = vsub.s32 %v1785, %v1808
      %v1810 = vsub.s32 0, %v1809
      %v1811 = vsel %vm1783, %v1810, %v1809
      %vm1812 = vcmp.lt.s32.totalorder %v1374, 0
      %v1813 = vsub.s32 0, %v1374
      %v1814 = vsel %vm1812, %v1813, %v1374
      %v1815 = vand.u32 %v1814, 65535
      %v1816 = vshrl.u32 %v1814, 16
      %v1818 = vmul.u32 %v1815, 14564
      %v1819 = vmul.u32 %v1815, 58254
      %v1820 = vmul.u32 %v1816, 14564
      %v1821 = vmul.u32 %v1816, 58254
      %v1822 = vshll.u32 %v1819, 16
      %v1823 = vshrl.u32 %v1819, 16
      %v1824 = vshll.u32 %v1820, 16
      %v1825 = vshrl.u32 %v1820, 16
      %vm1826 = vc.u32 %v1818, %v1822
      %v1827 = vsel %vm1826, 1, 0
      %v1828 = vadd.s32 %v1818, %v1822
      %v1829 = vadd.s32 %v1821, %v1827
      %vm1830 = vc.u32 %v1828, %v1824
      %v1831 = vsel %vm1830, 1, 0
      %v1832 = vadd.s32 %v1828, %v1824
      %v1833 = vadd.s32 %v1829, %v1831
      %v1834 = vadd.s32 %v1833, %v1823
      %v1835 = vadd.s32 %v1834, %v1825
      %v1836 = vshrl.u32 %v1835, 4
      %v1837 = vmul.u32 %v1836, 18
      %v1838 = vsub.s32 %v1814, %v1837
      %v1839 = vsub.s32 0, %v1838
      %v1840 = vsel %vm1812, %v1839, %v1838
      %vm1841 = vcmp.lt.s32.totalorder %v1375, 0
      %v1842 = vsub.s32 0, %v1375
      %v1843 = vsel %vm1841, %v1842, %v1375
      %v1844 = vand.u32 %v1843, 65535
      %v1845 = vshrl.u32 %v1843, 16
      %v1847 = vmul.u32 %v1844, 14564
      %v1848 = vmul.u32 %v1844, 58254
      %v1849 = vmul.u32 %v1845, 14564
      %v1850 = vmul.u32 %v1845, 58254
      %v1851 = vshll.u32 %v1848, 16
      %v1852 = vshrl.u32 %v1848, 16
      %v1853 = vshll.u32 %v1849, 16
      %v1854 = vshrl.u32 %v1849, 16
      %vm1855 = vc.u32 %v1847, %v1851
      %v1856 = vsel %vm1855, 1, 0
      %v1857 = vadd.s32 %v1847, %v1851
      %v1858 = vadd.s32 %v1850, %v1856
      %vm1859 = vc.u32 %v1857, %v1853
      %v1860 = vsel %vm1859, 1, 0
      %v1861 = vadd.s32 %v1857, %v1853
      %v1862 = vadd.s32 %v1858, %v1860
      %v1863 = vadd.s32 %v1862, %v1852
      %v1864 = vadd.s32 %v1863, %v1854
      %v1865 = vshrl.u32 %v1864, 4
      %v1866 = vmul.u32 %v1865, 18
      %v1867 = vsub.s32 %v1843, %v1866
      %v1868 = vsub.s32 0, %v1867
      %v1869 = vsel %vm1841, %v1868, %v1867
      %vm1870 = vcmp.lt.s32.totalorder %v1376, 0
      %v1871 = vsub.s32 0, %v1376
      %v1872 = vsel %vm1870, %v1871, %v1376
      %v1873 = vand.u32 %v1872, 65535
      %v1874 = vshrl.u32 %v1872, 16
      %v1876 = vmul.u32 %v1873, 14564
      %v1877 = vmul.u32 %v1873, 58254
      %v1878 = vmul.u32 %v1874, 14564
      %v1879 = vmul.u32 %v1874, 58254
      %v1880 = vshll.u32 %v1877, 16
      %v1881 = vshrl.u32 %v1877, 16
      %v1882 = vshll.u32 %v1878, 16
      %v1883 = vshrl.u32 %v1878, 16
      %vm1884 = vc.u32 %v1876, %v1880
      %v1885 = vsel %vm1884, 1, 0
      %v1886 = vadd.s32 %v1876, %v1880
      %v1887 = vadd.s32 %v1879, %v1885
      %vm1888 = vc.u32 %v1886, %v1882
      %v1889 = vsel %vm1888, 1, 0
      %v1890 = vadd.s32 %v1886, %v1882
      %v1891 = vadd.s32 %v1887, %v1889
      %v1892 = vadd.s32 %v1891, %v1881
      %v1893 = vadd.s32 %v1892, %v1883
      %v1894 = vshrl.u32 %v1893, 4
      %v1895 = vmul.u32 %v1894, 18
      %v1896 = vsub.s32 %v1872, %v1895
      %v1897 = vsub.s32 0, %v1896
      %v1898 = vsel %vm1870, %v1897, %v1896
      %vm1899 = vcmp.ne.s32.totalorder %v1405, 0
      %vm1900 = vcmp.ne.s32.totalorder %v1434, 0
      %vm1901 = vcmp.ne.s32.totalorder %v1463, 0
      %vm1902 = vcmp.ne.s32.totalorder %v1492, 0
      %vm1903 = vcmp.ne.s32.totalorder %v1521, 0
      %vm1904 = vcmp.ne.s32.totalorder %v1550, 0
      %vm1905 = vcmp.ne.s32.totalorder %v1579, 0
      %vm1906 = vcmp.ne.s32.totalorder %v1608, 0
      %vm1907 = vcmp.ne.s32.totalorder %v1637, 0
      %vm1908 = vcmp.ne.s32.totalorder %v1666, 0
      %vm1909 = vcmp.ne.s32.totalorder %v1695, 0
      %vm1910 = vcmp.ne.s32.totalorder %v1724, 0
      %vm1911 = vcmp.ne.s32.totalorder %v1753, 0
      %vm1912 = vcmp.ne.s32.totalorder %v1782, 0
      %vm1913 = vcmp.ne.s32.totalorder %v1811, 0
      %vm1914 = vcmp.ne.s32.totalorder %v1840, 0
      %vm1915 = vcmp.ne.s32.totalorder %v1869, 0
      %vm1916 = vcmp.ne.s32.totalorder %v1898, 0
      %vm1917 = vcmp.lt.s32.totalorder %v1405, 0
      %vm1918 = vcmp.lt.s32.totalorder %v1434, 0
      %vm1919 = vcmp.lt.s32.totalorder %v1463, 0
      %vm1920 = vcmp.lt.s32.totalorder %v1492, 0
      %vm1921 = vcmp.lt.s32.totalorder %v1521, 0
      %vm1922 = vcmp.lt.s32.totalorder %v1550, 0
      %vm1923 = vcmp.lt.s32.totalorder %v1579, 0
      %vm1924 = vcmp.lt.s32.totalorder %v1608, 0
      %vm1925 = vcmp.lt.s32.totalorder %v1637, 0
      %vm1926 = vcmp.lt.s32.totalorder %v1666, 0
      %vm1927 = vcmp.lt.s32.totalorder %v1695, 0
      %vm1928 = vcmp.lt.s32.totalorder %v1724, 0
      %vm1929 = vcmp.lt.s32.totalorder %v1753, 0
      %vm1930 = vcmp.lt.s32.totalorder %v1782, 0
      %vm1931 = vcmp.lt.s32.totalorder %v1811, 0
      %vm1932 = vcmp.lt.s32.totalorder %v1840, 0
      %vm1933 = vcmp.lt.s32.totalorder %v1869, 0
      %vm1934 = vcmp.lt.s32.totalorder %v1898, 0
      %vm1935 = vmand %vm1917, %vm1899
      %vm1936 = vmand %vm1918, %vm1900
      %vm1937 = vmand %vm1919, %vm1901
      %vm1938 = vmand %vm1920, %vm1902
      %vm1939 = vmand %vm1921, %vm1903
      %vm1940 = vmand %vm1922, %vm1904
      %vm1941 = vmand %vm1923, %vm1905
      %vm1942 = vmand %vm1924, %vm1906
      %vm1943 = vmand %vm1925, %vm1907
      %vm1944 = vmand %vm1926, %vm1908
      %vm1945 = vmand %vm1927, %vm1909
      %vm1946 = vmand %vm1928, %vm1910
      %vm1947 = vmand %vm1929, %vm1911
      %vm1948 = vmand %vm1930, %vm1912
      %vm1949 = vmand %vm1931, %vm1913
      %vm1950 = vmand %vm1932, %vm1914
      %vm1951 = vmand %vm1933, %vm1915
      %vm1952 = vmand %vm1934, %vm1916
      %v1953 = vadd.s32 %v1405, 18
      %v1954 = vadd.s32 %v1434, 18
      %v1955 = vadd.s32 %v1463, 18
      %v1956 = vadd.s32 %v1492, 18
      %v1957 = vadd.s32 %v1521, 18
      %v1958 = vadd.s32 %v1550, 18
      %v1959 = vadd.s32 %v1579, 18
      %v1960 = vadd.s32 %v1608, 18
      %v1961 = vadd.s32 %v1637, 18
      %v1962 = vadd.s32 %v1666, 18
      %v1963 = vadd.s32 %v1695, 18
      %v1964 = vadd.s32 %v1724, 18
      %v1965 = vadd.s32 %v1753, 18
      %v1966 = vadd.s32 %v1782, 18
      %v1967 = vadd.s32 %v1811, 18
      %v1968 = vadd.s32 %v1840, 18
      %v1969 = vadd.s32 %v1869, 18
      %v1970 = vadd.s32 %v1898, 18
      %v1971 = vsel %vm1935, %v1953, %v1405
      %v1972 = vsel %vm1936, %v1954, %v1434
      %v1973 = vsel %vm1937, %v1955, %v1463
      %v1974 = vsel %vm1938, %v1956, %v1492
      %v1975 = vsel %vm1939, %v1957, %v1521
      %v1976 = vsel %vm1940, %v1958, %v1550
      %v1977 = vsel %vm1941, %v1959, %v1579
      %v1978 = vsel %vm1942, %v1960, %v1608
      %v1979 = vsel %vm1943, %v1961, %v1637
      %v1980 = vsel %vm1944, %v1962, %v1666
      %v1981 = vsel %vm1945, %v1963, %v1695
      %v1982 = vsel %vm1946, %v1964, %v1724
      %v1983 = vsel %vm1947, %v1965, %v1753
      %v1984 = vsel %vm1948, %v1966, %v1782
      %v1985 = vsel %vm1949, %v1967, %v1811
      %v1986 = vsel %vm1950, %v1968, %v1840
      %v1987 = vsel %vm1951, %v1969, %v1869
      %v1988 = vsel %vm1952, %v1970, %v1898
      %vm1989 = vcmp.lt.s32.totalorder %v1971, 16
      %vm1990 = vcmp.lt.s32.totalorder %v1972, 16
      %vm1991 = vcmp.lt.s32.totalorder %v1973, 16
      %vm1992 = vcmp.lt.s32.totalorder %v1974, 16
      %vm1993 = vcmp.lt.s32.totalorder %v1975, 16
      %vm1994 = vcmp.lt.s32.totalorder %v1976, 16
      %vm1995 = vcmp.lt.s32.totalorder %v1977, 16
      %vm1996 = vcmp.lt.s32.totalorder %v1978, 16
      %vm1997 = vcmp.lt.s32.totalorder %v1979, 16
      %vm1998 = vcmp.lt.s32.totalorder %v1980, 16
      %vm1999 = vcmp.lt.s32.totalorder %v1981, 16
      %vm2000 = vcmp.lt.s32.totalorder %v1982, 16
      %vm2001 = vcmp.lt.s32.totalorder %v1983, 16
      %vm2002 = vcmp.lt.s32.totalorder %v1984, 16
      %vm2003 = vcmp.lt.s32.totalorder %v1985, 16
      %vm2004 = vcmp.lt.s32.totalorder %v1986, 16
      %vm2005 = vcmp.lt.s32.totalorder %v1987, 16
      %vm2006 = vcmp.lt.s32.totalorder %v1988, 16
      %v2007 = vsel %vm1989, 1, 0
      %v2008 = vsel %vm1990, 1, 0
      %v2009 = vsel %vm1991, 1, 0
      %v2010 = vsel %vm1992, 1, 0
      %v2011 = vsel %vm1993, 1, 0
      %v2012 = vsel %vm1994, 1, 0
      %v2013 = vsel %vm1995, 1, 0
      %v2014 = vsel %vm1996, 1, 0
      %v2015 = vsel %vm1997, 1, 0
      %v2016 = vsel %vm1998, 1, 0
      %v2017 = vsel %vm1999, 1, 0
      %v2018 = vsel %vm2000, 1, 0
      %v2019 = vsel %vm2001, 1, 0
      %v2020 = vsel %vm2002, 1, 0
      %v2021 = vsel %vm2003, 1, 0
      %v2022 = vsel %vm2004, 1, 0
      %v2023 = vsel %vm2005, 1, 0
      %v2024 = vsel %vm2006, 1, 0
      %vm2025 = vcmp.eq.s32.totalorder %v2007, 1
      %vm2026 = vcmp.eq.s32.totalorder %v2008, 1
      %vm2027 = vcmp.eq.s32.totalorder %v2009, 1
      %vm2028 = vcmp.eq.s32.totalorder %v2010, 1
      %vm2029 = vcmp.eq.s32.totalorder %v2011, 1
      %vm2030 = vcmp.eq.s32.totalorder %v2012, 1
      %vm2031 = vcmp.eq.s32.totalorder %v2013, 1
      %vm2032 = vcmp.eq.s32.totalorder %v2014, 1
      %vm2033 = vcmp.eq.s32.totalorder %v2015, 1
      %vm2034 = vcmp.eq.s32.totalorder %v2016, 1
      %vm2035 = vcmp.eq.s32.totalorder %v2017, 1
      %vm2036 = vcmp.eq.s32.totalorder %v2018, 1
      %vm2037 = vcmp.eq.s32.totalorder %v2019, 1
      %vm2038 = vcmp.eq.s32.totalorder %v2020, 1
      %vm2039 = vcmp.eq.s32.totalorder %v2021, 1
      %vm2040 = vcmp.eq.s32.totalorder %v2022, 1
      %vm2041 = vcmp.eq.s32.totalorder %v2023, 1
      %vm2042 = vcmp.eq.s32.totalorder %v2024, 1
      %v2043 = vsel %vm2025, %v1287, 0.0
      %v2044 = vsel %vm2026, %v1290, 0.0
      %v2045 = vsel %vm2027, %v1293, 0.0
      %v2046 = vsel %vm2028, %v1296, 0.0
      %v2047 = vsel %vm2029, %v1299, 0.0
      %v2048 = vsel %vm2030, %v1302, 0.0
      %v2049 = vsel %vm2031, %v1305, 0.0
      %v2050 = vsel %vm2032, %v1308, 0.0
      %v2051 = vsel %vm2033, %v1311, 0.0
      %v2052 = vsel %vm2034, %v1314, 0.0
      %v2053 = vsel %vm2035, %v1317, 0.0
      %v2054 = vsel %vm2036, %v1320, 0.0
      %v2055 = vsel %vm2037, %v1323, 0.0
      %v2056 = vsel %vm2038, %v1326, 0.0
      %v2057 = vsel %vm2039, %v1329, 0.0
      %v2058 = vsel %vm2040, %v1332, 0.0
      %v2059 = vsel %vm2041, %v1335, 0.0
      %v2060 = vsel %vm2042, %v1338, 0.0
      %v2061 = vadd.f32 %v2043, %v2044
      %v2062 = vadd.f32 %v2061, %v2045
      %v2063 = vadd.f32 %v2062, %v2046
      %v2064 = vadd.f32 %v2063, %v2047
      %v2065 = vadd.f32 %v2064, %v2048
      %v2066 = vadd.f32 %v2065, %v2049
      %v2067 = vadd.f32 %v2066, %v2050
      %v2068 = vadd.f32 %v2067, %v2051
      %v2069 = vadd.f32 %v2068, %v2052
      %v2070 = vadd.f32 %v2069, %v2053
      %v2071 = vadd.f32 %v2070, %v2054
      %v2072 = vadd.f32 %v2071, %v2055
      %v2073 = vadd.f32 %v2072, %v2056
      %v2074 = vadd.f32 %v2073, %v2057
      %v2075 = vadd.f32 %v2074, %v2058
      %v2076 = vadd.f32 %v2075, %v2059
      %v2077 = vadd.f32 %v2076, %v2060
      %v2078 = vrot.slane %v2077, 4
      %v2079 = vadd.f32 %v2077, %v2078
      %v2080 = vrot.slane %v2079, 2
      %v2081 = vadd.f32 %v2079, %v2080
      %v2082 = vrot.slane %v2081, 1
      %v2083 = vadd.f32 %v2081, %v2082
      %v2084 = vmul.f32 %v2043, %v2043
      %v2085 = vmul.f32 %v2044, %v2044
      %v2086 = vmul.f32 %v2045, %v2045
      %v2087 = vmul.f32 %v2046, %v2046
      %v2088 = vmul.f32 %v2047, %v2047
      %v2089 = vmul.f32 %v2048, %v2048
      %v2090 = vmul.f32 %v2049, %v2049
      %v2091 = vmul.f32 %v2050, %v2050
      %v2092 = vmul.f32 %v2051, %v2051
      %v2093 = vmul.f32 %v2052, %v2052
      %v2094 = vmul.f32 %v2053, %v2053
      %v2095 = vmul.f32 %v2054, %v2054
      %v2096 = vmul.f32 %v2055, %v2055
      %v2097 = vmul.f32 %v2056, %v2056
      %v2098 = vmul.f32 %v2057, %v2057
      %v2099 = vmul.f32 %v2058, %v2058
      %v2100 = vmul.f32 %v2059, %v2059
      %v2101 = vmul.f32 %v2060, %v2060
      %v2102 = vadd.f32 %v2084, %v2085
      %v2103 = vadd.f32 %v2102, %v2086
      %v2104 = vadd.f32 %v2103, %v2087
      %v2105 = vadd.f32 %v2104, %v2088
      %v2106 = vadd.f32 %v2105, %v2089
      %v2107 = vadd.f32 %v2106, %v2090
      %v2108 = vadd.f32 %v2107, %v2091
      %v2109 = vadd.f32 %v2108, %v2092
      %v2110 = vadd.f32 %v2109, %v2093
      %v2111 = vadd.f32 %v2110, %v2094
      %v2112 = vadd.f32 %v2111, %v2095
      %v2113 = vadd.f32 %v2112, %v2096
      %v2114 = vadd.f32 %v2113, %v2097
      %v2115 = vadd.f32 %v2114, %v2098
      %v2116 = vadd.f32 %v2115, %v2099
      %v2117 = vadd.f32 %v2116, %v2100
      %v2118 = vadd.f32 %v2117, %v2101
      %v2119 = vrot.slane %v2118, 4
      %v2120 = vadd.f32 %v2118, %v2119
      %v2121 = vrot.slane %v2120, 2
      %v2122 = vadd.f32 %v2120, %v2121
      %v2123 = vrot.slane %v2122, 1
      %v2124 = vadd.f32 %v2122, %v2123
      %p2125 = scmp.eq.s32.totalorder %s20, 0
      // Predicated region
      $region29: #{inception2d.12} parent=27 // pred_check
        %p2126 = pneg %p2125
      $region30: #{inception2d.12} parent=27 // pred_check_branch
        %2128 = sbr.rel (%p2126) target = $region32
      $region31: #{inception2d.12} parent=27 // pred_region
        %2129 = vst [vmem:[%s204] sm:$0x1] %v2083
        %2130 = vst [vmem:[%s204 + $0x1] sm:$0x1] %v2124
      $region32: #{inception2d.12} parent=27 // pred_fallthru
        _
      %p2131 = scmp.gt.s32.totalorder %s20, 0
      // Predicated region
      $region33: #{inception2d.12} parent=27 // pred_check
        %p2132 = pneg %p2131
      $region34: #{inception2d.12} parent=27 // pred_check_branch
        %2134 = sbr.rel (%p2132) target = $region36
      $region35: #{inception2d.12} parent=27 // pred_region
        %v2135 = vld [vmem:[%s204] sm:$0x1]
        %v2136 = vadd.f32 %v2135, %v2083
        %2137 = vst [vmem:[%s204] sm:$0x1] %v2136
        %v2138 = vld [vmem:[%s204 + $0x1] sm:$0x1]
        %v2139 = vadd.f32 %v2138, %v2124
        %2140 = vst [vmem:[%s204 + $0x1] sm:$0x1] %v2139
      $region36: #{inception2d.12} parent=27 // pred_fallthru
        _
      %s2141 = smul.u32 18, %s20
      %p2142 = scmp.lt.s32.totalorder %s19, 1
      %s2143 = scalar_select %p2142, %s19, 1
      %p2144 = scmp.lt.s32.totalorder %s2141, 35
      %s2145 = scalar_select %p2144, %s2141, 35
      %s2146 = smul.addr %s2143, 36
      %s2147 = sadd.s32 %s2145, %s2146
      %s2148 = smul.addr %s2147, 8
      %s2149 = scalar_lea.vmem %s2, %s2148
      %p2150 = scmp.lt.s32.totalorder %s19, 1
      %s2151 = scalar_select %p2150, %s19, 1
      %s2152 = smul.addr %s2151, 2
      %s2153 = scalar_lea.vmem %s3, %s2152
      // Predicated region
      $region37: #{inception2d.12} parent=27 // pred_check
        %p2154 = pneg %p94
      $region38: #{inception2d.12} parent=27 // pred_check_branch
        %2156 = sbr.rel (%p2154) target = $region40
      $region39: #{inception2d.12} parent=27 // pred_region
        %s2157 = smul.u32 18, %s20
      $region40: #{inception2d.12} parent=27 // pred_fallthru
        _
      // Predicated region
      $region41: #{inception2d.12} parent=27 // pred_check
        %p2158 = pneg %p120
      $region42: #{inception2d.12} parent=27 // pred_check_branch
        %2160 = sbr.rel (%p2158) target = $region44
      $region43: #{inception2d.12} parent=27 // pred_region
        _
      $region44: #{inception2d.12} parent=27 // pred_fallthru
        _
    $region28: #{inception2d.12} parent=5 // pred_fallthru
      _
    %p2161 = scmp.le.s32.totalorder 2, %s10
    // Predicated region
    $region45: #{inception2d.12} parent=5 // pred_check
      %p2162 = pneg %p2161
    $region46: #{inception2d.12} parent=5 // pred_check_branch
      %2164 = sbr.rel (%p2162) target = $region48
    $region47: #{inception2d.12} parent=5 // pred_region
      %s2165 = ssub.s32 %s10, 2
      // Predicated region
      $region49: #{inception2d.12} parent=47 // pred_check
        %p2166 = pneg %p100
      $region50: #{inception2d.12} parent=47 // pred_check_branch
        %2168 = sbr.rel (%p2166) target = $region52
      $region51: #{inception2d.12} parent=47 // pred_region
        %s2169 = smul.u32 18, %s22
        %p2170 = scmp.lt.s32.totalorder %s21, 1
        %s2171 = scalar_select %p2170, %s21, 1
        %p2172 = scmp.lt.s32.totalorder %s2169, 35
        %s2173 = scalar_select %p2172, %s2169, 35
        %s2174 = smul.addr %s2171, 36
        %s2175 = sadd.s32 %s2173, %s2174
        %s2176 = smul.addr %s2175, 8
        %s2177 = scalar_lea.vmem %s2, %s2176
      $region52: #{inception2d.12} parent=47 // pred_fallthru
        _
      // Predicated region
      $region53: #{inception2d.12} parent=47 // pred_check
        %p2178 = pneg %p126
      $region54: #{inception2d.12} parent=47 // pred_check_branch
        %2180 = sbr.rel (%p2178) target = $region56
      $region55: #{inception2d.12} parent=47 // pred_region
        %p2181 = scmp.lt.s32.totalorder %s21, 1
        %s2182 = scalar_select %p2181, %s21, 1
        %s2183 = smul.addr %s2182, 2
        %s2184 = scalar_lea.vmem %s3, %s2183
      $region56: #{inception2d.12} parent=47 // pred_fallthru
        _
    $region48: #{inception2d.12} parent=5 // pred_fallthru
      _
  $region6: #{inception2d.12} parent=0 // loop_footer
    %s14 = sadd.s32 1, %s10
  $region7: #{inception2d.12} parent=0 // loop_footer_branch
    %9 = sbr.rel target = $region3
  $region8: #{inception2d.12} parent=0 // loop_exit
    _

</llo_original>
